<compile_context>
chip_gen: v5e
topology: v5e:2x2
jax: 0.10.0
libtpu: 0.0.40
codegen_flags: <defaults>
</compile_context>

<pallas_src>
import math

import jax
import jax.numpy as jnp
from jax.experimental import pallas as pl
from jax.experimental.pallas import tpu as pltpu  # noqa: F401  (TPU backend)

# ---------------------------------------------------------------------------
# Model hyper-parameters (small demo sizes consistent with the PyTorch module)
# ---------------------------------------------------------------------------
INPUT_DIM = 16
HIDDEN = 32            # hidden_dim == d_model of the attention block
N_HEADS = 8
D_K = HIDDEN // N_HEADS
N_LAYERS = 2
OUT_DIM = 1
BATCH = 2
SEQ = 8
LN_EPS = 1e-5
BN_EPS = 1e-5

# Row indices inside the packed (VEC_H_ROWS, HIDDEN) per-feature vector slab.
_B_IN, _BN_G, _BN_B, _BN_M, _BN_V = 0, 1, 2, 3, 4
_LN_LSTM = 5                              # 2 rows (gamma, beta) per LSTM layer
_ATTN_BO = _LN_LSTM + 2 * N_LAYERS
_ATTN_LN_G, _ATTN_LN_B = _ATTN_BO + 1, _ATTN_BO + 2
_FUS_B, _FUS_LN_G, _FUS_LN_B = _ATTN_BO + 3, _ATTN_BO + 4, _ATTN_BO + 5
VEC_H_ROWS = ((_FUS_LN_B + 1 + 7) // 8) * 8

# Column offsets inside the packed (B, OUT_PACK) output slab.
_O_P = 0
_O_V = OUT_DIM
_O_D = 2 * OUT_DIM
_O_M = 2 * OUT_DIM + 2
OUT_PACK = max(8, _O_M + OUT_DIM)


# ---------------------------------------------------------------------------
# Kernel
# ---------------------------------------------------------------------------
def _model_kernel(x_ref, w_in_ref, lstm_w_ref, lstm_b_ref, wqkv_ref, bqkv_ref,
                  wo_ref, wf_ref, vec_h_ref, head_w1_ref, head_v1_ref,
                  pv_w2_ref, pv_v2_ref, pv_w3_ref, dir_w2_ref, mag_w2_ref,
                  final_b_ref, o_ref):
    f32 = jnp.float32
    B, S, Din = x_ref.shape
    H = HIDDEN

    vech = vec_h_ref[...]                                   # (VEC_H_ROWS, H)
    vrow = lambda i: vech[i:i + 1]                          # (1, H) row view

    def layer_norm(z, g, b):
        mu = jnp.mean(z, axis=-1, keepdims=True)
        var = jnp.mean((z - mu) ** 2, axis=-1, keepdims=True)
        return (z - mu) * jax.lax.rsqrt(var + LN_EPS) * g + b

    # ---- input projection + BatchNorm1d (eval: running stats) -------------
    x = x_ref[...].astype(f32).reshape(B * S, Din)          # rows ordered (b, t)
    h = jnp.dot(x, w_in_ref[...], preferred_element_type=f32) + vrow(_B_IN)
    bn_scale = vrow(_BN_G) * jax.lax.rsqrt(vrow(_BN_V) + BN_EPS)
    h = (h - vrow(_BN_M)) * bn_scale + vrow(_BN_B)          # (B*S, H)

    # ---- stacked LSTM layers (+ LayerNorm, residual for layer > 0) --------
    lstm_b = lstm_b_ref[...]                                # (L, 4H)
    cur = h
    for layer in range(N_LAYERS):
        lw = lstm_w_ref[layer]                              # (2H, 4H)
        w_ih, w_hh = lw[:H], lw[H:]
        # x-contribution to the gates for every timestep in one 128-lane matmul.
        xg = (jnp.dot(cur, w_ih, preferred_element_type=f32)
              + lstm_b[layer:layer + 1]).reshape(B, S, 4 * H)
        h_t = jnp.zeros((B, H), f32)
        c_t = jnp.zeros((B, H), f32)
        outs = []
        for t in range(S):                                  # unrolled recurrence
            g = xg[:, t, :] + jnp.dot(h_t, w_hh, preferred_element_type=f32)
            i_g = jax.nn.sigmoid(g[:, 0 * H:1 * H])
            f_g = jax.nn.sigmoid(g[:, 1 * H:2 * H])
            c_g = jnp.tanh(g[:, 2 * H:3 * H])
            o_g = jax.nn.sigmoid(g[:, 3 * H:4 * H])
            c_t = f_g * c_t + i_g * c_g
            h_t = o_g * jnp.tanh(c_t)
            outs.append(h_t)
        lstm_out = jnp.stack(outs, axis=1).reshape(B * S, H)
        lstm_out = layer_norm(lstm_out,
                              vrow(_LN_LSTM + 2 * layer),
                              vrow(_LN_LSTM + 2 * layer + 1))
        if layer > 0:
            lstm_out = lstm_out + cur                       # residual
        cur = lstm_out                                      # dropout: eval no-op

    # ---- multi-head attention ---------------------------------------------
    # Fused QKV projection; 1/sqrt(d_k) is pre-folded into the Q weights/bias.
    qkv = jnp.dot(cur, wqkv_ref[...], preferred_element_type=f32) + bqkv_ref[...]

    def heads(z):                                           # (B*S, H) -> (B*NH, S, DK)
        return (z.reshape(B, S, N_HEADS, D_K)
                 .transpose(0, 2, 1, 3)
                 .reshape(B * N_HEADS, S, D_K))

    q = heads(qkv[:, 0 * H:1 * H])
    k = heads(qkv[:, 1 * H:2 * H])
    v = heads(qkv[:, 2 * H:3 * H])

    # Head-batched dot_general: contract d_k, batch over (batch * heads).
    scores = jax.lax.dot_general(q, k, (((2,), (2,)), ((0,), (0,))),
                                 preferred_element_type=f32)      # (B*NH, S, S)
    scores = scores - jnp.max(scores, axis=-1, keepdims=True)
    p = jnp.exp(scores)
    attn = p / jnp.sum(p, axis=-1, keepdims=True)
    ctx = jax.lax.dot_general(attn, v, (((2,), (1,)), ((0,), (0,))),
                              preferred_element_type=f32)         # (B*NH, S, DK)
    ctx = (ctx.reshape(B, N_HEADS, S, D_K)
              .transpose(0, 2, 1, 3)
              .reshape(B * S, H))
    attn_out = jnp.dot(ctx, wo_ref[...], preferred_element_type=f32) + vrow(_ATTN_BO)
    attn_out = layer_norm(cur + attn_out, vrow(_ATTN_LN_G), vrow(_ATTN_LN_B))

    # ---- feature fusion on the last timestep -------------------------------
    lstm_last = cur.reshape(B, S, H)[:, S - 1, :]            # (B, H)
    attn_last = attn_out.reshape(B, S, H)[:, S - 1, :]       # (B, H)
    combined = jnp.concatenate([lstm_last, attn_last], axis=-1)   # (B, 2H)
    feat = jnp.dot(combined, wf_ref[...], preferred_element_type=f32) + vrow(_FUS_B)
    feat = jnp.maximum(layer_norm(feat, vrow(_FUS_LN_G), vrow(_FUS_LN_B)), 0.0)

    # ---- prediction heads ---------------------------------------------------
    head_w1 = head_w1_ref[...]                               # (4, H, H//2)
    head_v1 = head_v1_ref[...]                               # (4, 3, H//2)
    pv_w2, pv_v2, pv_w3 = pv_w2_ref[...], pv_v2_ref[...], pv_w3_ref[...]
    fb = final_b_ref[...]                                    # (1, OUT_PACK)

    def stage1(idx):                                         # Linear + LN + ReLU
        hv = head_v1[idx]
        z = jnp.dot(feat, head_w1[idx], preferred_element_type=f32) + hv[0:1]
        return jnp.maximum(layer_norm(z, hv[1:2], hv[2:3]), 0.0)

    def deep_head(idx):                                      # price / volatility
        hv = pv_v2[idx]
        z = jnp.dot(stage1(idx), pv_w2[idx], preferred_element_type=f32) + hv[0:1]
        z = jnp.maximum(layer_norm(z, hv[1:2], hv[2:3]), 0.0)
        return jnp.dot(z, pv_w3[idx], preferred_element_type=f32)

    price = deep_head(0) + fb[:, _O_P:_O_P + OUT_DIM]
    vol = jnp.abs(deep_head(1) + fb[:, _O_V:_O_V + OUT_DIM])
    direc = (jnp.dot(stage1(2), dir_w2_ref[...], preferred_element_type=f32)
             + fb[:, _O_D:_O_D + 2])
    mag = jnp.abs(jnp.dot(stage1(3), mag_w2_ref[...], preferred_element_type=f32)
                  + fb[:, _O_M:_O_M + OUT_DIM])

    packed = jnp.concatenate([price, vol, direc, mag], axis=-1)   # (B, 3*OUT+2)
    pad = OUT_PACK - packed.shape[-1]
    if pad:
        packed = jnp.concatenate([packed, jnp.zeros((B, pad), f32)], axis=-1)
    o_ref[...] = packed.astype(o_ref.dtype)


# ---------------------------------------------------------------------------
# Wrapper
# ---------------------------------------------------------------------------
def _forward_impl(x, packed):
    B = x.shape[0]
    out = pl.pallas_call(
        _model_kernel,
        out_shape=jax.ShapeDtypeStruct((B, OUT_PACK), jnp.float32),
    )(x, *packed)
    return {
        'price': out[:, _O_P:_O_P + OUT_DIM],
        'volatility': out[:, _O_V:_O_V + OUT_DIM],
        'direction': out[:, _O_D:_O_D + 2],
        'magnitude': out[:, _O_M:_O_M + OUT_DIM],
    }


advanced_stock_forward = jax.jit(_forward_impl)


# ---------------------------------------------------------------------------
# Parameter construction / packing
# ---------------------------------------------------------------------------
def init_params(key):
    H, Din = HIDDEN, INPUT_DIM
    ks = iter(jax.random.split(key, 96))
    nrm = lambda shape, s=0.1: s * jax.random.normal(next(ks), shape, jnp.float32)

    P = {}
    P['w_in_t'] = nrm((Din, H)); P['b_in'] = nrm((H,), 0.05)
    P['bn_g'] = 1.0 + nrm((H,), 0.05); P['bn_b'] = nrm((H,), 0.05)
    P['bn_mean'] = nrm((H,), 0.1)
    P['bn_var'] = 1.0 + jnp.abs(nrm((H,), 0.1))
    P['lstm'] = []
    for _ in range(N_LAYERS):
        P['lstm'].append(dict(
            w_ih_t=nrm((H, 4 * H)), w_hh_t=nrm((H, 4 * H)),
            b_ih=nrm((4 * H,), 0.05), b_hh=nrm((4 * H,), 0.05),
            ln_g=1.0 + nrm((H,), 0.05), ln_b=nrm((H,), 0.05)))
    P['wq_t'] = nrm((H, H)); P['bq'] = nrm((H,), 0.05)
    P['wk_t'] = nrm((H, H)); P['bk'] = nrm((H,), 0.05)
    P['wv_t'] = nrm((H, H)); P['bv'] = nrm((H,), 0.05)
    P['wo_t'] = nrm((H, H)); P['bo'] = nrm((H,), 0.05)
    P['attn_ln_g'] = 1.0 + nrm((H,), 0.05); P['attn_ln_b'] = nrm((H,), 0.05)
    P['wf_t'] = nrm((2 * H, H)); P['fus_b'] = nrm((H,), 0.05)
    P['fus_ln_g'] = 1.0 + nrm((H,), 0.05); P['fus_ln_b'] = nrm((H,), 0.05)

    def deep_head():
        return dict(w1_t=nrm((H, H // 2)), b1=nrm((H // 2,), 0.05),
                    ln1_g=1.0 + nrm((H // 2,), 0.05), ln1_b=nrm((H // 2,), 0.05),
                    w2_t=nrm((H // 2, H // 4)), b2=nrm((H // 4,), 0.05),
                    ln2_g=1.0 + nrm((H // 4,), 0.05), ln2_b=nrm((H // 4,), 0.05),
                    w3_t=nrm((H // 4, OUT_DIM)), b3=nrm((OUT_DIM,), 0.05))

    def shallow_head(nout):
        return dict(w1_t=nrm((H, H // 2)), b1=nrm((H // 2,), 0.05),
                    ln1_g=1.0 + nrm((H // 2,), 0.05), ln1_b=nrm((H // 2,), 0.05),
                    w2_t=nrm((H // 2, nout)), b2=nrm((nout,), 0.05))

    P['price'] = deep_head(); P['vol'] = deep_head()
    P['dir'] = shallow_head(2); P['mag'] = shallow_head(OUT_DIM)
    return P


def pack_params(P):
    H = HIDDEN
    scale = 1.0 / math.sqrt(D_K)
    f32 = jnp.float32

    wqkv = jnp.concatenate([P['wq_t'] * scale, P['wk_t'], P['wv_t']], axis=1)
    bqkv = jnp.concatenate([P['bq'] * scale, P['bk'], P['bv']]).reshape(1, 3 * H)

    lstm_w = jnp.stack([jnp.concatenate([P['lstm'][l]['w_ih_t'],
                                         P['lstm'][l]['w_hh_t']], axis=0)
                        for l in range(N_LAYERS)])                 # (L, 2H, 4H)
    lstm_b = jnp.stack([P['lstm'][l]['b_ih'] + P['lstm'][l]['b_hh']
                        for l in range(N_LAYERS)])                  # (L, 4H)

    rows = [P['b_in'], P['bn_g'], P['bn_b'], P['bn_mean'], P['bn_var']]
    for l in range(N_LAYERS):
        rows += [P['lstm'][l]['ln_g'], P['lstm'][l]['ln_b']]
    rows += [P['bo'], P['attn_ln_g'], P['attn_ln_b'],
             P['fus_b'], P['fus_ln_g'], P['fus_ln_b']]
    while len(rows) < VEC_H_ROWS:
        rows.append(jnp.zeros((H,), f32))
    vec_h = jnp.stack(rows)                                         # (16, H)

    order = ('price', 'vol', 'dir', 'mag')
    head_w1 = jnp.stack([P[h]['w1_t'] for h in order])              # (4, H, H//2)
    head_v1 = jnp.stack([jnp.stack([P[h]['b1'], P[h]['ln1_g'], P[h]['ln1_b']])
                         for h in order])                           # (4, 3, H//2)
    pv_w2 = jnp.stack([P['price']['w2_t'], P['vol']['w2_t']])       # (2, H//2, H//4)
    pv_v2 = jnp.stack([jnp.stack([P[h]['b2'], P[h]['ln2_g'], P[h]['ln2_b']])
                       for h in ('price', 'vol')])                  # (2, 3, H//4)
    pv_w3 = jnp.stack([P['price']['w3_t'], P['vol']['w3_t']])       # (2, H//4, OUT)

    final_b = jnp.concatenate([
        P['price']['b3'], P['vol']['b3'], P['dir']['b2'], P['mag']['b2'],
        jnp.zeros((OUT_PACK - (3 * OUT_DIM + 2),), f32)]).reshape(1, OUT_PACK)

    return (P['w_in_t'], lstm_w, lstm_b, wqkv, bqkv, P['wo_t'], P['wf_t'],
            vec_h, head_w1, head_v1, pv_w2, pv_v2, pv_w3,
            P['dir']['w2_t'], P['mag']['w2_t'], final_b)


# ---------------------------------------------------------------------------
# Pure-JAX reference (mirrors the PyTorch forward, eval mode)
# ---------------------------------------------------------------------------
def _layer_norm_ref(z, g, b):
    mu = jnp.mean(z, axis=-1, keepdims=True)
    var = jnp.mean((z - mu) ** 2, axis=-1, keepdims=True)
    return (z - mu) / jnp.sqrt(var + LN_EPS) * g + b


def reference_forward(x, P):
    HP = jax.lax.Precision.HIGHEST
    dot = lambda a, b: jnp.dot(a, b, precision=HP)
    B, S, _ = x.shape
    H = HIDDEN

    h = dot(x, P['w_in_t']) + P['b_in']
    h = (h - P['bn_mean']) / jnp.sqrt(P['bn_var'] + BN_EPS) * P['bn_g'] + P['bn_b']

    cur = h
    for l in range(N_LAYERS):
        lp = P['lstm'][l]
        bias = lp['b_ih'] + lp['b_hh']
        h_t = jnp.zeros((B, H), jnp.float32)
        c_t = jnp.zeros((B, H), jnp.float32)
        outs = []
        for t in range(S):
            g = dot(cur[:, t, :], lp['w_ih_t']) + dot(h_t, lp['w_hh_t']) + bias
            i = jax.nn.sigmoid(g[:, :H]); f = jax.nn.sigmoid(g[:, H:2 * H])
            gg = jnp.tanh(g[:, 2 * H:3 * H]); o = jax.nn.sigmoid(g[:, 3 * H:])
            c_t = f * c_t + i * gg
            h_t = o * jnp.tanh(c_t)
            outs.append(h_t)
        lo = _layer_norm_ref(jnp.stack(outs, axis=1), lp['ln_g'], lp['ln_b'])
        if l > 0:
            lo = lo + cur
        cur = lo

    q = (dot(cur, P['wq_t']) + P['bq']).reshape(B, S, N_HEADS, D_K).transpose(0, 2, 1, 3)
    k = (dot(cur, P['wk_t']) + P['bk']).reshape(B, S, N_HEADS, D_K).transpose(0, 2, 1, 3)
    v = (dot(cur, P['wv_t']) + P['bv']).reshape(B, S, N_HEADS, D_K).transpose(0, 2, 1, 3)
    scores = jnp.einsum('bhqd,bhkd->bhqk', q, k, precision=HP) / math.sqrt(D_K)
    attn = jax.nn.softmax(scores, axis=-1)
    ctx = jnp.einsum('bhqk,bhkd->bhqd', attn, v, precision=HP)
    ctx = ctx.transpose(0, 2, 1, 3).reshape(B, S, H)
    attn_out = dot(ctx, P['wo_t']) + P['bo']
    attn_out = _layer_norm_ref(cur + attn_out, P['attn_ln_g'], P['attn_ln_b'])

    combined = jnp.concatenate([cur[:, -1, :], attn_out[:, -1, :]], axis=-1)
    feat = jax.nn.relu(_layer_norm_ref(dot(combined, P['wf_t']) + P['fus_b'],
                                       P['fus_ln_g'], P['fus_ln_b']))

    def stage1(hp):
        z = dot(feat, hp['w1_t']) + hp['b1']
        return jax.nn.relu(_layer_norm_ref(z, hp['ln1_g'], hp['ln1_b']))

    def deep(hp):
        z = stage1(hp)
        z = jax.nn.relu(_layer_norm_ref(dot(z, hp['w2_t']) + hp['b2'],
                                        hp['ln2_g'], hp['ln2_b']))
        return dot(z, hp['w3_t']) + hp['b3']

    return {
        'price': deep(P['price']),
        'volatility': jnp.abs(deep(P['vol'])),
        'direction': dot(stage1(P['dir']), P['dir']['w2_t']) + P['dir']['b2'],
        'magnitude': jnp.abs(dot(stage1(P['mag']), P['mag']['w2_t']) + P['mag']['b2']),
    }


# ---------------------------------------------------------------------------
if __name__ == "__main__":
    key = jax.random.PRNGKey(0)
    kx, kp = jax.random.split(key)

    x = jax.random.normal(kx, (BATCH, SEQ, INPUT_DIM), jnp.float32)
    P = init_params(kp)
    packed = pack_params(P)

    out = advanced_stock_forward(x, packed)
    out = jax.block_until_ready(out)

    ref = reference_forward(x, P)
    # Tolerance absorbs f32-matmul pass differences between the Mosaic kernel
    # and the XLA reference; structural bugs would be orders of magnitude larger.
    for name in ('price', 'volatility', 'direction', 'magnitude'):
        assert out[name].shape == ref[name].shape, f"shape mismatch in {name}"
        assert jnp.allclose(out[name], ref[name], rtol=2e-2, atol=2e-2), \
            f"value mismatch vs reference in {name}"

    print("KERNEL_OK")
</pallas_src>

<mosaic_0001>
module attributes {stable_mosaic.version = 11 : i64} {
  func.func @_model_kernel(%arg0: memref<2x8x16xf32, #tpu.memory_space<vmem>>, %arg1: memref<16x32xf32, #tpu.memory_space<vmem>>, %arg2: memref<2x64x128xf32, #tpu.memory_space<vmem>>, %arg3: memref<2x128xf32, #tpu.memory_space<vmem>>, %arg4: memref<32x96xf32, #tpu.memory_space<vmem>>, %arg5: memref<1x96xf32, #tpu.memory_space<vmem>>, %arg6: memref<32x32xf32, #tpu.memory_space<vmem>>, %arg7: memref<64x32xf32, #tpu.memory_space<vmem>>, %arg8: memref<16x32xf32, #tpu.memory_space<vmem>>, %arg9: memref<4x32x16xf32, #tpu.memory_space<vmem>>, %arg10: memref<4x3x16xf32, #tpu.memory_space<vmem>>, %arg11: memref<2x16x8xf32, #tpu.memory_space<vmem>>, %arg12: memref<2x3x8xf32, #tpu.memory_space<vmem>>, %arg13: memref<2x8x1xf32, #tpu.memory_space<vmem>>, %arg14: memref<16x2xf32, #tpu.memory_space<vmem>>, %arg15: memref<16x1xf32, #tpu.memory_space<vmem>>, %arg16: memref<1x8xf32, #tpu.memory_space<vmem>>, %arg17: memref<2x8xf32, #tpu.memory_space<vmem>>) attributes {dimension_semantics = [], scalar_prefetch = 0 : i64, scratch_operands = 0 : i64, tpu.core_type = #tpu.core_type<tc>} {
    %c0 = arith.constant 0 : index
    %c0_0 = arith.constant 0 : index
    %0 = vector.load %arg8[%c0, %c0_0] : memref<16x32xf32, #tpu.memory_space<vmem>>, vector<16x32xf32>
    %c0_1 = arith.constant 0 : index
    %c0_2 = arith.constant 0 : index
    %c0_3 = arith.constant 0 : index
    %1 = vector.load %arg0[%c0_1, %c0_2, %c0_3] : memref<2x8x16xf32, #tpu.memory_space<vmem>>, vector<2x8x16xf32>
    %2 = vector.shape_cast %1 : vector<2x8x16xf32> to vector<16x16xf32>
    %c0_4 = arith.constant 0 : index
    %c0_5 = arith.constant 0 : index
    %3 = vector.load %arg1[%c0_4, %c0_5] : memref<16x32xf32, #tpu.memory_space<vmem>>, vector<16x32xf32>
    %cst = arith.constant dense<0.000000e+00> : vector<16x32xf32>
    %4 = tpu.matmul %2, %3, %cst {dimension_numbers = #tpu.dot_dimension_numbers<[1], [0], [0], [1], [0, 0, 1, 1], [], []>} : vector<16x16xf32>, vector<16x32xf32>, vector<16x32xf32> -> vector<16x32xf32>
    %5 = vector.extract_strided_slice %0 {offsets = [0, 0], sizes = [1, 32], strides = [1, 1]} : vector<16x32xf32> to vector<1x32xf32>
    %6 = vector.broadcast %5 : vector<1x32xf32> to vector<16x32xf32>
    %7 = arith.addf %4, %6 : vector<16x32xf32>
    %8 = vector.extract_strided_slice %0 {offsets = [1, 0], sizes = [1, 32], strides = [1, 1]} : vector<16x32xf32> to vector<1x32xf32>
    %9 = vector.extract_strided_slice %0 {offsets = [4, 0], sizes = [1, 32], strides = [1, 1]} : vector<16x32xf32> to vector<1x32xf32>
    %cst_6 = arith.constant 9.99999974E-6 : f32
    %10 = vector.broadcast %cst_6 : f32 to vector<1x32xf32>
    %11 = arith.addf %9, %10 : vector<1x32xf32>
    %12 = math.rsqrt %11 : vector<1x32xf32>
    %13 = arith.mulf %8, %12 : vector<1x32xf32>
    %14 = vector.extract_strided_slice %0 {offsets = [3, 0], sizes = [1, 32], strides = [1, 1]} : vector<16x32xf32> to vector<1x32xf32>
    %15 = vector.broadcast %14 : vector<1x32xf32> to vector<16x32xf32>
    %16 = arith.subf %7, %15 : vector<16x32xf32>
    %17 = vector.broadcast %13 : vector<1x32xf32> to vector<16x32xf32>
    %18 = arith.mulf %16, %17 : vector<16x32xf32>
    %19 = vector.extract_strided_slice %0 {offsets = [2, 0], sizes = [1, 32], strides = [1, 1]} : vector<16x32xf32> to vector<1x32xf32>
    %20 = vector.broadcast %19 : vector<1x32xf32> to vector<16x32xf32>
    %21 = arith.addf %18, %20 : vector<16x32xf32>
    %c0_7 = arith.constant 0 : index
    %c0_8 = arith.constant 0 : index
    %22 = vector.load %arg3[%c0_7, %c0_8] : memref<2x128xf32, #tpu.memory_space<vmem>>, vector<2x128xf32>
    %c0_9 = arith.constant 0 : index
    %c0_10 = arith.constant 0 : index
    %c0_11 = arith.constant 0 : index
    %23 = vector.load %arg2[%c0_9, %c0_10, %c0_11] : memref<2x64x128xf32, #tpu.memory_space<vmem>>, vector<1x64x128xf32>
    %24 = vector.shape_cast %23 : vector<1x64x128xf32> to vector<64x128xf32>
    %25 = vector.extract_strided_slice %24 {offsets = [0, 0], sizes = [32, 128], strides = [1, 1]} : vector<64x128xf32> to vector<32x128xf32>
    %26 = vector.extract_strided_slice %24 {offsets = [32, 0], sizes = [32, 128], strides = [1, 1]} : vector<64x128xf32> to vector<32x128xf32>
    %cst_12 = arith.constant dense<0.000000e+00> : vector<16x128xf32>
    %27 = tpu.matmul %21, %25, %cst_12 {dimension_numbers = #tpu.dot_dimension_numbers<[1], [0], [0], [1], [0, 0, 1, 1], [], []>} : vector<16x32xf32>, vector<32x128xf32>, vector<16x128xf32> -> vector<16x128xf32>
    %28 = vector.extract_strided_slice %22 {offsets = [0, 0], sizes = [1, 128], strides = [1, 1]} : vector<2x128xf32> to vector<1x128xf32>
    %29 = vector.broadcast %28 : vector<1x128xf32> to vector<16x128xf32>
    %30 = arith.addf %27, %29 : vector<16x128xf32>
    %31 = vector.shape_cast %30 : vector<16x128xf32> to vector<2x8x128xf32>
    %cst_13 = arith.constant 0.000000e+00 : f32
    %32 = vector.broadcast %cst_13 : f32 to vector<2x32xf32>
    %cst_14 = arith.constant 0.000000e+00 : f32
    %33 = vector.broadcast %cst_14 : f32 to vector<2x32xf32>
    %34 = vector.extract_strided_slice %31 {offsets = [0, 0, 0], sizes = [2, 1, 128], strides = [1, 1, 1]} : vector<2x8x128xf32> to vector<2x1x128xf32>
    %35 = vector.shape_cast %34 : vector<2x1x128xf32> to vector<2x128xf32>
    %cst_15 = arith.constant dense<0.000000e+00> : vector<2x128xf32>
    %36 = tpu.matmul %32, %26, %cst_15 {dimension_numbers = #tpu.dot_dimension_numbers<[1], [0], [0], [1], [0, 0, 1, 1], [], []>} : vector<2x32xf32>, vector<32x128xf32>, vector<2x128xf32> -> vector<2x128xf32>
    %37 = arith.addf %35, %36 : vector<2x128xf32>
    %38 = vector.extract_strided_slice %37 {offsets = [0, 0], sizes = [2, 32], strides = [1, 1]} : vector<2x128xf32> to vector<2x32xf32>
    %39 = arith.negf %38 : vector<2x32xf32>
    %40 = math.exp %39 : vector<2x32xf32>
    %cst_16 = arith.constant 1.000000e+00 : f32
    %41 = vector.broadcast %cst_16 : f32 to vector<2x32xf32>
    %42 = arith.addf %41, %40 : vector<2x32xf32>
    %43 = arith.divf %41, %42 : vector<2x32xf32>
    %44 = vector.extract_strided_slice %37 {offsets = [0, 32], sizes = [2, 32], strides = [1, 1]} : vector<2x128xf32> to vector<2x32xf32>
    %45 = arith.negf %44 : vector<2x32xf32>
    %46 = math.exp %45 : vector<2x32xf32>
    %cst_17 = arith.constant 1.000000e+00 : f32
    %47 = vector.broadcast %cst_17 : f32 to vector<2x32xf32>
    %48 = arith.addf %47, %46 : vector<2x32xf32>
    %49 = arith.divf %47, %48 : vector<2x32xf32>
    %50 = vector.extract_strided_slice %37 {offsets = [0, 64], sizes = [2, 32], strides = [1, 1]} : vector<2x128xf32> to vector<2x32xf32>
    %51 = math.tanh %50 : vector<2x32xf32>
    %52 = vector.extract_strided_slice %37 {offsets = [0, 96], sizes = [2, 32], strides = [1, 1]} : vector<2x128xf32> to vector<2x32xf32>
    %53 = arith.negf %52 : vector<2x32xf32>
    %54 = math.exp %53 : vector<2x32xf32>
    %cst_18 = arith.constant 1.000000e+00 : f32
    %55 = vector.broadcast %cst_18 : f32 to vector<2x32xf32>
    %56 = arith.addf %55, %54 : vector<2x32xf32>
    %57 = arith.divf %55, %56 : vector<2x32xf32>
    %58 = arith.mulf %49, %33 : vector<2x32xf32>
    %59 = arith.mulf %43, %51 : vector<2x32xf32>
    %60 = arith.addf %58, %59 : vector<2x32xf32>
    %61 = math.tanh %60 : vector<2x32xf32>
    %62 = arith.mulf %57, %61 : vector<2x32xf32>
    %63 = vector.extract_strided_slice %31 {offsets = [0, 1, 0], sizes = [2, 1, 128], strides = [1, 1, 1]} : vector<2x8x128xf32> to vector<2x1x128xf32>
    %64 = vector.shape_cast %63 : vector<2x1x128xf32> to vector<2x128xf32>
    %cst_19 = arith.constant dense<0.000000e+00> : vector<2x128xf32>
    %65 = tpu.matmul %62, %26, %cst_19 {dimension_numbers = #tpu.dot_dimension_numbers<[1], [0], [0], [1], [0, 0, 1, 1], [], []>} : vector<2x32xf32>, vector<32x128xf32>, vector<2x128xf32> -> vector<2x128xf32>
    %66 = arith.addf %64, %65 : vector<2x128xf32>
    %67 = vector.extract_strided_slice %66 {offsets = [0, 0], sizes = [2, 32], strides = [1, 1]} : vector<2x128xf32> to vector<2x32xf32>
    %68 = arith.negf %67 : vector<2x32xf32>
    %69 = math.exp %68 : vector<2x32xf32>
    %cst_20 = arith.constant 1.000000e+00 : f32
    %70 = vector.broadcast %cst_20 : f32 to vector<2x32xf32>
    %71 = arith.addf %70, %69 : vector<2x32xf32>
    %72 = arith.divf %70, %71 : vector<2x32xf32>
    %73 = vector.extract_strided_slice %66 {offsets = [0, 32], sizes = [2, 32], strides = [1, 1]} : vector<2x128xf32> to vector<2x32xf32>
    %74 = arith.negf %73 : vector<2x32xf32>
    %75 = math.exp %74 : vector<2x32xf32>
    %cst_21 = arith.constant 1.000000e+00 : f32
    %76 = vector.broadcast %cst_21 : f32 to vector<2x32xf32>
    %77 = arith.addf %76, %75 : vector<2x32xf32>
    %78 = arith.divf %76, %77 : vector<2x32xf32>
    %79 = vector.extract_strided_slice %66 {offsets = [0, 64], sizes = [2, 32], strides = [1, 1]} : vector<2x128xf32> to vector<2x32xf32>
    %80 = math.tanh %79 : vector<2x32xf32>
    %81 = vector.extract_strided_slice %66 {offsets = [0, 96], sizes = [2, 32], strides = [1, 1]} : vector<2x128xf32> to vector<2x32xf32>
    %82 = arith.negf %81 : vector<2x32xf32>
    %83 = math.exp %82 : vector<2x32xf32>
    %cst_22 = arith.constant 1.000000e+00 : f32
    %84 = vector.broadcast %cst_22 : f32 to vector<2x32xf32>
    %85 = arith.addf %84, %83 : vector<2x32xf32>
    %86 = arith.divf %84, %85 : vector<2x32xf32>
    %87 = arith.mulf %78, %60 : vector<2x32xf32>
    %88 = arith.mulf %72, %80 : vector<2x32xf32>
    %89 = arith.addf %87, %88 : vector<2x32xf32>
    %90 = math.tanh %89 : vector<2x32xf32>
    %91 = arith.mulf %86, %90 : vector<2x32xf32>
    %92 = vector.extract_strided_slice %31 {offsets = [0, 2, 0], sizes = [2, 1, 128], strides = [1, 1, 1]} : vector<2x8x128xf32> to vector<2x1x128xf32>
    %93 = vector.shape_cast %92 : vector<2x1x128xf32> to vector<2x128xf32>
    %cst_23 = arith.constant dense<0.000000e+00> : vector<2x128xf32>
    %94 = tpu.matmul %91, %26, %cst_23 {dimension_numbers = #tpu.dot_dimension_numbers<[1], [0], [0], [1], [0, 0, 1, 1], [], []>} : vector<2x32xf32>, vector<32x128xf32>, vector<2x128xf32> -> vector<2x128xf32>
    %95 = arith.addf %93, %94 : vector<2x128xf32>
    %96 = vector.extract_strided_slice %95 {offsets = [0, 0], sizes = [2, 32], strides = [1, 1]} : vector<2x128xf32> to vector<2x32xf32>
    %97 = arith.negf %96 : vector<2x32xf32>
    %98 = math.exp %97 : vector<2x32xf32>
    %cst_24 = arith.constant 1.000000e+00 : f32
    %99 = vector.broadcast %cst_24 : f32 to vector<2x32xf32>
    %100 = arith.addf %99, %98 : vector<2x32xf32>
    %101 = arith.divf %99, %100 : vector<2x32xf32>
    %102 = vector.extract_strided_slice %95 {offsets = [0, 32], sizes = [2, 32], strides = [1, 1]} : vector<2x128xf32> to vector<2x32xf32>
    %103 = arith.negf %102 : vector<2x32xf32>
    %104 = math.exp %103 : vector<2x32xf32>
    %cst_25 = arith.constant 1.000000e+00 : f32
    %105 = vector.broadcast %cst_25 : f32 to vector<2x32xf32>
    %106 = arith.addf %105, %104 : vector<2x32xf32>
    %107 = arith.divf %105, %106 : vector<2x32xf32>
    %108 = vector.extract_strided_slice %95 {offsets = [0, 64], sizes = [2, 32], strides = [1, 1]} : vector<2x128xf32> to vector<2x32xf32>
    %109 = math.tanh %108 : vector<2x32xf32>
    %110 = vector.extract_strided_slice %95 {offsets = [0, 96], sizes = [2, 32], strides = [1, 1]} : vector<2x128xf32> to vector<2x32xf32>
    %111 = arith.negf %110 : vector<2x32xf32>
    %112 = math.exp %111 : vector<2x32xf32>
    %cst_26 = arith.constant 1.000000e+00 : f32
    %113 = vector.broadcast %cst_26 : f32 to vector<2x32xf32>
    %114 = arith.addf %113, %112 : vector<2x32xf32>
    %115 = arith.divf %113, %114 : vector<2x32xf32>
    %116 = arith.mulf %107, %89 : vector<2x32xf32>
    %117 = arith.mulf %101, %109 : vector<2x32xf32>
    %118 = arith.addf %116, %117 : vector<2x32xf32>
    %119 = math.tanh %118 : vector<2x32xf32>
    %120 = arith.mulf %115, %119 : vector<2x32xf32>
    %121 = vector.extract_strided_slice %31 {offsets = [0, 3, 0], sizes = [2, 1, 128], strides = [1, 1, 1]} : vector<2x8x128xf32> to vector<2x1x128xf32>
    %122 = vector.shape_cast %121 : vector<2x1x128xf32> to vector<2x128xf32>
    %cst_27 = arith.constant dense<0.000000e+00> : vector<2x128xf32>
    %123 = tpu.matmul %120, %26, %cst_27 {dimension_numbers = #tpu.dot_dimension_numbers<[1], [0], [0], [1], [0, 0, 1, 1], [], []>} : vector<2x32xf32>, vector<32x128xf32>, vector<2x128xf32> -> vector<2x128xf32>
    %124 = arith.addf %122, %123 : vector<2x128xf32>
    %125 = vector.extract_strided_slice %124 {offsets = [0, 0], sizes = [2, 32], strides = [1, 1]} : vector<2x128xf32> to vector<2x32xf32>
    %126 = arith.negf %125 : vector<2x32xf32>
    %127 = math.exp %126 : vector<2x32xf32>
    %cst_28 = arith.constant 1.000000e+00 : f32
    %128 = vector.broadcast %cst_28 : f32 to vector<2x32xf32>
    %129 = arith.addf %128, %127 : vector<2x32xf32>
    %130 = arith.divf %128, %129 : vector<2x32xf32>
    %131 = vector.extract_strided_slice %124 {offsets = [0, 32], sizes = [2, 32], strides = [1, 1]} : vector<2x128xf32> to vector<2x32xf32>
    %132 = arith.negf %131 : vector<2x32xf32>
    %133 = math.exp %132 : vector<2x32xf32>
    %cst_29 = arith.constant 1.000000e+00 : f32
    %134 = vector.broadcast %cst_29 : f32 to vector<2x32xf32>
    %135 = arith.addf %134, %133 : vector<2x32xf32>
    %136 = arith.divf %134, %135 : vector<2x32xf32>
    %137 = vector.extract_strided_slice %124 {offsets = [0, 64], sizes = [2, 32], strides = [1, 1]} : vector<2x128xf32> to vector<2x32xf32>
    %138 = math.tanh %137 : vector<2x32xf32>
    %139 = vector.extract_strided_slice %124 {offsets = [0, 96], sizes = [2, 32], strides = [1, 1]} : vector<2x128xf32> to vector<2x32xf32>
    %140 = arith.negf %139 : vector<2x32xf32>
    %141 = math.exp %140 : vector<2x32xf32>
    %cst_30 = arith.constant 1.000000e+00 : f32
    %142 = vector.broadcast %cst_30 : f32 to vector<2x32xf32>
    %143 = arith.addf %142, %141 : vector<2x32xf32>
    %144 = arith.divf %142, %143 : vector<2x32xf32>
    %145 = arith.mulf %136, %118 : vector<2x32xf32>
    %146 = arith.mulf %130, %138 : vector<2x32xf32>
    %147 = arith.addf %145, %146 : vector<2x32xf32>
    %148 = math.tanh %147 : vector<2x32xf32>
    %149 = arith.mulf %144, %148 : vector<2x32xf32>
    %150 = vector.extract_strided_slice %31 {offsets = [0, 4, 0], sizes = [2, 1, 128], strides = [1, 1, 1]} : vector<2x8x128xf32> to vector<2x1x128xf32>
    %151 = vector.shape_cast %150 : vector<2x1x128xf32> to vector<2x128xf32>
    %cst_31 = arith.constant dense<0.000000e+00> : vector<2x128xf32>
    %152 = tpu.matmul %149, %26, %cst_31 {dimension_numbers = #tpu.dot_dimension_numbers<[1], [0], [0], [1], [0, 0, 1, 1], [], []>} : vector<2x32xf32>, vector<32x128xf32>, vector<2x128xf32> -> vector<2x128xf32>
    %153 = arith.addf %151, %152 : vector<2x128xf32>
    %154 = vector.extract_strided_slice %153 {offsets = [0, 0], sizes = [2, 32], strides = [1, 1]} : vector<2x128xf32> to vector<2x32xf32>
    %155 = arith.negf %154 : vector<2x32xf32>
    %156 = math.exp %155 : vector<2x32xf32>
    %cst_32 = arith.constant 1.000000e+00 : f32
    %157 = vector.broadcast %cst_32 : f32 to vector<2x32xf32>
    %158 = arith.addf %157, %156 : vector<2x32xf32>
    %159 = arith.divf %157, %158 : vector<2x32xf32>
    %160 = vector.extract_strided_slice %153 {offsets = [0, 32], sizes = [2, 32], strides = [1, 1]} : vector<2x128xf32> to vector<2x32xf32>
    %161 = arith.negf %160 : vector<2x32xf32>
    %162 = math.exp %161 : vector<2x32xf32>
    %cst_33 = arith.constant 1.000000e+00 : f32
    %163 = vector.broadcast %cst_33 : f32 to vector<2x32xf32>
    %164 = arith.addf %163, %162 : vector<2x32xf32>
    %165 = arith.divf %163, %164 : vector<2x32xf32>
    %166 = vector.extract_strided_slice %153 {offsets = [0, 64], sizes = [2, 32], strides = [1, 1]} : vector<2x128xf32> to vector<2x32xf32>
    %167 = math.tanh %166 : vector<2x32xf32>
    %168 = vector.extract_strided_slice %153 {offsets = [0, 96], sizes = [2, 32], strides = [1, 1]} : vector<2x128xf32> to vector<2x32xf32>
    %169 = arith.negf %168 : vector<2x32xf32>
    %170 = math.exp %169 : vector<2x32xf32>
    %cst_34 = arith.constant 1.000000e+00 : f32
    %171 = vector.broadcast %cst_34 : f32 to vector<2x32xf32>
    %172 = arith.addf %171, %170 : vector<2x32xf32>
    %173 = arith.divf %171, %172 : vector<2x32xf32>
    %174 = arith.mulf %165, %147 : vector<2x32xf32>
    %175 = arith.mulf %159, %167 : vector<2x32xf32>
    %176 = arith.addf %174, %175 : vector<2x32xf32>
    %177 = math.tanh %176 : vector<2x32xf32>
    %178 = arith.mulf %173, %177 : vector<2x32xf32>
    %179 = vector.extract_strided_slice %31 {offsets = [0, 5, 0], sizes = [2, 1, 128], strides = [1, 1, 1]} : vector<2x8x128xf32> to vector<2x1x128xf32>
    %180 = vector.shape_cast %179 : vector<2x1x128xf32> to vector<2x128xf32>
    %cst_35 = arith.constant dense<0.000000e+00> : vector<2x128xf32>
    %181 = tpu.matmul %178, %26, %cst_35 {dimension_numbers = #tpu.dot_dimension_numbers<[1], [0], [0], [1], [0, 0, 1, 1], [], []>} : vector<2x32xf32>, vector<32x128xf32>, vector<2x128xf32> -> vector<2x128xf32>
    %182 = arith.addf %180, %181 : vector<2x128xf32>
    %183 = vector.extract_strided_slice %182 {offsets = [0, 0], sizes = [2, 32], strides = [1, 1]} : vector<2x128xf32> to vector<2x32xf32>
    %184 = arith.negf %183 : vector<2x32xf32>
    %185 = math.exp %184 : vector<2x32xf32>
    %cst_36 = arith.constant 1.000000e+00 : f32
    %186 = vector.broadcast %cst_36 : f32 to vector<2x32xf32>
    %187 = arith.addf %186, %185 : vector<2x32xf32>
    %188 = arith.divf %186, %187 : vector<2x32xf32>
    %189 = vector.extract_strided_slice %182 {offsets = [0, 32], sizes = [2, 32], strides = [1, 1]} : vector<2x128xf32> to vector<2x32xf32>
    %190 = arith.negf %189 : vector<2x32xf32>
    %191 = math.exp %190 : vector<2x32xf32>
    %cst_37 = arith.constant 1.000000e+00 : f32
    %192 = vector.broadcast %cst_37 : f32 to vector<2x32xf32>
    %193 = arith.addf %192, %191 : vector<2x32xf32>
    %194 = arith.divf %192, %193 : vector<2x32xf32>
    %195 = vector.extract_strided_slice %182 {offsets = [0, 64], sizes = [2, 32], strides = [1, 1]} : vector<2x128xf32> to vector<2x32xf32>
    %196 = math.tanh %195 : vector<2x32xf32>
    %197 = vector.extract_strided_slice %182 {offsets = [0, 96], sizes = [2, 32], strides = [1, 1]} : vector<2x128xf32> to vector<2x32xf32>
    %198 = arith.negf %197 : vector<2x32xf32>
    %199 = math.exp %198 : vector<2x32xf32>
    %cst_38 = arith.constant 1.000000e+00 : f32
    %200 = vector.broadcast %cst_38 : f32 to vector<2x32xf32>
    %201 = arith.addf %200, %199 : vector<2x32xf32>
    %202 = arith.divf %200, %201 : vector<2x32xf32>
    %203 = arith.mulf %194, %176 : vector<2x32xf32>
    %204 = arith.mulf %188, %196 : vector<2x32xf32>
    %205 = arith.addf %203, %204 : vector<2x32xf32>
    %206 = math.tanh %205 : vector<2x32xf32>
    %207 = arith.mulf %202, %206 : vector<2x32xf32>
    %208 = vector.extract_strided_slice %31 {offsets = [0, 6, 0], sizes = [2, 1, 128], strides = [1, 1, 1]} : vector<2x8x128xf32> to vector<2x1x128xf32>
    %209 = vector.shape_cast %208 : vector<2x1x128xf32> to vector<2x128xf32>
    %cst_39 = arith.constant dense<0.000000e+00> : vector<2x128xf32>
    %210 = tpu.matmul %207, %26, %cst_39 {dimension_numbers = #tpu.dot_dimension_numbers<[1], [0], [0], [1], [0, 0, 1, 1], [], []>} : vector<2x32xf32>, vector<32x128xf32>, vector<2x128xf32> -> vector<2x128xf32>
    %211 = arith.addf %209, %210 : vector<2x128xf32>
    %212 = vector.extract_strided_slice %211 {offsets = [0, 0], sizes = [2, 32], strides = [1, 1]} : vector<2x128xf32> to vector<2x32xf32>
    %213 = arith.negf %212 : vector<2x32xf32>
    %214 = math.exp %213 : vector<2x32xf32>
    %cst_40 = arith.constant 1.000000e+00 : f32
    %215 = vector.broadcast %cst_40 : f32 to vector<2x32xf32>
    %216 = arith.addf %215, %214 : vector<2x32xf32>
    %217 = arith.divf %215, %216 : vector<2x32xf32>
    %218 = vector.extract_strided_slice %211 {offsets = [0, 32], sizes = [2, 32], strides = [1, 1]} : vector<2x128xf32> to vector<2x32xf32>
    %219 = arith.negf %218 : vector<2x32xf32>
    %220 = math.exp %219 : vector<2x32xf32>
    %cst_41 = arith.constant 1.000000e+00 : f32
    %221 = vector.broadcast %cst_41 : f32 to vector<2x32xf32>
    %222 = arith.addf %221, %220 : vector<2x32xf32>
    %223 = arith.divf %221, %222 : vector<2x32xf32>
    %224 = vector.extract_strided_slice %211 {offsets = [0, 64], sizes = [2, 32], strides = [1, 1]} : vector<2x128xf32> to vector<2x32xf32>
    %225 = math.tanh %224 : vector<2x32xf32>
    %226 = vector.extract_strided_slice %211 {offsets = [0, 96], sizes = [2, 32], strides = [1, 1]} : vector<2x128xf32> to vector<2x32xf32>
    %227 = arith.negf %226 : vector<2x32xf32>
    %228 = math.exp %227 : vector<2x32xf32>
    %cst_42 = arith.constant 1.000000e+00 : f32
    %229 = vector.broadcast %cst_42 : f32 to vector<2x32xf32>
    %230 = arith.addf %229, %228 : vector<2x32xf32>
    %231 = arith.divf %229, %230 : vector<2x32xf32>
    %232 = arith.mulf %223, %205 : vector<2x32xf32>
    %233 = arith.mulf %217, %225 : vector<2x32xf32>
    %234 = arith.addf %232, %233 : vector<2x32xf32>
    %235 = math.tanh %234 : vector<2x32xf32>
    %236 = arith.mulf %231, %235 : vector<2x32xf32>
    %237 = vector.extract_strided_slice %31 {offsets = [0, 7, 0], sizes = [2, 1, 128], strides = [1, 1, 1]} : vector<2x8x128xf32> to vector<2x1x128xf32>
    %238 = vector.shape_cast %237 : vector<2x1x128xf32> to vector<2x128xf32>
    %cst_43 = arith.constant dense<0.000000e+00> : vector<2x128xf32>
    %239 = tpu.matmul %236, %26, %cst_43 {dimension_numbers = #tpu.dot_dimension_numbers<[1], [0], [0], [1], [0, 0, 1, 1], [], []>} : vector<2x32xf32>, vector<32x128xf32>, vector<2x128xf32> -> vector<2x128xf32>
    %240 = arith.addf %238, %239 : vector<2x128xf32>
    %241 = vector.extract_strided_slice %240 {offsets = [0, 0], sizes = [2, 32], strides = [1, 1]} : vector<2x128xf32> to vector<2x32xf32>
    %242 = arith.negf %241 : vector<2x32xf32>
    %243 = math.exp %242 : vector<2x32xf32>
    %cst_44 = arith.constant 1.000000e+00 : f32
    %244 = vector.broadcast %cst_44 : f32 to vector<2x32xf32>
    %245 = arith.addf %244, %243 : vector<2x32xf32>
    %246 = arith.divf %244, %245 : vector<2x32xf32>
    %247 = vector.extract_strided_slice %240 {offsets = [0, 32], sizes = [2, 32], strides = [1, 1]} : vector<2x128xf32> to vector<2x32xf32>
    %248 = arith.negf %247 : vector<2x32xf32>
    %249 = math.exp %248 : vector<2x32xf32>
    %cst_45 = arith.constant 1.000000e+00 : f32
    %250 = vector.broadcast %cst_45 : f32 to vector<2x32xf32>
    %251 = arith.addf %250, %249 : vector<2x32xf32>
    %252 = arith.divf %250, %251 : vector<2x32xf32>
    %253 = vector.extract_strided_slice %240 {offsets = [0, 64], sizes = [2, 32], strides = [1, 1]} : vector<2x128xf32> to vector<2x32xf32>
    %254 = math.tanh %253 : vector<2x32xf32>
    %255 = vector.extract_strided_slice %240 {offsets = [0, 96], sizes = [2, 32], strides = [1, 1]} : vector<2x128xf32> to vector<2x32xf32>
    %256 = arith.negf %255 : vector<2x32xf32>
    %257 = math.exp %256 : vector<2x32xf32>
    %cst_46 = arith.constant 1.000000e+00 : f32
    %258 = vector.broadcast %cst_46 : f32 to vector<2x32xf32>
    %259 = arith.addf %258, %257 : vector<2x32xf32>
    %260 = arith.divf %258, %259 : vector<2x32xf32>
    %261 = arith.mulf %252, %234 : vector<2x32xf32>
    %262 = arith.mulf %246, %254 : vector<2x32xf32>
    %263 = arith.addf %261, %262 : vector<2x32xf32>
    %264 = math.tanh %263 : vector<2x32xf32>
    %265 = arith.mulf %260, %264 : vector<2x32xf32>
    %266 = vector.shape_cast %62 : vector<2x32xf32> to vector<2x1x32xf32>
    %267 = vector.shape_cast %91 : vector<2x32xf32> to vector<2x1x32xf32>
    %268 = vector.shape_cast %120 : vector<2x32xf32> to vector<2x1x32xf32>
    %269 = vector.shape_cast %149 : vector<2x32xf32> to vector<2x1x32xf32>
    %270 = vector.shape_cast %178 : vector<2x32xf32> to vector<2x1x32xf32>
    %271 = vector.shape_cast %207 : vector<2x32xf32> to vector<2x1x32xf32>
    %272 = vector.shape_cast %236 : vector<2x32xf32> to vector<2x1x32xf32>
    %273 = vector.shape_cast %265 : vector<2x32xf32> to vector<2x1x32xf32>
    %274 = tpu.concatenate %266, %267, %268, %269, %270, %271, %272, %273 in 1 : vector<2x1x32xf32>, vector<2x1x32xf32>, vector<2x1x32xf32>, vector<2x1x32xf32>, vector<2x1x32xf32>, vector<2x1x32xf32>, vector<2x1x32xf32>, vector<2x1x32xf32> -> vector<2x8x32xf32>
    %275 = vector.shape_cast %274 : vector<2x8x32xf32> to vector<16x32xf32>
    %276 = vector.extract_strided_slice %0 {offsets = [5, 0], sizes = [1, 32], strides = [1, 1]} : vector<16x32xf32> to vector<1x32xf32>
    %277 = vector.extract_strided_slice %0 {offsets = [6, 0], sizes = [1, 32], strides = [1, 1]} : vector<16x32xf32> to vector<1x32xf32>
    %cst_47 = arith.constant dense<0.000000e+00> : vector<16xf32>
    %278 = vector.multi_reduction <add>, %275, %cst_47 [1] : vector<16x32xf32> to vector<16xf32>
    %279 = vector.shape_cast %278 : vector<16xf32> to vector<16x1xf32>
    %cst_48 = arith.constant 3.200000e+01 : f32
    %280 = vector.broadcast %cst_48 : f32 to vector<16x1xf32>
    %281 = arith.divf %279, %280 : vector<16x1xf32>
    %282 = vector.broadcast %281 : vector<16x1xf32> to vector<16x32xf32>
    %283 = arith.subf %275, %282 : vector<16x32xf32>
    %284 = arith.mulf %283, %283 : vector<16x32xf32>
    %cst_49 = arith.constant dense<0.000000e+00> : vector<16xf32>
    %285 = vector.multi_reduction <add>, %284, %cst_49 [1] : vector<16x32xf32> to vector<16xf32>
    %286 = vector.shape_cast %285 : vector<16xf32> to vector<16x1xf32>
    %cst_50 = arith.constant 3.200000e+01 : f32
    %287 = vector.broadcast %cst_50 : f32 to vector<16x1xf32>
    %288 = arith.divf %286, %287 : vector<16x1xf32>
    %289 = vector.broadcast %281 : vector<16x1xf32> to vector<16x32xf32>
    %290 = arith.subf %275, %289 : vector<16x32xf32>
    %cst_51 = arith.constant 9.99999974E-6 : f32
    %291 = vector.broadcast %cst_51 : f32 to vector<16x1xf32>
    %292 = arith.addf %288, %291 : vector<16x1xf32>
    %293 = math.rsqrt %292 : vector<16x1xf32>
    %294 = vector.broadcast %293 : vector<16x1xf32> to vector<16x32xf32>
    %295 = arith.mulf %290, %294 : vector<16x32xf32>
    %296 = vector.broadcast %276 : vector<1x32xf32> to vector<16x32xf32>
    %297 = arith.mulf %295, %296 : vector<16x32xf32>
    %298 = vector.broadcast %277 : vector<1x32xf32> to vector<16x32xf32>
    %299 = arith.addf %297, %298 : vector<16x32xf32>
    %c1 = arith.constant 1 : index
    %c0_52 = arith.constant 0 : index
    %c0_53 = arith.constant 0 : index
    %300 = vector.load %arg2[%c1, %c0_52, %c0_53] : memref<2x64x128xf32, #tpu.memory_space<vmem>>, vector<1x64x128xf32>
    %301 = vector.shape_cast %300 : vector<1x64x128xf32> to vector<64x128xf32>
    %302 = vector.extract_strided_slice %301 {offsets = [0, 0], sizes = [32, 128], strides = [1, 1]} : vector<64x128xf32> to vector<32x128xf32>
    %303 = vector.extract_strided_slice %301 {offsets = [32, 0], sizes = [32, 128], strides = [1, 1]} : vector<64x128xf32> to vector<32x128xf32>
    %cst_54 = arith.constant dense<0.000000e+00> : vector<16x128xf32>
    %304 = tpu.matmul %299, %302, %cst_54 {dimension_numbers = #tpu.dot_dimension_numbers<[1], [0], [0], [1], [0, 0, 1, 1], [], []>} : vector<16x32xf32>, vector<32x128xf32>, vector<16x128xf32> -> vector<16x128xf32>
    %305 = vector.extract_strided_slice %22 {offsets = [1, 0], sizes = [1, 128], strides = [1, 1]} : vector<2x128xf32> to vector<1x128xf32>
    %306 = vector.broadcast %305 : vector<1x128xf32> to vector<16x128xf32>
    %307 = arith.addf %304, %306 : vector<16x128xf32>
    %308 = vector.shape_cast %307 : vector<16x128xf32> to vector<2x8x128xf32>
    %cst_55 = arith.constant 0.000000e+00 : f32
    %309 = vector.broadcast %cst_55 : f32 to vector<2x32xf32>
    %cst_56 = arith.constant 0.000000e+00 : f32
    %310 = vector.broadcast %cst_56 : f32 to vector<2x32xf32>
    %311 = vector.extract_strided_slice %308 {offsets = [0, 0, 0], sizes = [2, 1, 128], strides = [1, 1, 1]} : vector<2x8x128xf32> to vector<2x1x128xf32>
    %312 = vector.shape_cast %311 : vector<2x1x128xf32> to vector<2x128xf32>
    %cst_57 = arith.constant dense<0.000000e+00> : vector<2x128xf32>
    %313 = tpu.matmul %309, %303, %cst_57 {dimension_numbers = #tpu.dot_dimension_numbers<[1], [0], [0], [1], [0, 0, 1, 1], [], []>} : vector<2x32xf32>, vector<32x128xf32>, vector<2x128xf32> -> vector<2x128xf32>
    %314 = arith.addf %312, %313 : vector<2x128xf32>
    %315 = vector.extract_strided_slice %314 {offsets = [0, 0], sizes = [2, 32], strides = [1, 1]} : vector<2x128xf32> to vector<2x32xf32>
    %316 = arith.negf %315 : vector<2x32xf32>
    %317 = math.exp %316 : vector<2x32xf32>
    %cst_58 = arith.constant 1.000000e+00 : f32
    %318 = vector.broadcast %cst_58 : f32 to vector<2x32xf32>
    %319 = arith.addf %318, %317 : vector<2x32xf32>
    %320 = arith.divf %318, %319 : vector<2x32xf32>
    %321 = vector.extract_strided_slice %314 {offsets = [0, 32], sizes = [2, 32], strides = [1, 1]} : vector<2x128xf32> to vector<2x32xf32>
    %322 = arith.negf %321 : vector<2x32xf32>
    %323 = math.exp %322 : vector<2x32xf32>
    %cst_59 = arith.constant 1.000000e+00 : f32
    %324 = vector.broadcast %cst_59 : f32 to vector<2x32xf32>
    %325 = arith.addf %324, %323 : vector<2x32xf32>
    %326 = arith.divf %324, %325 : vector<2x32xf32>
    %327 = vector.extract_strided_slice %314 {offsets = [0, 64], sizes = [2, 32], strides = [1, 1]} : vector<2x128xf32> to vector<2x32xf32>
    %328 = math.tanh %327 : vector<2x32xf32>
    %329 = vector.extract_strided_slice %314 {offsets = [0, 96], sizes = [2, 32], strides = [1, 1]} : vector<2x128xf32> to vector<2x32xf32>
    %330 = arith.negf %329 : vector<2x32xf32>
    %331 = math.exp %330 : vector<2x32xf32>
    %cst_60 = arith.constant 1.000000e+00 : f32
    %332 = vector.broadcast %cst_60 : f32 to vector<2x32xf32>
    %333 = arith.addf %332, %331 : vector<2x32xf32>
    %334 = arith.divf %332, %333 : vector<2x32xf32>
    %335 = arith.mulf %326, %310 : vector<2x32xf32>
    %336 = arith.mulf %320, %328 : vector<2x32xf32>
    %337 = arith.addf %335, %336 : vector<2x32xf32>
    %338 = math.tanh %337 : vector<2x32xf32>
    %339 = arith.mulf %334, %338 : vector<2x32xf32>
    %340 = vector.extract_strided_slice %308 {offsets = [0, 1, 0], sizes = [2, 1, 128], strides = [1, 1, 1]} : vector<2x8x128xf32> to vector<2x1x128xf32>
    %341 = vector.shape_cast %340 : vector<2x1x128xf32> to vector<2x128xf32>
    %cst_61 = arith.constant dense<0.000000e+00> : vector<2x128xf32>
    %342 = tpu.matmul %339, %303, %cst_61 {dimension_numbers = #tpu.dot_dimension_numbers<[1], [0], [0], [1], [0, 0, 1, 1], [], []>} : vector<2x32xf32>, vector<32x128xf32>, vector<2x128xf32> -> vector<2x128xf32>
    %343 = arith.addf %341, %342 : vector<2x128xf32>
    %344 = vector.extract_strided_slice %343 {offsets = [0, 0], sizes = [2, 32], strides = [1, 1]} : vector<2x128xf32> to vector<2x32xf32>
    %345 = arith.negf %344 : vector<2x32xf32>
    %346 = math.exp %345 : vector<2x32xf32>
    %cst_62 = arith.constant 1.000000e+00 : f32
    %347 = vector.broadcast %cst_62 : f32 to vector<2x32xf32>
    %348 = arith.addf %347, %346 : vector<2x32xf32>
    %349 = arith.divf %347, %348 : vector<2x32xf32>
    %350 = vector.extract_strided_slice %343 {offsets = [0, 32], sizes = [2, 32], strides = [1, 1]} : vector<2x128xf32> to vector<2x32xf32>
    %351 = arith.negf %350 : vector<2x32xf32>
    %352 = math.exp %351 : vector<2x32xf32>
    %cst_63 = arith.constant 1.000000e+00 : f32
    %353 = vector.broadcast %cst_63 : f32 to vector<2x32xf32>
    %354 = arith.addf %353, %352 : vector<2x32xf32>
    %355 = arith.divf %353, %354 : vector<2x32xf32>
    %356 = vector.extract_strided_slice %343 {offsets = [0, 64], sizes = [2, 32], strides = [1, 1]} : vector<2x128xf32> to vector<2x32xf32>
    %357 = math.tanh %356 : vector<2x32xf32>
    %358 = vector.extract_strided_slice %343 {offsets = [0, 96], sizes = [2, 32], strides = [1, 1]} : vector<2x128xf32> to vector<2x32xf32>
    %359 = arith.negf %358 : vector<2x32xf32>
    %360 = math.exp %359 : vector<2x32xf32>
    %cst_64 = arith.constant 1.000000e+00 : f32
    %361 = vector.broadcast %cst_64 : f32 to vector<2x32xf32>
    %362 = arith.addf %361, %360 : vector<2x32xf32>
    %363 = arith.divf %361, %362 : vector<2x32xf32>
    %364 = arith.mulf %355, %337 : vector<2x32xf32>
    %365 = arith.mulf %349, %357 : vector<2x32xf32>
    %366 = arith.addf %364, %365 : vector<2x32xf32>
    %367 = math.tanh %366 : vector<2x32xf32>
    %368 = arith.mulf %363, %367 : vector<2x32xf32>
    %369 = vector.extract_strided_slice %308 {offsets = [0, 2, 0], sizes = [2, 1, 128], strides = [1, 1, 1]} : vector<2x8x128xf32> to vector<2x1x128xf32>
    %370 = vector.shape_cast %369 : vector<2x1x128xf32> to vector<2x128xf32>
    %cst_65 = arith.constant dense<0.000000e+00> : vector<2x128xf32>
    %371 = tpu.matmul %368, %303, %cst_65 {dimension_numbers = #tpu.dot_dimension_numbers<[1], [0], [0], [1], [0, 0, 1, 1], [], []>} : vector<2x32xf32>, vector<32x128xf32>, vector<2x128xf32> -> vector<2x128xf32>
    %372 = arith.addf %370, %371 : vector<2x128xf32>
    %373 = vector.extract_strided_slice %372 {offsets = [0, 0], sizes = [2, 32], strides = [1, 1]} : vector<2x128xf32> to vector<2x32xf32>
    %374 = arith.negf %373 : vector<2x32xf32>
    %375 = math.exp %374 : vector<2x32xf32>
    %cst_66 = arith.constant 1.000000e+00 : f32
    %376 = vector.broadcast %cst_66 : f32 to vector<2x32xf32>
    %377 = arith.addf %376, %375 : vector<2x32xf32>
    %378 = arith.divf %376, %377 : vector<2x32xf32>
    %379 = vector.extract_strided_slice %372 {offsets = [0, 32], sizes = [2, 32], strides = [1, 1]} : vector<2x128xf32> to vector<2x32xf32>
    %380 = arith.negf %379 : vector<2x32xf32>
    %381 = math.exp %380 : vector<2x32xf32>
    %cst_67 = arith.constant 1.000000e+00 : f32
    %382 = vector.broadcast %cst_67 : f32 to vector<2x32xf32>
    %383 = arith.addf %382, %381 : vector<2x32xf32>
    %384 = arith.divf %382, %383 : vector<2x32xf32>
    %385 = vector.extract_strided_slice %372 {offsets = [0, 64], sizes = [2, 32], strides = [1, 1]} : vector<2x128xf32> to vector<2x32xf32>
    %386 = math.tanh %385 : vector<2x32xf32>
    %387 = vector.extract_strided_slice %372 {offsets = [0, 96], sizes = [2, 32], strides = [1, 1]} : vector<2x128xf32> to vector<2x32xf32>
    %388 = arith.negf %387 : vector<2x32xf32>
    %389 = math.exp %388 : vector<2x32xf32>
    %cst_68 = arith.constant 1.000000e+00 : f32
    %390 = vector.broadcast %cst_68 : f32 to vector<2x32xf32>
    %391 = arith.addf %390, %389 : vector<2x32xf32>
    %392 = arith.divf %390, %391 : vector<2x32xf32>
    %393 = arith.mulf %384, %366 : vector<2x32xf32>
    %394 = arith.mulf %378, %386 : vector<2x32xf32>
    %395 = arith.addf %393, %394 : vector<2x32xf32>
    %396 = math.tanh %395 : vector<2x32xf32>
    %397 = arith.mulf %392, %396 : vector<2x32xf32>
    %398 = vector.extract_strided_slice %308 {offsets = [0, 3, 0], sizes = [2, 1, 128], strides = [1, 1, 1]} : vector<2x8x128xf32> to vector<2x1x128xf32>
    %399 = vector.shape_cast %398 : vector<2x1x128xf32> to vector<2x128xf32>
    %cst_69 = arith.constant dense<0.000000e+00> : vector<2x128xf32>
    %400 = tpu.matmul %397, %303, %cst_69 {dimension_numbers = #tpu.dot_dimension_numbers<[1], [0], [0], [1], [0, 0, 1, 1], [], []>} : vector<2x32xf32>, vector<32x128xf32>, vector<2x128xf32> -> vector<2x128xf32>
    %401 = arith.addf %399, %400 : vector<2x128xf32>
    %402 = vector.extract_strided_slice %401 {offsets = [0, 0], sizes = [2, 32], strides = [1, 1]} : vector<2x128xf32> to vector<2x32xf32>
    %403 = arith.negf %402 : vector<2x32xf32>
    %404 = math.exp %403 : vector<2x32xf32>
    %cst_70 = arith.constant 1.000000e+00 : f32
    %405 = vector.broadcast %cst_70 : f32 to vector<2x32xf32>
    %406 = arith.addf %405, %404 : vector<2x32xf32>
    %407 = arith.divf %405, %406 : vector<2x32xf32>
    %408 = vector.extract_strided_slice %401 {offsets = [0, 32], sizes = [2, 32], strides = [1, 1]} : vector<2x128xf32> to vector<2x32xf32>
    %409 = arith.negf %408 : vector<2x32xf32>
    %410 = math.exp %409 : vector<2x32xf32>
    %cst_71 = arith.constant 1.000000e+00 : f32
    %411 = vector.broadcast %cst_71 : f32 to vector<2x32xf32>
    %412 = arith.addf %411, %410 : vector<2x32xf32>
    %413 = arith.divf %411, %412 : vector<2x32xf32>
    %414 = vector.extract_strided_slice %401 {offsets = [0, 64], sizes = [2, 32], strides = [1, 1]} : vector<2x128xf32> to vector<2x32xf32>
    %415 = math.tanh %414 : vector<2x32xf32>
    %416 = vector.extract_strided_slice %401 {offsets = [0, 96], sizes = [2, 32], strides = [1, 1]} : vector<2x128xf32> to vector<2x32xf32>
    %417 = arith.negf %416 : vector<2x32xf32>
    %418 = math.exp %417 : vector<2x32xf32>
    %cst_72 = arith.constant 1.000000e+00 : f32
    %419 = vector.broadcast %cst_72 : f32 to vector<2x32xf32>
    %420 = arith.addf %419, %418 : vector<2x32xf32>
    %421 = arith.divf %419, %420 : vector<2x32xf32>
    %422 = arith.mulf %413, %395 : vector<2x32xf32>
    %423 = arith.mulf %407, %415 : vector<2x32xf32>
    %424 = arith.addf %422, %423 : vector<2x32xf32>
    %425 = math.tanh %424 : vector<2x32xf32>
    %426 = arith.mulf %421, %425 : vector<2x32xf32>
    %427 = vector.extract_strided_slice %308 {offsets = [0, 4, 0], sizes = [2, 1, 128], strides = [1, 1, 1]} : vector<2x8x128xf32> to vector<2x1x128xf32>
    %428 = vector.shape_cast %427 : vector<2x1x128xf32> to vector<2x128xf32>
    %cst_73 = arith.constant dense<0.000000e+00> : vector<2x128xf32>
    %429 = tpu.matmul %426, %303, %cst_73 {dimension_numbers = #tpu.dot_dimension_numbers<[1], [0], [0], [1], [0, 0, 1, 1], [], []>} : vector<2x32xf32>, vector<32x128xf32>, vector<2x128xf32> -> vector<2x128xf32>
    %430 = arith.addf %428, %429 : vector<2x128xf32>
    %431 = vector.extract_strided_slice %430 {offsets = [0, 0], sizes = [2, 32], strides = [1, 1]} : vector<2x128xf32> to vector<2x32xf32>
    %432 = arith.negf %431 : vector<2x32xf32>
    %433 = math.exp %432 : vector<2x32xf32>
    %cst_74 = arith.constant 1.000000e+00 : f32
    %434 = vector.broadcast %cst_74 : f32 to vector<2x32xf32>
    %435 = arith.addf %434, %433 : vector<2x32xf32>
    %436 = arith.divf %434, %435 : vector<2x32xf32>
    %437 = vector.extract_strided_slice %430 {offsets = [0, 32], sizes = [2, 32], strides = [1, 1]} : vector<2x128xf32> to vector<2x32xf32>
    %438 = arith.negf %437 : vector<2x32xf32>
    %439 = math.exp %438 : vector<2x32xf32>
    %cst_75 = arith.constant 1.000000e+00 : f32
    %440 = vector.broadcast %cst_75 : f32 to vector<2x32xf32>
    %441 = arith.addf %440, %439 : vector<2x32xf32>
    %442 = arith.divf %440, %441 : vector<2x32xf32>
    %443 = vector.extract_strided_slice %430 {offsets = [0, 64], sizes = [2, 32], strides = [1, 1]} : vector<2x128xf32> to vector<2x32xf32>
    %444 = math.tanh %443 : vector<2x32xf32>
    %445 = vector.extract_strided_slice %430 {offsets = [0, 96], sizes = [2, 32], strides = [1, 1]} : vector<2x128xf32> to vector<2x32xf32>
    %446 = arith.negf %445 : vector<2x32xf32>
    %447 = math.exp %446 : vector<2x32xf32>
    %cst_76 = arith.constant 1.000000e+00 : f32
    %448 = vector.broadcast %cst_76 : f32 to vector<2x32xf32>
    %449 = arith.addf %448, %447 : vector<2x32xf32>
    %450 = arith.divf %448, %449 : vector<2x32xf32>
    %451 = arith.mulf %442, %424 : vector<2x32xf32>
    %452 = arith.mulf %436, %444 : vector<2x32xf32>
    %453 = arith.addf %451, %452 : vector<2x32xf32>
    %454 = math.tanh %453 : vector<2x32xf32>
    %455 = arith.mulf %450, %454 : vector<2x32xf32>
    %456 = vector.extract_strided_slice %308 {offsets = [0, 5, 0], sizes = [2, 1, 128], strides = [1, 1, 1]} : vector<2x8x128xf32> to vector<2x1x128xf32>
    %457 = vector.shape_cast %456 : vector<2x1x128xf32> to vector<2x128xf32>
    %cst_77 = arith.constant dense<0.000000e+00> : vector<2x128xf32>
    %458 = tpu.matmul %455, %303, %cst_77 {dimension_numbers = #tpu.dot_dimension_numbers<[1], [0], [0], [1], [0, 0, 1, 1], [], []>} : vector<2x32xf32>, vector<32x128xf32>, vector<2x128xf32> -> vector<2x128xf32>
    %459 = arith.addf %457, %458 : vector<2x128xf32>
    %460 = vector.extract_strided_slice %459 {offsets = [0, 0], sizes = [2, 32], strides = [1, 1]} : vector<2x128xf32> to vector<2x32xf32>
    %461 = arith.negf %460 : vector<2x32xf32>
    %462 = math.exp %461 : vector<2x32xf32>
    %cst_78 = arith.constant 1.000000e+00 : f32
    %463 = vector.broadcast %cst_78 : f32 to vector<2x32xf32>
    %464 = arith.addf %463, %462 : vector<2x32xf32>
    %465 = arith.divf %463, %464 : vector<2x32xf32>
    %466 = vector.extract_strided_slice %459 {offsets = [0, 32], sizes = [2, 32], strides = [1, 1]} : vector<2x128xf32> to vector<2x32xf32>
    %467 = arith.negf %466 : vector<2x32xf32>
    %468 = math.exp %467 : vector<2x32xf32>
    %cst_79 = arith.constant 1.000000e+00 : f32
    %469 = vector.broadcast %cst_79 : f32 to vector<2x32xf32>
    %470 = arith.addf %469, %468 : vector<2x32xf32>
    %471 = arith.divf %469, %470 : vector<2x32xf32>
    %472 = vector.extract_strided_slice %459 {offsets = [0, 64], sizes = [2, 32], strides = [1, 1]} : vector<2x128xf32> to vector<2x32xf32>
    %473 = math.tanh %472 : vector<2x32xf32>
    %474 = vector.extract_strided_slice %459 {offsets = [0, 96], sizes = [2, 32], strides = [1, 1]} : vector<2x128xf32> to vector<2x32xf32>
    %475 = arith.negf %474 : vector<2x32xf32>
    %476 = math.exp %475 : vector<2x32xf32>
    %cst_80 = arith.constant 1.000000e+00 : f32
    %477 = vector.broadcast %cst_80 : f32 to vector<2x32xf32>
    %478 = arith.addf %477, %476 : vector<2x32xf32>
    %479 = arith.divf %477, %478 : vector<2x32xf32>
    %480 = arith.mulf %471, %453 : vector<2x32xf32>
    %481 = arith.mulf %465, %473 : vector<2x32xf32>
    %482 = arith.addf %480, %481 : vector<2x32xf32>
    %483 = math.tanh %482 : vector<2x32xf32>
    %484 = arith.mulf %479, %483 : vector<2x32xf32>
    %485 = vector.extract_strided_slice %308 {offsets = [0, 6, 0], sizes = [2, 1, 128], strides = [1, 1, 1]} : vector<2x8x128xf32> to vector<2x1x128xf32>
    %486 = vector.shape_cast %485 : vector<2x1x128xf32> to vector<2x128xf32>
    %cst_81 = arith.constant dense<0.000000e+00> : vector<2x128xf32>
    %487 = tpu.matmul %484, %303, %cst_81 {dimension_numbers = #tpu.dot_dimension_numbers<[1], [0], [0], [1], [0, 0, 1, 1], [], []>} : vector<2x32xf32>, vector<32x128xf32>, vector<2x128xf32> -> vector<2x128xf32>
    %488 = arith.addf %486, %487 : vector<2x128xf32>
    %489 = vector.extract_strided_slice %488 {offsets = [0, 0], sizes = [2, 32], strides = [1, 1]} : vector<2x128xf32> to vector<2x32xf32>
    %490 = arith.negf %489 : vector<2x32xf32>
    %491 = math.exp %490 : vector<2x32xf32>
    %cst_82 = arith.constant 1.000000e+00 : f32
    %492 = vector.broadcast %cst_82 : f32 to vector<2x32xf32>
    %493 = arith.addf %492, %491 : vector<2x32xf32>
    %494 = arith.divf %492, %493 : vector<2x32xf32>
    %495 = vector.extract_strided_slice %488 {offsets = [0, 32], sizes = [2, 32], strides = [1, 1]} : vector<2x128xf32> to vector<2x32xf32>
    %496 = arith.negf %495 : vector<2x32xf32>
    %497 = math.exp %496 : vector<2x32xf32>
    %cst_83 = arith.constant 1.000000e+00 : f32
    %498 = vector.broadcast %cst_83 : f32 to vector<2x32xf32>
    %499 = arith.addf %498, %497 : vector<2x32xf32>
    %500 = arith.divf %498, %499 : vector<2x32xf32>
    %501 = vector.extract_strided_slice %488 {offsets = [0, 64], sizes = [2, 32], strides = [1, 1]} : vector<2x128xf32> to vector<2x32xf32>
    %502 = math.tanh %501 : vector<2x32xf32>
    %503 = vector.extract_strided_slice %488 {offsets = [0, 96], sizes = [2, 32], strides = [1, 1]} : vector<2x128xf32> to vector<2x32xf32>
    %504 = arith.negf %503 : vector<2x32xf32>
    %505 = math.exp %504 : vector<2x32xf32>
    %cst_84 = arith.constant 1.000000e+00 : f32
    %506 = vector.broadcast %cst_84 : f32 to vector<2x32xf32>
    %507 = arith.addf %506, %505 : vector<2x32xf32>
    %508 = arith.divf %506, %507 : vector<2x32xf32>
    %509 = arith.mulf %500, %482 : vector<2x32xf32>
    %510 = arith.mulf %494, %502 : vector<2x32xf32>
    %511 = arith.addf %509, %510 : vector<2x32xf32>
    %512 = math.tanh %511 : vector<2x32xf32>
    %513 = arith.mulf %508, %512 : vector<2x32xf32>
    %514 = vector.extract_strided_slice %308 {offsets = [0, 7, 0], sizes = [2, 1, 128], strides = [1, 1, 1]} : vector<2x8x128xf32> to vector<2x1x128xf32>
    %515 = vector.shape_cast %514 : vector<2x1x128xf32> to vector<2x128xf32>
    %cst_85 = arith.constant dense<0.000000e+00> : vector<2x128xf32>
    %516 = tpu.matmul %513, %303, %cst_85 {dimension_numbers = #tpu.dot_dimension_numbers<[1], [0], [0], [1], [0, 0, 1, 1], [], []>} : vector<2x32xf32>, vector<32x128xf32>, vector<2x128xf32> -> vector<2x128xf32>
    %517 = arith.addf %515, %516 : vector<2x128xf32>
    %518 = vector.extract_strided_slice %517 {offsets = [0, 0], sizes = [2, 32], strides = [1, 1]} : vector<2x128xf32> to vector<2x32xf32>
    %519 = arith.negf %518 : vector<2x32xf32>
    %520 = math.exp %519 : vector<2x32xf32>
    %cst_86 = arith.constant 1.000000e+00 : f32
    %521 = vector.broadcast %cst_86 : f32 to vector<2x32xf32>
    %522 = arith.addf %521, %520 : vector<2x32xf32>
    %523 = arith.divf %521, %522 : vector<2x32xf32>
    %524 = vector.extract_strided_slice %517 {offsets = [0, 32], sizes = [2, 32], strides = [1, 1]} : vector<2x128xf32> to vector<2x32xf32>
    %525 = arith.negf %524 : vector<2x32xf32>
    %526 = math.exp %525 : vector<2x32xf32>
    %cst_87 = arith.constant 1.000000e+00 : f32
    %527 = vector.broadcast %cst_87 : f32 to vector<2x32xf32>
    %528 = arith.addf %527, %526 : vector<2x32xf32>
    %529 = arith.divf %527, %528 : vector<2x32xf32>
    %530 = vector.extract_strided_slice %517 {offsets = [0, 64], sizes = [2, 32], strides = [1, 1]} : vector<2x128xf32> to vector<2x32xf32>
    %531 = math.tanh %530 : vector<2x32xf32>
    %532 = vector.extract_strided_slice %517 {offsets = [0, 96], sizes = [2, 32], strides = [1, 1]} : vector<2x128xf32> to vector<2x32xf32>
    %533 = arith.negf %532 : vector<2x32xf32>
    %534 = math.exp %533 : vector<2x32xf32>
    %cst_88 = arith.constant 1.000000e+00 : f32
    %535 = vector.broadcast %cst_88 : f32 to vector<2x32xf32>
    %536 = arith.addf %535, %534 : vector<2x32xf32>
    %537 = arith.divf %535, %536 : vector<2x32xf32>
    %538 = arith.mulf %529, %511 : vector<2x32xf32>
    %539 = arith.mulf %523, %531 : vector<2x32xf32>
    %540 = arith.addf %538, %539 : vector<2x32xf32>
    %541 = math.tanh %540 : vector<2x32xf32>
    %542 = arith.mulf %537, %541 : vector<2x32xf32>
    %543 = vector.shape_cast %339 : vector<2x32xf32> to vector<2x1x32xf32>
    %544 = vector.shape_cast %368 : vector<2x32xf32> to vector<2x1x32xf32>
    %545 = vector.shape_cast %397 : vector<2x32xf32> to vector<2x1x32xf32>
    %546 = vector.shape_cast %426 : vector<2x32xf32> to vector<2x1x32xf32>
    %547 = vector.shape_cast %455 : vector<2x32xf32> to vector<2x1x32xf32>
    %548 = vector.shape_cast %484 : vector<2x32xf32> to vector<2x1x32xf32>
    %549 = vector.shape_cast %513 : vector<2x32xf32> to vector<2x1x32xf32>
    %550 = vector.shape_cast %542 : vector<2x32xf32> to vector<2x1x32xf32>
    %551 = tpu.concatenate %543, %544, %545, %546, %547, %548, %549, %550 in 1 : vector<2x1x32xf32>, vector<2x1x32xf32>, vector<2x1x32xf32>, vector<2x1x32xf32>, vector<2x1x32xf32>, vector<2x1x32xf32>, vector<2x1x32xf32>, vector<2x1x32xf32> -> vector<2x8x32xf32>
    %552 = vector.shape_cast %551 : vector<2x8x32xf32> to vector<16x32xf32>
    %553 = vector.extract_strided_slice %0 {offsets = [7, 0], sizes = [1, 32], strides = [1, 1]} : vector<16x32xf32> to vector<1x32xf32>
    %554 = vector.extract_strided_slice %0 {offsets = [8, 0], sizes = [1, 32], strides = [1, 1]} : vector<16x32xf32> to vector<1x32xf32>
    %cst_89 = arith.constant dense<0.000000e+00> : vector<16xf32>
    %555 = vector.multi_reduction <add>, %552, %cst_89 [1] : vector<16x32xf32> to vector<16xf32>
    %556 = vector.shape_cast %555 : vector<16xf32> to vector<16x1xf32>
    %cst_90 = arith.constant 3.200000e+01 : f32
    %557 = vector.broadcast %cst_90 : f32 to vector<16x1xf32>
    %558 = arith.divf %556, %557 : vector<16x1xf32>
    %559 = vector.broadcast %558 : vector<16x1xf32> to vector<16x32xf32>
    %560 = arith.subf %552, %559 : vector<16x32xf32>
    %561 = arith.mulf %560, %560 : vector<16x32xf32>
    %cst_91 = arith.constant dense<0.000000e+00> : vector<16xf32>
    %562 = vector.multi_reduction <add>, %561, %cst_91 [1] : vector<16x32xf32> to vector<16xf32>
    %563 = vector.shape_cast %562 : vector<16xf32> to vector<16x1xf32>
    %cst_92 = arith.constant 3.200000e+01 : f32
    %564 = vector.broadcast %cst_92 : f32 to vector<16x1xf32>
    %565 = arith.divf %563, %564 : vector<16x1xf32>
    %566 = vector.broadcast %558 : vector<16x1xf32> to vector<16x32xf32>
    %567 = arith.subf %552, %566 : vector<16x32xf32>
    %cst_93 = arith.constant 9.99999974E-6 : f32
    %568 = vector.broadcast %cst_93 : f32 to vector<16x1xf32>
    %569 = arith.addf %565, %568 : vector<16x1xf32>
    %570 = math.rsqrt %569 : vector<16x1xf32>
    %571 = vector.broadcast %570 : vector<16x1xf32> to vector<16x32xf32>
    %572 = arith.mulf %567, %571 : vector<16x32xf32>
    %573 = vector.broadcast %553 : vector<1x32xf32> to vector<16x32xf32>
    %574 = arith.mulf %572, %573 : vector<16x32xf32>
    %575 = vector.broadcast %554 : vector<1x32xf32> to vector<16x32xf32>
    %576 = arith.addf %574, %575 : vector<16x32xf32>
    %577 = arith.addf %576, %299 : vector<16x32xf32>
    %c0_94 = arith.constant 0 : index
    %c0_95 = arith.constant 0 : index
    %578 = vector.load %arg4[%c0_94, %c0_95] : memref<32x96xf32, #tpu.memory_space<vmem>>, vector<32x96xf32>
    %cst_96 = arith.constant dense<0.000000e+00> : vector<16x96xf32>
    %579 = tpu.matmul %577, %578, %cst_96 {dimension_numbers = #tpu.dot_dimension_numbers<[1], [0], [0], [1], [0, 0, 1, 1], [], []>} : vector<16x32xf32>, vector<32x96xf32>, vector<16x96xf32> -> vector<16x96xf32>
    %c0_97 = arith.constant 0 : index
    %c0_98 = arith.constant 0 : index
    %580 = vector.load %arg5[%c0_97, %c0_98] : memref<1x96xf32, #tpu.memory_space<vmem>>, vector<1x96xf32>
    %581 = vector.broadcast %580 : vector<1x96xf32> to vector<16x96xf32>
    %582 = arith.addf %579, %581 : vector<16x96xf32>
    %583 = vector.extract_strided_slice %582 {offsets = [0, 0], sizes = [16, 32], strides = [1, 1]} : vector<16x96xf32> to vector<16x32xf32>
    %584 = vector.shape_cast %583 : vector<16x32xf32> to vector<2x8x8x4xf32>
    %585 = tpu.transpose %584, [0, 2, 1, 3] : vector<2x8x8x4xf32> -> vector<2x8x8x4xf32>
    %586 = vector.shape_cast %585 : vector<2x8x8x4xf32> to vector<16x8x4xf32>
    %587 = vector.extract_strided_slice %582 {offsets = [0, 32], sizes = [16, 32], strides = [1, 1]} : vector<16x96xf32> to vector<16x32xf32>
    %588 = vector.shape_cast %587 : vector<16x32xf32> to vector<2x8x8x4xf32>
    %589 = tpu.transpose %588, [0, 2, 1, 3] : vector<2x8x8x4xf32> -> vector<2x8x8x4xf32>
    %590 = vector.shape_cast %589 : vector<2x8x8x4xf32> to vector<16x8x4xf32>
    %591 = vector.extract_strided_slice %582 {offsets = [0, 64], sizes = [16, 32], strides = [1, 1]} : vector<16x96xf32> to vector<16x32xf32>
    %592 = vector.shape_cast %591 : vector<16x32xf32> to vector<2x8x8x4xf32>
    %593 = tpu.transpose %592, [0, 2, 1, 3] : vector<2x8x8x4xf32> -> vector<2x8x8x4xf32>
    %594 = vector.shape_cast %593 : vector<2x8x8x4xf32> to vector<16x8x4xf32>
    %cst_99 = arith.constant dense<0.000000e+00> : vector<16x8x8xf32>
    %595 = tpu.matmul %586, %590, %cst_99 {dimension_numbers = #tpu.dot_dimension_numbers<[2], [2], [1], [1], [0, 0, 0, 1, 1, 1], [0], [0]>} : vector<16x8x4xf32>, vector<16x8x4xf32>, vector<16x8x8xf32> -> vector<16x8x8xf32>
    %cst_100 = arith.constant dense<0xFF800000> : vector<16x8xf32>
    %596 = vector.multi_reduction <maximumf>, %595, %cst_100 [2] : vector<16x8x8xf32> to vector<16x8xf32>
    %597 = vector.shape_cast %596 : vector<16x8xf32> to vector<16x8x1xf32>
    %598 = vector.broadcast %597 : vector<16x8x1xf32> to vector<16x8x8xf32>
    %599 = arith.subf %595, %598 : vector<16x8x8xf32>
    %600 = math.exp %599 : vector<16x8x8xf32>
    %cst_101 = arith.constant dense<0.000000e+00> : vector<16x8xf32>
    %601 = vector.multi_reduction <add>, %600, %cst_101 [2] : vector<16x8x8xf32> to vector<16x8xf32>
    %602 = vector.shape_cast %601 : vector<16x8xf32> to vector<16x8x1xf32>
    %603 = vector.broadcast %602 : vector<16x8x1xf32> to vector<16x8x8xf32>
    %604 = arith.divf %600, %603 : vector<16x8x8xf32>
    %cst_102 = arith.constant dense<0.000000e+00> : vector<16x8x4xf32>
    %605 = tpu.matmul %604, %594, %cst_102 {dimension_numbers = #tpu.dot_dimension_numbers<[2], [1], [1], [2], [0, 0, 0, 1, 1, 2], [0], [0]>} : vector<16x8x8xf32>, vector<16x8x4xf32>, vector<16x8x4xf32> -> vector<16x8x4xf32>
    %606 = vector.shape_cast %605 : vector<16x8x4xf32> to vector<2x8x8x4xf32>
    %607 = tpu.transpose %606, [0, 2, 1, 3] : vector<2x8x8x4xf32> -> vector<2x8x8x4xf32>
    %608 = vector.shape_cast %607 : vector<2x8x8x4xf32> to vector<16x32xf32>
    %c0_103 = arith.constant 0 : index
    %c0_104 = arith.constant 0 : index
    %609 = vector.load %arg6[%c0_103, %c0_104] : memref<32x32xf32, #tpu.memory_space<vmem>>, vector<32x32xf32>
    %cst_105 = arith.constant dense<0.000000e+00> : vector<16x32xf32>
    %610 = tpu.matmul %608, %609, %cst_105 {dimension_numbers = #tpu.dot_dimension_numbers<[1], [0], [0], [1], [0, 0, 1, 1], [], []>} : vector<16x32xf32>, vector<32x32xf32>, vector<16x32xf32> -> vector<16x32xf32>
    %611 = vector.extract_strided_slice %0 {offsets = [9, 0], sizes = [1, 32], strides = [1, 1]} : vector<16x32xf32> to vector<1x32xf32>
    %612 = vector.broadcast %611 : vector<1x32xf32> to vector<16x32xf32>
    %613 = arith.addf %610, %612 : vector<16x32xf32>
    %614 = arith.addf %577, %613 : vector<16x32xf32>
    %615 = vector.extract_strided_slice %0 {offsets = [10, 0], sizes = [1, 32], strides = [1, 1]} : vector<16x32xf32> to vector<1x32xf32>
    %616 = vector.extract_strided_slice %0 {offsets = [11, 0], sizes = [1, 32], strides = [1, 1]} : vector<16x32xf32> to vector<1x32xf32>
    %cst_106 = arith.constant dense<0.000000e+00> : vector<16xf32>
    %617 = vector.multi_reduction <add>, %614, %cst_106 [1] : vector<16x32xf32> to vector<16xf32>
    %618 = vector.shape_cast %617 : vector<16xf32> to vector<16x1xf32>
    %cst_107 = arith.constant 3.200000e+01 : f32
    %619 = vector.broadcast %cst_107 : f32 to vector<16x1xf32>
    %620 = arith.divf %618, %619 : vector<16x1xf32>
    %621 = vector.broadcast %620 : vector<16x1xf32> to vector<16x32xf32>
    %622 = arith.subf %614, %621 : vector<16x32xf32>
    %623 = arith.mulf %622, %622 : vector<16x32xf32>
    %cst_108 = arith.constant dense<0.000000e+00> : vector<16xf32>
    %624 = vector.multi_reduction <add>, %623, %cst_108 [1] : vector<16x32xf32> to vector<16xf32>
    %625 = vector.shape_cast %624 : vector<16xf32> to vector<16x1xf32>
    %cst_109 = arith.constant 3.200000e+01 : f32
    %626 = vector.broadcast %cst_109 : f32 to vector<16x1xf32>
    %627 = arith.divf %625, %626 : vector<16x1xf32>
    %628 = vector.broadcast %620 : vector<16x1xf32> to vector<16x32xf32>
    %629 = arith.subf %614, %628 : vector<16x32xf32>
    %cst_110 = arith.constant 9.99999974E-6 : f32
    %630 = vector.broadcast %cst_110 : f32 to vector<16x1xf32>
    %631 = arith.addf %627, %630 : vector<16x1xf32>
    %632 = math.rsqrt %631 : vector<16x1xf32>
    %633 = vector.broadcast %632 : vector<16x1xf32> to vector<16x32xf32>
    %634 = arith.mulf %629, %633 : vector<16x32xf32>
    %635 = vector.broadcast %615 : vector<1x32xf32> to vector<16x32xf32>
    %636 = arith.mulf %634, %635 : vector<16x32xf32>
    %637 = vector.broadcast %616 : vector<1x32xf32> to vector<16x32xf32>
    %638 = arith.addf %636, %637 : vector<16x32xf32>
    %639 = vector.shape_cast %577 : vector<16x32xf32> to vector<2x8x32xf32>
    %640 = vector.extract_strided_slice %639 {offsets = [0, 7, 0], sizes = [2, 1, 32], strides = [1, 1, 1]} : vector<2x8x32xf32> to vector<2x1x32xf32>
    %641 = vector.shape_cast %640 : vector<2x1x32xf32> to vector<2x32xf32>
    %642 = vector.shape_cast %638 : vector<16x32xf32> to vector<2x8x32xf32>
    %643 = vector.extract_strided_slice %642 {offsets = [0, 7, 0], sizes = [2, 1, 32], strides = [1, 1, 1]} : vector<2x8x32xf32> to vector<2x1x32xf32>
    %644 = vector.shape_cast %643 : vector<2x1x32xf32> to vector<2x32xf32>
    %645 = tpu.concatenate %641, %644 in 1 : vector<2x32xf32>, vector<2x32xf32> -> vector<2x64xf32>
    %c0_111 = arith.constant 0 : index
    %c0_112 = arith.constant 0 : index
    %646 = vector.load %arg7[%c0_111, %c0_112] : memref<64x32xf32, #tpu.memory_space<vmem>>, vector<64x32xf32>
    %cst_113 = arith.constant dense<0.000000e+00> : vector<2x32xf32>
    %647 = tpu.matmul %645, %646, %cst_113 {dimension_numbers = #tpu.dot_dimension_numbers<[1], [0], [0], [1], [0, 0, 1, 1], [], []>} : vector<2x64xf32>, vector<64x32xf32>, vector<2x32xf32> -> vector<2x32xf32>
    %648 = vector.extract_strided_slice %0 {offsets = [12, 0], sizes = [1, 32], strides = [1, 1]} : vector<16x32xf32> to vector<1x32xf32>
    %649 = vector.broadcast %648 : vector<1x32xf32> to vector<2x32xf32>
    %650 = arith.addf %647, %649 : vector<2x32xf32>
    %651 = vector.extract_strided_slice %0 {offsets = [13, 0], sizes = [1, 32], strides = [1, 1]} : vector<16x32xf32> to vector<1x32xf32>
    %652 = vector.extract_strided_slice %0 {offsets = [14, 0], sizes = [1, 32], strides = [1, 1]} : vector<16x32xf32> to vector<1x32xf32>
    %cst_114 = arith.constant dense<0.000000e+00> : vector<2xf32>
    %653 = vector.multi_reduction <add>, %650, %cst_114 [1] : vector<2x32xf32> to vector<2xf32>
    %654 = vector.shape_cast %653 : vector<2xf32> to vector<2x1xf32>
    %cst_115 = arith.constant 3.200000e+01 : f32
    %655 = vector.broadcast %cst_115 : f32 to vector<2x1xf32>
    %656 = arith.divf %654, %655 : vector<2x1xf32>
    %657 = vector.broadcast %656 : vector<2x1xf32> to vector<2x32xf32>
    %658 = arith.subf %650, %657 : vector<2x32xf32>
    %659 = arith.mulf %658, %658 : vector<2x32xf32>
    %cst_116 = arith.constant dense<0.000000e+00> : vector<2xf32>
    %660 = vector.multi_reduction <add>, %659, %cst_116 [1] : vector<2x32xf32> to vector<2xf32>
    %661 = vector.shape_cast %660 : vector<2xf32> to vector<2x1xf32>
    %cst_117 = arith.constant 3.200000e+01 : f32
    %662 = vector.broadcast %cst_117 : f32 to vector<2x1xf32>
    %663 = arith.divf %661, %662 : vector<2x1xf32>
    %664 = vector.broadcast %656 : vector<2x1xf32> to vector<2x32xf32>
    %665 = arith.subf %650, %664 : vector<2x32xf32>
    %cst_118 = arith.constant 9.99999974E-6 : f32
    %666 = vector.broadcast %cst_118 : f32 to vector<2x1xf32>
    %667 = arith.addf %663, %666 : vector<2x1xf32>
    %668 = math.rsqrt %667 : vector<2x1xf32>
    %669 = vector.broadcast %668 : vector<2x1xf32> to vector<2x32xf32>
    %670 = arith.mulf %665, %669 : vector<2x32xf32>
    %671 = vector.broadcast %651 : vector<1x32xf32> to vector<2x32xf32>
    %672 = arith.mulf %670, %671 : vector<2x32xf32>
    %673 = vector.broadcast %652 : vector<1x32xf32> to vector<2x32xf32>
    %674 = arith.addf %672, %673 : vector<2x32xf32>
    %cst_119 = arith.constant 0.000000e+00 : f32
    %675 = vector.broadcast %cst_119 : f32 to vector<2x32xf32>
    %676 = arith.maximumf %674, %675 : vector<2x32xf32>
    %c0_120 = arith.constant 0 : index
    %c0_121 = arith.constant 0 : index
    %c0_122 = arith.constant 0 : index
    %677 = vector.load %arg9[%c0_120, %c0_121, %c0_122] : memref<4x32x16xf32, #tpu.memory_space<vmem>>, vector<4x32x16xf32>
    %c0_123 = arith.constant 0 : index
    %c0_124 = arith.constant 0 : index
    %c0_125 = arith.constant 0 : index
    %678 = vector.load %arg10[%c0_123, %c0_124, %c0_125] : memref<4x3x16xf32, #tpu.memory_space<vmem>>, vector<4x3x16xf32>
    %c0_126 = arith.constant 0 : index
    %c0_127 = arith.constant 0 : index
    %c0_128 = arith.constant 0 : index
    %679 = vector.load %arg11[%c0_126, %c0_127, %c0_128] : memref<2x16x8xf32, #tpu.memory_space<vmem>>, vector<2x16x8xf32>
    %c0_129 = arith.constant 0 : index
    %c0_130 = arith.constant 0 : index
    %c0_131 = arith.constant 0 : index
    %680 = vector.load %arg12[%c0_129, %c0_130, %c0_131] : memref<2x3x8xf32, #tpu.memory_space<vmem>>, vector<2x3x8xf32>
    %c0_132 = arith.constant 0 : index
    %c0_133 = arith.constant 0 : index
    %c0_134 = arith.constant 0 : index
    %681 = vector.load %arg13[%c0_132, %c0_133, %c0_134] : memref<2x8x1xf32, #tpu.memory_space<vmem>>, vector<2x8x1xf32>
    %c0_135 = arith.constant 0 : index
    %c0_136 = arith.constant 0 : index
    %682 = vector.load %arg16[%c0_135, %c0_136] : memref<1x8xf32, #tpu.memory_space<vmem>>, vector<1x8xf32>
    %683 = vector.extract_strided_slice %680 {offsets = [0, 0, 0], sizes = [1, 3, 8], strides = [1, 1, 1]} : vector<2x3x8xf32> to vector<1x3x8xf32>
    %684 = vector.shape_cast %683 : vector<1x3x8xf32> to vector<3x8xf32>
    %685 = vector.extract_strided_slice %678 {offsets = [0, 0, 0], sizes = [1, 3, 16], strides = [1, 1, 1]} : vector<4x3x16xf32> to vector<1x3x16xf32>
    %686 = vector.shape_cast %685 : vector<1x3x16xf32> to vector<3x16xf32>
    %687 = vector.extract_strided_slice %677 {offsets = [0, 0, 0], sizes = [1, 32, 16], strides = [1, 1, 1]} : vector<4x32x16xf32> to vector<1x32x16xf32>
    %688 = vector.shape_cast %687 : vector<1x32x16xf32> to vector<32x16xf32>
    %cst_137 = arith.constant dense<0.000000e+00> : vector<2x16xf32>
    %689 = tpu.matmul %676, %688, %cst_137 {dimension_numbers = #tpu.dot_dimension_numbers<[1], [0], [0], [1], [0, 0, 1, 1], [], []>} : vector<2x32xf32>, vector<32x16xf32>, vector<2x16xf32> -> vector<2x16xf32>
    %690 = vector.extract_strided_slice %686 {offsets = [0, 0], sizes = [1, 16], strides = [1, 1]} : vector<3x16xf32> to vector<1x16xf32>
    %691 = vector.broadcast %690 : vector<1x16xf32> to vector<2x16xf32>
    %692 = arith.addf %689, %691 : vector<2x16xf32>
    %693 = vector.extract_strided_slice %686 {offsets = [1, 0], sizes = [1, 16], strides = [1, 1]} : vector<3x16xf32> to vector<1x16xf32>
    %694 = vector.extract_strided_slice %686 {offsets = [2, 0], sizes = [1, 16], strides = [1, 1]} : vector<3x16xf32> to vector<1x16xf32>
    %cst_138 = arith.constant dense<0.000000e+00> : vector<2xf32>
    %695 = vector.multi_reduction <add>, %692, %cst_138 [1] : vector<2x16xf32> to vector<2xf32>
    %696 = vector.shape_cast %695 : vector<2xf32> to vector<2x1xf32>
    %cst_139 = arith.constant 1.600000e+01 : f32
    %697 = vector.broadcast %cst_139 : f32 to vector<2x1xf32>
    %698 = arith.divf %696, %697 : vector<2x1xf32>
    %699 = vector.broadcast %698 : vector<2x1xf32> to vector<2x16xf32>
    %700 = arith.subf %692, %699 : vector<2x16xf32>
    %701 = arith.mulf %700, %700 : vector<2x16xf32>
    %cst_140 = arith.constant dense<0.000000e+00> : vector<2xf32>
    %702 = vector.multi_reduction <add>, %701, %cst_140 [1] : vector<2x16xf32> to vector<2xf32>
    %703 = vector.shape_cast %702 : vector<2xf32> to vector<2x1xf32>
    %cst_141 = arith.constant 1.600000e+01 : f32
    %704 = vector.broadcast %cst_141 : f32 to vector<2x1xf32>
    %705 = arith.divf %703, %704 : vector<2x1xf32>
    %706 = vector.broadcast %698 : vector<2x1xf32> to vector<2x16xf32>
    %707 = arith.subf %692, %706 : vector<2x16xf32>
    %cst_142 = arith.constant 9.99999974E-6 : f32
    %708 = vector.broadcast %cst_142 : f32 to vector<2x1xf32>
    %709 = arith.addf %705, %708 : vector<2x1xf32>
    %710 = math.rsqrt %709 : vector<2x1xf32>
    %711 = vector.broadcast %710 : vector<2x1xf32> to vector<2x16xf32>
    %712 = arith.mulf %707, %711 : vector<2x16xf32>
    %713 = vector.broadcast %693 : vector<1x16xf32> to vector<2x16xf32>
    %714 = arith.mulf %712, %713 : vector<2x16xf32>
    %715 = vector.broadcast %694 : vector<1x16xf32> to vector<2x16xf32>
    %716 = arith.addf %714, %715 : vector<2x16xf32>
    %cst_143 = arith.constant 0.000000e+00 : f32
    %717 = vector.broadcast %cst_143 : f32 to vector<2x16xf32>
    %718 = arith.maximumf %716, %717 : vector<2x16xf32>
    %719 = vector.extract_strided_slice %679 {offsets = [0, 0, 0], sizes = [1, 16, 8], strides = [1, 1, 1]} : vector<2x16x8xf32> to vector<1x16x8xf32>
    %720 = vector.shape_cast %719 : vector<1x16x8xf32> to vector<16x8xf32>
    %cst_144 = arith.constant dense<0.000000e+00> : vector<2x8xf32>
    %721 = tpu.matmul %718, %720, %cst_144 {dimension_numbers = #tpu.dot_dimension_numbers<[1], [0], [0], [1], [0, 0, 1, 1], [], []>} : vector<2x16xf32>, vector<16x8xf32>, vector<2x8xf32> -> vector<2x8xf32>
    %722 = vector.extract_strided_slice %684 {offsets = [0, 0], sizes = [1, 8], strides = [1, 1]} : vector<3x8xf32> to vector<1x8xf32>
    %723 = vector.broadcast %722 : vector<1x8xf32> to vector<2x8xf32>
    %724 = arith.addf %721, %723 : vector<2x8xf32>
    %725 = vector.extract_strided_slice %684 {offsets = [1, 0], sizes = [1, 8], strides = [1, 1]} : vector<3x8xf32> to vector<1x8xf32>
    %726 = vector.extract_strided_slice %684 {offsets = [2, 0], sizes = [1, 8], strides = [1, 1]} : vector<3x8xf32> to vector<1x8xf32>
    %cst_145 = arith.constant dense<0.000000e+00> : vector<2xf32>
    %727 = vector.multi_reduction <add>, %724, %cst_145 [1] : vector<2x8xf32> to vector<2xf32>
    %728 = vector.shape_cast %727 : vector<2xf32> to vector<2x1xf32>
    %cst_146 = arith.constant 8.000000e+00 : f32
    %729 = vector.broadcast %cst_146 : f32 to vector<2x1xf32>
    %730 = arith.divf %728, %729 : vector<2x1xf32>
    %731 = vector.broadcast %730 : vector<2x1xf32> to vector<2x8xf32>
    %732 = arith.subf %724, %731 : vector<2x8xf32>
    %733 = arith.mulf %732, %732 : vector<2x8xf32>
    %cst_147 = arith.constant dense<0.000000e+00> : vector<2xf32>
    %734 = vector.multi_reduction <add>, %733, %cst_147 [1] : vector<2x8xf32> to vector<2xf32>
    %735 = vector.shape_cast %734 : vector<2xf32> to vector<2x1xf32>
    %cst_148 = arith.constant 8.000000e+00 : f32
    %736 = vector.broadcast %cst_148 : f32 to vector<2x1xf32>
    %737 = arith.divf %735, %736 : vector<2x1xf32>
    %738 = vector.broadcast %730 : vector<2x1xf32> to vector<2x8xf32>
    %739 = arith.subf %724, %738 : vector<2x8xf32>
    %cst_149 = arith.constant 9.99999974E-6 : f32
    %740 = vector.broadcast %cst_149 : f32 to vector<2x1xf32>
    %741 = arith.addf %737, %740 : vector<2x1xf32>
    %742 = math.rsqrt %741 : vector<2x1xf32>
    %743 = vector.broadcast %742 : vector<2x1xf32> to vector<2x8xf32>
    %744 = arith.mulf %739, %743 : vector<2x8xf32>
    %745 = vector.broadcast %725 : vector<1x8xf32> to vector<2x8xf32>
    %746 = arith.mulf %744, %745 : vector<2x8xf32>
    %747 = vector.broadcast %726 : vector<1x8xf32> to vector<2x8xf32>
    %748 = arith.addf %746, %747 : vector<2x8xf32>
    %cst_150 = arith.constant 0.000000e+00 : f32
    %749 = vector.broadcast %cst_150 : f32 to vector<2x8xf32>
    %750 = arith.maximumf %748, %749 : vector<2x8xf32>
    %751 = vector.extract_strided_slice %681 {offsets = [0, 0, 0], sizes = [1, 8, 1], strides = [1, 1, 1]} : vector<2x8x1xf32> to vector<1x8x1xf32>
    %752 = vector.shape_cast %751 : vector<1x8x1xf32> to vector<8x1xf32>
    %cst_151 = arith.constant dense<0.000000e+00> : vector<2x1xf32>
    %753 = tpu.matmul %750, %752, %cst_151 {dimension_numbers = #tpu.dot_dimension_numbers<[1], [0], [0], [1], [0, 0, 1, 1], [], []>} : vector<2x8xf32>, vector<8x1xf32>, vector<2x1xf32> -> vector<2x1xf32>
    %754 = vector.extract_strided_slice %682 {offsets = [0, 0], sizes = [1, 1], strides = [1, 1]} : vector<1x8xf32> to vector<1x1xf32>
    %755 = vector.broadcast %754 : vector<1x1xf32> to vector<2x1xf32>
    %756 = arith.addf %753, %755 : vector<2x1xf32>
    %757 = vector.extract_strided_slice %680 {offsets = [1, 0, 0], sizes = [1, 3, 8], strides = [1, 1, 1]} : vector<2x3x8xf32> to vector<1x3x8xf32>
    %758 = vector.shape_cast %757 : vector<1x3x8xf32> to vector<3x8xf32>
    %759 = vector.extract_strided_slice %678 {offsets = [1, 0, 0], sizes = [1, 3, 16], strides = [1, 1, 1]} : vector<4x3x16xf32> to vector<1x3x16xf32>
    %760 = vector.shape_cast %759 : vector<1x3x16xf32> to vector<3x16xf32>
    %761 = vector.extract_strided_slice %677 {offsets = [1, 0, 0], sizes = [1, 32, 16], strides = [1, 1, 1]} : vector<4x32x16xf32> to vector<1x32x16xf32>
    %762 = vector.shape_cast %761 : vector<1x32x16xf32> to vector<32x16xf32>
    %cst_152 = arith.constant dense<0.000000e+00> : vector<2x16xf32>
    %763 = tpu.matmul %676, %762, %cst_152 {dimension_numbers = #tpu.dot_dimension_numbers<[1], [0], [0], [1], [0, 0, 1, 1], [], []>} : vector<2x32xf32>, vector<32x16xf32>, vector<2x16xf32> -> vector<2x16xf32>
    %764 = vector.extract_strided_slice %760 {offsets = [0, 0], sizes = [1, 16], strides = [1, 1]} : vector<3x16xf32> to vector<1x16xf32>
    %765 = vector.broadcast %764 : vector<1x16xf32> to vector<2x16xf32>
    %766 = arith.addf %763, %765 : vector<2x16xf32>
    %767 = vector.extract_strided_slice %760 {offsets = [1, 0], sizes = [1, 16], strides = [1, 1]} : vector<3x16xf32> to vector<1x16xf32>
    %768 = vector.extract_strided_slice %760 {offsets = [2, 0], sizes = [1, 16], strides = [1, 1]} : vector<3x16xf32> to vector<1x16xf32>
    %cst_153 = arith.constant dense<0.000000e+00> : vector<2xf32>
    %769 = vector.multi_reduction <add>, %766, %cst_153 [1] : vector<2x16xf32> to vector<2xf32>
    %770 = vector.shape_cast %769 : vector<2xf32> to vector<2x1xf32>
    %cst_154 = arith.constant 1.600000e+01 : f32
    %771 = vector.broadcast %cst_154 : f32 to vector<2x1xf32>
    %772 = arith.divf %770, %771 : vector<2x1xf32>
    %773 = vector.broadcast %772 : vector<2x1xf32> to vector<2x16xf32>
    %774 = arith.subf %766, %773 : vector<2x16xf32>
    %775 = arith.mulf %774, %774 : vector<2x16xf32>
    %cst_155 = arith.constant dense<0.000000e+00> : vector<2xf32>
    %776 = vector.multi_reduction <add>, %775, %cst_155 [1] : vector<2x16xf32> to vector<2xf32>
    %777 = vector.shape_cast %776 : vector<2xf32> to vector<2x1xf32>
    %cst_156 = arith.constant 1.600000e+01 : f32
    %778 = vector.broadcast %cst_156 : f32 to vector<2x1xf32>
    %779 = arith.divf %777, %778 : vector<2x1xf32>
    %780 = vector.broadcast %772 : vector<2x1xf32> to vector<2x16xf32>
    %781 = arith.subf %766, %780 : vector<2x16xf32>
    %cst_157 = arith.constant 9.99999974E-6 : f32
    %782 = vector.broadcast %cst_157 : f32 to vector<2x1xf32>
    %783 = arith.addf %779, %782 : vector<2x1xf32>
    %784 = math.rsqrt %783 : vector<2x1xf32>
    %785 = vector.broadcast %784 : vector<2x1xf32> to vector<2x16xf32>
    %786 = arith.mulf %781, %785 : vector<2x16xf32>
    %787 = vector.broadcast %767 : vector<1x16xf32> to vector<2x16xf32>
    %788 = arith.mulf %786, %787 : vector<2x16xf32>
    %789 = vector.broadcast %768 : vector<1x16xf32> to vector<2x16xf32>
    %790 = arith.addf %788, %789 : vector<2x16xf32>
    %cst_158 = arith.constant 0.000000e+00 : f32
    %791 = vector.broadcast %cst_158 : f32 to vector<2x16xf32>
    %792 = arith.maximumf %790, %791 : vector<2x16xf32>
    %793 = vector.extract_strided_slice %679 {offsets = [1, 0, 0], sizes = [1, 16, 8], strides = [1, 1, 1]} : vector<2x16x8xf32> to vector<1x16x8xf32>
    %794 = vector.shape_cast %793 : vector<1x16x8xf32> to vector<16x8xf32>
    %cst_159 = arith.constant dense<0.000000e+00> : vector<2x8xf32>
    %795 = tpu.matmul %792, %794, %cst_159 {dimension_numbers = #tpu.dot_dimension_numbers<[1], [0], [0], [1], [0, 0, 1, 1], [], []>} : vector<2x16xf32>, vector<16x8xf32>, vector<2x8xf32> -> vector<2x8xf32>
    %796 = vector.extract_strided_slice %758 {offsets = [0, 0], sizes = [1, 8], strides = [1, 1]} : vector<3x8xf32> to vector<1x8xf32>
    %797 = vector.broadcast %796 : vector<1x8xf32> to vector<2x8xf32>
    %798 = arith.addf %795, %797 : vector<2x8xf32>
    %799 = vector.extract_strided_slice %758 {offsets = [1, 0], sizes = [1, 8], strides = [1, 1]} : vector<3x8xf32> to vector<1x8xf32>
    %800 = vector.extract_strided_slice %758 {offsets = [2, 0], sizes = [1, 8], strides = [1, 1]} : vector<3x8xf32> to vector<1x8xf32>
    %cst_160 = arith.constant dense<0.000000e+00> : vector<2xf32>
    %801 = vector.multi_reduction <add>, %798, %cst_160 [1] : vector<2x8xf32> to vector<2xf32>
    %802 = vector.shape_cast %801 : vector<2xf32> to vector<2x1xf32>
    %cst_161 = arith.constant 8.000000e+00 : f32
    %803 = vector.broadcast %cst_161 : f32 to vector<2x1xf32>
    %804 = arith.divf %802, %803 : vector<2x1xf32>
    %805 = vector.broadcast %804 : vector<2x1xf32> to vector<2x8xf32>
    %806 = arith.subf %798, %805 : vector<2x8xf32>
    %807 = arith.mulf %806, %806 : vector<2x8xf32>
    %cst_162 = arith.constant dense<0.000000e+00> : vector<2xf32>
    %808 = vector.multi_reduction <add>, %807, %cst_162 [1] : vector<2x8xf32> to vector<2xf32>
    %809 = vector.shape_cast %808 : vector<2xf32> to vector<2x1xf32>
    %cst_163 = arith.constant 8.000000e+00 : f32
    %810 = vector.broadcast %cst_163 : f32 to vector<2x1xf32>
    %811 = arith.divf %809, %810 : vector<2x1xf32>
    %812 = vector.broadcast %804 : vector<2x1xf32> to vector<2x8xf32>
    %813 = arith.subf %798, %812 : vector<2x8xf32>
    %cst_164 = arith.constant 9.99999974E-6 : f32
    %814 = vector.broadcast %cst_164 : f32 to vector<2x1xf32>
    %815 = arith.addf %811, %814 : vector<2x1xf32>
    %816 = math.rsqrt %815 : vector<2x1xf32>
    %817 = vector.broadcast %816 : vector<2x1xf32> to vector<2x8xf32>
    %818 = arith.mulf %813, %817 : vector<2x8xf32>
    %819 = vector.broadcast %799 : vector<1x8xf32> to vector<2x8xf32>
    %820 = arith.mulf %818, %819 : vector<2x8xf32>
    %821 = vector.broadcast %800 : vector<1x8xf32> to vector<2x8xf32>
    %822 = arith.addf %820, %821 : vector<2x8xf32>
    %cst_165 = arith.constant 0.000000e+00 : f32
    %823 = vector.broadcast %cst_165 : f32 to vector<2x8xf32>
    %824 = arith.maximumf %822, %823 : vector<2x8xf32>
    %825 = vector.extract_strided_slice %681 {offsets = [1, 0, 0], sizes = [1, 8, 1], strides = [1, 1, 1]} : vector<2x8x1xf32> to vector<1x8x1xf32>
    %826 = vector.shape_cast %825 : vector<1x8x1xf32> to vector<8x1xf32>
    %cst_166 = arith.constant dense<0.000000e+00> : vector<2x1xf32>
    %827 = tpu.matmul %824, %826, %cst_166 {dimension_numbers = #tpu.dot_dimension_numbers<[1], [0], [0], [1], [0, 0, 1, 1], [], []>} : vector<2x8xf32>, vector<8x1xf32>, vector<2x1xf32> -> vector<2x1xf32>
    %828 = vector.extract_strided_slice %682 {offsets = [0, 1], sizes = [1, 1], strides = [1, 1]} : vector<1x8xf32> to vector<1x1xf32>
    %829 = vector.broadcast %828 : vector<1x1xf32> to vector<2x1xf32>
    %830 = arith.addf %827, %829 : vector<2x1xf32>
    %831 = math.absf %830 : vector<2x1xf32>
    %832 = vector.extract_strided_slice %678 {offsets = [2, 0, 0], sizes = [1, 3, 16], strides = [1, 1, 1]} : vector<4x3x16xf32> to vector<1x3x16xf32>
    %833 = vector.shape_cast %832 : vector<1x3x16xf32> to vector<3x16xf32>
    %834 = vector.extract_strided_slice %677 {offsets = [2, 0, 0], sizes = [1, 32, 16], strides = [1, 1, 1]} : vector<4x32x16xf32> to vector<1x32x16xf32>
    %835 = vector.shape_cast %834 : vector<1x32x16xf32> to vector<32x16xf32>
    %cst_167 = arith.constant dense<0.000000e+00> : vector<2x16xf32>
    %836 = tpu.matmul %676, %835, %cst_167 {dimension_numbers = #tpu.dot_dimension_numbers<[1], [0], [0], [1], [0, 0, 1, 1], [], []>} : vector<2x32xf32>, vector<32x16xf32>, vector<2x16xf32> -> vector<2x16xf32>
    %837 = vector.extract_strided_slice %833 {offsets = [0, 0], sizes = [1, 16], strides = [1, 1]} : vector<3x16xf32> to vector<1x16xf32>
    %838 = vector.broadcast %837 : vector<1x16xf32> to vector<2x16xf32>
    %839 = arith.addf %836, %838 : vector<2x16xf32>
    %840 = vector.extract_strided_slice %833 {offsets = [1, 0], sizes = [1, 16], strides = [1, 1]} : vector<3x16xf32> to vector<1x16xf32>
    %841 = vector.extract_strided_slice %833 {offsets = [2, 0], sizes = [1, 16], strides = [1, 1]} : vector<3x16xf32> to vector<1x16xf32>
    %cst_168 = arith.constant dense<0.000000e+00> : vector<2xf32>
    %842 = vector.multi_reduction <add>, %839, %cst_168 [1] : vector<2x16xf32> to vector<2xf32>
    %843 = vector.shape_cast %842 : vector<2xf32> to vector<2x1xf32>
    %cst_169 = arith.constant 1.600000e+01 : f32
    %844 = vector.broadcast %cst_169 : f32 to vector<2x1xf32>
    %845 = arith.divf %843, %844 : vector<2x1xf32>
    %846 = vector.broadcast %845 : vector<2x1xf32> to vector<2x16xf32>
    %847 = arith.subf %839, %846 : vector<2x16xf32>
    %848 = arith.mulf %847, %847 : vector<2x16xf32>
    %cst_170 = arith.constant dense<0.000000e+00> : vector<2xf32>
    %849 = vector.multi_reduction <add>, %848, %cst_170 [1] : vector<2x16xf32> to vector<2xf32>
    %850 = vector.shape_cast %849 : vector<2xf32> to vector<2x1xf32>
    %cst_171 = arith.constant 1.600000e+01 : f32
    %851 = vector.broadcast %cst_171 : f32 to vector<2x1xf32>
    %852 = arith.divf %850, %851 : vector<2x1xf32>
    %853 = vector.broadcast %845 : vector<2x1xf32> to vector<2x16xf32>
    %854 = arith.subf %839, %853 : vector<2x16xf32>
    %cst_172 = arith.constant 9.99999974E-6 : f32
    %855 = vector.broadcast %cst_172 : f32 to vector<2x1xf32>
    %856 = arith.addf %852, %855 : vector<2x1xf32>
    %857 = math.rsqrt %856 : vector<2x1xf32>
    %858 = vector.broadcast %857 : vector<2x1xf32> to vector<2x16xf32>
    %859 = arith.mulf %854, %858 : vector<2x16xf32>
    %860 = vector.broadcast %840 : vector<1x16xf32> to vector<2x16xf32>
    %861 = arith.mulf %859, %860 : vector<2x16xf32>
    %862 = vector.broadcast %841 : vector<1x16xf32> to vector<2x16xf32>
    %863 = arith.addf %861, %862 : vector<2x16xf32>
    %cst_173 = arith.constant 0.000000e+00 : f32
    %864 = vector.broadcast %cst_173 : f32 to vector<2x16xf32>
    %865 = arith.maximumf %863, %864 : vector<2x16xf32>
    %c0_174 = arith.constant 0 : index
    %c0_175 = arith.constant 0 : index
    %866 = vector.load %arg14[%c0_174, %c0_175] : memref<16x2xf32, #tpu.memory_space<vmem>>, vector<16x2xf32>
    %cst_176 = arith.constant dense<0.000000e+00> : vector<2x2xf32>
    %867 = tpu.matmul %865, %866, %cst_176 {dimension_numbers = #tpu.dot_dimension_numbers<[1], [0], [0], [1], [0, 0, 1, 1], [], []>} : vector<2x16xf32>, vector<16x2xf32>, vector<2x2xf32> -> vector<2x2xf32>
    %868 = vector.extract_strided_slice %682 {offsets = [0, 2], sizes = [1, 2], strides = [1, 1]} : vector<1x8xf32> to vector<1x2xf32>
    %869 = vector.broadcast %868 : vector<1x2xf32> to vector<2x2xf32>
    %870 = arith.addf %867, %869 : vector<2x2xf32>
    %871 = vector.extract_strided_slice %678 {offsets = [3, 0, 0], sizes = [1, 3, 16], strides = [1, 1, 1]} : vector<4x3x16xf32> to vector<1x3x16xf32>
    %872 = vector.shape_cast %871 : vector<1x3x16xf32> to vector<3x16xf32>
    %873 = vector.extract_strided_slice %677 {offsets = [3, 0, 0], sizes = [1, 32, 16], strides = [1, 1, 1]} : vector<4x32x16xf32> to vector<1x32x16xf32>
    %874 = vector.shape_cast %873 : vector<1x32x16xf32> to vector<32x16xf32>
    %cst_177 = arith.constant dense<0.000000e+00> : vector<2x16xf32>
    %875 = tpu.matmul %676, %874, %cst_177 {dimension_numbers = #tpu.dot_dimension_numbers<[1], [0], [0], [1], [0, 0, 1, 1], [], []>} : vector<2x32xf32>, vector<32x16xf32>, vector<2x16xf32> -> vector<2x16xf32>
    %876 = vector.extract_strided_slice %872 {offsets = [0, 0], sizes = [1, 16], strides = [1, 1]} : vector<3x16xf32> to vector<1x16xf32>
    %877 = vector.broadcast %876 : vector<1x16xf32> to vector<2x16xf32>
    %878 = arith.addf %875, %877 : vector<2x16xf32>
    %879 = vector.extract_strided_slice %872 {offsets = [1, 0], sizes = [1, 16], strides = [1, 1]} : vector<3x16xf32> to vector<1x16xf32>
    %880 = vector.extract_strided_slice %872 {offsets = [2, 0], sizes = [1, 16], strides = [1, 1]} : vector<3x16xf32> to vector<1x16xf32>
    %cst_178 = arith.constant dense<0.000000e+00> : vector<2xf32>
    %881 = vector.multi_reduction <add>, %878, %cst_178 [1] : vector<2x16xf32> to vector<2xf32>
    %882 = vector.shape_cast %881 : vector<2xf32> to vector<2x1xf32>
    %cst_179 = arith.constant 1.600000e+01 : f32
    %883 = vector.broadcast %cst_179 : f32 to vector<2x1xf32>
    %884 = arith.divf %882, %883 : vector<2x1xf32>
    %885 = vector.broadcast %884 : vector<2x1xf32> to vector<2x16xf32>
    %886 = arith.subf %878, %885 : vector<2x16xf32>
    %887 = arith.mulf %886, %886 : vector<2x16xf32>
    %cst_180 = arith.constant dense<0.000000e+00> : vector<2xf32>
    %888 = vector.multi_reduction <add>, %887, %cst_180 [1] : vector<2x16xf32> to vector<2xf32>
    %889 = vector.shape_cast %888 : vector<2xf32> to vector<2x1xf32>
    %cst_181 = arith.constant 1.600000e+01 : f32
    %890 = vector.broadcast %cst_181 : f32 to vector<2x1xf32>
    %891 = arith.divf %889, %890 : vector<2x1xf32>
    %892 = vector.broadcast %884 : vector<2x1xf32> to vector<2x16xf32>
    %893 = arith.subf %878, %892 : vector<2x16xf32>
    %cst_182 = arith.constant 9.99999974E-6 : f32
    %894 = vector.broadcast %cst_182 : f32 to vector<2x1xf32>
    %895 = arith.addf %891, %894 : vector<2x1xf32>
    %896 = math.rsqrt %895 : vector<2x1xf32>
    %897 = vector.broadcast %896 : vector<2x1xf32> to vector<2x16xf32>
    %898 = arith.mulf %893, %897 : vector<2x16xf32>
    %899 = vector.broadcast %879 : vector<1x16xf32> to vector<2x16xf32>
    %900 = arith.mulf %898, %899 : vector<2x16xf32>
    %901 = vector.broadcast %880 : vector<1x16xf32> to vector<2x16xf32>
    %902 = arith.addf %900, %901 : vector<2x16xf32>
    %cst_183 = arith.constant 0.000000e+00 : f32
    %903 = vector.broadcast %cst_183 : f32 to vector<2x16xf32>
    %904 = arith.maximumf %902, %903 : vector<2x16xf32>
    %c0_184 = arith.constant 0 : index
    %c0_185 = arith.constant 0 : index
    %905 = vector.load %arg15[%c0_184, %c0_185] : memref<16x1xf32, #tpu.memory_space<vmem>>, vector<16x1xf32>
    %cst_186 = arith.constant dense<0.000000e+00> : vector<2x1xf32>
    %906 = tpu.matmul %904, %905, %cst_186 {dimension_numbers = #tpu.dot_dimension_numbers<[1], [0], [0], [1], [0, 0, 1, 1], [], []>} : vector<2x16xf32>, vector<16x1xf32>, vector<2x1xf32> -> vector<2x1xf32>
    %907 = vector.extract_strided_slice %682 {offsets = [0, 4], sizes = [1, 1], strides = [1, 1]} : vector<1x8xf32> to vector<1x1xf32>
    %908 = vector.broadcast %907 : vector<1x1xf32> to vector<2x1xf32>
    %909 = arith.addf %906, %908 : vector<2x1xf32>
    %910 = math.absf %909 : vector<2x1xf32>
    %911 = tpu.concatenate %756, %831, %870, %910 in 1 : vector<2x1xf32>, vector<2x1xf32>, vector<2x2xf32>, vector<2x1xf32> -> vector<2x5xf32>
    %cst_187 = arith.constant 0.000000e+00 : f32
    %912 = vector.broadcast %cst_187 : f32 to vector<2x3xf32>
    %913 = tpu.concatenate %911, %912 in 1 : vector<2x5xf32>, vector<2x3xf32> -> vector<2x8xf32>
    %c0_188 = arith.constant 0 : index
    %c0_189 = arith.constant 0 : index
    %914 = vector.load %arg17[%c0_188, %c0_189] : memref<2x8xf32, #tpu.memory_space<vmem>>, vector<2x8xf32>
    tpu.vector_store %arg17[%c0_188, %c0_189], %913 {strides = array<i32>} : memref<2x8xf32, #tpu.memory_space<vmem>>, vector<2x8xf32>,
    return
  }
}

</mosaic_0001>

<llo_original>
// kernel: _forward_impl.1
$region0: #{_forward_impl.1}
  #allocation0 [shape = 'u32[]', space=smem, size = 0x4, offset = 0x4, fixed_abs, tag = 'smem constant byte address 0x4 - core index']
  #allocation1 [shape = 'u32[72,128]{1,0:T(1,128)}', space=vmem, size = 0x9000, scoped, tag = 'internal scratch']
  %s0 = inlined_call_operand.vmem [shape: f32[2,8,16], index: 0, kind: input, shape index: {}]
  %s1 = inlined_call_operand.vmem [shape: f32[16,32], index: 1, kind: input, shape index: {}]
  %s2 = inlined_call_operand.vmem [shape: f32[2,64,128], index: 2, kind: input, shape index: {}]
  %s3 = inlined_call_operand.vmem [shape: f32[2,128], index: 3, kind: input, shape index: {}]
  %s4 = inlined_call_operand.vmem [shape: f32[32,96], index: 4, kind: input, shape index: {}]
  %s5 = inlined_call_operand.vmem [shape: f32[1,96], index: 5, kind: input, shape index: {}]
  %s6 = inlined_call_operand.vmem [shape: f32[32,32], index: 6, kind: input, shape index: {}]
  %s7 = inlined_call_operand.vmem [shape: f32[64,32], index: 7, kind: input, shape index: {}]
  %s8 = inlined_call_operand.vmem [shape: f32[16,32], index: 8, kind: input, shape index: {}]
  %s9 = inlined_call_operand.vmem [shape: f32[4,32,16], index: 9, kind: input, shape index: {}]
  %s10 = inlined_call_operand.vmem [shape: f32[4,3,16], index: 10, kind: input, shape index: {}]
  %s11 = inlined_call_operand.vmem [shape: f32[2,16,8], index: 11, kind: input, shape index: {}]
  %s12 = inlined_call_operand.vmem [shape: f32[2,3,8], index: 12, kind: input, shape index: {}]
  %s13 = inlined_call_operand.vmem [shape: f32[2,8,1], index: 13, kind: input, shape index: {}]
  %s14 = inlined_call_operand.vmem [shape: f32[16,2], index: 14, kind: input, shape index: {}]
  %s15 = inlined_call_operand.vmem [shape: f32[16,1], index: 15, kind: input, shape index: {}]
  %s16 = inlined_call_operand.vmem [shape: f32[1,8], index: 16, kind: input, shape index: {}]
  %s17 = inlined_call_operand.vmem [shape: f32[2,8], index: 17, kind: output, shape index: {}]
  %s18 = sld [smem:[#allocation0]]
  $region78: #{_forward_impl.1} parent=0
    _
  %s20 = ssub.s32 1, %s18
  %s21 = scalar_select 0, %s20, %s18
  // Predicated region
  $region2: #{_forward_impl.1} parent=0 // pred_check
    _
  $region3: #{_forward_impl.1} parent=0 // pred_check_branch
    %23 = sbr.rel (0) target = $region5
  $region4: #{_forward_impl.1} parent=0 // pred_region
    _
  $region5: #{_forward_impl.1} parent=0 // pred_fallthru
    _
  // Predicated region
  $region6: #{_forward_impl.1} parent=0 // pred_check
    _
  $region7: #{_forward_impl.1} parent=0 // pred_check_branch
    %25 = sbr.rel (0) target = $region9
  $region8: #{_forward_impl.1} parent=0 // pred_region
    _
  $region9: #{_forward_impl.1} parent=0 // pred_fallthru
    _
  // Predicated region
  $region10: #{_forward_impl.1} parent=0 // pred_check
    _
  $region11: #{_forward_impl.1} parent=0 // pred_check_branch
    %27 = sbr.rel (0) target = $region13
  $region12: #{_forward_impl.1} parent=0 // pred_region
    _
  $region13: #{_forward_impl.1} parent=0 // pred_fallthru
    _
  // Predicated region
  $region14: #{_forward_impl.1} parent=0 // pred_check
    _
  $region15: #{_forward_impl.1} parent=0 // pred_check_branch
    %29 = sbr.rel (0) target = $region17
  $region16: #{_forward_impl.1} parent=0 // pred_region
    _
  $region17: #{_forward_impl.1} parent=0 // pred_fallthru
    _
  // Predicated region
  $region18: #{_forward_impl.1} parent=0 // pred_check
    _
  $region19: #{_forward_impl.1} parent=0 // pred_check_branch
    %31 = sbr.rel (0) target = $region21
  $region20: #{_forward_impl.1} parent=0 // pred_region
    _
  $region21: #{_forward_impl.1} parent=0 // pred_fallthru
    _
  // Predicated region
  $region22: #{_forward_impl.1} parent=0 // pred_check
    _
  $region23: #{_forward_impl.1} parent=0 // pred_check_branch
    %33 = sbr.rel (0) target = $region25
  $region24: #{_forward_impl.1} parent=0 // pred_region
    _
  $region25: #{_forward_impl.1} parent=0 // pred_fallthru
    _
  // Predicated region
  $region26: #{_forward_impl.1} parent=0 // pred_check
    _
  $region27: #{_forward_impl.1} parent=0 // pred_check_branch
    %35 = sbr.rel (0) target = $region29
  $region28: #{_forward_impl.1} parent=0 // pred_region
    _
  $region29: #{_forward_impl.1} parent=0 // pred_fallthru
    _
  // Predicated region
  $region30: #{_forward_impl.1} parent=0 // pred_check
    _
  $region31: #{_forward_impl.1} parent=0 // pred_check_branch
    %37 = sbr.rel (0) target = $region33
  $region32: #{_forward_impl.1} parent=0 // pred_region
    _
  $region33: #{_forward_impl.1} parent=0 // pred_fallthru
    _
  // Predicated region
  $region34: #{_forward_impl.1} parent=0 // pred_check
    _
  $region35: #{_forward_impl.1} parent=0 // pred_check_branch
    %39 = sbr.rel (0) target = $region37
  $region36: #{_forward_impl.1} parent=0 // pred_region
    _
  $region37: #{_forward_impl.1} parent=0 // pred_fallthru
    _
  // Predicated region
  $region38: #{_forward_impl.1} parent=0 // pred_check
    _
  $region39: #{_forward_impl.1} parent=0 // pred_check_branch
    %41 = sbr.rel (0) target = $region41
  $region40: #{_forward_impl.1} parent=0 // pred_region
    _
  $region41: #{_forward_impl.1} parent=0 // pred_fallthru
    _
  // Predicated region
  $region42: #{_forward_impl.1} parent=0 // pred_check
    _
  $region43: #{_forward_impl.1} parent=0 // pred_check_branch
    %43 = sbr.rel (0) target = $region45
  $region44: #{_forward_impl.1} parent=0 // pred_region
    _
  $region45: #{_forward_impl.1} parent=0 // pred_fallthru
    _
  // Predicated region
  $region46: #{_forward_impl.1} parent=0 // pred_check
    _
  $region47: #{_forward_impl.1} parent=0 // pred_check_branch
    %45 = sbr.rel (0) target = $region49
  $region48: #{_forward_impl.1} parent=0 // pred_region
    _
  $region49: #{_forward_impl.1} parent=0 // pred_fallthru
    _
  // Predicated region
  $region50: #{_forward_impl.1} parent=0 // pred_check
    _
  $region51: #{_forward_impl.1} parent=0 // pred_check_branch
    %47 = sbr.rel (0) target = $region53
  $region52: #{_forward_impl.1} parent=0 // pred_region
    _
  $region53: #{_forward_impl.1} parent=0 // pred_fallthru
    _
  // Predicated region
  $region54: #{_forward_impl.1} parent=0 // pred_check
    _
  $region55: #{_forward_impl.1} parent=0 // pred_check_branch
    %49 = sbr.rel (0) target = $region57
  $region56: #{_forward_impl.1} parent=0 // pred_region
    _
  $region57: #{_forward_impl.1} parent=0 // pred_fallthru
    _
  // Predicated region
  $region58: #{_forward_impl.1} parent=0 // pred_check
    _
  $region59: #{_forward_impl.1} parent=0 // pred_check_branch
    %51 = sbr.rel (0) target = $region61
  $region60: #{_forward_impl.1} parent=0 // pred_region
    _
  $region61: #{_forward_impl.1} parent=0 // pred_fallthru
    _
  // Predicated region
  $region62: #{_forward_impl.1} parent=0 // pred_check
    _
  $region63: #{_forward_impl.1} parent=0 // pred_check_branch
    %53 = sbr.rel (0) target = $region65
  $region64: #{_forward_impl.1} parent=0 // pred_region
    _
  $region65: #{_forward_impl.1} parent=0 // pred_fallthru
    _
  // Predicated region
  $region66: #{_forward_impl.1} parent=0 // pred_check
    _
  $region67: #{_forward_impl.1} parent=0 // pred_check_branch
    %55 = sbr.rel (0) target = $region69
  $region68: #{_forward_impl.1} parent=0 // pred_region
    _
  $region69: #{_forward_impl.1} parent=0 // pred_fallthru
    _
  %v56 = vld [vmem:[%s8] sm:$0xff]
  %v57 = vld [vmem:[%s8 + $0x8] sm:$0xff]
  %v58 = vld [vmem:[%s0] sm:$0xff]
  %v59 = vld [vmem:[%s0 + $0x8] sm:$0xff]
  %v60 = vld [vmem:[%s1] sm:$0xff]
  %v61 = vld [vmem:[%s1 + $0x8] sm:$0xff]
  %v62 = vperm.slane %v56, 0
  %vm63 = vcmask 130048
  %v65 = vsel %vm63, %v58, 0
  %v68 = vsel %vm63, %v59, 0
  %70 = vmatpush.msra.mxu0 0.0
  %71 = vmatpush.msra.mxu0 0.0
  %72 = vmatpush.msra.mxu0 0.0
  %73 = vmatpush.msra.mxu0 0.0
  %74 = vmatpush.msra.mxu0 0.0
  %75 = vmatpush.msra.mxu0 0.0
  %76 = vmatpush.msra.mxu0 0.0
  %77 = vmatpush.msra.mxu0 0.0
  %78 = vmatpush.msra.mxu0 0.0
  %79 = vmatpush.msra.mxu0 0.0
  %80 = vmatpush.msra.mxu0 0.0
  %81 = vmatpush.msra.mxu0 0.0
  %82 = vmatpush.msra.mxu0 0.0
  %83 = vmatpush.msra.mxu0 0.0
  %84 = vmatpush.msra.mxu0 %v61
  %85 = vmatpush.msra.mxu0 %v60
  %86 = vmatmul.f32.gmra.mxu0 %v65
  %v87 = vpop.f32.mrf.mxu0
  %v88 = vadd.f32 %v62, %v87
  %89 = vmatmul.f32.gmra.mxu0 %v68
  %v90 = vpop.f32.mrf.mxu0
  %v91 = vadd.f32 %v62, %v90
  %92 = vdwg.mxu0
  %v93 = vadd.f32 %v56, 1e-05
  %v94 = vrsqrt.pop %v93
  %v95 = vmul.f32 %v94, %v93
  %v96 = vmul.f32 %v95, %v94
  %v97 = vmul.f32 0.5, %v96
  %v98 = vsub.f32 1.5, %v97
  %v99 = vmul.f32 %v94, %v98
  %vm100 = vweird.f32 %v93
  %vm101 = vweird.f32 %v94
  %vm102 = vmor %vm100, %vm101
  %v103 = vsel %vm102, %v94, %v99
  %v105 = vrot.slane %v103, 3
  %v107 = vmul.f32 %v56, %v105
  %v108 = vperm.slane %v56, 3
  %v109 = vsub.f32 %v88, %v108
  %v110 = vsub.f32 %v91, %v108
  %v111 = vperm.slane %v107, 1
  %v112 = vmul.f32 %v109, %v111
  %v113 = vmul.f32 %v110, %v111
  %v114 = vperm.slane %v56, 2
  %v115 = vadd.f32 %v112, %v114
  %v116 = vadd.f32 %v113, %v114
  %v117 = vld [vmem:[%s3] sm:$0x3]
  %v118 = vld [vmem:[%s2] sm:$0xff]
  %v119 = vld [vmem:[%s2 + $0x8] sm:$0xff]
  %v120 = vld [vmem:[%s2 + $0x10] sm:$0xff]
  %v121 = vld [vmem:[%s2 + $0x18] sm:$0xff]
  %v122 = vld [vmem:[%s2 + $0x20] sm:$0xff]
  %v123 = vld [vmem:[%s2 + $0x28] sm:$0xff]
  %v124 = vld [vmem:[%s2 + $0x30] sm:$0xff]
  %v125 = vld [vmem:[%s2 + $0x38] sm:$0xff]
  %v126 = vperm.slane %v117, 0
  %vm127 = vcmask 261120
  %v129 = vsel %vm127, %v115, 0
  %v132 = vsel %vm127, %v116, 0
  %134 = vmatpush.msra.mxu0 0.0
  %135 = vmatpush.msra.mxu0 0.0
  %136 = vmatpush.msra.mxu0 0.0
  %137 = vmatpush.msra.mxu0 0.0
  %138 = vmatpush.msra.mxu0 0.0
  %139 = vmatpush.msra.mxu0 0.0
  %140 = vmatpush.msra.mxu0 0.0
  %141 = vmatpush.msra.mxu0 0.0
  %142 = vmatpush.msra.mxu0 0.0
  %143 = vmatpush.msra.mxu0 0.0
  %144 = vmatpush.msra.mxu0 0.0
  %145 = vmatpush.msra.mxu0 0.0
  %146 = vmatpush.msra.mxu0 %v121
  %147 = vmatpush.msra.mxu0 %v120
  %148 = vmatpush.msra.mxu0 %v119
  %149 = vmatpush.msra.mxu0 %v118
  %150 = vmatmul.f32.gmra.mxu0 %v129
  %v151 = vpop.f32.mrf.mxu0
  %v152 = vadd.f32 %v126, %v151
  %153 = vmatmul.f32.gmra.mxu0 %v132
  %v154 = vpop.f32.mrf.mxu0
  %v155 = vadd.f32 %v126, %v154
  %156 = vdwg.mxu0
  %v158 = vsel %vm127, 0.0, 0
  %160 = vmatpush.msra.mxu0 0.0
  %161 = vmatpush.msra.mxu0 0.0
  %162 = vmatpush.msra.mxu0 0.0
  %163 = vmatpush.msra.mxu0 0.0
  %164 = vmatpush.msra.mxu0 0.0
  %165 = vmatpush.msra.mxu0 0.0
  %166 = vmatpush.msra.mxu0 0.0
  %167 = vmatpush.msra.mxu0 0.0
  %168 = vmatpush.msra.mxu0 0.0
  %169 = vmatpush.msra.mxu0 0.0
  %170 = vmatpush.msra.mxu0 0.0
  %171 = vmatpush.msra.mxu0 0.0
  %172 = vmatpush.msra.mxu0 %v125
  %173 = vmatpush.msra.mxu0 %v124
  %174 = vmatpush.msra.mxu0 %v123
  %175 = vmatpush.msra.mxu0 %v122
  %176 = vmatmul.f32.gmra.mxu0 %v158
  %v177 = vpop.f32.mrf.mxu0
  %v178 = vadd.f32 0.0, %v177
  %179 = vdwg.mxu0
  %v181 = vrot.slane %v178, 1
  %v184 = vadd.f32 %v152, %v178
  %v185 = vadd.f32 %v155, %v181
  %v186 = vxor.u32 %v184, 2147483648
  %v187 = vxor.u32 %v185, 2147483648
  %v188 = vmul.f32 %v186, 1.442695
  %v189 = vpow.pop %v188
  %v190 = vmul.f32 %v187, 1.442695
  %v191 = vpow.pop %v190
  %v192 = vadd.f32 %v189, 1.0
  %v193 = vadd.f32 %v191, 1.0
  %v194 = vrcp.pop %v192
  %v195 = vmul.f32 %v192, %v194
  %v196 = vsub.f32 1.0, %v195
  %v197 = vmul.f32 %v194, %v196
  %v198 = vadd.f32 %v194, %v197
  %vm199 = vweird.f32 %v192
  %vm200 = vweird.f32 %v194
  %vm201 = vmor %vm199, %vm200
  %v202 = vsel %vm201, %v194, %v198
  %v203 = vand.u32 2147483647, %v192
  %vm204 = vcmp.eq.f32.partialorder %v203, 8.507059e+37
  %v205 = vand.u32 %v192, 2147483648
  %v206 = vor.u32 1.1754944e-38, %v205
  %v207 = vsel %vm204, %v206, %v202
  %v208 = vmul.f32 1.0, %v207
  %v209 = vrcp.pop %v193
  %v210 = vmul.f32 %v193, %v209
  %v211 = vsub.f32 1.0, %v210
  %v212 = vmul.f32 %v209, %v211
  %v213 = vadd.f32 %v209, %v212
  %vm214 = vweird.f32 %v193
  %vm215 = vweird.f32 %v209
  %vm216 = vmor %vm214, %vm215
  %v217 = vsel %vm216, %v209, %v213
  %v218 = vand.u32 2147483647, %v193
  %vm219 = vcmp.eq.f32.partialorder %v218, 8.507059e+37
  %v220 = vand.u32 %v193, 2147483648
  %v221 = vor.u32 1.1754944e-38, %v220
  %v222 = vsel %vm219, %v221, %v217
  %v223 = vmul.f32 1.0, %v222
  %v224 = vtanh.pop %v184
  %v225 = vtanh.pop %v185
  %v226 = vmul.f32 %v208, 0.0
  %v227 = vmul.f32 %v223, 0.0
  %230 = vrot.lane.b32.xlu0 %v224, 64
  %v231 = vpop.permute.xlu0 %230
  %232 = vrot.lane.b32.xlu0 %v225, 64
  %v233 = vpop.permute.xlu0 %232
  %v236 = vmul.f32 %v208, %v231
  %v237 = vmul.f32 %v223, %v233
  %240 = vrot.lane.b32.xlu0 %v236, 32
  %v241 = vpop.permute.xlu0 %240
  %242 = vrot.lane.b32.xlu0 %v237, 32
  %v243 = vpop.permute.xlu0 %242
  %v246 = vadd.f32 %v226, %v241
  %v247 = vadd.f32 %v227, %v243
  %v248 = vtanh.pop %v246
  %v249 = vtanh.pop %v247
  %252 = vrot.lane.b32.xlu0 %v248, 64
  %v253 = vpop.permute.xlu0 %252
  %254 = vrot.lane.b32.xlu0 %v249, 64
  %v255 = vpop.permute.xlu0 %254
  %v258 = vmul.f32 %v208, %v253
  %v259 = vmul.f32 %v223, %v255
  %v262 = vrot.slane %v259, 7
  %vm263 = vcmask 1041409
  %v264 = vsel %vm263, %v262, %v258
  %265 = vrot.lane.b32.xlu0 %v264, 32
  %v266 = vpop.permute.xlu0 %265
  %v267 = vsel %vm127, %v266, 0
  %269 = vmatpush.msra.mxu0 0.0
  %270 = vmatpush.msra.mxu0 0.0
  %271 = vmatpush.msra.mxu0 0.0
  %272 = vmatpush.msra.mxu0 0.0
  %273 = vmatpush.msra.mxu0 0.0
  %274 = vmatpush.msra.mxu0 0.0
  %275 = vmatpush.msra.mxu0 0.0
  %276 = vmatpush.msra.mxu0 0.0
  %277 = vmatpush.msra.mxu0 0.0
  %278 = vmatpush.msra.mxu0 0.0
  %279 = vmatpush.msra.mxu0 0.0
  %280 = vmatpush.msra.mxu0 0.0
  %281 = vmatpush.msra.mxu0 %v125
  %282 = vmatpush.msra.mxu0 %v124
  %283 = vmatpush.msra.mxu0 %v123
  %284 = vmatpush.msra.mxu0 %v122
  %285 = vmatmul.f32.gmra.mxu0 %v267
  %v286 = vpop.f32.mrf.mxu0
  %v287 = vadd.f32 0.0, %v286
  %288 = vdwg.mxu0
  %v290 = vrot.slane %v287, 7
  %v293 = vadd.f32 %v152, %v290
  %v294 = vadd.f32 %v155, %v287
  %v295 = vxor.u32 %v293, 2147483648
  %v296 = vxor.u32 %v294, 2147483648
  %v297 = vmul.f32 %v295, 1.442695
  %v298 = vpow.pop %v297
  %v299 = vmul.f32 %v296, 1.442695
  %v300 = vpow.pop %v299
  %v301 = vadd.f32 %v298, 1.0
  %v302 = vadd.f32 %v300, 1.0
  %v303 = vrcp.pop %v301
  %v304 = vmul.f32 %v301, %v303
  %v305 = vsub.f32 1.0, %v304
  %v306 = vmul.f32 %v303, %v305
  %v307 = vadd.f32 %v303, %v306
  %vm308 = vweird.f32 %v301
  %vm309 = vweird.f32 %v303
  %vm310 = vmor %vm308, %vm309
  %v311 = vsel %vm310, %v303, %v307
  %v312 = vand.u32 2147483647, %v301
  %vm313 = vcmp.eq.f32.partialorder %v312, 8.507059e+37
  %v314 = vand.u32 %v301, 2147483648
  %v315 = vor.u32 1.1754944e-38, %v314
  %v316 = vsel %vm313, %v315, %v311
  %v317 = vmul.f32 1.0, %v316
  %v318 = vrcp.pop %v302
  %v319 = vmul.f32 %v302, %v318
  %v320 = vsub.f32 1.0, %v319
  %v321 = vmul.f32 %v318, %v320
  %v322 = vadd.f32 %v318, %v321
  %vm323 = vweird.f32 %v302
  %vm324 = vweird.f32 %v318
  %vm325 = vmor %vm323, %vm324
  %v326 = vsel %vm325, %v318, %v322
  %v327 = vand.u32 2147483647, %v302
  %vm328 = vcmp.eq.f32.partialorder %v327, 8.507059e+37
  %v329 = vand.u32 %v302, 2147483648
  %v330 = vor.u32 1.1754944e-38, %v329
  %v331 = vsel %vm328, %v330, %v326
  %v332 = vmul.f32 1.0, %v331
  %v333 = vtanh.pop %v293
  %v334 = vtanh.pop %v294
  %v337 = vrot.slane %v246, 7
  %v338 = vrot.slane %v247, 7
  %v341 = vmul.f32 %v317, %v337
  %v342 = vmul.f32 %v332, %v338
  %345 = vrot.lane.b32.xlu0 %v333, 64
  %v346 = vpop.permute.xlu0 %345
  %347 = vrot.lane.b32.xlu0 %v334, 64
  %v348 = vpop.permute.xlu0 %347
  %v351 = vmul.f32 %v317, %v346
  %v352 = vmul.f32 %v332, %v348
  %355 = vrot.lane.b32.xlu0 %v351, 32
  %v356 = vpop.permute.xlu0 %355
  %357 = vrot.lane.b32.xlu0 %v352, 32
  %v358 = vpop.permute.xlu0 %357
  %v361 = vadd.f32 %v341, %v356
  %v362 = vadd.f32 %v342, %v358
  %v363 = vtanh.pop %v361
  %v364 = vtanh.pop %v362
  %367 = vrot.lane.b32.xlu0 %v363, 64
  %v368 = vpop.permute.xlu0 %367
  %369 = vrot.lane.b32.xlu0 %v364, 64
  %v370 = vpop.permute.xlu0 %369
  %v373 = vmul.f32 %v317, %v368
  %v374 = vmul.f32 %v332, %v370
  %v377 = vrot.slane %v373, 1
  %v378 = vsel %vm263, %v374, %v377
  %379 = vrot.lane.b32.xlu0 %v378, 32
  %v380 = vpop.permute.xlu0 %379
  %v381 = vsel %vm127, %v380, 0
  %383 = vmatpush.msra.mxu0 0.0
  %384 = vmatpush.msra.mxu0 0.0
  %385 = vmatpush.msra.mxu0 0.0
  %386 = vmatpush.msra.mxu0 0.0
  %387 = vmatpush.msra.mxu0 0.0
  %388 = vmatpush.msra.mxu0 0.0
  %389 = vmatpush.msra.mxu0 0.0
  %390 = vmatpush.msra.mxu0 0.0
  %391 = vmatpush.msra.mxu0 0.0
  %392 = vmatpush.msra.mxu0 0.0
  %393 = vmatpush.msra.mxu0 0.0
  %394 = vmatpush.msra.mxu0 0.0
  %395 = vmatpush.msra.mxu0 %v125
  %396 = vmatpush.msra.mxu0 %v124
  %397 = vmatpush.msra.mxu0 %v123
  %398 = vmatpush.msra.mxu0 %v122
  %399 = vmatmul.f32.gmra.mxu0 %v381
  %v400 = vpop.f32.mrf.mxu0
  %v401 = vadd.f32 0.0, %v400
  %402 = vdwg.mxu0
  %v404 = vrot.slane %v401, 6
  %v405 = vrot.slane %v401, 7
  %v408 = vadd.f32 %v152, %v404
  %v409 = vadd.f32 %v155, %v405
  %v410 = vxor.u32 %v408, 2147483648
  %v411 = vxor.u32 %v409, 2147483648
  %v412 = vmul.f32 %v410, 1.442695
  %v413 = vpow.pop %v412
  %v414 = vmul.f32 %v411, 1.442695
  %v415 = vpow.pop %v414
  %v416 = vadd.f32 %v413, 1.0
  %v417 = vadd.f32 %v415, 1.0
  %v418 = vrcp.pop %v416
  %v419 = vmul.f32 %v416, %v418
  %v420 = vsub.f32 1.0, %v419
  %v421 = vmul.f32 %v418, %v420
  %v422 = vadd.f32 %v418, %v421
  %vm423 = vweird.f32 %v416
  %vm424 = vweird.f32 %v418
  %vm425 = vmor %vm423, %vm424
  %v426 = vsel %vm425, %v418, %v422
  %v427 = vand.u32 2147483647, %v416
  %vm428 = vcmp.eq.f32.partialorder %v427, 8.507059e+37
  %v429 = vand.u32 %v416, 2147483648
  %v430 = vor.u32 1.1754944e-38, %v429
  %v431 = vsel %vm428, %v430, %v426
  %v432 = vmul.f32 1.0, %v431
  %v433 = vrcp.pop %v417
  %v434 = vmul.f32 %v417, %v433
  %v435 = vsub.f32 1.0, %v434
  %v436 = vmul.f32 %v433, %v435
  %v437 = vadd.f32 %v433, %v436
  %vm438 = vweird.f32 %v417
  %vm439 = vweird.f32 %v433
  %vm440 = vmor %vm438, %vm439
  %v441 = vsel %vm440, %v433, %v437
  %v442 = vand.u32 2147483647, %v417
  %vm443 = vcmp.eq.f32.partialorder %v442, 8.507059e+37
  %v444 = vand.u32 %v417, 2147483648
  %v445 = vor.u32 1.1754944e-38, %v444
  %v446 = vsel %vm443, %v445, %v441
  %v447 = vmul.f32 1.0, %v446
  %v448 = vtanh.pop %v408
  %v449 = vtanh.pop %v409
  %v452 = vrot.slane %v361, 7
  %v453 = vrot.slane %v362, 7
  %v456 = vmul.f32 %v432, %v452
  %v457 = vmul.f32 %v447, %v453
  %460 = vrot.lane.b32.xlu0 %v448, 64
  %v461 = vpop.permute.xlu0 %460
  %462 = vrot.lane.b32.xlu0 %v449, 64
  %v463 = vpop.permute.xlu0 %462
  %v466 = vmul.f32 %v432, %v461
  %v467 = vmul.f32 %v447, %v463
  %470 = vrot.lane.b32.xlu0 %v466, 32
  %v471 = vpop.permute.xlu0 %470
  %472 = vrot.lane.b32.xlu0 %v467, 32
  %v473 = vpop.permute.xlu0 %472
  %v476 = vadd.f32 %v456, %v471
  %v477 = vadd.f32 %v457, %v473
  %v478 = vtanh.pop %v476
  %v479 = vtanh.pop %v477
  %482 = vrot.lane.b32.xlu0 %v478, 64
  %v483 = vpop.permute.xlu0 %482
  %484 = vrot.lane.b32.xlu0 %v479, 64
  %v485 = vpop.permute.xlu0 %484
  %v488 = vmul.f32 %v432, %v483
  %v489 = vmul.f32 %v447, %v485
  %v492 = vrot.slane %v488, 2
  %v493 = vrot.slane %v489, 1
  %v494 = vsel %vm263, %v493, %v492
  %495 = vrot.lane.b32.xlu0 %v494, 32
  %v496 = vpop.permute.xlu0 %495
  %v497 = vsel %vm127, %v496, 0
  %499 = vmatpush.msra.mxu0 0.0
  %500 = vmatpush.msra.mxu0 0.0
  %501 = vmatpush.msra.mxu0 0.0
  %502 = vmatpush.msra.mxu0 0.0
  %503 = vmatpush.msra.mxu0 0.0
  %504 = vmatpush.msra.mxu0 0.0
  %505 = vmatpush.msra.mxu0 0.0
  %506 = vmatpush.msra.mxu0 0.0
  %507 = vmatpush.msra.mxu0 0.0
  %508 = vmatpush.msra.mxu0 0.0
  %509 = vmatpush.msra.mxu0 0.0
  %510 = vmatpush.msra.mxu0 0.0
  %511 = vmatpush.msra.mxu0 %v125
  %512 = vmatpush.msra.mxu0 %v124
  %513 = vmatpush.msra.mxu0 %v123
  %514 = vmatpush.msra.mxu0 %v122
  %515 = vmatmul.f32.gmra.mxu0 %v497
  %v516 = vpop.f32.mrf.mxu0
  %v517 = vadd.f32 0.0, %v516
  %518 = vdwg.mxu0
  %v520 = vrot.slane %v517, 5
  %v521 = vrot.slane %v517, 6
  %v524 = vadd.f32 %v152, %v520
  %v525 = vadd.f32 %v155, %v521
  %v526 = vxor.u32 %v524, 2147483648
  %v527 = vxor.u32 %v525, 2147483648
  %v528 = vmul.f32 %v526, 1.442695
  %v529 = vpow.pop %v528
  %v530 = vmul.f32 %v527, 1.442695
  %v531 = vpow.pop %v530
  %v532 = vadd.f32 %v529, 1.0
  %v533 = vadd.f32 %v531, 1.0
  %v534 = vrcp.pop %v532
  %v535 = vmul.f32 %v532, %v534
  %v536 = vsub.f32 1.0, %v535
  %v537 = vmul.f32 %v534, %v536
  %v538 = vadd.f32 %v534, %v537
  %vm539 = vweird.f32 %v532
  %vm540 = vweird.f32 %v534
  %vm541 = vmor %vm539, %vm540
  %v542 = vsel %vm541, %v534, %v538
  %v543 = vand.u32 2147483647, %v532
  %vm544 = vcmp.eq.f32.partialorder %v543, 8.507059e+37
  %v545 = vand.u32 %v532, 2147483648
  %v546 = vor.u32 1.1754944e-38, %v545
  %v547 = vsel %vm544, %v546, %v542
  %v548 = vmul.f32 1.0, %v547
  %v549 = vrcp.pop %v533
  %v550 = vmul.f32 %v533, %v549
  %v551 = vsub.f32 1.0, %v550
  %v552 = vmul.f32 %v549, %v551
  %v553 = vadd.f32 %v549, %v552
  %vm554 = vweird.f32 %v533
  %vm555 = vweird.f32 %v549
  %vm556 = vmor %vm554, %vm555
  %v557 = vsel %vm556, %v549, %v553
  %v558 = vand.u32 2147483647, %v533
  %vm559 = vcmp.eq.f32.partialorder %v558, 8.507059e+37
  %v560 = vand.u32 %v533, 2147483648
  %v561 = vor.u32 1.1754944e-38, %v560
  %v562 = vsel %vm559, %v561, %v557
  %v563 = vmul.f32 1.0, %v562
  %v564 = vtanh.pop %v524
  %v565 = vtanh.pop %v525
  %v568 = vrot.slane %v476, 7
  %v569 = vrot.slane %v477, 7
  %v572 = vmul.f32 %v548, %v568
  %v573 = vmul.f32 %v563, %v569
  %576 = vrot.lane.b32.xlu0 %v564, 64
  %v577 = vpop.permute.xlu0 %576
  %578 = vrot.lane.b32.xlu0 %v565, 64
  %v579 = vpop.permute.xlu0 %578
  %v582 = vmul.f32 %v548, %v577
  %v583 = vmul.f32 %v563, %v579
  %586 = vrot.lane.b32.xlu0 %v582, 32
  %v587 = vpop.permute.xlu0 %586
  %588 = vrot.lane.b32.xlu0 %v583, 32
  %v589 = vpop.permute.xlu0 %588
  %v592 = vadd.f32 %v572, %v587
  %v593 = vadd.f32 %v573, %v589
  %v594 = vtanh.pop %v592
  %v595 = vtanh.pop %v593
  %598 = vrot.lane.b32.xlu0 %v594, 64
  %v599 = vpop.permute.xlu0 %598
  %600 = vrot.lane.b32.xlu0 %v595, 64
  %v601 = vpop.permute.xlu0 %600
  %v604 = vmul.f32 %v548, %v599
  %v605 = vmul.f32 %v563, %v601
  %v608 = vrot.slane %v604, 3
  %v609 = vrot.slane %v605, 2
  %v610 = vsel %vm263, %v609, %v608
  %611 = vrot.lane.b32.xlu0 %v610, 32
  %v612 = vpop.permute.xlu0 %611
  %v613 = vsel %vm127, %v612, 0
  %615 = vmatpush.msra.mxu0 0.0
  %616 = vmatpush.msra.mxu0 0.0
  %617 = vmatpush.msra.mxu0 0.0
  %618 = vmatpush.msra.mxu0 0.0
  %619 = vmatpush.msra.mxu0 0.0
  %620 = vmatpush.msra.mxu0 0.0
  %621 = vmatpush.msra.mxu0 0.0
  %622 = vmatpush.msra.mxu0 0.0
  %623 = vmatpush.msra.mxu0 0.0
  %624 = vmatpush.msra.mxu0 0.0
  %625 = vmatpush.msra.mxu0 0.0
  %626 = vmatpush.msra.mxu0 0.0
  %627 = vmatpush.msra.mxu0 %v125
  %628 = vmatpush.msra.mxu0 %v124
  %629 = vmatpush.msra.mxu0 %v123
  %630 = vmatpush.msra.mxu0 %v122
  %631 = vmatmul.f32.gmra.mxu0 %v613
  %v632 = vpop.f32.mrf.mxu0
  %v633 = vadd.f32 0.0, %v632
  %634 = vdwg.mxu0
  %v636 = vrot.slane %v633, 4
  %v637 = vrot.slane %v633, 5
  %v640 = vadd.f32 %v152, %v636
  %v641 = vadd.f32 %v155, %v637
  %v642 = vxor.u32 %v640, 2147483648
  %v643 = vxor.u32 %v641, 2147483648
  %v644 = vmul.f32 %v642, 1.442695
  %v645 = vpow.pop %v644
  %v646 = vmul.f32 %v643, 1.442695
  %v647 = vpow.pop %v646
  %v648 = vadd.f32 %v645, 1.0
  %v649 = vadd.f32 %v647, 1.0
  %v650 = vrcp.pop %v648
  %v651 = vmul.f32 %v648, %v650
  %v652 = vsub.f32 1.0, %v651
  %v653 = vmul.f32 %v650, %v652
  %v654 = vadd.f32 %v650, %v653
  %vm655 = vweird.f32 %v648
  %vm656 = vweird.f32 %v650
  %vm657 = vmor %vm655, %vm656
  %v658 = vsel %vm657, %v650, %v654
  %v659 = vand.u32 2147483647, %v648
  %vm660 = vcmp.eq.f32.partialorder %v659, 8.507059e+37
  %v661 = vand.u32 %v648, 2147483648
  %v662 = vor.u32 1.1754944e-38, %v661
  %v663 = vsel %vm660, %v662, %v658
  %v664 = vmul.f32 1.0, %v663
  %v665 = vrcp.pop %v649
  %v666 = vmul.f32 %v649, %v665
  %v667 = vsub.f32 1.0, %v666
  %v668 = vmul.f32 %v665, %v667
  %v669 = vadd.f32 %v665, %v668
  %vm670 = vweird.f32 %v649
  %vm671 = vweird.f32 %v665
  %vm672 = vmor %vm670, %vm671
  %v673 = vsel %vm672, %v665, %v669
  %v674 = vand.u32 2147483647, %v649
  %vm675 = vcmp.eq.f32.partialorder %v674, 8.507059e+37
  %v676 = vand.u32 %v649, 2147483648
  %v677 = vor.u32 1.1754944e-38, %v676
  %v678 = vsel %vm675, %v677, %v673
  %v679 = vmul.f32 1.0, %v678
  %v680 = vtanh.pop %v640
  %v681 = vtanh.pop %v641
  %v684 = vrot.slane %v592, 7
  %v685 = vrot.slane %v593, 7
  %v688 = vmul.f32 %v664, %v684
  %v689 = vmul.f32 %v679, %v685
  %692 = vrot.lane.b32.xlu0 %v680, 64
  %v693 = vpop.permute.xlu0 %692
  %694 = vrot.lane.b32.xlu0 %v681, 64
  %v695 = vpop.permute.xlu0 %694
  %v698 = vmul.f32 %v664, %v693
  %v699 = vmul.f32 %v679, %v695
  %702 = vrot.lane.b32.xlu0 %v698, 32
  %v703 = vpop.permute.xlu0 %702
  %704 = vrot.lane.b32.xlu0 %v699, 32
  %v705 = vpop.permute.xlu0 %704
  %v708 = vadd.f32 %v688, %v703
  %v709 = vadd.f32 %v689, %v705
  %v710 = vtanh.pop %v708
  %v711 = vtanh.pop %v709
  %714 = vrot.lane.b32.xlu0 %v710, 64
  %v715 = vpop.permute.xlu0 %714
  %716 = vrot.lane.b32.xlu0 %v711, 64
  %v717 = vpop.permute.xlu0 %716
  %v720 = vmul.f32 %v664, %v715
  %v721 = vmul.f32 %v679, %v717
  %v724 = vrot.slane %v720, 4
  %v725 = vrot.slane %v721, 3
  %v726 = vsel %vm263, %v725, %v724
  %727 = vrot.lane.b32.xlu0 %v726, 32
  %v728 = vpop.permute.xlu0 %727
  %v729 = vsel %vm127, %v728, 0
  %731 = vmatpush.msra.mxu0 0.0
  %732 = vmatpush.msra.mxu0 0.0
  %733 = vmatpush.msra.mxu0 0.0
  %734 = vmatpush.msra.mxu0 0.0
  %735 = vmatpush.msra.mxu0 0.0
  %736 = vmatpush.msra.mxu0 0.0
  %737 = vmatpush.msra.mxu0 0.0
  %738 = vmatpush.msra.mxu0 0.0
  %739 = vmatpush.msra.mxu0 0.0
  %740 = vmatpush.msra.mxu0 0.0
  %741 = vmatpush.msra.mxu0 0.0
  %742 = vmatpush.msra.mxu0 0.0
  %743 = vmatpush.msra.mxu0 %v125
  %744 = vmatpush.msra.mxu0 %v124
  %745 = vmatpush.msra.mxu0 %v123
  %746 = vmatpush.msra.mxu0 %v122
  %747 = vmatmul.f32.gmra.mxu0 %v729
  %v748 = vpop.f32.mrf.mxu0
  %v749 = vadd.f32 0.0, %v748
  %750 = vdwg.mxu0
  %v752 = vrot.slane %v749, 3
  %v753 = vrot.slane %v749, 4
  %v756 = vadd.f32 %v152, %v752
  %v757 = vadd.f32 %v155, %v753
  %v758 = vxor.u32 %v756, 2147483648
  %v759 = vxor.u32 %v757, 2147483648
  %v760 = vmul.f32 %v758, 1.442695
  %v761 = vpow.pop %v760
  %v762 = vmul.f32 %v759, 1.442695
  %v763 = vpow.pop %v762
  %v764 = vadd.f32 %v761, 1.0
  %v765 = vadd.f32 %v763, 1.0
  %v766 = vrcp.pop %v764
  %v767 = vmul.f32 %v764, %v766
  %v768 = vsub.f32 1.0, %v767
  %v769 = vmul.f32 %v766, %v768
  %v770 = vadd.f32 %v766, %v769
  %vm771 = vweird.f32 %v764
  %vm772 = vweird.f32 %v766
  %vm773 = vmor %vm771, %vm772
  %v774 = vsel %vm773, %v766, %v770
  %v775 = vand.u32 2147483647, %v764
  %vm776 = vcmp.eq.f32.partialorder %v775, 8.507059e+37
  %v777 = vand.u32 %v764, 2147483648
  %v778 = vor.u32 1.1754944e-38, %v777
  %v779 = vsel %vm776, %v778, %v774
  %v780 = vmul.f32 1.0, %v779
  %v781 = vrcp.pop %v765
  %v782 = vmul.f32 %v765, %v781
  %v783 = vsub.f32 1.0, %v782
  %v784 = vmul.f32 %v781, %v783
  %v785 = vadd.f32 %v781, %v784
  %vm786 = vweird.f32 %v765
  %vm787 = vweird.f32 %v781
  %vm788 = vmor %vm786, %vm787
  %v789 = vsel %vm788, %v781, %v785
  %v790 = vand.u32 2147483647, %v765
  %vm791 = vcmp.eq.f32.partialorder %v790, 8.507059e+37
  %v792 = vand.u32 %v765, 2147483648
  %v793 = vor.u32 1.1754944e-38, %v792
  %v794 = vsel %vm791, %v793, %v789
  %v795 = vmul.f32 1.0, %v794
  %v796 = vtanh.pop %v756
  %v797 = vtanh.pop %v757
  %v800 = vrot.slane %v708, 7
  %v801 = vrot.slane %v709, 7
  %v804 = vmul.f32 %v780, %v800
  %v805 = vmul.f32 %v795, %v801
  %808 = vrot.lane.b32.xlu0 %v796, 64
  %v809 = vpop.permute.xlu0 %808
  %810 = vrot.lane.b32.xlu0 %v797, 64
  %v811 = vpop.permute.xlu0 %810
  %v814 = vmul.f32 %v780, %v809
  %v815 = vmul.f32 %v795, %v811
  %818 = vrot.lane.b32.xlu0 %v814, 32
  %v819 = vpop.permute.xlu0 %818
  %820 = vrot.lane.b32.xlu0 %v815, 32
  %v821 = vpop.permute.xlu0 %820
  %v824 = vadd.f32 %v804, %v819
  %v825 = vadd.f32 %v805, %v821
  %v826 = vtanh.pop %v824
  %v827 = vtanh.pop %v825
  %830 = vrot.lane.b32.xlu0 %v826, 64
  %v831 = vpop.permute.xlu0 %830
  %832 = vrot.lane.b32.xlu0 %v827, 64
  %v833 = vpop.permute.xlu0 %832
  %v836 = vmul.f32 %v780, %v831
  %v837 = vmul.f32 %v795, %v833
  %v840 = vrot.slane %v836, 5
  %v841 = vrot.slane %v837, 4
  %v842 = vsel %vm263, %v841, %v840
  %843 = vrot.lane.b32.xlu0 %v842, 32
  %v844 = vpop.permute.xlu0 %843
  %v845 = vsel %vm127, %v844, 0
  %847 = vmatpush.msra.mxu0 0.0
  %848 = vmatpush.msra.mxu0 0.0
  %849 = vmatpush.msra.mxu0 0.0
  %850 = vmatpush.msra.mxu0 0.0
  %851 = vmatpush.msra.mxu0 0.0
  %852 = vmatpush.msra.mxu0 0.0
  %853 = vmatpush.msra.mxu0 0.0
  %854 = vmatpush.msra.mxu0 0.0
  %855 = vmatpush.msra.mxu0 0.0
  %856 = vmatpush.msra.mxu0 0.0
  %857 = vmatpush.msra.mxu0 0.0
  %858 = vmatpush.msra.mxu0 0.0
  %859 = vmatpush.msra.mxu0 %v125
  %860 = vmatpush.msra.mxu0 %v124
  %861 = vmatpush.msra.mxu0 %v123
  %862 = vmatpush.msra.mxu0 %v122
  %863 = vmatmul.f32.gmra.mxu0 %v845
  %v864 = vpop.f32.mrf.mxu0
  %v865 = vadd.f32 0.0, %v864
  %866 = vdwg.mxu0
  %v868 = vrot.slane %v865, 2
  %v869 = vrot.slane %v865, 3
  %v872 = vadd.f32 %v152, %v868
  %v873 = vadd.f32 %v155, %v869
  %v874 = vxor.u32 %v872, 2147483648
  %v875 = vxor.u32 %v873, 2147483648
  %v876 = vmul.f32 %v874, 1.442695
  %v877 = vpow.pop %v876
  %v878 = vmul.f32 %v875, 1.442695
  %v879 = vpow.pop %v878
  %v880 = vadd.f32 %v877, 1.0
  %v881 = vadd.f32 %v879, 1.0
  %v882 = vrcp.pop %v880
  %v883 = vmul.f32 %v880, %v882
  %v884 = vsub.f32 1.0, %v883
  %v885 = vmul.f32 %v882, %v884
  %v886 = vadd.f32 %v882, %v885
  %vm887 = vweird.f32 %v880
  %vm888 = vweird.f32 %v882
  %vm889 = vmor %vm887, %vm888
  %v890 = vsel %vm889, %v882, %v886
  %v891 = vand.u32 2147483647, %v880
  %vm892 = vcmp.eq.f32.partialorder %v891, 8.507059e+37
  %v893 = vand.u32 %v880, 2147483648
  %v894 = vor.u32 1.1754944e-38, %v893
  %v895 = vsel %vm892, %v894, %v890
  %v896 = vmul.f32 1.0, %v895
  %v897 = vrcp.pop %v881
  %v898 = vmul.f32 %v881, %v897
  %v899 = vsub.f32 1.0, %v898
  %v900 = vmul.f32 %v897, %v899
  %v901 = vadd.f32 %v897, %v900
  %vm902 = vweird.f32 %v881
  %vm903 = vweird.f32 %v897
  %vm904 = vmor %vm902, %vm903
  %v905 = vsel %vm904, %v897, %v901
  %v906 = vand.u32 2147483647, %v881
  %vm907 = vcmp.eq.f32.partialorder %v906, 8.507059e+37
  %v908 = vand.u32 %v881, 2147483648
  %v909 = vor.u32 1.1754944e-38, %v908
  %v910 = vsel %vm907, %v909, %v905
  %v911 = vmul.f32 1.0, %v910
  %v912 = vtanh.pop %v872
  %v913 = vtanh.pop %v873
  %v916 = vrot.slane %v824, 7
  %v917 = vrot.slane %v825, 7
  %v920 = vmul.f32 %v896, %v916
  %v921 = vmul.f32 %v911, %v917
  %924 = vrot.lane.b32.xlu0 %v912, 64
  %v925 = vpop.permute.xlu0 %924
  %926 = vrot.lane.b32.xlu0 %v913, 64
  %v927 = vpop.permute.xlu0 %926
  %v930 = vmul.f32 %v896, %v925
  %v931 = vmul.f32 %v911, %v927
  %934 = vrot.lane.b32.xlu0 %v930, 32
  %v935 = vpop.permute.xlu0 %934
  %936 = vrot.lane.b32.xlu0 %v931, 32
  %v937 = vpop.permute.xlu0 %936
  %v940 = vadd.f32 %v920, %v935
  %v941 = vadd.f32 %v921, %v937
  %v942 = vtanh.pop %v940
  %v943 = vtanh.pop %v941
  %946 = vrot.lane.b32.xlu0 %v942, 64
  %v947 = vpop.permute.xlu0 %946
  %948 = vrot.lane.b32.xlu0 %v943, 64
  %v949 = vpop.permute.xlu0 %948
  %v952 = vmul.f32 %v896, %v947
  %v953 = vmul.f32 %v911, %v949
  %v956 = vrot.slane %v952, 6
  %v957 = vrot.slane %v953, 5
  %v958 = vsel %vm263, %v957, %v956
  %959 = vrot.lane.b32.xlu0 %v958, 32
  %v960 = vpop.permute.xlu0 %959
  %v961 = vsel %vm127, %v960, 0
  %963 = vmatpush.msra.mxu0 0.0
  %964 = vmatpush.msra.mxu0 0.0
  %965 = vmatpush.msra.mxu0 0.0
  %966 = vmatpush.msra.mxu0 0.0
  %967 = vmatpush.msra.mxu0 0.0
  %968 = vmatpush.msra.mxu0 0.0
  %969 = vmatpush.msra.mxu0 0.0
  %970 = vmatpush.msra.mxu0 0.0
  %971 = vmatpush.msra.mxu0 0.0
  %972 = vmatpush.msra.mxu0 0.0
  %973 = vmatpush.msra.mxu0 0.0
  %974 = vmatpush.msra.mxu0 0.0
  %975 = vmatpush.msra.mxu0 %v125
  %976 = vmatpush.msra.mxu0 %v124
  %977 = vmatpush.msra.mxu0 %v123
  %978 = vmatpush.msra.mxu0 %v122
  %979 = vmatmul.f32.gmra.mxu0 %v961
  %v980 = vpop.f32.mrf.mxu0
  %v981 = vadd.f32 0.0, %v980
  %982 = vdwg.mxu0
  %v984 = vrot.slane %v981, 1
  %v985 = vrot.slane %v981, 2
  %v988 = vadd.f32 %v152, %v984
  %v989 = vadd.f32 %v155, %v985
  %v990 = vxor.u32 %v988, 2147483648
  %v991 = vxor.u32 %v989, 2147483648
  %v992 = vmul.f32 %v990, 1.442695
  %v993 = vpow.pop %v992
  %v994 = vmul.f32 %v991, 1.442695
  %v995 = vpow.pop %v994
  %v996 = vadd.f32 %v993, 1.0
  %v997 = vadd.f32 %v995, 1.0
  %v998 = vrcp.pop %v996
  %v999 = vmul.f32 %v996, %v998
  %v1000 = vsub.f32 1.0, %v999
  %v1001 = vmul.f32 %v998, %v1000
  %v1002 = vadd.f32 %v998, %v1001
  %vm1003 = vweird.f32 %v996
  %vm1004 = vweird.f32 %v998
  %vm1005 = vmor %vm1003, %vm1004
  %v1006 = vsel %vm1005, %v998, %v1002
  %v1007 = vand.u32 2147483647, %v996
  %vm1008 = vcmp.eq.f32.partialorder %v1007, 8.507059e+37
  %v1009 = vand.u32 %v996, 2147483648
  %v1010 = vor.u32 1.1754944e-38, %v1009
  %v1011 = vsel %vm1008, %v1010, %v1006
  %v1012 = vmul.f32 1.0, %v1011
  %v1013 = vrcp.pop %v997
  %v1014 = vmul.f32 %v997, %v1013
  %v1015 = vsub.f32 1.0, %v1014
  %v1016 = vmul.f32 %v1013, %v1015
  %v1017 = vadd.f32 %v1013, %v1016
  %vm1018 = vweird.f32 %v997
  %vm1019 = vweird.f32 %v1013
  %vm1020 = vmor %vm1018, %vm1019
  %v1021 = vsel %vm1020, %v1013, %v1017
  %v1022 = vand.u32 2147483647, %v997
  %vm1023 = vcmp.eq.f32.partialorder %v1022, 8.507059e+37
  %v1024 = vand.u32 %v997, 2147483648
  %v1025 = vor.u32 1.1754944e-38, %v1024
  %v1026 = vsel %vm1023, %v1025, %v1021
  %v1027 = vmul.f32 1.0, %v1026
  %v1028 = vtanh.pop %v988
  %v1029 = vtanh.pop %v989
  %v1032 = vrot.slane %v940, 7
  %v1033 = vrot.slane %v941, 7
  %v1036 = vmul.f32 %v1012, %v1032
  %v1037 = vmul.f32 %v1027, %v1033
  %1040 = vrot.lane.b32.xlu0 %v1028, 64
  %v1041 = vpop.permute.xlu0 %1040
  %1042 = vrot.lane.b32.xlu0 %v1029, 64
  %v1043 = vpop.permute.xlu0 %1042
  %v1046 = vmul.f32 %v1012, %v1041
  %v1047 = vmul.f32 %v1027, %v1043
  %1050 = vrot.lane.b32.xlu0 %v1046, 32
  %v1051 = vpop.permute.xlu0 %1050
  %1052 = vrot.lane.b32.xlu0 %v1047, 32
  %v1053 = vpop.permute.xlu0 %1052
  %v1056 = vadd.f32 %v1036, %v1051
  %v1057 = vadd.f32 %v1037, %v1053
  %v1058 = vtanh.pop %v1056
  %v1059 = vtanh.pop %v1057
  %1062 = vrot.lane.b32.xlu0 %v1058, 64
  %v1063 = vpop.permute.xlu0 %1062
  %1064 = vrot.lane.b32.xlu0 %v1059, 64
  %v1065 = vpop.permute.xlu0 %1064
  %v1068 = vmul.f32 %v1012, %v1063
  %v1069 = vmul.f32 %v1027, %v1065
  %vm1070 = vcmask 1040384
  %v1071 = vsel %vm1070, %v258, %v373
  %v1072 = vsel %vm1070, %v259, %v374
  %vm1073 = vcmask 1041408
  %v1074 = vsel %vm1073, %v1071, %v488
  %v1075 = vsel %vm1073, %v1072, %v489
  %vm1076 = vcmask 1042432
  %v1077 = vsel %vm1076, %v1074, %v604
  %v1078 = vsel %vm1076, %v1075, %v605
  %vm1079 = vcmask 1043456
  %v1080 = vsel %vm1079, %v1077, %v720
  %v1081 = vsel %vm1079, %v1078, %v721
  %vm1082 = vcmask 1044480
  %v1083 = vsel %vm1082, %v1080, %v836
  %v1084 = vsel %vm1082, %v1081, %v837
  %vm1085 = vcmask 1045504
  %v1086 = vsel %vm1085, %v1083, %v952
  %v1087 = vsel %vm1085, %v1084, %v953
  %vm1088 = vcmask 1046528
  %v1089 = vsel %vm1088, %v1086, %v1068
  %v1090 = vsel %vm1088, %v1087, %v1069
  %1093 = vrot.lane.b32.xlu0 %v1089, 32
  %v1094 = vpop.permute.xlu0 %1093
  %1095 = vrot.lane.b32.xlu0 %v1090, 32
  %v1096 = vpop.permute.xlu0 %1095
  %v1099 = vsel %vm127, %v1094, 0.0
  %1100 = vadd.xlane.f32.xlu0 %v1099
  %v1101 = vpop.xlane.xlu0 %1100
  %v1102 = vsel %vm127, %v1096, 0.0
  %1103 = vadd.xlane.f32.xlu0 %v1102
  %v1104 = vpop.xlane.xlu0 %1103
  %v1105 = vrcp.pop 32.0
  %v1106 = vmul.f32 32.0, %v1105
  %v1107 = vsub.f32 1.0, %v1106
  %v1108 = vmul.f32 %v1105, %v1107
  %v1109 = vadd.f32 %v1105, %v1108
  %vm1110 = vweird.f32 %v1105
  %v1111 = vsel %vm1110, %v1105, %v1109
  %v1112 = vmul.f32 %v1101, %v1111
  %v1113 = vmul.f32 %v1104, %v1111
  %v1114 = vsub.f32 %v1089, %v1112
  %v1115 = vsub.f32 %v1090, %v1113
  %v1116 = vmul.f32 %v1114, %v1114
  %v1117 = vmul.f32 %v1115, %v1115
  %1120 = vrot.lane.b32.xlu0 %v1116, 32
  %v1121 = vpop.permute.xlu0 %1120
  %1122 = vrot.lane.b32.xlu0 %v1117, 32
  %v1123 = vpop.permute.xlu0 %1122
  %v1126 = vsel %vm127, %v1121, 0.0
  %1127 = vadd.xlane.f32.xlu0 %v1126
  %v1128 = vpop.xlane.xlu0 %1127
  %v1129 = vsel %vm127, %v1123, 0.0
  %1130 = vadd.xlane.f32.xlu0 %v1129
  %v1131 = vpop.xlane.xlu0 %1130
  %v1132 = vmul.f32 %v1128, %v1111
  %v1133 = vmul.f32 %v1131, %v1111
  %v1134 = vadd.f32 %v1132, 1e-05
  %v1135 = vadd.f32 %v1133, 1e-05
  %v1136 = vrsqrt.pop %v1134
  %v1137 = vmul.f32 %v1136, %v1134
  %v1138 = vmul.f32 %v1137, %v1136
  %v1139 = vmul.f32 0.5, %v1138
  %v1140 = vsub.f32 1.5, %v1139
  %v1141 = vmul.f32 %v1136, %v1140
  %vm1142 = vweird.f32 %v1134
  %vm1143 = vweird.f32 %v1136
  %vm1144 = vmor %vm1142, %vm1143
  %v1145 = vsel %vm1144, %v1136, %v1141
  %v1146 = vrsqrt.pop %v1135
  %v1147 = vmul.f32 %v1146, %v1135
  %v1148 = vmul.f32 %v1147, %v1146
  %v1149 = vmul.f32 0.5, %v1148
  %v1150 = vsub.f32 1.5, %v1149
  %v1151 = vmul.f32 %v1146, %v1150
  %vm1152 = vweird.f32 %v1135
  %vm1153 = vweird.f32 %v1146
  %vm1154 = vmor %vm1152, %vm1153
  %v1155 = vsel %vm1154, %v1146, %v1151
  %v1156 = vmul.f32 %v1114, %v1145
  %v1157 = vmul.f32 %v1115, %v1155
  %v1158 = vperm.slane %v56, 5
  %1160 = vrot.lane.b32.xlu0 %v1158, 96
  %v1161 = vpop.permute.xlu0 %1160
  %v1163 = vmul.f32 %v1156, %v1161
  %v1164 = vmul.f32 %v1157, %v1161
  %v1165 = vperm.slane %v56, 6
  %1167 = vrot.lane.b32.xlu0 %v1165, 96
  %v1168 = vpop.permute.xlu0 %1167
  %v1170 = vadd.f32 %v1163, %v1168
  %v1171 = vadd.f32 %v1164, %v1168
  %s1172 = scalar_lea.vmem %s2, 64
  %v1173 = vld [vmem:[%s1172] sm:$0xff]
  %v1174 = vld [vmem:[%s1172 + $0x8] sm:$0xff]
  %v1175 = vld [vmem:[%s1172 + $0x10] sm:$0xff]
  %v1176 = vld [vmem:[%s1172 + $0x18] sm:$0xff]
  %v1177 = vld [vmem:[%s1172 + $0x20] sm:$0xff]
  %v1178 = vld [vmem:[%s1172 + $0x28] sm:$0xff]
  %v1179 = vld [vmem:[%s1172 + $0x30] sm:$0xff]
  %v1180 = vld [vmem:[%s1172 + $0x38] sm:$0xff]
  %v1181 = vperm.slane %v117, 1
  %1184 = vrot.lane.b32.xlu0 %v1170, 32
  %v1185 = vpop.permute.xlu0 %1184
  %1186 = vrot.lane.b32.xlu0 %v1171, 32
  %v1187 = vpop.permute.xlu0 %1186
  %v1188 = vsel %vm127, %v1185, 0
  %v1190 = vsel %vm127, %v1187, 0
  %1192 = vmatpush.msra.mxu0 0.0
  %1193 = vmatpush.msra.mxu0 0.0
  %1194 = vmatpush.msra.mxu0 0.0
  %1195 = vmatpush.msra.mxu0 0.0
  %1196 = vmatpush.msra.mxu0 0.0
  %1197 = vmatpush.msra.mxu0 0.0
  %1198 = vmatpush.msra.mxu0 0.0
  %1199 = vmatpush.msra.mxu0 0.0
  %1200 = vmatpush.msra.mxu0 0.0
  %1201 = vmatpush.msra.mxu0 0.0
  %1202 = vmatpush.msra.mxu0 0.0
  %1203 = vmatpush.msra.mxu0 0.0
  %1204 = vmatpush.msra.mxu0 %v1176
  %1205 = vmatpush.msra.mxu0 %v1175
  %1206 = vmatpush.msra.mxu0 %v1174
  %1207 = vmatpush.msra.mxu0 %v1173
  %1208 = vmatmul.f32.gmra.mxu0 %v1188
  %v1209 = vpop.f32.mrf.mxu0
  %v1210 = vadd.f32 %v1181, %v1209
  %1211 = vmatmul.f32.gmra.mxu0 %v1190
  %v1212 = vpop.f32.mrf.mxu0
  %v1213 = vadd.f32 %v1181, %v1212
  %1214 = vdwg.mxu0
  %1215 = vmatpush.msra.mxu0 0.0
  %1216 = vmatpush.msra.mxu0 0.0
  %1217 = vmatpush.msra.mxu0 0.0
  %1218 = vmatpush.msra.mxu0 0.0
  %1219 = vmatpush.msra.mxu0 0.0
  %1220 = vmatpush.msra.mxu0 0.0
  %1221 = vmatpush.msra.mxu0 0.0
  %1222 = vmatpush.msra.mxu0 0.0
  %1223 = vmatpush.msra.mxu0 0.0
  %1224 = vmatpush.msra.mxu0 0.0
  %1225 = vmatpush.msra.mxu0 0.0
  %1226 = vmatpush.msra.mxu0 0.0
  %1227 = vmatpush.msra.mxu0 %v1180
  %1228 = vmatpush.msra.mxu0 %v1179
  %1229 = vmatpush.msra.mxu0 %v1178
  %1230 = vmatpush.msra.mxu0 %v1177
  %1231 = vmatmul.f32.gmra.mxu0 %v158
  %v1232 = vpop.f32.mrf.mxu0
  %v1233 = vadd.f32 0.0, %v1232
  %1234 = vdwg.mxu0
  %v1236 = vrot.slane %v1233, 1
  %v1239 = vadd.f32 %v1210, %v1233
  %v1240 = vadd.f32 %v1213, %v1236
  %v1241 = vxor.u32 %v1239, 2147483648
  %v1242 = vxor.u32 %v1240, 2147483648
  %v1243 = vmul.f32 %v1241, 1.442695
  %v1244 = vpow.pop %v1243
  %v1245 = vmul.f32 %v1242, 1.442695
  %v1246 = vpow.pop %v1245
  %v1247 = vadd.f32 %v1244, 1.0
  %v1248 = vadd.f32 %v1246, 1.0
  %v1249 = vrcp.pop %v1247
  %v1250 = vmul.f32 %v1247, %v1249
  %v1251 = vsub.f32 1.0, %v1250
  %v1252 = vmul.f32 %v1249, %v1251
  %v1253 = vadd.f32 %v1249, %v1252
  %vm1254 = vweird.f32 %v1247
  %vm1255 = vweird.f32 %v1249
  %vm1256 = vmor %vm1254, %vm1255
  %v1257 = vsel %vm1256, %v1249, %v1253
  %v1258 = vand.u32 2147483647, %v1247
  %vm1259 = vcmp.eq.f32.partialorder %v1258, 8.507059e+37
  %v1260 = vand.u32 %v1247, 2147483648
  %v1261 = vor.u32 1.1754944e-38, %v1260
  %v1262 = vsel %vm1259, %v1261, %v1257
  %v1263 = vmul.f32 1.0, %v1262
  %v1264 = vrcp.pop %v1248
  %v1265 = vmul.f32 %v1248, %v1264
  %v1266 = vsub.f32 1.0, %v1265
  %v1267 = vmul.f32 %v1264, %v1266
  %v1268 = vadd.f32 %v1264, %v1267
  %vm1269 = vweird.f32 %v1248
  %vm1270 = vweird.f32 %v1264
  %vm1271 = vmor %vm1269, %vm1270
  %v1272 = vsel %vm1271, %v1264, %v1268
  %v1273 = vand.u32 2147483647, %v1248
  %vm1274 = vcmp.eq.f32.partialorder %v1273, 8.507059e+37
  %v1275 = vand.u32 %v1248, 2147483648
  %v1276 = vor.u32 1.1754944e-38, %v1275
  %v1277 = vsel %vm1274, %v1276, %v1272
  %v1278 = vmul.f32 1.0, %v1277
  %v1279 = vtanh.pop %v1239
  %v1280 = vtanh.pop %v1240
  %v1281 = vmul.f32 %v1263, 0.0
  %v1282 = vmul.f32 %v1278, 0.0
  %1285 = vrot.lane.b32.xlu0 %v1279, 64
  %v1286 = vpop.permute.xlu0 %1285
  %1287 = vrot.lane.b32.xlu0 %v1280, 64
  %v1288 = vpop.permute.xlu0 %1287
  %v1291 = vmul.f32 %v1263, %v1286
  %v1292 = vmul.f32 %v1278, %v1288
  %1295 = vrot.lane.b32.xlu0 %v1291, 32
  %v1296 = vpop.permute.xlu0 %1295
  %1297 = vrot.lane.b32.xlu0 %v1292, 32
  %v1298 = vpop.permute.xlu0 %1297
  %v1301 = vadd.f32 %v1281, %v1296
  %v1302 = vadd.f32 %v1282, %v1298
  %v1303 = vtanh.pop %v1301
  %v1304 = vtanh.pop %v1302
  %1307 = vrot.lane.b32.xlu0 %v1303, 64
  %v1308 = vpop.permute.xlu0 %1307
  %1309 = vrot.lane.b32.xlu0 %v1304, 64
  %v1310 = vpop.permute.xlu0 %1309
  %v1313 = vmul.f32 %v1263, %v1308
  %v1314 = vmul.f32 %v1278, %v1310
  %v1317 = vrot.slane %v1314, 7
  %v1318 = vsel %vm263, %v1317, %v1313
  %1319 = vrot.lane.b32.xlu0 %v1318, 32
  %v1320 = vpop.permute.xlu0 %1319
  %v1321 = vsel %vm127, %v1320, 0
  %1323 = vmatpush.msra.mxu0 0.0
  %1324 = vmatpush.msra.mxu0 0.0
  %1325 = vmatpush.msra.mxu0 0.0
  %1326 = vmatpush.msra.mxu0 0.0
  %1327 = vmatpush.msra.mxu0 0.0
  %1328 = vmatpush.msra.mxu0 0.0
  %1329 = vmatpush.msra.mxu0 0.0
  %1330 = vmatpush.msra.mxu0 0.0
  %1331 = vmatpush.msra.mxu0 0.0
  %1332 = vmatpush.msra.mxu0 0.0
  %1333 = vmatpush.msra.mxu0 0.0
  %1334 = vmatpush.msra.mxu0 0.0
  %1335 = vmatpush.msra.mxu0 %v1180
  %1336 = vmatpush.msra.mxu0 %v1179
  %1337 = vmatpush.msra.mxu0 %v1178
  %1338 = vmatpush.msra.mxu0 %v1177
  %1339 = vmatmul.f32.gmra.mxu0 %v1321
  %v1340 = vpop.f32.mrf.mxu0
  %v1341 = vadd.f32 0.0, %v1340
  %1342 = vdwg.mxu0
  %v1344 = vrot.slane %v1341, 7
  %v1347 = vadd.f32 %v1210, %v1344
  %v1348 = vadd.f32 %v1213, %v1341
  %v1349 = vxor.u32 %v1347, 2147483648
  %v1350 = vxor.u32 %v1348, 2147483648
  %v1351 = vmul.f32 %v1349, 1.442695
  %v1352 = vpow.pop %v1351
  %v1353 = vmul.f32 %v1350, 1.442695
  %v1354 = vpow.pop %v1353
  %v1355 = vadd.f32 %v1352, 1.0
  %v1356 = vadd.f32 %v1354, 1.0
  %v1357 = vrcp.pop %v1355
  %v1358 = vmul.f32 %v1355, %v1357
  %v1359 = vsub.f32 1.0, %v1358
  %v1360 = vmul.f32 %v1357, %v1359
  %v1361 = vadd.f32 %v1357, %v1360
  %vm1362 = vweird.f32 %v1355
  %vm1363 = vweird.f32 %v1357
  %vm1364 = vmor %vm1362, %vm1363
  %v1365 = vsel %vm1364, %v1357, %v1361
  %v1366 = vand.u32 2147483647, %v1355
  %vm1367 = vcmp.eq.f32.partialorder %v1366, 8.507059e+37
  %v1368 = vand.u32 %v1355, 2147483648
  %v1369 = vor.u32 1.1754944e-38, %v1368
  %v1370 = vsel %vm1367, %v1369, %v1365
  %v1371 = vmul.f32 1.0, %v1370
  %v1372 = vrcp.pop %v1356
  %v1373 = vmul.f32 %v1356, %v1372
  %v1374 = vsub.f32 1.0, %v1373
  %v1375 = vmul.f32 %v1372, %v1374
  %v1376 = vadd.f32 %v1372, %v1375
  %vm1377 = vweird.f32 %v1356
  %vm1378 = vweird.f32 %v1372
  %vm1379 = vmor %vm1377, %vm1378
  %v1380 = vsel %vm1379, %v1372, %v1376
  %v1381 = vand.u32 2147483647, %v1356
  %vm1382 = vcmp.eq.f32.partialorder %v1381, 8.507059e+37
  %v1383 = vand.u32 %v1356, 2147483648
  %v1384 = vor.u32 1.1754944e-38, %v1383
  %v1385 = vsel %vm1382, %v1384, %v1380
  %v1386 = vmul.f32 1.0, %v1385
  %v1387 = vtanh.pop %v1347
  %v1388 = vtanh.pop %v1348
  %v1391 = vrot.slane %v1301, 7
  %v1392 = vrot.slane %v1302, 7
  %v1395 = vmul.f32 %v1371, %v1391
  %v1396 = vmul.f32 %v1386, %v1392
  %1399 = vrot.lane.b32.xlu0 %v1387, 64
  %v1400 = vpop.permute.xlu0 %1399
  %1401 = vrot.lane.b32.xlu0 %v1388, 64
  %v1402 = vpop.permute.xlu0 %1401
  %v1405 = vmul.f32 %v1371, %v1400
  %v1406 = vmul.f32 %v1386, %v1402
  %1409 = vrot.lane.b32.xlu0 %v1405, 32
  %v1410 = vpop.permute.xlu0 %1409
  %1411 = vrot.lane.b32.xlu0 %v1406, 32
  %v1412 = vpop.permute.xlu0 %1411
  %v1415 = vadd.f32 %v1395, %v1410
  %v1416 = vadd.f32 %v1396, %v1412
  %v1417 = vtanh.pop %v1415
  %v1418 = vtanh.pop %v1416
  %1421 = vrot.lane.b32.xlu0 %v1417, 64
  %v1422 = vpop.permute.xlu0 %1421
  %1423 = vrot.lane.b32.xlu0 %v1418, 64
  %v1424 = vpop.permute.xlu0 %1423
  %v1427 = vmul.f32 %v1371, %v1422
  %v1428 = vmul.f32 %v1386, %v1424
  %v1431 = vrot.slane %v1427, 1
  %v1432 = vsel %vm263, %v1428, %v1431
  %1433 = vrot.lane.b32.xlu0 %v1432, 32
  %v1434 = vpop.permute.xlu0 %1433
  %v1435 = vsel %vm127, %v1434, 0
  %1437 = vmatpush.msra.mxu0 0.0
  %1438 = vmatpush.msra.mxu0 0.0
  %1439 = vmatpush.msra.mxu0 0.0
  %1440 = vmatpush.msra.mxu0 0.0
  %1441 = vmatpush.msra.mxu0 0.0
  %1442 = vmatpush.msra.mxu0 0.0
  %1443 = vmatpush.msra.mxu0 0.0
  %1444 = vmatpush.msra.mxu0 0.0
  %1445 = vmatpush.msra.mxu0 0.0
  %1446 = vmatpush.msra.mxu0 0.0
  %1447 = vmatpush.msra.mxu0 0.0
  %1448 = vmatpush.msra.mxu0 0.0
  %1449 = vmatpush.msra.mxu0 %v1180
  %1450 = vmatpush.msra.mxu0 %v1179
  %1451 = vmatpush.msra.mxu0 %v1178
  %1452 = vmatpush.msra.mxu0 %v1177
  %1453 = vmatmul.f32.gmra.mxu0 %v1435
  %v1454 = vpop.f32.mrf.mxu0
  %v1455 = vadd.f32 0.0, %v1454
  %1456 = vdwg.mxu0
  %v1458 = vrot.slane %v1455, 6
  %v1459 = vrot.slane %v1455, 7
  %v1462 = vadd.f32 %v1210, %v1458
  %v1463 = vadd.f32 %v1213, %v1459
  %v1464 = vxor.u32 %v1462, 2147483648
  %v1465 = vxor.u32 %v1463, 2147483648
  %v1466 = vmul.f32 %v1464, 1.442695
  %v1467 = vpow.pop %v1466
  %v1468 = vmul.f32 %v1465, 1.442695
  %v1469 = vpow.pop %v1468
  %v1470 = vadd.f32 %v1467, 1.0
  %v1471 = vadd.f32 %v1469, 1.0
  %v1472 = vrcp.pop %v1470
  %v1473 = vmul.f32 %v1470, %v1472
  %v1474 = vsub.f32 1.0, %v1473
  %v1475 = vmul.f32 %v1472, %v1474
  %v1476 = vadd.f32 %v1472, %v1475
  %vm1477 = vweird.f32 %v1470
  %vm1478 = vweird.f32 %v1472
  %vm1479 = vmor %vm1477, %vm1478
  %v1480 = vsel %vm1479, %v1472, %v1476
  %v1481 = vand.u32 2147483647, %v1470
  %vm1482 = vcmp.eq.f32.partialorder %v1481, 8.507059e+37
  %v1483 = vand.u32 %v1470, 2147483648
  %v1484 = vor.u32 1.1754944e-38, %v1483
  %v1485 = vsel %vm1482, %v1484, %v1480
  %v1486 = vmul.f32 1.0, %v1485
  %v1487 = vrcp.pop %v1471
  %v1488 = vmul.f32 %v1471, %v1487
  %v1489 = vsub.f32 1.0, %v1488
  %v1490 = vmul.f32 %v1487, %v1489
  %v1491 = vadd.f32 %v1487, %v1490
  %vm1492 = vweird.f32 %v1471
  %vm1493 = vweird.f32 %v1487
  %vm1494 = vmor %vm1492, %vm1493
  %v1495 = vsel %vm1494, %v1487, %v1491
  %v1496 = vand.u32 2147483647, %v1471
  %vm1497 = vcmp.eq.f32.partialorder %v1496, 8.507059e+37
  %v1498 = vand.u32 %v1471, 2147483648
  %v1499 = vor.u32 1.1754944e-38, %v1498
  %v1500 = vsel %vm1497, %v1499, %v1495
  %v1501 = vmul.f32 1.0, %v1500
  %v1502 = vtanh.pop %v1462
  %v1503 = vtanh.pop %v1463
  %v1506 = vrot.slane %v1415, 7
  %v1507 = vrot.slane %v1416, 7
  %v1510 = vmul.f32 %v1486, %v1506
  %v1511 = vmul.f32 %v1501, %v1507
  %1514 = vrot.lane.b32.xlu0 %v1502, 64
  %v1515 = vpop.permute.xlu0 %1514
  %1516 = vrot.lane.b32.xlu0 %v1503, 64
  %v1517 = vpop.permute.xlu0 %1516
  %v1520 = vmul.f32 %v1486, %v1515
  %v1521 = vmul.f32 %v1501, %v1517
  %1524 = vrot.lane.b32.xlu0 %v1520, 32
  %v1525 = vpop.permute.xlu0 %1524
  %1526 = vrot.lane.b32.xlu0 %v1521, 32
  %v1527 = vpop.permute.xlu0 %1526
  %v1530 = vadd.f32 %v1510, %v1525
  %v1531 = vadd.f32 %v1511, %v1527
  %v1532 = vtanh.pop %v1530
  %v1533 = vtanh.pop %v1531
  %1536 = vrot.lane.b32.xlu0 %v1532, 64
  %v1537 = vpop.permute.xlu0 %1536
  %1538 = vrot.lane.b32.xlu0 %v1533, 64
  %v1539 = vpop.permute.xlu0 %1538
  %v1542 = vmul.f32 %v1486, %v1537
  %v1543 = vmul.f32 %v1501, %v1539
  %v1546 = vrot.slane %v1542, 2
  %v1547 = vrot.slane %v1543, 1
  %v1548 = vsel %vm263, %v1547, %v1546
  %1549 = vrot.lane.b32.xlu0 %v1548, 32
  %v1550 = vpop.permute.xlu0 %1549
  %v1551 = vsel %vm127, %v1550, 0
  %1553 = vmatpush.msra.mxu0 0.0
  %1554 = vmatpush.msra.mxu0 0.0
  %1555 = vmatpush.msra.mxu0 0.0
  %1556 = vmatpush.msra.mxu0 0.0
  %1557 = vmatpush.msra.mxu0 0.0
  %1558 = vmatpush.msra.mxu0 0.0
  %1559 = vmatpush.msra.mxu0 0.0
  %1560 = vmatpush.msra.mxu0 0.0
  %1561 = vmatpush.msra.mxu0 0.0
  %1562 = vmatpush.msra.mxu0 0.0
  %1563 = vmatpush.msra.mxu0 0.0
  %1564 = vmatpush.msra.mxu0 0.0
  %1565 = vmatpush.msra.mxu0 %v1180
  %1566 = vmatpush.msra.mxu0 %v1179
  %1567 = vmatpush.msra.mxu0 %v1178
  %1568 = vmatpush.msra.mxu0 %v1177
  %1569 = vmatmul.f32.gmra.mxu0 %v1551
  %v1570 = vpop.f32.mrf.mxu0
  %v1571 = vadd.f32 0.0, %v1570
  %1572 = vdwg.mxu0
  %v1574 = vrot.slane %v1571, 5
  %v1575 = vrot.slane %v1571, 6
  %v1578 = vadd.f32 %v1210, %v1574
  %v1579 = vadd.f32 %v1213, %v1575
  %v1580 = vxor.u32 %v1578, 2147483648
  %v1581 = vxor.u32 %v1579, 2147483648
  %v1582 = vmul.f32 %v1580, 1.442695
  %v1583 = vpow.pop %v1582
  %v1584 = vmul.f32 %v1581, 1.442695
  %v1585 = vpow.pop %v1584
  %v1586 = vadd.f32 %v1583, 1.0
  %v1587 = vadd.f32 %v1585, 1.0
  %v1588 = vrcp.pop %v1586
  %v1589 = vmul.f32 %v1586, %v1588
  %v1590 = vsub.f32 1.0, %v1589
  %v1591 = vmul.f32 %v1588, %v1590
  %v1592 = vadd.f32 %v1588, %v1591
  %vm1593 = vweird.f32 %v1586
  %vm1594 = vweird.f32 %v1588
  %vm1595 = vmor %vm1593, %vm1594
  %v1596 = vsel %vm1595, %v1588, %v1592
  %v1597 = vand.u32 2147483647, %v1586
  %vm1598 = vcmp.eq.f32.partialorder %v1597, 8.507059e+37
  %v1599 = vand.u32 %v1586, 2147483648
  %v1600 = vor.u32 1.1754944e-38, %v1599
  %v1601 = vsel %vm1598, %v1600, %v1596
  %v1602 = vmul.f32 1.0, %v1601
  %v1603 = vrcp.pop %v1587
  %v1604 = vmul.f32 %v1587, %v1603
  %v1605 = vsub.f32 1.0, %v1604
  %v1606 = vmul.f32 %v1603, %v1605
  %v1607 = vadd.f32 %v1603, %v1606
  %vm1608 = vweird.f32 %v1587
  %vm1609 = vweird.f32 %v1603
  %vm1610 = vmor %vm1608, %vm1609
  %v1611 = vsel %vm1610, %v1603, %v1607
  %v1612 = vand.u32 2147483647, %v1587
  %vm1613 = vcmp.eq.f32.partialorder %v1612, 8.507059e+37
  %v1614 = vand.u32 %v1587, 2147483648
  %v1615 = vor.u32 1.1754944e-38, %v1614
  %v1616 = vsel %vm1613, %v1615, %v1611
  %v1617 = vmul.f32 1.0, %v1616
  %v1618 = vtanh.pop %v1578
  %v1619 = vtanh.pop %v1579
  %v1622 = vrot.slane %v1530, 7
  %v1623 = vrot.slane %v1531, 7
  %v1626 = vmul.f32 %v1602, %v1622
  %v1627 = vmul.f32 %v1617, %v1623
  %1630 = vrot.lane.b32.xlu0 %v1618, 64
  %v1631 = vpop.permute.xlu0 %1630
  %1632 = vrot.lane.b32.xlu0 %v1619, 64
  %v1633 = vpop.permute.xlu0 %1632
  %v1636 = vmul.f32 %v1602, %v1631
  %v1637 = vmul.f32 %v1617, %v1633
  %1640 = vrot.lane.b32.xlu0 %v1636, 32
  %v1641 = vpop.permute.xlu0 %1640
  %1642 = vrot.lane.b32.xlu0 %v1637, 32
  %v1643 = vpop.permute.xlu0 %1642
  %v1646 = vadd.f32 %v1626, %v1641
  %v1647 = vadd.f32 %v1627, %v1643
  %v1648 = vtanh.pop %v1646
  %v1649 = vtanh.pop %v1647
  %1652 = vrot.lane.b32.xlu0 %v1648, 64
  %v1653 = vpop.permute.xlu0 %1652
  %1654 = vrot.lane.b32.xlu0 %v1649, 64
  %v1655 = vpop.permute.xlu0 %1654
  %v1658 = vmul.f32 %v1602, %v1653
  %v1659 = vmul.f32 %v1617, %v1655
  %v1662 = vrot.slane %v1658, 3
  %v1663 = vrot.slane %v1659, 2
  %v1664 = vsel %vm263, %v1663, %v1662
  %1665 = vrot.lane.b32.xlu0 %v1664, 32
  %v1666 = vpop.permute.xlu0 %1665
  %v1667 = vsel %vm127, %v1666, 0
  %1669 = vmatpush.msra.mxu0 0.0
  %1670 = vmatpush.msra.mxu0 0.0
  %1671 = vmatpush.msra.mxu0 0.0
  %1672 = vmatpush.msra.mxu0 0.0
  %1673 = vmatpush.msra.mxu0 0.0
  %1674 = vmatpush.msra.mxu0 0.0
  %1675 = vmatpush.msra.mxu0 0.0
  %1676 = vmatpush.msra.mxu0 0.0
  %1677 = vmatpush.msra.mxu0 0.0
  %1678 = vmatpush.msra.mxu0 0.0
  %1679 = vmatpush.msra.mxu0 0.0
  %1680 = vmatpush.msra.mxu0 0.0
  %1681 = vmatpush.msra.mxu0 %v1180
  %1682 = vmatpush.msra.mxu0 %v1179
  %1683 = vmatpush.msra.mxu0 %v1178
  %1684 = vmatpush.msra.mxu0 %v1177
  %1685 = vmatmul.f32.gmra.mxu0 %v1667
  %v1686 = vpop.f32.mrf.mxu0
  %v1687 = vadd.f32 0.0, %v1686
  %1688 = vdwg.mxu0
  %v1690 = vrot.slane %v1687, 4
  %v1691 = vrot.slane %v1687, 5
  %v1694 = vadd.f32 %v1210, %v1690
  %v1695 = vadd.f32 %v1213, %v1691
  %v1696 = vxor.u32 %v1694, 2147483648
  %v1697 = vxor.u32 %v1695, 2147483648
  %v1698 = vmul.f32 %v1696, 1.442695
  %v1699 = vpow.pop %v1698
  %v1700 = vmul.f32 %v1697, 1.442695
  %v1701 = vpow.pop %v1700
  %v1702 = vadd.f32 %v1699, 1.0
  %v1703 = vadd.f32 %v1701, 1.0
  %v1704 = vrcp.pop %v1702
  %v1705 = vmul.f32 %v1702, %v1704
  %v1706 = vsub.f32 1.0, %v1705
  %v1707 = vmul.f32 %v1704, %v1706
  %v1708 = vadd.f32 %v1704, %v1707
  %vm1709 = vweird.f32 %v1702
  %vm1710 = vweird.f32 %v1704
  %vm1711 = vmor %vm1709, %vm1710
  %v1712 = vsel %vm1711, %v1704, %v1708
  %v1713 = vand.u32 2147483647, %v1702
  %vm1714 = vcmp.eq.f32.partialorder %v1713, 8.507059e+37
  %v1715 = vand.u32 %v1702, 2147483648
  %v1716 = vor.u32 1.1754944e-38, %v1715
  %v1717 = vsel %vm1714, %v1716, %v1712
  %v1718 = vmul.f32 1.0, %v1717
  %v1719 = vrcp.pop %v1703
  %v1720 = vmul.f32 %v1703, %v1719
  %v1721 = vsub.f32 1.0, %v1720
  %v1722 = vmul.f32 %v1719, %v1721
  %v1723 = vadd.f32 %v1719, %v1722
  %vm1724 = vweird.f32 %v1703
  %vm1725 = vweird.f32 %v1719
  %vm1726 = vmor %vm1724, %vm1725
  %v1727 = vsel %vm1726, %v1719, %v1723
  %v1728 = vand.u32 2147483647, %v1703
  %vm1729 = vcmp.eq.f32.partialorder %v1728, 8.507059e+37
  %v1730 = vand.u32 %v1703, 2147483648
  %v1731 = vor.u32 1.1754944e-38, %v1730
  %v1732 = vsel %vm1729, %v1731, %v1727
  %v1733 = vmul.f32 1.0, %v1732
  %v1734 = vtanh.pop %v1694
  %v1735 = vtanh.pop %v1695
  %v1738 = vrot.slane %v1646, 7
  %v1739 = vrot.slane %v1647, 7
  %v1742 = vmul.f32 %v1718, %v1738
  %v1743 = vmul.f32 %v1733, %v1739
  %1746 = vrot.lane.b32.xlu0 %v1734, 64
  %v1747 = vpop.permute.xlu0 %1746
  %1748 = vrot.lane.b32.xlu0 %v1735, 64
  %v1749 = vpop.permute.xlu0 %1748
  %v1752 = vmul.f32 %v1718, %v1747
  %v1753 = vmul.f32 %v1733, %v1749
  %1756 = vrot.lane.b32.xlu0 %v1752, 32
  %v1757 = vpop.permute.xlu0 %1756
  %1758 = vrot.lane.b32.xlu0 %v1753, 32
  %v1759 = vpop.permute.xlu0 %1758
  %v1762 = vadd.f32 %v1742, %v1757
  %v1763 = vadd.f32 %v1743, %v1759
  %v1764 = vtanh.pop %v1762
  %v1765 = vtanh.pop %v1763
  %1768 = vrot.lane.b32.xlu0 %v1764, 64
  %v1769 = vpop.permute.xlu0 %1768
  %1770 = vrot.lane.b32.xlu0 %v1765, 64
  %v1771 = vpop.permute.xlu0 %1770
  %v1774 = vmul.f32 %v1718, %v1769
  %v1775 = vmul.f32 %v1733, %v1771
  %v1778 = vrot.slane %v1774, 4
  %v1779 = vrot.slane %v1775, 3
  %v1780 = vsel %vm263, %v1779, %v1778
  %1781 = vrot.lane.b32.xlu0 %v1780, 32
  %v1782 = vpop.permute.xlu0 %1781
  %v1783 = vsel %vm127, %v1782, 0
  %1785 = vmatpush.msra.mxu0 0.0
  %1786 = vmatpush.msra.mxu0 0.0
  %1787 = vmatpush.msra.mxu0 0.0
  %1788 = vmatpush.msra.mxu0 0.0
  %1789 = vmatpush.msra.mxu0 0.0
  %1790 = vmatpush.msra.mxu0 0.0
  %1791 = vmatpush.msra.mxu0 0.0
  %1792 = vmatpush.msra.mxu0 0.0
  %1793 = vmatpush.msra.mxu0 0.0
  %1794 = vmatpush.msra.mxu0 0.0
  %1795 = vmatpush.msra.mxu0 0.0
  %1796 = vmatpush.msra.mxu0 0.0
  %1797 = vmatpush.msra.mxu0 %v1180
  %1798 = vmatpush.msra.mxu0 %v1179
  %1799 = vmatpush.msra.mxu0 %v1178
  %1800 = vmatpush.msra.mxu0 %v1177
  %1801 = vmatmul.f32.gmra.mxu0 %v1783
  %v1802 = vpop.f32.mrf.mxu0
  %v1803 = vadd.f32 0.0, %v1802
  %1804 = vdwg.mxu0
  %v1806 = vrot.slane %v1803, 3
  %v1807 = vrot.slane %v1803, 4
  %v1810 = vadd.f32 %v1210, %v1806
  %v1811 = vadd.f32 %v1213, %v1807
  %v1812 = vxor.u32 %v1810, 2147483648
  %v1813 = vxor.u32 %v1811, 2147483648
  %v1814 = vmul.f32 %v1812, 1.442695
  %v1815 = vpow.pop %v1814
  %v1816 = vmul.f32 %v1813, 1.442695
  %v1817 = vpow.pop %v1816
  %v1818 = vadd.f32 %v1815, 1.0
  %v1819 = vadd.f32 %v1817, 1.0
  %v1820 = vrcp.pop %v1818
  %v1821 = vmul.f32 %v1818, %v1820
  %v1822 = vsub.f32 1.0, %v1821
  %v1823 = vmul.f32 %v1820, %v1822
  %v1824 = vadd.f32 %v1820, %v1823
  %vm1825 = vweird.f32 %v1818
  %vm1826 = vweird.f32 %v1820
  %vm1827 = vmor %vm1825, %vm1826
  %v1828 = vsel %vm1827, %v1820, %v1824
  %v1829 = vand.u32 2147483647, %v1818
  %vm1830 = vcmp.eq.f32.partialorder %v1829, 8.507059e+37
  %v1831 = vand.u32 %v1818, 2147483648
  %v1832 = vor.u32 1.1754944e-38, %v1831
  %v1833 = vsel %vm1830, %v1832, %v1828
  %v1834 = vmul.f32 1.0, %v1833
  %v1835 = vrcp.pop %v1819
  %v1836 = vmul.f32 %v1819, %v1835
  %v1837 = vsub.f32 1.0, %v1836
  %v1838 = vmul.f32 %v1835, %v1837
  %v1839 = vadd.f32 %v1835, %v1838
  %vm1840 = vweird.f32 %v1819
  %vm1841 = vweird.f32 %v1835
  %vm1842 = vmor %vm1840, %vm1841
  %v1843 = vsel %vm1842, %v1835, %v1839
  %v1844 = vand.u32 2147483647, %v1819
  %vm1845 = vcmp.eq.f32.partialorder %v1844, 8.507059e+37
  %v1846 = vand.u32 %v1819, 2147483648
  %v1847 = vor.u32 1.1754944e-38, %v1846
  %v1848 = vsel %vm1845, %v1847, %v1843
  %v1849 = vmul.f32 1.0, %v1848
  %v1850 = vtanh.pop %v1810
  %v1851 = vtanh.pop %v1811
  %v1854 = vrot.slane %v1762, 7
  %v1855 = vrot.slane %v1763, 7
  %v1858 = vmul.f32 %v1834, %v1854
  %v1859 = vmul.f32 %v1849, %v1855
  %1862 = vrot.lane.b32.xlu0 %v1850, 64
  %v1863 = vpop.permute.xlu0 %1862
  %1864 = vrot.lane.b32.xlu0 %v1851, 64
  %v1865 = vpop.permute.xlu0 %1864
  %v1868 = vmul.f32 %v1834, %v1863
  %v1869 = vmul.f32 %v1849, %v1865
  %1872 = vrot.lane.b32.xlu0 %v1868, 32
  %v1873 = vpop.permute.xlu0 %1872
  %1874 = vrot.lane.b32.xlu0 %v1869, 32
  %v1875 = vpop.permute.xlu0 %1874
  %v1878 = vadd.f32 %v1858, %v1873
  %v1879 = vadd.f32 %v1859, %v1875
  %v1880 = vtanh.pop %v1878
  %v1881 = vtanh.pop %v1879
  %1884 = vrot.lane.b32.xlu0 %v1880, 64
  %v1885 = vpop.permute.xlu0 %1884
  %1886 = vrot.lane.b32.xlu0 %v1881, 64
  %v1887 = vpop.permute.xlu0 %1886
  %v1890 = vmul.f32 %v1834, %v1885
  %v1891 = vmul.f32 %v1849, %v1887
  %v1894 = vrot.slane %v1890, 5
  %v1895 = vrot.slane %v1891, 4
  %v1896 = vsel %vm263, %v1895, %v1894
  %1897 = vrot.lane.b32.xlu0 %v1896, 32
  %v1898 = vpop.permute.xlu0 %1897
  %v1899 = vsel %vm127, %v1898, 0
  %1901 = vmatpush.msra.mxu0 0.0
  %1902 = vmatpush.msra.mxu0 0.0
  %1903 = vmatpush.msra.mxu0 0.0
  %1904 = vmatpush.msra.mxu0 0.0
  %1905 = vmatpush.msra.mxu0 0.0
  %1906 = vmatpush.msra.mxu0 0.0
  %1907 = vmatpush.msra.mxu0 0.0
  %1908 = vmatpush.msra.mxu0 0.0
  %1909 = vmatpush.msra.mxu0 0.0
  %1910 = vmatpush.msra.mxu0 0.0
  %1911 = vmatpush.msra.mxu0 0.0
  %1912 = vmatpush.msra.mxu0 0.0
  %1913 = vmatpush.msra.mxu0 %v1180
  %1914 = vmatpush.msra.mxu0 %v1179
  %1915 = vmatpush.msra.mxu0 %v1178
  %1916 = vmatpush.msra.mxu0 %v1177
  %1917 = vmatmul.f32.gmra.mxu0 %v1899
  %v1918 = vpop.f32.mrf.mxu0
  %v1919 = vadd.f32 0.0, %v1918
  %1920 = vdwg.mxu0
  %v1922 = vrot.slane %v1919, 2
  %v1923 = vrot.slane %v1919, 3
  %v1926 = vadd.f32 %v1210, %v1922
  %v1927 = vadd.f32 %v1213, %v1923
  %v1928 = vxor.u32 %v1926, 2147483648
  %v1929 = vxor.u32 %v1927, 2147483648
  %v1930 = vmul.f32 %v1928, 1.442695
  %v1931 = vpow.pop %v1930
  %v1932 = vmul.f32 %v1929, 1.442695
  %v1933 = vpow.pop %v1932
  %v1934 = vadd.f32 %v1931, 1.0
  %v1935 = vadd.f32 %v1933, 1.0
  %v1936 = vrcp.pop %v1934
  %v1937 = vmul.f32 %v1934, %v1936
  %v1938 = vsub.f32 1.0, %v1937
  %v1939 = vmul.f32 %v1936, %v1938
  %v1940 = vadd.f32 %v1936, %v1939
  %vm1941 = vweird.f32 %v1934
  %vm1942 = vweird.f32 %v1936
  %vm1943 = vmor %vm1941, %vm1942
  %v1944 = vsel %vm1943, %v1936, %v1940
  %v1945 = vand.u32 2147483647, %v1934
  %vm1946 = vcmp.eq.f32.partialorder %v1945, 8.507059e+37
  %v1947 = vand.u32 %v1934, 2147483648
  %v1948 = vor.u32 1.1754944e-38, %v1947
  %v1949 = vsel %vm1946, %v1948, %v1944
  %v1950 = vmul.f32 1.0, %v1949
  %v1951 = vrcp.pop %v1935
  %v1952 = vmul.f32 %v1935, %v1951
  %v1953 = vsub.f32 1.0, %v1952
  %v1954 = vmul.f32 %v1951, %v1953
  %v1955 = vadd.f32 %v1951, %v1954
  %vm1956 = vweird.f32 %v1935
  %vm1957 = vweird.f32 %v1951
  %vm1958 = vmor %vm1956, %vm1957
  %v1959 = vsel %vm1958, %v1951, %v1955
  %v1960 = vand.u32 2147483647, %v1935
  %vm1961 = vcmp.eq.f32.partialorder %v1960, 8.507059e+37
  %v1962 = vand.u32 %v1935, 2147483648
  %v1963 = vor.u32 1.1754944e-38, %v1962
  %v1964 = vsel %vm1961, %v1963, %v1959
  %v1965 = vmul.f32 1.0, %v1964
  %v1966 = vtanh.pop %v1926
  %v1967 = vtanh.pop %v1927
  %v1970 = vrot.slane %v1878, 7
  %v1971 = vrot.slane %v1879, 7
  %v1974 = vmul.f32 %v1950, %v1970
  %v1975 = vmul.f32 %v1965, %v1971
  %1978 = vrot.lane.b32.xlu0 %v1966, 64
  %v1979 = vpop.permute.xlu0 %1978
  %1980 = vrot.lane.b32.xlu0 %v1967, 64
  %v1981 = vpop.permute.xlu0 %1980
  %v1984 = vmul.f32 %v1950, %v1979
  %v1985 = vmul.f32 %v1965, %v1981
  %1988 = vrot.lane.b32.xlu0 %v1984, 32
  %v1989 = vpop.permute.xlu0 %1988
  %1990 = vrot.lane.b32.xlu0 %v1985, 32
  %v1991 = vpop.permute.xlu0 %1990
  %v1994 = vadd.f32 %v1974, %v1989
  %v1995 = vadd.f32 %v1975, %v1991
  %v1996 = vtanh.pop %v1994
  %v1997 = vtanh.pop %v1995
  %2000 = vrot.lane.b32.xlu0 %v1996, 64
  %v2001 = vpop.permute.xlu0 %2000
  %2002 = vrot.lane.b32.xlu0 %v1997, 64
  %v2003 = vpop.permute.xlu0 %2002
  %v2006 = vmul.f32 %v1950, %v2001
  %v2007 = vmul.f32 %v1965, %v2003
  %v2010 = vrot.slane %v2006, 6
  %v2011 = vrot.slane %v2007, 5
  %v2012 = vsel %vm263, %v2011, %v2010
  %2013 = vrot.lane.b32.xlu0 %v2012, 32
  %v2014 = vpop.permute.xlu0 %2013
  %v2015 = vsel %vm127, %v2014, 0
  %2017 = vmatpush.msra.mxu0 0.0
  %2018 = vmatpush.msra.mxu0 0.0
  %2019 = vmatpush.msra.mxu0 0.0
  %2020 = vmatpush.msra.mxu0 0.0
  %2021 = vmatpush.msra.mxu0 0.0
  %2022 = vmatpush.msra.mxu0 0.0
  %2023 = vmatpush.msra.mxu0 0.0
  %2024 = vmatpush.msra.mxu0 0.0
  %2025 = vmatpush.msra.mxu0 0.0
  %2026 = vmatpush.msra.mxu0 0.0
  %2027 = vmatpush.msra.mxu0 0.0
  %2028 = vmatpush.msra.mxu0 0.0
  %2029 = vmatpush.msra.mxu0 %v1180
  %2030 = vmatpush.msra.mxu0 %v1179
  %2031 = vmatpush.msra.mxu0 %v1178
  %2032 = vmatpush.msra.mxu0 %v1177
  %2033 = vmatmul.f32.gmra.mxu0 %v2015
  %v2034 = vpop.f32.mrf.mxu0
  %v2035 = vadd.f32 0.0, %v2034
  %2036 = vdwg.mxu0
  %v2038 = vrot.slane %v2035, 1
  %v2039 = vrot.slane %v2035, 2
  %v2042 = vadd.f32 %v1210, %v2038
  %v2043 = vadd.f32 %v1213, %v2039
  %v2044 = vxor.u32 %v2042, 2147483648
  %v2045 = vxor.u32 %v2043, 2147483648
  %v2046 = vmul.f32 %v2044, 1.442695
  %v2047 = vpow.pop %v2046
  %v2048 = vmul.f32 %v2045, 1.442695
  %v2049 = vpow.pop %v2048
  %v2050 = vadd.f32 %v2047, 1.0
  %v2051 = vadd.f32 %v2049, 1.0
  %v2052 = vrcp.pop %v2050
  %v2053 = vmul.f32 %v2050, %v2052
  %v2054 = vsub.f32 1.0, %v2053
  %v2055 = vmul.f32 %v2052, %v2054
  %v2056 = vadd.f32 %v2052, %v2055
  %vm2057 = vweird.f32 %v2050
  %vm2058 = vweird.f32 %v2052
  %vm2059 = vmor %vm2057, %vm2058
  %v2060 = vsel %vm2059, %v2052, %v2056
  %v2061 = vand.u32 2147483647, %v2050
  %vm2062 = vcmp.eq.f32.partialorder %v2061, 8.507059e+37
  %v2063 = vand.u32 %v2050, 2147483648
  %v2064 = vor.u32 1.1754944e-38, %v2063
  %v2065 = vsel %vm2062, %v2064, %v2060
  %v2066 = vmul.f32 1.0, %v2065
  %v2067 = vrcp.pop %v2051
  %v2068 = vmul.f32 %v2051, %v2067
  %v2069 = vsub.f32 1.0, %v2068
  %v2070 = vmul.f32 %v2067, %v2069
  %v2071 = vadd.f32 %v2067, %v2070
  %vm2072 = vweird.f32 %v2051
  %vm2073 = vweird.f32 %v2067
  %vm2074 = vmor %vm2072, %vm2073
  %v2075 = vsel %vm2074, %v2067, %v2071
  %v2076 = vand.u32 2147483647, %v2051
  %vm2077 = vcmp.eq.f32.partialorder %v2076, 8.507059e+37
  %v2078 = vand.u32 %v2051, 2147483648
  %v2079 = vor.u32 1.1754944e-38, %v2078
  %v2080 = vsel %vm2077, %v2079, %v2075
  %v2081 = vmul.f32 1.0, %v2080
  %v2082 = vtanh.pop %v2042
  %v2083 = vtanh.pop %v2043
  %v2086 = vrot.slane %v1994, 7
  %v2087 = vrot.slane %v1995, 7
  %v2090 = vmul.f32 %v2066, %v2086
  %v2091 = vmul.f32 %v2081, %v2087
  %2094 = vrot.lane.b32.xlu0 %v2082, 64
  %v2095 = vpop.permute.xlu0 %2094
  %2096 = vrot.lane.b32.xlu0 %v2083, 64
  %v2097 = vpop.permute.xlu0 %2096
  %v2100 = vmul.f32 %v2066, %v2095
  %v2101 = vmul.f32 %v2081, %v2097
  %2104 = vrot.lane.b32.xlu0 %v2100, 32
  %v2105 = vpop.permute.xlu0 %2104
  %2106 = vrot.lane.b32.xlu0 %v2101, 32
  %v2107 = vpop.permute.xlu0 %2106
  %v2110 = vadd.f32 %v2090, %v2105
  %v2111 = vadd.f32 %v2091, %v2107
  %v2112 = vtanh.pop %v2110
  %v2113 = vtanh.pop %v2111
  %2116 = vrot.lane.b32.xlu0 %v2112, 64
  %v2117 = vpop.permute.xlu0 %2116
  %2118 = vrot.lane.b32.xlu0 %v2113, 64
  %v2119 = vpop.permute.xlu0 %2118
  %v2122 = vmul.f32 %v2066, %v2117
  %v2123 = vmul.f32 %v2081, %v2119
  %v2124 = vsel %vm1070, %v1313, %v1427
  %v2125 = vsel %vm1070, %v1314, %v1428
  %v2126 = vsel %vm1073, %v2124, %v1542
  %v2127 = vsel %vm1073, %v2125, %v1543
  %v2128 = vsel %vm1076, %v2126, %v1658
  %v2129 = vsel %vm1076, %v2127, %v1659
  %v2130 = vsel %vm1079, %v2128, %v1774
  %v2131 = vsel %vm1079, %v2129, %v1775
  %v2132 = vsel %vm1082, %v2130, %v1890
  %v2133 = vsel %vm1082, %v2131, %v1891
  %v2134 = vsel %vm1085, %v2132, %v2006
  %v2135 = vsel %vm1085, %v2133, %v2007
  %v2136 = vsel %vm1088, %v2134, %v2122
  %v2137 = vsel %vm1088, %v2135, %v2123
  %2140 = vrot.lane.b32.xlu0 %v2136, 32
  %v2141 = vpop.permute.xlu0 %2140
  %2142 = vrot.lane.b32.xlu0 %v2137, 32
  %v2143 = vpop.permute.xlu0 %2142
  %v2146 = vsel %vm127, %v2141, 0.0
  %2147 = vadd.xlane.f32.xlu0 %v2146
  %v2148 = vpop.xlane.xlu0 %2147
  %v2149 = vsel %vm127, %v2143, 0.0
  %2150 = vadd.xlane.f32.xlu0 %v2149
  %v2151 = vpop.xlane.xlu0 %2150
  %v2152 = vmul.f32 %v2148, %v1111
  %v2153 = vmul.f32 %v2151, %v1111
  %v2154 = vsub.f32 %v2136, %v2152
  %v2155 = vsub.f32 %v2137, %v2153
  %v2156 = vmul.f32 %v2154, %v2154
  %v2157 = vmul.f32 %v2155, %v2155
  %2160 = vrot.lane.b32.xlu0 %v2156, 32
  %v2161 = vpop.permute.xlu0 %2160
  %2162 = vrot.lane.b32.xlu0 %v2157, 32
  %v2163 = vpop.permute.xlu0 %2162
  %v2166 = vsel %vm127, %v2161, 0.0
  %2167 = vadd.xlane.f32.xlu0 %v2166
  %v2168 = vpop.xlane.xlu0 %2167
  %v2169 = vsel %vm127, %v2163, 0.0
  %2170 = vadd.xlane.f32.xlu0 %v2169
  %v2171 = vpop.xlane.xlu0 %2170
  %v2172 = vmul.f32 %v2168, %v1111
  %v2173 = vmul.f32 %v2171, %v1111
  %v2174 = vadd.f32 %v2172, 1e-05
  %v2175 = vadd.f32 %v2173, 1e-05
  %v2176 = vrsqrt.pop %v2174
  %v2177 = vmul.f32 %v2176, %v2174
  %v2178 = vmul.f32 %v2177, %v2176
  %v2179 = vmul.f32 0.5, %v2178
  %v2180 = vsub.f32 1.5, %v2179
  %v2181 = vmul.f32 %v2176, %v2180
  %vm2182 = vweird.f32 %v2174
  %vm2183 = vweird.f32 %v2176
  %vm2184 = vmor %vm2182, %vm2183
  %v2185 = vsel %vm2184, %v2176, %v2181
  %v2186 = vrsqrt.pop %v2175
  %v2187 = vmul.f32 %v2186, %v2175
  %v2188 = vmul.f32 %v2187, %v2186
  %v2189 = vmul.f32 0.5, %v2188
  %v2190 = vsub.f32 1.5, %v2189
  %v2191 = vmul.f32 %v2186, %v2190
  %vm2192 = vweird.f32 %v2175
  %vm2193 = vweird.f32 %v2186
  %vm2194 = vmor %vm2192, %vm2193
  %v2195 = vsel %vm2194, %v2186, %v2191
  %v2196 = vmul.f32 %v2154, %v2185
  %v2197 = vmul.f32 %v2155, %v2195
  %v2198 = vperm.slane %v56, 7
  %2200 = vrot.lane.b32.xlu0 %v2198, 96
  %v2201 = vpop.permute.xlu0 %2200
  %v2203 = vmul.f32 %v2196, %v2201
  %v2204 = vmul.f32 %v2197, %v2201
  %v2205 = vperm.slane %v57, 0
  %2207 = vrot.lane.b32.xlu0 %v2205, 96
  %v2208 = vpop.permute.xlu0 %2207
  %v2210 = vadd.f32 %v2203, %v2208
  %v2211 = vadd.f32 %v2204, %v2208
  %v2212 = vadd.f32 %v2210, %v1170
  %v2213 = vadd.f32 %v2211, %v1171
  %v2214 = vld [vmem:[%s4] sm:$0xff]
  %v2215 = vld [vmem:[%s4 + $0x8] sm:$0xff]
  %v2216 = vld [vmem:[%s4 + $0x10] sm:$0xff]
  %v2217 = vld [vmem:[%s4 + $0x18] sm:$0xff]
  %v2218 = vld [vmem:[%s5] sm:$0x1]
  %v2220 = vperm.slane %v2218, 0
  %2224 = vrot.lane.b32.xlu0 %v2212, 32
  %v2225 = vpop.permute.xlu0 %2224
  %2226 = vrot.lane.b32.xlu0 %v2213, 32
  %v2227 = vpop.permute.xlu0 %2226
  %v2228 = vsel %vm127, %v2225, 0
  %v2230 = vsel %vm127, %v2227, 0
  %2232 = vmatpush.msra.mxu0 0.0
  %2233 = vmatpush.msra.mxu0 0.0
  %2234 = vmatpush.msra.mxu0 0.0
  %2235 = vmatpush.msra.mxu0 0.0
  %2236 = vmatpush.msra.mxu0 0.0
  %2237 = vmatpush.msra.mxu0 0.0
  %2238 = vmatpush.msra.mxu0 0.0
  %2239 = vmatpush.msra.mxu0 0.0
  %2240 = vmatpush.msra.mxu0 0.0
  %2241 = vmatpush.msra.mxu0 0.0
  %2242 = vmatpush.msra.mxu0 0.0
  %2243 = vmatpush.msra.mxu0 0.0
  %2244 = vmatpush.msra.mxu0 %v2217
  %2245 = vmatpush.msra.mxu0 %v2216
  %2246 = vmatpush.msra.mxu0 %v2215
  %2247 = vmatpush.msra.mxu0 %v2214
  %2248 = vmatmul.f32.gmra.mxu0 %v2228
  %v2249 = vpop.f32.mrf.mxu0
  %v2250 = vadd.f32 %v2220, %v2249
  %2251 = vmatmul.f32.gmra.mxu0 %v2230
  %v2252 = vpop.f32.mrf.mxu0
  %v2253 = vadd.f32 %v2220, %v2252
  %2254 = vdwg.mxu0
  %2257 = vrot.lane.b32.xlu0 %v2250, 124
  %v2258 = vpop.permute.xlu0 %2257
  %2259 = vrot.lane.b32.xlu0 %v2253, 124
  %v2260 = vpop.permute.xlu0 %2259
  %2263 = vrot.lane.b32.xlu0 %v2250, 120
  %v2264 = vpop.permute.xlu0 %2263
  %2265 = vrot.lane.b32.xlu0 %v2253, 120
  %v2266 = vpop.permute.xlu0 %2265
  %2269 = vrot.lane.b32.xlu0 %v2250, 116
  %v2270 = vpop.permute.xlu0 %2269
  %2271 = vrot.lane.b32.xlu0 %v2253, 116
  %v2272 = vpop.permute.xlu0 %2271
  %2275 = vrot.lane.b32.xlu0 %v2250, 112
  %v2276 = vpop.permute.xlu0 %2275
  %2277 = vrot.lane.b32.xlu0 %v2253, 112
  %v2278 = vpop.permute.xlu0 %2277
  %2281 = vrot.lane.b32.xlu0 %v2250, 108
  %v2282 = vpop.permute.xlu0 %2281
  %2283 = vrot.lane.b32.xlu0 %v2253, 108
  %v2284 = vpop.permute.xlu0 %2283
  %2287 = vrot.lane.b32.xlu0 %v2250, 104
  %v2288 = vpop.permute.xlu0 %2287
  %2289 = vrot.lane.b32.xlu0 %v2253, 104
  %v2290 = vpop.permute.xlu0 %2289
  %2293 = vrot.lane.b32.xlu0 %v2250, 100
  %v2294 = vpop.permute.xlu0 %2293
  %2295 = vrot.lane.b32.xlu0 %v2253, 100
  %v2296 = vpop.permute.xlu0 %2295
  %v2299 = vrot.slane %v2264, 4
  %vm2300 = vcmask 1047556
  %v2301 = vsel %vm2300, %v2299, %v2250
  %v2302 = vrot.slane %v2250, 4
  %v2303 = vsel %vm2300, %v2264, %v2302
  %v2305 = vunpack.c.l.s4 1983009808
  %v2306 = vunpack.c.0.s8 %v2305
  %v2307 = vperm.slane %v2301, %v2306
  %v2309 = vunpack.c.l.s4 1983009808
  %v2310 = vunpack.c.0.s8 %v2309
  %v2311 = vperm.slane %v2303, %v2310
  %v2312 = vrot.slane %v2270, 4
  %v2313 = vsel %vm2300, %v2312, %v2258
  %v2314 = vrot.slane %v2258, 4
  %v2315 = vsel %vm2300, %v2270, %v2314
  %v2317 = vunpack.c.l.s4 1983009808
  %v2318 = vunpack.c.0.s8 %v2317
  %v2319 = vperm.slane %v2313, %v2318
  %v2321 = vunpack.c.l.s4 1983009808
  %v2322 = vunpack.c.0.s8 %v2321
  %v2323 = vperm.slane %v2315, %v2322
  %v2324 = vrot.slane %v2288, 4
  %v2325 = vsel %vm2300, %v2324, %v2276
  %v2326 = vrot.slane %v2276, 4
  %v2327 = vsel %vm2300, %v2288, %v2326
  %v2329 = vunpack.c.l.s4 1983009808
  %v2330 = vunpack.c.0.s8 %v2329
  %v2331 = vperm.slane %v2325, %v2330
  %v2333 = vunpack.c.l.s4 1983009808
  %v2334 = vunpack.c.0.s8 %v2333
  %v2335 = vperm.slane %v2327, %v2334
  %v2336 = vrot.slane %v2294, 4
  %v2337 = vsel %vm2300, %v2336, %v2282
  %v2338 = vrot.slane %v2282, 4
  %v2339 = vsel %vm2300, %v2294, %v2338
  %v2341 = vunpack.c.l.s4 1983009808
  %v2342 = vunpack.c.0.s8 %v2341
  %v2343 = vperm.slane %v2337, %v2342
  %v2345 = vunpack.c.l.s4 1983009808
  %v2346 = vunpack.c.0.s8 %v2345
  %v2347 = vperm.slane %v2339, %v2346
  %v2348 = vrot.slane %v2319, 4
  %v2349 = vsel %vm2300, %v2348, %v2307
  %v2350 = vrot.slane %v2307, 4
  %v2351 = vsel %vm2300, %v2319, %v2350
  %v2353 = vunpack.c.l.s4 1934713408
  %v2354 = vunpack.c.0.s8 %v2353
  %v2355 = vperm.slane %v2349, %v2354
  %v2357 = vunpack.c.l.s4 1934713408
  %v2358 = vunpack.c.0.s8 %v2357
  %v2359 = vperm.slane %v2351, %v2358
  %v2360 = vrot.slane %v2323, 4
  %v2361 = vsel %vm2300, %v2360, %v2311
  %v2362 = vrot.slane %v2311, 4
  %v2363 = vsel %vm2300, %v2323, %v2362
  %v2365 = vunpack.c.l.s4 1934713408
  %v2366 = vunpack.c.0.s8 %v2365
  %v2367 = vperm.slane %v2361, %v2366
  %v2369 = vunpack.c.l.s4 1934713408
  %v2370 = vunpack.c.0.s8 %v2369
  %v2371 = vperm.slane %v2363, %v2370
  %v2372 = vrot.slane %v2343, 4
  %v2373 = vsel %vm2300, %v2372, %v2331
  %v2374 = vrot.slane %v2331, 4
  %v2375 = vsel %vm2300, %v2343, %v2374
  %v2377 = vunpack.c.l.s4 1934713408
  %v2378 = vunpack.c.0.s8 %v2377
  %v2379 = vperm.slane %v2373, %v2378
  %v2381 = vunpack.c.l.s4 1934713408
  %v2382 = vunpack.c.0.s8 %v2381
  %v2383 = vperm.slane %v2375, %v2382
  %v2384 = vrot.slane %v2347, 4
  %v2385 = vsel %vm2300, %v2384, %v2335
  %v2386 = vrot.slane %v2335, 4
  %v2387 = vsel %vm2300, %v2347, %v2386
  %v2389 = vunpack.c.l.s4 1934713408
  %v2390 = vunpack.c.0.s8 %v2389
  %v2391 = vperm.slane %v2385, %v2390
  %v2393 = vunpack.c.l.s4 1934713408
  %v2394 = vunpack.c.0.s8 %v2393
  %v2395 = vperm.slane %v2387, %v2394
  %v2396 = vrot.slane %v2379, 4
  %v2397 = vsel %vm2300, %v2396, %v2355
  %v2398 = vrot.slane %v2355, 4
  %v2399 = vsel %vm2300, %v2379, %v2398
  %v2400 = vrot.slane %v2383, 4
  %v2401 = vsel %vm2300, %v2400, %v2359
  %v2402 = vrot.slane %v2359, 4
  %v2403 = vsel %vm2300, %v2383, %v2402
  %v2404 = vrot.slane %v2391, 4
  %v2405 = vsel %vm2300, %v2404, %v2367
  %v2406 = vrot.slane %v2367, 4
  %v2407 = vsel %vm2300, %v2391, %v2406
  %v2408 = vrot.slane %v2395, 4
  %v2409 = vsel %vm2300, %v2408, %v2371
  %v2410 = vrot.slane %v2371, 4
  %v2411 = vsel %vm2300, %v2395, %v2410
  %v2412 = vrot.slane %v2266, 4
  %v2413 = vsel %vm2300, %v2412, %v2253
  %v2414 = vrot.slane %v2253, 4
  %v2415 = vsel %vm2300, %v2266, %v2414
  %v2417 = vunpack.c.l.s4 1983009808
  %v2418 = vunpack.c.0.s8 %v2417
  %v2419 = vperm.slane %v2413, %v2418
  %v2421 = vunpack.c.l.s4 1983009808
  %v2422 = vunpack.c.0.s8 %v2421
  %v2423 = vperm.slane %v2415, %v2422
  %v2424 = vrot.slane %v2272, 4
  %v2425 = vsel %vm2300, %v2424, %v2260
  %v2426 = vrot.slane %v2260, 4
  %v2427 = vsel %vm2300, %v2272, %v2426
  %v2429 = vunpack.c.l.s4 1983009808
  %v2430 = vunpack.c.0.s8 %v2429
  %v2431 = vperm.slane %v2425, %v2430
  %v2433 = vunpack.c.l.s4 1983009808
  %v2434 = vunpack.c.0.s8 %v2433
  %v2435 = vperm.slane %v2427, %v2434
  %v2436 = vrot.slane %v2290, 4
  %v2437 = vsel %vm2300, %v2436, %v2278
  %v2438 = vrot.slane %v2278, 4
  %v2439 = vsel %vm2300, %v2290, %v2438
  %v2441 = vunpack.c.l.s4 1983009808
  %v2442 = vunpack.c.0.s8 %v2441
  %v2443 = vperm.slane %v2437, %v2442
  %v2445 = vunpack.c.l.s4 1983009808
  %v2446 = vunpack.c.0.s8 %v2445
  %v2447 = vperm.slane %v2439, %v2446
  %v2448 = vrot.slane %v2296, 4
  %v2449 = vsel %vm2300, %v2448, %v2284
  %v2450 = vrot.slane %v2284, 4
  %v2451 = vsel %vm2300, %v2296, %v2450
  %v2453 = vunpack.c.l.s4 1983009808
  %v2454 = vunpack.c.0.s8 %v2453
  %v2455 = vperm.slane %v2449, %v2454
  %v2457 = vunpack.c.l.s4 1983009808
  %v2458 = vunpack.c.0.s8 %v2457
  %v2459 = vperm.slane %v2451, %v2458
  %v2460 = vrot.slane %v2431, 4
  %v2461 = vsel %vm2300, %v2460, %v2419
  %v2462 = vrot.slane %v2419, 4
  %v2463 = vsel %vm2300, %v2431, %v2462
  %v2465 = vunpack.c.l.s4 1934713408
  %v2466 = vunpack.c.0.s8 %v2465
  %v2467 = vperm.slane %v2461, %v2466
  %v2469 = vunpack.c.l.s4 1934713408
  %v2470 = vunpack.c.0.s8 %v2469
  %v2471 = vperm.slane %v2463, %v2470
  %v2472 = vrot.slane %v2435, 4
  %v2473 = vsel %vm2300, %v2472, %v2423
  %v2474 = vrot.slane %v2423, 4
  %v2475 = vsel %vm2300, %v2435, %v2474
  %v2477 = vunpack.c.l.s4 1934713408
  %v2478 = vunpack.c.0.s8 %v2477
  %v2479 = vperm.slane %v2473, %v2478
  %v2481 = vunpack.c.l.s4 1934713408
  %v2482 = vunpack.c.0.s8 %v2481
  %v2483 = vperm.slane %v2475, %v2482
  %v2484 = vrot.slane %v2455, 4
  %v2485 = vsel %vm2300, %v2484, %v2443
  %v2486 = vrot.slane %v2443, 4
  %v2487 = vsel %vm2300, %v2455, %v2486
  %v2489 = vunpack.c.l.s4 1934713408
  %v2490 = vunpack.c.0.s8 %v2489
  %v2491 = vperm.slane %v2485, %v2490
  %v2493 = vunpack.c.l.s4 1934713408
  %v2494 = vunpack.c.0.s8 %v2493
  %v2495 = vperm.slane %v2487, %v2494
  %v2496 = vrot.slane %v2459, 4
  %v2497 = vsel %vm2300, %v2496, %v2447
  %v2498 = vrot.slane %v2447, 4
  %v2499 = vsel %vm2300, %v2459, %v2498
  %v2501 = vunpack.c.l.s4 1934713408
  %v2502 = vunpack.c.0.s8 %v2501
  %v2503 = vperm.slane %v2497, %v2502
  %v2505 = vunpack.c.l.s4 1934713408
  %v2506 = vunpack.c.0.s8 %v2505
  %v2507 = vperm.slane %v2499, %v2506
  %v2508 = vrot.slane %v2491, 4
  %v2509 = vsel %vm2300, %v2508, %v2467
  %v2510 = vrot.slane %v2467, 4
  %v2511 = vsel %vm2300, %v2491, %v2510
  %v2512 = vrot.slane %v2495, 4
  %v2513 = vsel %vm2300, %v2512, %v2471
  %v2514 = vrot.slane %v2471, 4
  %v2515 = vsel %vm2300, %v2495, %v2514
  %v2516 = vrot.slane %v2503, 4
  %v2517 = vsel %vm2300, %v2516, %v2479
  %v2518 = vrot.slane %v2479, 4
  %v2519 = vsel %vm2300, %v2503, %v2518
  %v2520 = vrot.slane %v2507, 4
  %v2521 = vsel %vm2300, %v2520, %v2483
  %v2522 = vrot.slane %v2483, 4
  %v2523 = vsel %vm2300, %v2507, %v2522
  %v2524 = vrot.slane %v2401, 4
  %v2525 = vsel %vm2300, %v2524, %v2397
  %v2526 = vrot.slane %v2397, 4
  %v2527 = vsel %vm2300, %v2401, %v2526
  %v2529 = vunpack.c.l.s4 1983009808
  %v2530 = vunpack.c.0.s8 %v2529
  %v2531 = vperm.slane %v2525, %v2530
  %v2533 = vunpack.c.l.s4 1983009808
  %v2534 = vunpack.c.0.s8 %v2533
  %v2535 = vperm.slane %v2527, %v2534
  %v2536 = vrot.slane %v2403, 4
  %v2537 = vsel %vm2300, %v2536, %v2399
  %v2538 = vrot.slane %v2399, 4
  %v2539 = vsel %vm2300, %v2403, %v2538
  %v2541 = vunpack.c.l.s4 1983009808
  %v2542 = vunpack.c.0.s8 %v2541
  %v2543 = vperm.slane %v2537, %v2542
  %v2545 = vunpack.c.l.s4 1983009808
  %v2546 = vunpack.c.0.s8 %v2545
  %v2547 = vperm.slane %v2539, %v2546
  %v2548 = vrot.slane %v2409, 4
  %v2549 = vsel %vm2300, %v2548, %v2405
  %v2550 = vrot.slane %v2405, 4
  %v2551 = vsel %vm2300, %v2409, %v2550
  %v2553 = vunpack.c.l.s4 1983009808
  %v2554 = vunpack.c.0.s8 %v2553
  %v2555 = vperm.slane %v2549, %v2554
  %v2557 = vunpack.c.l.s4 1983009808
  %v2558 = vunpack.c.0.s8 %v2557
  %v2559 = vperm.slane %v2551, %v2558
  %v2560 = vrot.slane %v2411, 4
  %v2561 = vsel %vm2300, %v2560, %v2407
  %v2562 = vrot.slane %v2407, 4
  %v2563 = vsel %vm2300, %v2411, %v2562
  %v2565 = vunpack.c.l.s4 1983009808
  %v2566 = vunpack.c.0.s8 %v2565
  %v2567 = vperm.slane %v2561, %v2566
  %v2569 = vunpack.c.l.s4 1983009808
  %v2570 = vunpack.c.0.s8 %v2569
  %v2571 = vperm.slane %v2563, %v2570
  %v2572 = vrot.slane %v2543, 4
  %v2573 = vsel %vm2300, %v2572, %v2531
  %v2574 = vrot.slane %v2531, 4
  %v2575 = vsel %vm2300, %v2543, %v2574
  %v2577 = vunpack.c.l.s4 1934713408
  %v2578 = vunpack.c.0.s8 %v2577
  %v2579 = vperm.slane %v2573, %v2578
  %v2581 = vunpack.c.l.s4 1934713408
  %v2582 = vunpack.c.0.s8 %v2581
  %v2583 = vperm.slane %v2575, %v2582
  %v2584 = vrot.slane %v2547, 4
  %v2585 = vsel %vm2300, %v2584, %v2535
  %v2586 = vrot.slane %v2535, 4
  %v2587 = vsel %vm2300, %v2547, %v2586
  %v2589 = vunpack.c.l.s4 1934713408
  %v2590 = vunpack.c.0.s8 %v2589
  %v2591 = vperm.slane %v2585, %v2590
  %v2593 = vunpack.c.l.s4 1934713408
  %v2594 = vunpack.c.0.s8 %v2593
  %v2595 = vperm.slane %v2587, %v2594
  %v2596 = vrot.slane %v2567, 4
  %v2597 = vsel %vm2300, %v2596, %v2555
  %v2598 = vrot.slane %v2555, 4
  %v2599 = vsel %vm2300, %v2567, %v2598
  %v2601 = vunpack.c.l.s4 1934713408
  %v2602 = vunpack.c.0.s8 %v2601
  %v2603 = vperm.slane %v2597, %v2602
  %v2605 = vunpack.c.l.s4 1934713408
  %v2606 = vunpack.c.0.s8 %v2605
  %v2607 = vperm.slane %v2599, %v2606
  %v2608 = vrot.slane %v2571, 4
  %v2609 = vsel %vm2300, %v2608, %v2559
  %v2610 = vrot.slane %v2559, 4
  %v2611 = vsel %vm2300, %v2571, %v2610
  %v2613 = vunpack.c.l.s4 1934713408
  %v2614 = vunpack.c.0.s8 %v2613
  %v2615 = vperm.slane %v2609, %v2614
  %v2617 = vunpack.c.l.s4 1934713408
  %v2618 = vunpack.c.0.s8 %v2617
  %v2619 = vperm.slane %v2611, %v2618
  %v2620 = vrot.slane %v2603, 4
  %v2621 = vsel %vm2300, %v2620, %v2579
  %v2622 = vrot.slane %v2579, 4
  %v2623 = vsel %vm2300, %v2603, %v2622
  %v2624 = vrot.slane %v2607, 4
  %v2625 = vsel %vm2300, %v2624, %v2583
  %v2626 = vrot.slane %v2583, 4
  %v2627 = vsel %vm2300, %v2607, %v2626
  %v2628 = vrot.slane %v2615, 4
  %v2629 = vsel %vm2300, %v2628, %v2591
  %v2630 = vrot.slane %v2591, 4
  %v2631 = vsel %vm2300, %v2615, %v2630
  %v2632 = vrot.slane %v2619, 4
  %v2633 = vsel %vm2300, %v2632, %v2595
  %v2634 = vrot.slane %v2595, 4
  %v2635 = vsel %vm2300, %v2619, %v2634
  %v2636 = vrot.slane %v2513, 4
  %v2637 = vsel %vm2300, %v2636, %v2509
  %v2638 = vrot.slane %v2509, 4
  %v2639 = vsel %vm2300, %v2513, %v2638
  %v2641 = vunpack.c.l.s4 1983009808
  %v2642 = vunpack.c.0.s8 %v2641
  %v2643 = vperm.slane %v2637, %v2642
  %v2645 = vunpack.c.l.s4 1983009808
  %v2646 = vunpack.c.0.s8 %v2645
  %v2647 = vperm.slane %v2639, %v2646
  %v2648 = vrot.slane %v2515, 4
  %v2649 = vsel %vm2300, %v2648, %v2511
  %v2650 = vrot.slane %v2511, 4
  %v2651 = vsel %vm2300, %v2515, %v2650
  %v2653 = vunpack.c.l.s4 1983009808
  %v2654 = vunpack.c.0.s8 %v2653
  %v2655 = vperm.slane %v2649, %v2654
  %v2657 = vunpack.c.l.s4 1983009808
  %v2658 = vunpack.c.0.s8 %v2657
  %v2659 = vperm.slane %v2651, %v2658
  %v2660 = vrot.slane %v2521, 4
  %v2661 = vsel %vm2300, %v2660, %v2517
  %v2662 = vrot.slane %v2517, 4
  %v2663 = vsel %vm2300, %v2521, %v2662
  %v2665 = vunpack.c.l.s4 1983009808
  %v2666 = vunpack.c.0.s8 %v2665
  %v2667 = vperm.slane %v2661, %v2666
  %v2669 = vunpack.c.l.s4 1983009808
  %v2670 = vunpack.c.0.s8 %v2669
  %v2671 = vperm.slane %v2663, %v2670
  %v2672 = vrot.slane %v2523, 4
  %v2673 = vsel %vm2300, %v2672, %v2519
  %v2674 = vrot.slane %v2519, 4
  %v2675 = vsel %vm2300, %v2523, %v2674
  %v2677 = vunpack.c.l.s4 1983009808
  %v2678 = vunpack.c.0.s8 %v2677
  %v2679 = vperm.slane %v2673, %v2678
  %v2681 = vunpack.c.l.s4 1983009808
  %v2682 = vunpack.c.0.s8 %v2681
  %v2683 = vperm.slane %v2675, %v2682
  %v2684 = vrot.slane %v2655, 4
  %v2685 = vsel %vm2300, %v2684, %v2643
  %v2686 = vrot.slane %v2643, 4
  %v2687 = vsel %vm2300, %v2655, %v2686
  %v2689 = vunpack.c.l.s4 1934713408
  %v2690 = vunpack.c.0.s8 %v2689
  %v2691 = vperm.slane %v2685, %v2690
  %v2693 = vunpack.c.l.s4 1934713408
  %v2694 = vunpack.c.0.s8 %v2693
  %v2695 = vperm.slane %v2687, %v2694
  %v2696 = vrot.slane %v2659, 4
  %v2697 = vsel %vm2300, %v2696, %v2647
  %v2698 = vrot.slane %v2647, 4
  %v2699 = vsel %vm2300, %v2659, %v2698
  %v2701 = vunpack.c.l.s4 1934713408
  %v2702 = vunpack.c.0.s8 %v2701
  %v2703 = vperm.slane %v2697, %v2702
  %v2705 = vunpack.c.l.s4 1934713408
  %v2706 = vunpack.c.0.s8 %v2705
  %v2707 = vperm.slane %v2699, %v2706
  %v2708 = vrot.slane %v2679, 4
  %v2709 = vsel %vm2300, %v2708, %v2667
  %v2710 = vrot.slane %v2667, 4
  %v2711 = vsel %vm2300, %v2679, %v2710
  %v2713 = vunpack.c.l.s4 1934713408
  %v2714 = vunpack.c.0.s8 %v2713
  %v2715 = vperm.slane %v2709, %v2714
  %v2717 = vunpack.c.l.s4 1934713408
  %v2718 = vunpack.c.0.s8 %v2717
  %v2719 = vperm.slane %v2711, %v2718
  %v2720 = vrot.slane %v2683, 4
  %v2721 = vsel %vm2300, %v2720, %v2671
  %v2722 = vrot.slane %v2671, 4
  %v2723 = vsel %vm2300, %v2683, %v2722
  %v2725 = vunpack.c.l.s4 1934713408
  %v2726 = vunpack.c.0.s8 %v2725
  %v2727 = vperm.slane %v2721, %v2726
  %v2729 = vunpack.c.l.s4 1934713408
  %v2730 = vunpack.c.0.s8 %v2729
  %v2731 = vperm.slane %v2723, %v2730
  %v2732 = vrot.slane %v2715, 4
  %v2733 = vsel %vm2300, %v2732, %v2691
  %v2734 = vrot.slane %v2691, 4
  %v2735 = vsel %vm2300, %v2715, %v2734
  %v2736 = vrot.slane %v2719, 4
  %v2737 = vsel %vm2300, %v2736, %v2695
  %v2738 = vrot.slane %v2695, 4
  %v2739 = vsel %vm2300, %v2719, %v2738
  %v2740 = vrot.slane %v2727, 4
  %v2741 = vsel %vm2300, %v2740, %v2703
  %v2742 = vrot.slane %v2703, 4
  %v2743 = vsel %vm2300, %v2727, %v2742
  %v2744 = vrot.slane %v2731, 4
  %v2745 = vsel %vm2300, %v2744, %v2707
  %v2746 = vrot.slane %v2707, 4
  %v2747 = vsel %vm2300, %v2731, %v2746
  %2748 = vrot.lane.b32.xlu0 %v2250, 96
  %v2749 = vpop.permute.xlu0 %2748
  %2750 = vrot.lane.b32.xlu0 %v2253, 96
  %v2751 = vpop.permute.xlu0 %2750
  %2752 = vrot.lane.b32.xlu0 %v2258, 96
  %v2753 = vpop.permute.xlu0 %2752
  %2754 = vrot.lane.b32.xlu0 %v2260, 96
  %v2755 = vpop.permute.xlu0 %2754
  %2756 = vrot.lane.b32.xlu0 %v2264, 96
  %v2757 = vpop.permute.xlu0 %2756
  %2758 = vrot.lane.b32.xlu0 %v2266, 96
  %v2759 = vpop.permute.xlu0 %2758
  %2760 = vrot.lane.b32.xlu0 %v2270, 96
  %v2761 = vpop.permute.xlu0 %2760
  %2762 = vrot.lane.b32.xlu0 %v2272, 96
  %v2763 = vpop.permute.xlu0 %2762
  %2764 = vrot.lane.b32.xlu0 %v2276, 96
  %v2765 = vpop.permute.xlu0 %2764
  %2766 = vrot.lane.b32.xlu0 %v2278, 96
  %v2767 = vpop.permute.xlu0 %2766
  %2768 = vrot.lane.b32.xlu0 %v2282, 96
  %v2769 = vpop.permute.xlu0 %2768
  %2770 = vrot.lane.b32.xlu0 %v2284, 96
  %v2771 = vpop.permute.xlu0 %2770
  %2772 = vrot.lane.b32.xlu0 %v2288, 96
  %v2773 = vpop.permute.xlu0 %2772
  %2774 = vrot.lane.b32.xlu0 %v2290, 96
  %v2775 = vpop.permute.xlu0 %2774
  %2776 = vrot.lane.b32.xlu0 %v2294, 96
  %v2777 = vpop.permute.xlu0 %2776
  %2778 = vrot.lane.b32.xlu0 %v2296, 96
  %v2779 = vpop.permute.xlu0 %2778
  %v2796 = vrot.slane %v2757, 4
  %v2797 = vsel %vm2300, %v2796, %v2749
  %v2798 = vrot.slane %v2749, 4
  %v2799 = vsel %vm2300, %v2757, %v2798
  %v2801 = vunpack.c.l.s4 1983009808
  %v2802 = vunpack.c.0.s8 %v2801
  %v2803 = vperm.slane %v2797, %v2802
  %v2805 = vunpack.c.l.s4 1983009808
  %v2806 = vunpack.c.0.s8 %v2805
  %v2807 = vperm.slane %v2799, %v2806
  %v2808 = vrot.slane %v2761, 4
  %v2809 = vsel %vm2300, %v2808, %v2753
  %v2810 = vrot.slane %v2753, 4
  %v2811 = vsel %vm2300, %v2761, %v2810
  %v2813 = vunpack.c.l.s4 1983009808
  %v2814 = vunpack.c.0.s8 %v2813
  %v2815 = vperm.slane %v2809, %v2814
  %v2817 = vunpack.c.l.s4 1983009808
  %v2818 = vunpack.c.0.s8 %v2817
  %v2819 = vperm.slane %v2811, %v2818
  %v2820 = vrot.slane %v2773, 4
  %v2821 = vsel %vm2300, %v2820, %v2765
  %v2822 = vrot.slane %v2765, 4
  %v2823 = vsel %vm2300, %v2773, %v2822
  %v2825 = vunpack.c.l.s4 1983009808
  %v2826 = vunpack.c.0.s8 %v2825
  %v2827 = vperm.slane %v2821, %v2826
  %v2829 = vunpack.c.l.s4 1983009808
  %v2830 = vunpack.c.0.s8 %v2829
  %v2831 = vperm.slane %v2823, %v2830
  %v2832 = vrot.slane %v2777, 4
  %v2833 = vsel %vm2300, %v2832, %v2769
  %v2834 = vrot.slane %v2769, 4
  %v2835 = vsel %vm2300, %v2777, %v2834
  %v2837 = vunpack.c.l.s4 1983009808
  %v2838 = vunpack.c.0.s8 %v2837
  %v2839 = vperm.slane %v2833, %v2838
  %v2841 = vunpack.c.l.s4 1983009808
  %v2842 = vunpack.c.0.s8 %v2841
  %v2843 = vperm.slane %v2835, %v2842
  %v2844 = vrot.slane %v2815, 4
  %v2845 = vsel %vm2300, %v2844, %v2803
  %v2846 = vrot.slane %v2803, 4
  %v2847 = vsel %vm2300, %v2815, %v2846
  %v2849 = vunpack.c.l.s4 1934713408
  %v2850 = vunpack.c.0.s8 %v2849
  %v2851 = vperm.slane %v2845, %v2850
  %v2853 = vunpack.c.l.s4 1934713408
  %v2854 = vunpack.c.0.s8 %v2853
  %v2855 = vperm.slane %v2847, %v2854
  %v2856 = vrot.slane %v2819, 4
  %v2857 = vsel %vm2300, %v2856, %v2807
  %v2858 = vrot.slane %v2807, 4
  %v2859 = vsel %vm2300, %v2819, %v2858
  %v2861 = vunpack.c.l.s4 1934713408
  %v2862 = vunpack.c.0.s8 %v2861
  %v2863 = vperm.slane %v2857, %v2862
  %v2865 = vunpack.c.l.s4 1934713408
  %v2866 = vunpack.c.0.s8 %v2865
  %v2867 = vperm.slane %v2859, %v2866
  %v2868 = vrot.slane %v2839, 4
  %v2869 = vsel %vm2300, %v2868, %v2827
  %v2870 = vrot.slane %v2827, 4
  %v2871 = vsel %vm2300, %v2839, %v2870
  %v2873 = vunpack.c.l.s4 1934713408
  %v2874 = vunpack.c.0.s8 %v2873
  %v2875 = vperm.slane %v2869, %v2874
  %v2877 = vunpack.c.l.s4 1934713408
  %v2878 = vunpack.c.0.s8 %v2877
  %v2879 = vperm.slane %v2871, %v2878
  %v2880 = vrot.slane %v2843, 4
  %v2881 = vsel %vm2300, %v2880, %v2831
  %v2882 = vrot.slane %v2831, 4
  %v2883 = vsel %vm2300, %v2843, %v2882
  %v2885 = vunpack.c.l.s4 1934713408
  %v2886 = vunpack.c.0.s8 %v2885
  %v2887 = vperm.slane %v2881, %v2886
  %v2889 = vunpack.c.l.s4 1934713408
  %v2890 = vunpack.c.0.s8 %v2889
  %v2891 = vperm.slane %v2883, %v2890
  %v2892 = vrot.slane %v2875, 4
  %v2893 = vsel %vm2300, %v2892, %v2851
  %v2894 = vrot.slane %v2851, 4
  %v2895 = vsel %vm2300, %v2875, %v2894
  %v2896 = vrot.slane %v2879, 4
  %v2897 = vsel %vm2300, %v2896, %v2855
  %v2898 = vrot.slane %v2855, 4
  %v2899 = vsel %vm2300, %v2879, %v2898
  %v2900 = vrot.slane %v2887, 4
  %v2901 = vsel %vm2300, %v2900, %v2863
  %v2902 = vrot.slane %v2863, 4
  %v2903 = vsel %vm2300, %v2887, %v2902
  %v2904 = vrot.slane %v2891, 4
  %v2905 = vsel %vm2300, %v2904, %v2867
  %v2906 = vrot.slane %v2867, 4
  %v2907 = vsel %vm2300, %v2891, %v2906
  %v2908 = vrot.slane %v2759, 4
  %v2909 = vsel %vm2300, %v2908, %v2751
  %v2910 = vrot.slane %v2751, 4
  %v2911 = vsel %vm2300, %v2759, %v2910
  %v2913 = vunpack.c.l.s4 1983009808
  %v2914 = vunpack.c.0.s8 %v2913
  %v2915 = vperm.slane %v2909, %v2914
  %v2917 = vunpack.c.l.s4 1983009808
  %v2918 = vunpack.c.0.s8 %v2917
  %v2919 = vperm.slane %v2911, %v2918
  %v2920 = vrot.slane %v2763, 4
  %v2921 = vsel %vm2300, %v2920, %v2755
  %v2922 = vrot.slane %v2755, 4
  %v2923 = vsel %vm2300, %v2763, %v2922
  %v2925 = vunpack.c.l.s4 1983009808
  %v2926 = vunpack.c.0.s8 %v2925
  %v2927 = vperm.slane %v2921, %v2926
  %v2929 = vunpack.c.l.s4 1983009808
  %v2930 = vunpack.c.0.s8 %v2929
  %v2931 = vperm.slane %v2923, %v2930
  %v2932 = vrot.slane %v2775, 4
  %v2933 = vsel %vm2300, %v2932, %v2767
  %v2934 = vrot.slane %v2767, 4
  %v2935 = vsel %vm2300, %v2775, %v2934
  %v2937 = vunpack.c.l.s4 1983009808
  %v2938 = vunpack.c.0.s8 %v2937
  %v2939 = vperm.slane %v2933, %v2938
  %v2941 = vunpack.c.l.s4 1983009808
  %v2942 = vunpack.c.0.s8 %v2941
  %v2943 = vperm.slane %v2935, %v2942
  %v2944 = vrot.slane %v2779, 4
  %v2945 = vsel %vm2300, %v2944, %v2771
  %v2946 = vrot.slane %v2771, 4
  %v2947 = vsel %vm2300, %v2779, %v2946
  %v2949 = vunpack.c.l.s4 1983009808
  %v2950 = vunpack.c.0.s8 %v2949
  %v2951 = vperm.slane %v2945, %v2950
  %v2953 = vunpack.c.l.s4 1983009808
  %v2954 = vunpack.c.0.s8 %v2953
  %v2955 = vperm.slane %v2947, %v2954
  %v2956 = vrot.slane %v2927, 4
  %v2957 = vsel %vm2300, %v2956, %v2915
  %v2958 = vrot.slane %v2915, 4
  %v2959 = vsel %vm2300, %v2927, %v2958
  %v2961 = vunpack.c.l.s4 1934713408
  %v2962 = vunpack.c.0.s8 %v2961
  %v2963 = vperm.slane %v2957, %v2962
  %v2965 = vunpack.c.l.s4 1934713408
  %v2966 = vunpack.c.0.s8 %v2965
  %v2967 = vperm.slane %v2959, %v2966
  %v2968 = vrot.slane %v2931, 4
  %v2969 = vsel %vm2300, %v2968, %v2919
  %v2970 = vrot.slane %v2919, 4
  %v2971 = vsel %vm2300, %v2931, %v2970
  %v2973 = vunpack.c.l.s4 1934713408
  %v2974 = vunpack.c.0.s8 %v2973
  %v2975 = vperm.slane %v2969, %v2974
  %v2977 = vunpack.c.l.s4 1934713408
  %v2978 = vunpack.c.0.s8 %v2977
  %v2979 = vperm.slane %v2971, %v2978
  %v2980 = vrot.slane %v2951, 4
  %v2981 = vsel %vm2300, %v2980, %v2939
  %v2982 = vrot.slane %v2939, 4
  %v2983 = vsel %vm2300, %v2951, %v2982
  %v2985 = vunpack.c.l.s4 1934713408
  %v2986 = vunpack.c.0.s8 %v2985
  %v2987 = vperm.slane %v2981, %v2986
  %v2989 = vunpack.c.l.s4 1934713408
  %v2990 = vunpack.c.0.s8 %v2989
  %v2991 = vperm.slane %v2983, %v2990
  %v2992 = vrot.slane %v2955, 4
  %v2993 = vsel %vm2300, %v2992, %v2943
  %v2994 = vrot.slane %v2943, 4
  %v2995 = vsel %vm2300, %v2955, %v2994
  %v2997 = vunpack.c.l.s4 1934713408
  %v2998 = vunpack.c.0.s8 %v2997
  %v2999 = vperm.slane %v2993, %v2998
  %v3001 = vunpack.c.l.s4 1934713408
  %v3002 = vunpack.c.0.s8 %v3001
  %v3003 = vperm.slane %v2995, %v3002
  %v3004 = vrot.slane %v2987, 4
  %v3005 = vsel %vm2300, %v3004, %v2963
  %v3006 = vrot.slane %v2963, 4
  %v3007 = vsel %vm2300, %v2987, %v3006
  %v3008 = vrot.slane %v2991, 4
  %v3009 = vsel %vm2300, %v3008, %v2967
  %v3010 = vrot.slane %v2967, 4
  %v3011 = vsel %vm2300, %v2991, %v3010
  %v3012 = vrot.slane %v2999, 4
  %v3013 = vsel %vm2300, %v3012, %v2975
  %v3014 = vrot.slane %v2975, 4
  %v3015 = vsel %vm2300, %v2999, %v3014
  %v3016 = vrot.slane %v3003, 4
  %v3017 = vsel %vm2300, %v3016, %v2979
  %v3018 = vrot.slane %v2979, 4
  %v3019 = vsel %vm2300, %v3003, %v3018
  %v3020 = vrot.slane %v2897, 4
  %v3021 = vsel %vm2300, %v3020, %v2893
  %v3022 = vrot.slane %v2893, 4
  %v3023 = vsel %vm2300, %v2897, %v3022
  %v3025 = vunpack.c.l.s4 1983009808
  %v3026 = vunpack.c.0.s8 %v3025
  %v3027 = vperm.slane %v3021, %v3026
  %v3029 = vunpack.c.l.s4 1983009808
  %v3030 = vunpack.c.0.s8 %v3029
  %v3031 = vperm.slane %v3023, %v3030
  %v3032 = vrot.slane %v2899, 4
  %v3033 = vsel %vm2300, %v3032, %v2895
  %v3034 = vrot.slane %v2895, 4
  %v3035 = vsel %vm2300, %v2899, %v3034
  %v3037 = vunpack.c.l.s4 1983009808
  %v3038 = vunpack.c.0.s8 %v3037
  %v3039 = vperm.slane %v3033, %v3038
  %v3041 = vunpack.c.l.s4 1983009808
  %v3042 = vunpack.c.0.s8 %v3041
  %v3043 = vperm.slane %v3035, %v3042
  %v3044 = vrot.slane %v2905, 4
  %v3045 = vsel %vm2300, %v3044, %v2901
  %v3046 = vrot.slane %v2901, 4
  %v3047 = vsel %vm2300, %v2905, %v3046
  %v3049 = vunpack.c.l.s4 1983009808
  %v3050 = vunpack.c.0.s8 %v3049
  %v3051 = vperm.slane %v3045, %v3050
  %v3053 = vunpack.c.l.s4 1983009808
  %v3054 = vunpack.c.0.s8 %v3053
  %v3055 = vperm.slane %v3047, %v3054
  %v3056 = vrot.slane %v2907, 4
  %v3057 = vsel %vm2300, %v3056, %v2903
  %v3058 = vrot.slane %v2903, 4
  %v3059 = vsel %vm2300, %v2907, %v3058
  %v3061 = vunpack.c.l.s4 1983009808
  %v3062 = vunpack.c.0.s8 %v3061
  %v3063 = vperm.slane %v3057, %v3062
  %v3065 = vunpack.c.l.s4 1983009808
  %v3066 = vunpack.c.0.s8 %v3065
  %v3067 = vperm.slane %v3059, %v3066
  %v3068 = vrot.slane %v3039, 4
  %v3069 = vsel %vm2300, %v3068, %v3027
  %v3070 = vrot.slane %v3027, 4
  %v3071 = vsel %vm2300, %v3039, %v3070
  %v3073 = vunpack.c.l.s4 1934713408
  %v3074 = vunpack.c.0.s8 %v3073
  %v3075 = vperm.slane %v3069, %v3074
  %v3077 = vunpack.c.l.s4 1934713408
  %v3078 = vunpack.c.0.s8 %v3077
  %v3079 = vperm.slane %v3071, %v3078
  %v3080 = vrot.slane %v3043, 4
  %v3081 = vsel %vm2300, %v3080, %v3031
  %v3082 = vrot.slane %v3031, 4
  %v3083 = vsel %vm2300, %v3043, %v3082
  %v3085 = vunpack.c.l.s4 1934713408
  %v3086 = vunpack.c.0.s8 %v3085
  %v3087 = vperm.slane %v3081, %v3086
  %v3089 = vunpack.c.l.s4 1934713408
  %v3090 = vunpack.c.0.s8 %v3089
  %v3091 = vperm.slane %v3083, %v3090
  %v3092 = vrot.slane %v3063, 4
  %v3093 = vsel %vm2300, %v3092, %v3051
  %v3094 = vrot.slane %v3051, 4
  %v3095 = vsel %vm2300, %v3063, %v3094
  %v3097 = vunpack.c.l.s4 1934713408
  %v3098 = vunpack.c.0.s8 %v3097
  %v3099 = vperm.slane %v3093, %v3098
  %v3101 = vunpack.c.l.s4 1934713408
  %v3102 = vunpack.c.0.s8 %v3101
  %v3103 = vperm.slane %v3095, %v3102
  %v3104 = vrot.slane %v3067, 4
  %v3105 = vsel %vm2300, %v3104, %v3055
  %v3106 = vrot.slane %v3055, 4
  %v3107 = vsel %vm2300, %v3067, %v3106
  %v3109 = vunpack.c.l.s4 1934713408
  %v3110 = vunpack.c.0.s8 %v3109
  %v3111 = vperm.slane %v3105, %v3110
  %v3113 = vunpack.c.l.s4 1934713408
  %v3114 = vunpack.c.0.s8 %v3113
  %v3115 = vperm.slane %v3107, %v3114
  %v3116 = vrot.slane %v3099, 4
  %v3117 = vsel %vm2300, %v3116, %v3075
  %v3118 = vrot.slane %v3075, 4
  %v3119 = vsel %vm2300, %v3099, %v3118
  %v3120 = vrot.slane %v3103, 4
  %v3121 = vsel %vm2300, %v3120, %v3079
  %v3122 = vrot.slane %v3079, 4
  %v3123 = vsel %vm2300, %v3103, %v3122
  %v3124 = vrot.slane %v3111, 4
  %v3125 = vsel %vm2300, %v3124, %v3087
  %v3126 = vrot.slane %v3087, 4
  %v3127 = vsel %vm2300, %v3111, %v3126
  %v3128 = vrot.slane %v3115, 4
  %v3129 = vsel %vm2300, %v3128, %v3091
  %v3130 = vrot.slane %v3091, 4
  %v3131 = vsel %vm2300, %v3115, %v3130
  %v3132 = vrot.slane %v3009, 4
  %v3133 = vsel %vm2300, %v3132, %v3005
  %v3134 = vrot.slane %v3005, 4
  %v3135 = vsel %vm2300, %v3009, %v3134
  %v3137 = vunpack.c.l.s4 1983009808
  %v3138 = vunpack.c.0.s8 %v3137
  %v3139 = vperm.slane %v3133, %v3138
  %v3141 = vunpack.c.l.s4 1983009808
  %v3142 = vunpack.c.0.s8 %v3141
  %v3143 = vperm.slane %v3135, %v3142
  %v3144 = vrot.slane %v3011, 4
  %v3145 = vsel %vm2300, %v3144, %v3007
  %v3146 = vrot.slane %v3007, 4
  %v3147 = vsel %vm2300, %v3011, %v3146
  %v3149 = vunpack.c.l.s4 1983009808
  %v3150 = vunpack.c.0.s8 %v3149
  %v3151 = vperm.slane %v3145, %v3150
  %v3153 = vunpack.c.l.s4 1983009808
  %v3154 = vunpack.c.0.s8 %v3153
  %v3155 = vperm.slane %v3147, %v3154
  %v3156 = vrot.slane %v3017, 4
  %v3157 = vsel %vm2300, %v3156, %v3013
  %v3158 = vrot.slane %v3013, 4
  %v3159 = vsel %vm2300, %v3017, %v3158
  %v3161 = vunpack.c.l.s4 1983009808
  %v3162 = vunpack.c.0.s8 %v3161
  %v3163 = vperm.slane %v3157, %v3162
  %v3165 = vunpack.c.l.s4 1983009808
  %v3166 = vunpack.c.0.s8 %v3165
  %v3167 = vperm.slane %v3159, %v3166
  %v3168 = vrot.slane %v3019, 4
  %v3169 = vsel %vm2300, %v3168, %v3015
  %v3170 = vrot.slane %v3015, 4
  %v3171 = vsel %vm2300, %v3019, %v3170
  %v3173 = vunpack.c.l.s4 1983009808
  %v3174 = vunpack.c.0.s8 %v3173
  %v3175 = vperm.slane %v3169, %v3174
  %v3177 = vunpack.c.l.s4 1983009808
  %v3178 = vunpack.c.0.s8 %v3177
  %v3179 = vperm.slane %v3171, %v3178
  %v3180 = vrot.slane %v3151, 4
  %v3181 = vsel %vm2300, %v3180, %v3139
  %v3182 = vrot.slane %v3139, 4
  %v3183 = vsel %vm2300, %v3151, %v3182
  %v3185 = vunpack.c.l.s4 1934713408
  %v3186 = vunpack.c.0.s8 %v3185
  %v3187 = vperm.slane %v3181, %v3186
  %v3189 = vunpack.c.l.s4 1934713408
  %v3190 = vunpack.c.0.s8 %v3189
  %v3191 = vperm.slane %v3183, %v3190
  %v3192 = vrot.slane %v3155, 4
  %v3193 = vsel %vm2300, %v3192, %v3143
  %v3194 = vrot.slane %v3143, 4
  %v3195 = vsel %vm2300, %v3155, %v3194
  %v3197 = vunpack.c.l.s4 1934713408
  %v3198 = vunpack.c.0.s8 %v3197
  %v3199 = vperm.slane %v3193, %v3198
  %v3201 = vunpack.c.l.s4 1934713408
  %v3202 = vunpack.c.0.s8 %v3201
  %v3203 = vperm.slane %v3195, %v3202
  %v3204 = vrot.slane %v3175, 4
  %v3205 = vsel %vm2300, %v3204, %v3163
  %v3206 = vrot.slane %v3163, 4
  %v3207 = vsel %vm2300, %v3175, %v3206
  %v3209 = vunpack.c.l.s4 1934713408
  %v3210 = vunpack.c.0.s8 %v3209
  %v3211 = vperm.slane %v3205, %v3210
  %v3213 = vunpack.c.l.s4 1934713408
  %v3214 = vunpack.c.0.s8 %v3213
  %v3215 = vperm.slane %v3207, %v3214
  %v3216 = vrot.slane %v3179, 4
  %v3217 = vsel %vm2300, %v3216, %v3167
  %v3218 = vrot.slane %v3167, 4
  %v3219 = vsel %vm2300, %v3179, %v3218
  %v3221 = vunpack.c.l.s4 1934713408
  %v3222 = vunpack.c.0.s8 %v3221
  %v3223 = vperm.slane %v3217, %v3222
  %v3225 = vunpack.c.l.s4 1934713408
  %v3226 = vunpack.c.0.s8 %v3225
  %v3227 = vperm.slane %v3219, %v3226
  %v3228 = vrot.slane %v3211, 4
  %v3229 = vsel %vm2300, %v3228, %v3187
  %v3230 = vrot.slane %v3187, 4
  %v3231 = vsel %vm2300, %v3211, %v3230
  %v3232 = vrot.slane %v3215, 4
  %v3233 = vsel %vm2300, %v3232, %v3191
  %v3234 = vrot.slane %v3191, 4
  %v3235 = vsel %vm2300, %v3215, %v3234
  %v3236 = vrot.slane %v3223, 4
  %v3237 = vsel %vm2300, %v3236, %v3199
  %v3238 = vrot.slane %v3199, 4
  %v3239 = vsel %vm2300, %v3223, %v3238
  %v3240 = vrot.slane %v3227, 4
  %v3241 = vsel %vm2300, %v3240, %v3203
  %v3242 = vrot.slane %v3203, 4
  %v3243 = vsel %vm2300, %v3227, %v3242
  %3244 = vrot.lane.b32.xlu0 %v2250, 64
  %v3245 = vpop.permute.xlu0 %3244
  %3246 = vrot.lane.b32.xlu0 %v2253, 64
  %v3247 = vpop.permute.xlu0 %3246
  %3248 = vrot.lane.b32.xlu0 %v2258, 64
  %v3249 = vpop.permute.xlu0 %3248
  %3250 = vrot.lane.b32.xlu0 %v2260, 64
  %v3251 = vpop.permute.xlu0 %3250
  %3252 = vrot.lane.b32.xlu0 %v2264, 64
  %v3253 = vpop.permute.xlu0 %3252
  %3254 = vrot.lane.b32.xlu0 %v2266, 64
  %v3255 = vpop.permute.xlu0 %3254
  %3256 = vrot.lane.b32.xlu0 %v2270, 64
  %v3257 = vpop.permute.xlu0 %3256
  %3258 = vrot.lane.b32.xlu0 %v2272, 64
  %v3259 = vpop.permute.xlu0 %3258
  %3260 = vrot.lane.b32.xlu0 %v2276, 64
  %v3261 = vpop.permute.xlu0 %3260
  %3262 = vrot.lane.b32.xlu0 %v2278, 64
  %v3263 = vpop.permute.xlu0 %3262
  %3264 = vrot.lane.b32.xlu0 %v2282, 64
  %v3265 = vpop.permute.xlu0 %3264
  %3266 = vrot.lane.b32.xlu0 %v2284, 64
  %v3267 = vpop.permute.xlu0 %3266
  %3268 = vrot.lane.b32.xlu0 %v2288, 64
  %v3269 = vpop.permute.xlu0 %3268
  %3270 = vrot.lane.b32.xlu0 %v2290, 64
  %v3271 = vpop.permute.xlu0 %3270
  %3272 = vrot.lane.b32.xlu0 %v2294, 64
  %v3273 = vpop.permute.xlu0 %3272
  %3274 = vrot.lane.b32.xlu0 %v2296, 64
  %v3275 = vpop.permute.xlu0 %3274
  %v3292 = vrot.slane %v3253, 4
  %v3293 = vsel %vm2300, %v3292, %v3245
  %v3294 = vrot.slane %v3245, 4
  %v3295 = vsel %vm2300, %v3253, %v3294
  %v3297 = vunpack.c.l.s4 1983009808
  %v3298 = vunpack.c.0.s8 %v3297
  %v3299 = vperm.slane %v3293, %v3298
  %v3301 = vunpack.c.l.s4 1983009808
  %v3302 = vunpack.c.0.s8 %v3301
  %v3303 = vperm.slane %v3295, %v3302
  %v3304 = vrot.slane %v3257, 4
  %v3305 = vsel %vm2300, %v3304, %v3249
  %v3306 = vrot.slane %v3249, 4
  %v3307 = vsel %vm2300, %v3257, %v3306
  %v3309 = vunpack.c.l.s4 1983009808
  %v3310 = vunpack.c.0.s8 %v3309
  %v3311 = vperm.slane %v3305, %v3310
  %v3313 = vunpack.c.l.s4 1983009808
  %v3314 = vunpack.c.0.s8 %v3313
  %v3315 = vperm.slane %v3307, %v3314
  %v3316 = vrot.slane %v3269, 4
  %v3317 = vsel %vm2300, %v3316, %v3261
  %v3318 = vrot.slane %v3261, 4
  %v3319 = vsel %vm2300, %v3269, %v3318
  %v3321 = vunpack.c.l.s4 1983009808
  %v3322 = vunpack.c.0.s8 %v3321
  %v3323 = vperm.slane %v3317, %v3322
  %v3325 = vunpack.c.l.s4 1983009808
  %v3326 = vunpack.c.0.s8 %v3325
  %v3327 = vperm.slane %v3319, %v3326
  %v3328 = vrot.slane %v3273, 4
  %v3329 = vsel %vm2300, %v3328, %v3265
  %v3330 = vrot.slane %v3265, 4
  %v3331 = vsel %vm2300, %v3273, %v3330
  %v3333 = vunpack.c.l.s4 1983009808
  %v3334 = vunpack.c.0.s8 %v3333
  %v3335 = vperm.slane %v3329, %v3334
  %v3337 = vunpack.c.l.s4 1983009808
  %v3338 = vunpack.c.0.s8 %v3337
  %v3339 = vperm.slane %v3331, %v3338
  %v3340 = vrot.slane %v3311, 4
  %v3341 = vsel %vm2300, %v3340, %v3299
  %v3342 = vrot.slane %v3299, 4
  %v3343 = vsel %vm2300, %v3311, %v3342
  %v3345 = vunpack.c.l.s4 1934713408
  %v3346 = vunpack.c.0.s8 %v3345
  %v3347 = vperm.slane %v3341, %v3346
  %v3349 = vunpack.c.l.s4 1934713408
  %v3350 = vunpack.c.0.s8 %v3349
  %v3351 = vperm.slane %v3343, %v3350
  %v3352 = vrot.slane %v3315, 4
  %v3353 = vsel %vm2300, %v3352, %v3303
  %v3354 = vrot.slane %v3303, 4
  %v3355 = vsel %vm2300, %v3315, %v3354
  %v3357 = vunpack.c.l.s4 1934713408
  %v3358 = vunpack.c.0.s8 %v3357
  %v3359 = vperm.slane %v3353, %v3358
  %v3361 = vunpack.c.l.s4 1934713408
  %v3362 = vunpack.c.0.s8 %v3361
  %v3363 = vperm.slane %v3355, %v3362
  %v3364 = vrot.slane %v3335, 4
  %v3365 = vsel %vm2300, %v3364, %v3323
  %v3366 = vrot.slane %v3323, 4
  %v3367 = vsel %vm2300, %v3335, %v3366
  %v3369 = vunpack.c.l.s4 1934713408
  %v3370 = vunpack.c.0.s8 %v3369
  %v3371 = vperm.slane %v3365, %v3370
  %v3373 = vunpack.c.l.s4 1934713408
  %v3374 = vunpack.c.0.s8 %v3373
  %v3375 = vperm.slane %v3367, %v3374
  %v3376 = vrot.slane %v3339, 4
  %v3377 = vsel %vm2300, %v3376, %v3327
  %v3378 = vrot.slane %v3327, 4
  %v3379 = vsel %vm2300, %v3339, %v3378
  %v3381 = vunpack.c.l.s4 1934713408
  %v3382 = vunpack.c.0.s8 %v3381
  %v3383 = vperm.slane %v3377, %v3382
  %v3385 = vunpack.c.l.s4 1934713408
  %v3386 = vunpack.c.0.s8 %v3385
  %v3387 = vperm.slane %v3379, %v3386
  %v3388 = vrot.slane %v3371, 4
  %v3389 = vsel %vm2300, %v3388, %v3347
  %v3390 = vrot.slane %v3347, 4
  %v3391 = vsel %vm2300, %v3371, %v3390
  %v3392 = vrot.slane %v3375, 4
  %v3393 = vsel %vm2300, %v3392, %v3351
  %v3394 = vrot.slane %v3351, 4
  %v3395 = vsel %vm2300, %v3375, %v3394
  %v3396 = vrot.slane %v3383, 4
  %v3397 = vsel %vm2300, %v3396, %v3359
  %v3398 = vrot.slane %v3359, 4
  %v3399 = vsel %vm2300, %v3383, %v3398
  %v3400 = vrot.slane %v3387, 4
  %v3401 = vsel %vm2300, %v3400, %v3363
  %v3402 = vrot.slane %v3363, 4
  %v3403 = vsel %vm2300, %v3387, %v3402
  %v3404 = vrot.slane %v3255, 4
  %v3405 = vsel %vm2300, %v3404, %v3247
  %v3406 = vrot.slane %v3247, 4
  %v3407 = vsel %vm2300, %v3255, %v3406
  %v3409 = vunpack.c.l.s4 1983009808
  %v3410 = vunpack.c.0.s8 %v3409
  %v3411 = vperm.slane %v3405, %v3410
  %v3413 = vunpack.c.l.s4 1983009808
  %v3414 = vunpack.c.0.s8 %v3413
  %v3415 = vperm.slane %v3407, %v3414
  %v3416 = vrot.slane %v3259, 4
  %v3417 = vsel %vm2300, %v3416, %v3251
  %v3418 = vrot.slane %v3251, 4
  %v3419 = vsel %vm2300, %v3259, %v3418
  %v3421 = vunpack.c.l.s4 1983009808
  %v3422 = vunpack.c.0.s8 %v3421
  %v3423 = vperm.slane %v3417, %v3422
  %v3425 = vunpack.c.l.s4 1983009808
  %v3426 = vunpack.c.0.s8 %v3425
  %v3427 = vperm.slane %v3419, %v3426
  %v3428 = vrot.slane %v3271, 4
  %v3429 = vsel %vm2300, %v3428, %v3263
  %v3430 = vrot.slane %v3263, 4
  %v3431 = vsel %vm2300, %v3271, %v3430
  %v3433 = vunpack.c.l.s4 1983009808
  %v3434 = vunpack.c.0.s8 %v3433
  %v3435 = vperm.slane %v3429, %v3434
  %v3437 = vunpack.c.l.s4 1983009808
  %v3438 = vunpack.c.0.s8 %v3437
  %v3439 = vperm.slane %v3431, %v3438
  %v3440 = vrot.slane %v3275, 4
  %v3441 = vsel %vm2300, %v3440, %v3267
  %v3442 = vrot.slane %v3267, 4
  %v3443 = vsel %vm2300, %v3275, %v3442
  %v3445 = vunpack.c.l.s4 1983009808
  %v3446 = vunpack.c.0.s8 %v3445
  %v3447 = vperm.slane %v3441, %v3446
  %v3449 = vunpack.c.l.s4 1983009808
  %v3450 = vunpack.c.0.s8 %v3449
  %v3451 = vperm.slane %v3443, %v3450
  %v3452 = vrot.slane %v3423, 4
  %v3453 = vsel %vm2300, %v3452, %v3411
  %v3454 = vrot.slane %v3411, 4
  %v3455 = vsel %vm2300, %v3423, %v3454
  %v3457 = vunpack.c.l.s4 1934713408
  %v3458 = vunpack.c.0.s8 %v3457
  %v3459 = vperm.slane %v3453, %v3458
  %v3461 = vunpack.c.l.s4 1934713408
  %v3462 = vunpack.c.0.s8 %v3461
  %v3463 = vperm.slane %v3455, %v3462
  %v3464 = vrot.slane %v3427, 4
  %v3465 = vsel %vm2300, %v3464, %v3415
  %v3466 = vrot.slane %v3415, 4
  %v3467 = vsel %vm2300, %v3427, %v3466
  %v3469 = vunpack.c.l.s4 1934713408
  %v3470 = vunpack.c.0.s8 %v3469
  %v3471 = vperm.slane %v3465, %v3470
  %v3473 = vunpack.c.l.s4 1934713408
  %v3474 = vunpack.c.0.s8 %v3473
  %v3475 = vperm.slane %v3467, %v3474
  %v3476 = vrot.slane %v3447, 4
  %v3477 = vsel %vm2300, %v3476, %v3435
  %v3478 = vrot.slane %v3435, 4
  %v3479 = vsel %vm2300, %v3447, %v3478
  %v3481 = vunpack.c.l.s4 1934713408
  %v3482 = vunpack.c.0.s8 %v3481
  %v3483 = vperm.slane %v3477, %v3482
  %v3485 = vunpack.c.l.s4 1934713408
  %v3486 = vunpack.c.0.s8 %v3485
  %v3487 = vperm.slane %v3479, %v3486
  %v3488 = vrot.slane %v3451, 4
  %v3489 = vsel %vm2300, %v3488, %v3439
  %v3490 = vrot.slane %v3439, 4
  %v3491 = vsel %vm2300, %v3451, %v3490
  %v3493 = vunpack.c.l.s4 1934713408
  %v3494 = vunpack.c.0.s8 %v3493
  %v3495 = vperm.slane %v3489, %v3494
  %v3497 = vunpack.c.l.s4 1934713408
  %v3498 = vunpack.c.0.s8 %v3497
  %v3499 = vperm.slane %v3491, %v3498
  %v3500 = vrot.slane %v3483, 4
  %v3501 = vsel %vm2300, %v3500, %v3459
  %v3502 = vrot.slane %v3459, 4
  %v3503 = vsel %vm2300, %v3483, %v3502
  %v3504 = vrot.slane %v3487, 4
  %v3505 = vsel %vm2300, %v3504, %v3463
  %v3506 = vrot.slane %v3463, 4
  %v3507 = vsel %vm2300, %v3487, %v3506
  %v3508 = vrot.slane %v3495, 4
  %v3509 = vsel %vm2300, %v3508, %v3471
  %v3510 = vrot.slane %v3471, 4
  %v3511 = vsel %vm2300, %v3495, %v3510
  %v3512 = vrot.slane %v3499, 4
  %v3513 = vsel %vm2300, %v3512, %v3475
  %v3514 = vrot.slane %v3475, 4
  %v3515 = vsel %vm2300, %v3499, %v3514
  %v3516 = vrot.slane %v3393, 4
  %v3517 = vsel %vm2300, %v3516, %v3389
  %v3518 = vrot.slane %v3389, 4
  %v3519 = vsel %vm2300, %v3393, %v3518
  %v3521 = vunpack.c.l.s4 1983009808
  %v3522 = vunpack.c.0.s8 %v3521
  %v3523 = vperm.slane %v3517, %v3522
  %v3525 = vunpack.c.l.s4 1983009808
  %v3526 = vunpack.c.0.s8 %v3525
  %v3527 = vperm.slane %v3519, %v3526
  %v3528 = vrot.slane %v3395, 4
  %v3529 = vsel %vm2300, %v3528, %v3391
  %v3530 = vrot.slane %v3391, 4
  %v3531 = vsel %vm2300, %v3395, %v3530
  %v3533 = vunpack.c.l.s4 1983009808
  %v3534 = vunpack.c.0.s8 %v3533
  %v3535 = vperm.slane %v3529, %v3534
  %v3537 = vunpack.c.l.s4 1983009808
  %v3538 = vunpack.c.0.s8 %v3537
  %v3539 = vperm.slane %v3531, %v3538
  %v3540 = vrot.slane %v3401, 4
  %v3541 = vsel %vm2300, %v3540, %v3397
  %v3542 = vrot.slane %v3397, 4
  %v3543 = vsel %vm2300, %v3401, %v3542
  %v3545 = vunpack.c.l.s4 1983009808
  %v3546 = vunpack.c.0.s8 %v3545
  %v3547 = vperm.slane %v3541, %v3546
  %v3549 = vunpack.c.l.s4 1983009808
  %v3550 = vunpack.c.0.s8 %v3549
  %v3551 = vperm.slane %v3543, %v3550
  %v3552 = vrot.slane %v3403, 4
  %v3553 = vsel %vm2300, %v3552, %v3399
  %v3554 = vrot.slane %v3399, 4
  %v3555 = vsel %vm2300, %v3403, %v3554
  %v3557 = vunpack.c.l.s4 1983009808
  %v3558 = vunpack.c.0.s8 %v3557
  %v3559 = vperm.slane %v3553, %v3558
  %v3561 = vunpack.c.l.s4 1983009808
  %v3562 = vunpack.c.0.s8 %v3561
  %v3563 = vperm.slane %v3555, %v3562
  %v3564 = vrot.slane %v3535, 4
  %v3565 = vsel %vm2300, %v3564, %v3523
  %v3566 = vrot.slane %v3523, 4
  %v3567 = vsel %vm2300, %v3535, %v3566
  %v3569 = vunpack.c.l.s4 1934713408
  %v3570 = vunpack.c.0.s8 %v3569
  %v3571 = vperm.slane %v3565, %v3570
  %v3573 = vunpack.c.l.s4 1934713408
  %v3574 = vunpack.c.0.s8 %v3573
  %v3575 = vperm.slane %v3567, %v3574
  %v3576 = vrot.slane %v3539, 4
  %v3577 = vsel %vm2300, %v3576, %v3527
  %v3578 = vrot.slane %v3527, 4
  %v3579 = vsel %vm2300, %v3539, %v3578
  %v3581 = vunpack.c.l.s4 1934713408
  %v3582 = vunpack.c.0.s8 %v3581
  %v3583 = vperm.slane %v3577, %v3582
  %v3585 = vunpack.c.l.s4 1934713408
  %v3586 = vunpack.c.0.s8 %v3585
  %v3587 = vperm.slane %v3579, %v3586
  %v3588 = vrot.slane %v3559, 4
  %v3589 = vsel %vm2300, %v3588, %v3547
  %v3590 = vrot.slane %v3547, 4
  %v3591 = vsel %vm2300, %v3559, %v3590
  %v3593 = vunpack.c.l.s4 1934713408
  %v3594 = vunpack.c.0.s8 %v3593
  %v3595 = vperm.slane %v3589, %v3594
  %v3597 = vunpack.c.l.s4 1934713408
  %v3598 = vunpack.c.0.s8 %v3597
  %v3599 = vperm.slane %v3591, %v3598
  %v3600 = vrot.slane %v3563, 4
  %v3601 = vsel %vm2300, %v3600, %v3551
  %v3602 = vrot.slane %v3551, 4
  %v3603 = vsel %vm2300, %v3563, %v3602
  %v3605 = vunpack.c.l.s4 1934713408
  %v3606 = vunpack.c.0.s8 %v3605
  %v3607 = vperm.slane %v3601, %v3606
  %v3609 = vunpack.c.l.s4 1934713408
  %v3610 = vunpack.c.0.s8 %v3609
  %v3611 = vperm.slane %v3603, %v3610
  %v3612 = vrot.slane %v3595, 4
  %v3613 = vsel %vm2300, %v3612, %v3571
  %v3614 = vrot.slane %v3571, 4
  %v3615 = vsel %vm2300, %v3595, %v3614
  %v3616 = vrot.slane %v3599, 4
  %v3617 = vsel %vm2300, %v3616, %v3575
  %v3618 = vrot.slane %v3575, 4
  %v3619 = vsel %vm2300, %v3599, %v3618
  %v3620 = vrot.slane %v3607, 4
  %v3621 = vsel %vm2300, %v3620, %v3583
  %v3622 = vrot.slane %v3583, 4
  %v3623 = vsel %vm2300, %v3607, %v3622
  %v3624 = vrot.slane %v3611, 4
  %v3625 = vsel %vm2300, %v3624, %v3587
  %v3626 = vrot.slane %v3587, 4
  %v3627 = vsel %vm2300, %v3611, %v3626
  %v3628 = vrot.slane %v3505, 4
  %v3629 = vsel %vm2300, %v3628, %v3501
  %v3630 = vrot.slane %v3501, 4
  %v3631 = vsel %vm2300, %v3505, %v3630
  %v3633 = vunpack.c.l.s4 1983009808
  %v3634 = vunpack.c.0.s8 %v3633
  %v3635 = vperm.slane %v3629, %v3634
  %v3637 = vunpack.c.l.s4 1983009808
  %v3638 = vunpack.c.0.s8 %v3637
  %v3639 = vperm.slane %v3631, %v3638
  %v3640 = vrot.slane %v3507, 4
  %v3641 = vsel %vm2300, %v3640, %v3503
  %v3642 = vrot.slane %v3503, 4
  %v3643 = vsel %vm2300, %v3507, %v3642
  %v3645 = vunpack.c.l.s4 1983009808
  %v3646 = vunpack.c.0.s8 %v3645
  %v3647 = vperm.slane %v3641, %v3646
  %v3649 = vunpack.c.l.s4 1983009808
  %v3650 = vunpack.c.0.s8 %v3649
  %v3651 = vperm.slane %v3643, %v3650
  %v3652 = vrot.slane %v3513, 4
  %v3653 = vsel %vm2300, %v3652, %v3509
  %v3654 = vrot.slane %v3509, 4
  %v3655 = vsel %vm2300, %v3513, %v3654
  %v3657 = vunpack.c.l.s4 1983009808
  %v3658 = vunpack.c.0.s8 %v3657
  %v3659 = vperm.slane %v3653, %v3658
  %v3661 = vunpack.c.l.s4 1983009808
  %v3662 = vunpack.c.0.s8 %v3661
  %v3663 = vperm.slane %v3655, %v3662
  %v3664 = vrot.slane %v3515, 4
  %v3665 = vsel %vm2300, %v3664, %v3511
  %v3666 = vrot.slane %v3511, 4
  %v3667 = vsel %vm2300, %v3515, %v3666
  %v3669 = vunpack.c.l.s4 1983009808
  %v3670 = vunpack.c.0.s8 %v3669
  %v3671 = vperm.slane %v3665, %v3670
  %v3673 = vunpack.c.l.s4 1983009808
  %v3674 = vunpack.c.0.s8 %v3673
  %v3675 = vperm.slane %v3667, %v3674
  %v3676 = vrot.slane %v3647, 4
  %v3677 = vsel %vm2300, %v3676, %v3635
  %v3678 = vrot.slane %v3635, 4
  %v3679 = vsel %vm2300, %v3647, %v3678
  %v3681 = vunpack.c.l.s4 1934713408
  %v3682 = vunpack.c.0.s8 %v3681
  %v3683 = vperm.slane %v3677, %v3682
  %v3685 = vunpack.c.l.s4 1934713408
  %v3686 = vunpack.c.0.s8 %v3685
  %v3687 = vperm.slane %v3679, %v3686
  %v3688 = vrot.slane %v3651, 4
  %v3689 = vsel %vm2300, %v3688, %v3639
  %v3690 = vrot.slane %v3639, 4
  %v3691 = vsel %vm2300, %v3651, %v3690
  %v3693 = vunpack.c.l.s4 1934713408
  %v3694 = vunpack.c.0.s8 %v3693
  %v3695 = vperm.slane %v3689, %v3694
  %v3697 = vunpack.c.l.s4 1934713408
  %v3698 = vunpack.c.0.s8 %v3697
  %v3699 = vperm.slane %v3691, %v3698
  %v3700 = vrot.slane %v3671, 4
  %v3701 = vsel %vm2300, %v3700, %v3659
  %v3702 = vrot.slane %v3659, 4
  %v3703 = vsel %vm2300, %v3671, %v3702
  %v3705 = vunpack.c.l.s4 1934713408
  %v3706 = vunpack.c.0.s8 %v3705
  %v3707 = vperm.slane %v3701, %v3706
  %v3709 = vunpack.c.l.s4 1934713408
  %v3710 = vunpack.c.0.s8 %v3709
  %v3711 = vperm.slane %v3703, %v3710
  %v3712 = vrot.slane %v3675, 4
  %v3713 = vsel %vm2300, %v3712, %v3663
  %v3714 = vrot.slane %v3663, 4
  %v3715 = vsel %vm2300, %v3675, %v3714
  %v3717 = vunpack.c.l.s4 1934713408
  %v3718 = vunpack.c.0.s8 %v3717
  %v3719 = vperm.slane %v3713, %v3718
  %v3721 = vunpack.c.l.s4 1934713408
  %v3722 = vunpack.c.0.s8 %v3721
  %v3723 = vperm.slane %v3715, %v3722
  %v3724 = vrot.slane %v3707, 4
  %v3725 = vsel %vm2300, %v3724, %v3683
  %v3726 = vrot.slane %v3683, 4
  %v3727 = vsel %vm2300, %v3707, %v3726
  %v3728 = vrot.slane %v3711, 4
  %v3729 = vsel %vm2300, %v3728, %v3687
  %v3730 = vrot.slane %v3687, 4
  %v3731 = vsel %vm2300, %v3711, %v3730
  %v3732 = vrot.slane %v3719, 4
  %v3733 = vsel %vm2300, %v3732, %v3695
  %v3734 = vrot.slane %v3695, 4
  %v3735 = vsel %vm2300, %v3719, %v3734
  %v3736 = vrot.slane %v3723, 4
  %v3737 = vsel %vm2300, %v3736, %v3699
  %v3738 = vrot.slane %v3699, 4
  %v3739 = vsel %vm2300, %v3723, %v3738
  %vm3740 = vcmask 31744
  %v3742 = vsel %vm3740, %v2621, 0
  %v3745 = vsel %vm3740, %v3117, 0
  %3747 = vmatpush.xpose.msra.mxu0 0.0
  %3748 = vmatpush.xpose.msra.mxu0 0.0
  %3749 = vmatpush.xpose.msra.mxu0 0.0
  %3750 = vmatpush.xpose.msra.mxu0 0.0
  %3751 = vmatpush.xpose.msra.mxu0 0.0
  %3752 = vmatpush.xpose.msra.mxu0 0.0
  %3753 = vmatpush.xpose.msra.mxu0 0.0
  %3754 = vmatpush.xpose.msra.mxu0 0.0
  %3755 = vmatpush.xpose.msra.mxu0 0.0
  %3756 = vmatpush.xpose.msra.mxu0 0.0
  %3757 = vmatpush.xpose.msra.mxu0 0.0
  %3758 = vmatpush.xpose.msra.mxu0 0.0
  %3759 = vmatpush.xpose.msra.mxu0 0.0
  %3760 = vmatpush.xpose.msra.mxu0 0.0
  %3761 = vmatpush.xpose.msra.mxu0 0.0
  %3762 = vmatpush.xpose.msra.mxu0 %v3745
  %3763 = vmatmul.f32.gmra.mxu0 %v3742
  %v3764 = vpop.f32.mrf.mxu0
  %v3765 = vadd.f32 0.0, %v3764
  %3766 = vdwg.mxu0
  %v3768 = vsel %vm3740, %v2623, 0
  %v3771 = vsel %vm3740, %v3119, 0
  %3773 = vmatpush.xpose.msra.mxu0 0.0
  %3774 = vmatpush.xpose.msra.mxu0 0.0
  %3775 = vmatpush.xpose.msra.mxu0 0.0
  %3776 = vmatpush.xpose.msra.mxu0 0.0
  %3777 = vmatpush.xpose.msra.mxu0 0.0
  %3778 = vmatpush.xpose.msra.mxu0 0.0
  %3779 = vmatpush.xpose.msra.mxu0 0.0
  %3780 = vmatpush.xpose.msra.mxu0 0.0
  %3781 = vmatpush.xpose.msra.mxu0 0.0
  %3782 = vmatpush.xpose.msra.mxu0 0.0
  %3783 = vmatpush.xpose.msra.mxu0 0.0
  %3784 = vmatpush.xpose.msra.mxu0 0.0
  %3785 = vmatpush.xpose.msra.mxu0 0.0
  %3786 = vmatpush.xpose.msra.mxu0 0.0
  %3787 = vmatpush.xpose.msra.mxu0 0.0
  %3788 = vmatpush.xpose.msra.mxu0 %v3771
  %3789 = vmatmul.f32.gmra.mxu0 %v3768
  %v3790 = vpop.f32.mrf.mxu0
  %v3791 = vadd.f32 0.0, %v3790
  %3792 = vdwg.mxu0
  %v3794 = vsel %vm3740, %v2625, 0
  %v3797 = vsel %vm3740, %v3121, 0
  %3799 = vmatpush.xpose.msra.mxu0 0.0
  %3800 = vmatpush.xpose.msra.mxu0 0.0
  %3801 = vmatpush.xpose.msra.mxu0 0.0
  %3802 = vmatpush.xpose.msra.mxu0 0.0
  %3803 = vmatpush.xpose.msra.mxu0 0.0
  %3804 = vmatpush.xpose.msra.mxu0 0.0
  %3805 = vmatpush.xpose.msra.mxu0 0.0
  %3806 = vmatpush.xpose.msra.mxu0 0.0
  %3807 = vmatpush.xpose.msra.mxu0 0.0
  %3808 = vmatpush.xpose.msra.mxu0 0.0
  %3809 = vmatpush.xpose.msra.mxu0 0.0
  %3810 = vmatpush.xpose.msra.mxu0 0.0
  %3811 = vmatpush.xpose.msra.mxu0 0.0
  %3812 = vmatpush.xpose.msra.mxu0 0.0
  %3813 = vmatpush.xpose.msra.mxu0 0.0
  %3814 = vmatpush.xpose.msra.mxu0 %v3797
  %3815 = vmatmul.f32.gmra.mxu0 %v3794
  %v3816 = vpop.f32.mrf.mxu0
  %v3817 = vadd.f32 0.0, %v3816
  %3818 = vdwg.mxu0
  %v3820 = vsel %vm3740, %v2627, 0
  %v3823 = vsel %vm3740, %v3123, 0
  %3825 = vmatpush.xpose.msra.mxu0 0.0
  %3826 = vmatpush.xpose.msra.mxu0 0.0
  %3827 = vmatpush.xpose.msra.mxu0 0.0
  %3828 = vmatpush.xpose.msra.mxu0 0.0
  %3829 = vmatpush.xpose.msra.mxu0 0.0
  %3830 = vmatpush.xpose.msra.mxu0 0.0
  %3831 = vmatpush.xpose.msra.mxu0 0.0
  %3832 = vmatpush.xpose.msra.mxu0 0.0
  %3833 = vmatpush.xpose.msra.mxu0 0.0
  %3834 = vmatpush.xpose.msra.mxu0 0.0
  %3835 = vmatpush.xpose.msra.mxu0 0.0
  %3836 = vmatpush.xpose.msra.mxu0 0.0
  %3837 = vmatpush.xpose.msra.mxu0 0.0
  %3838 = vmatpush.xpose.msra.mxu0 0.0
  %3839 = vmatpush.xpose.msra.mxu0 0.0
  %3840 = vmatpush.xpose.msra.mxu0 %v3823
  %3841 = vmatmul.f32.gmra.mxu0 %v3820
  %v3842 = vpop.f32.mrf.mxu0
  %v3843 = vadd.f32 0.0, %v3842
  %3844 = vdwg.mxu0
  %v3846 = vsel %vm3740, %v2629, 0
  %v3849 = vsel %vm3740, %v3125, 0
  %3851 = vmatpush.xpose.msra.mxu0 0.0
  %3852 = vmatpush.xpose.msra.mxu0 0.0
  %3853 = vmatpush.xpose.msra.mxu0 0.0
  %3854 = vmatpush.xpose.msra.mxu0 0.0
  %3855 = vmatpush.xpose.msra.mxu0 0.0
  %3856 = vmatpush.xpose.msra.mxu0 0.0
  %3857 = vmatpush.xpose.msra.mxu0 0.0
  %3858 = vmatpush.xpose.msra.mxu0 0.0
  %3859 = vmatpush.xpose.msra.mxu0 0.0
  %3860 = vmatpush.xpose.msra.mxu0 0.0
  %3861 = vmatpush.xpose.msra.mxu0 0.0
  %3862 = vmatpush.xpose.msra.mxu0 0.0
  %3863 = vmatpush.xpose.msra.mxu0 0.0
  %3864 = vmatpush.xpose.msra.mxu0 0.0
  %3865 = vmatpush.xpose.msra.mxu0 0.0
  %3866 = vmatpush.xpose.msra.mxu0 %v3849
  %3867 = vmatmul.f32.gmra.mxu0 %v3846
  %v3868 = vpop.f32.mrf.mxu0
  %v3869 = vadd.f32 0.0, %v3868
  %3870 = vdwg.mxu0
  %v3872 = vsel %vm3740, %v2631, 0
  %v3875 = vsel %vm3740, %v3127, 0
  %3877 = vmatpush.xpose.msra.mxu0 0.0
  %3878 = vmatpush.xpose.msra.mxu0 0.0
  %3879 = vmatpush.xpose.msra.mxu0 0.0
  %3880 = vmatpush.xpose.msra.mxu0 0.0
  %3881 = vmatpush.xpose.msra.mxu0 0.0
  %3882 = vmatpush.xpose.msra.mxu0 0.0
  %3883 = vmatpush.xpose.msra.mxu0 0.0
  %3884 = vmatpush.xpose.msra.mxu0 0.0
  %3885 = vmatpush.xpose.msra.mxu0 0.0
  %3886 = vmatpush.xpose.msra.mxu0 0.0
  %3887 = vmatpush.xpose.msra.mxu0 0.0
  %3888 = vmatpush.xpose.msra.mxu0 0.0
  %3889 = vmatpush.xpose.msra.mxu0 0.0
  %3890 = vmatpush.xpose.msra.mxu0 0.0
  %3891 = vmatpush.xpose.msra.mxu0 0.0
  %3892 = vmatpush.xpose.msra.mxu0 %v3875
  %3893 = vmatmul.f32.gmra.mxu0 %v3872
  %v3894 = vpop.f32.mrf.mxu0
  %v3895 = vadd.f32 0.0, %v3894
  %3896 = vdwg.mxu0
  %v3898 = vsel %vm3740, %v2633, 0
  %v3901 = vsel %vm3740, %v3129, 0
  %3903 = vmatpush.xpose.msra.mxu0 0.0
  %3904 = vmatpush.xpose.msra.mxu0 0.0
  %3905 = vmatpush.xpose.msra.mxu0 0.0
  %3906 = vmatpush.xpose.msra.mxu0 0.0
  %3907 = vmatpush.xpose.msra.mxu0 0.0
  %3908 = vmatpush.xpose.msra.mxu0 0.0
  %3909 = vmatpush.xpose.msra.mxu0 0.0
  %3910 = vmatpush.xpose.msra.mxu0 0.0
  %3911 = vmatpush.xpose.msra.mxu0 0.0
  %3912 = vmatpush.xpose.msra.mxu0 0.0
  %3913 = vmatpush.xpose.msra.mxu0 0.0
  %3914 = vmatpush.xpose.msra.mxu0 0.0
  %3915 = vmatpush.xpose.msra.mxu0 0.0
  %3916 = vmatpush.xpose.msra.mxu0 0.0
  %3917 = vmatpush.xpose.msra.mxu0 0.0
  %3918 = vmatpush.xpose.msra.mxu0 %v3901
  %3919 = vmatmul.f32.gmra.mxu0 %v3898
  %v3920 = vpop.f32.mrf.mxu0
  %v3921 = vadd.f32 0.0, %v3920
  %3922 = vdwg.mxu0
  %v3924 = vsel %vm3740, %v2635, 0
  %v3927 = vsel %vm3740, %v3131, 0
  %3929 = vmatpush.xpose.msra.mxu0 0.0
  %3930 = vmatpush.xpose.msra.mxu0 0.0
  %3931 = vmatpush.xpose.msra.mxu0 0.0
  %3932 = vmatpush.xpose.msra.mxu0 0.0
  %3933 = vmatpush.xpose.msra.mxu0 0.0
  %3934 = vmatpush.xpose.msra.mxu0 0.0
  %3935 = vmatpush.xpose.msra.mxu0 0.0
  %3936 = vmatpush.xpose.msra.mxu0 0.0
  %3937 = vmatpush.xpose.msra.mxu0 0.0
  %3938 = vmatpush.xpose.msra.mxu0 0.0
  %3939 = vmatpush.xpose.msra.mxu0 0.0
  %3940 = vmatpush.xpose.msra.mxu0 0.0
  %3941 = vmatpush.xpose.msra.mxu0 0.0
  %3942 = vmatpush.xpose.msra.mxu0 0.0
  %3943 = vmatpush.xpose.msra.mxu0 0.0
  %3944 = vmatpush.xpose.msra.mxu0 %v3927
  %3945 = vmatmul.f32.gmra.mxu0 %v3924
  %v3946 = vpop.f32.mrf.mxu0
  %v3947 = vadd.f32 0.0, %v3946
  %3948 = vdwg.mxu0
  %v3950 = vsel %vm3740, %v2733, 0
  %v3953 = vsel %vm3740, %v3229, 0
  %3955 = vmatpush.xpose.msra.mxu0 0.0
  %3956 = vmatpush.xpose.msra.mxu0 0.0
  %3957 = vmatpush.xpose.msra.mxu0 0.0
  %3958 = vmatpush.xpose.msra.mxu0 0.0
  %3959 = vmatpush.xpose.msra.mxu0 0.0
  %3960 = vmatpush.xpose.msra.mxu0 0.0
  %3961 = vmatpush.xpose.msra.mxu0 0.0
  %3962 = vmatpush.xpose.msra.mxu0 0.0
  %3963 = vmatpush.xpose.msra.mxu0 0.0
  %3964 = vmatpush.xpose.msra.mxu0 0.0
  %3965 = vmatpush.xpose.msra.mxu0 0.0
  %3966 = vmatpush.xpose.msra.mxu0 0.0
  %3967 = vmatpush.xpose.msra.mxu0 0.0
  %3968 = vmatpush.xpose.msra.mxu0 0.0
  %3969 = vmatpush.xpose.msra.mxu0 0.0
  %3970 = vmatpush.xpose.msra.mxu0 %v3953
  %3971 = vmatmul.f32.gmra.mxu0 %v3950
  %v3972 = vpop.f32.mrf.mxu0
  %v3973 = vadd.f32 0.0, %v3972
  %3974 = vdwg.mxu0
  %v3976 = vsel %vm3740, %v2735, 0
  %v3979 = vsel %vm3740, %v3231, 0
  %3981 = vmatpush.xpose.msra.mxu0 0.0
  %3982 = vmatpush.xpose.msra.mxu0 0.0
  %3983 = vmatpush.xpose.msra.mxu0 0.0
  %3984 = vmatpush.xpose.msra.mxu0 0.0
  %3985 = vmatpush.xpose.msra.mxu0 0.0
  %3986 = vmatpush.xpose.msra.mxu0 0.0
  %3987 = vmatpush.xpose.msra.mxu0 0.0
  %3988 = vmatpush.xpose.msra.mxu0 0.0
  %3989 = vmatpush.xpose.msra.mxu0 0.0
  %3990 = vmatpush.xpose.msra.mxu0 0.0
  %3991 = vmatpush.xpose.msra.mxu0 0.0
  %3992 = vmatpush.xpose.msra.mxu0 0.0
  %3993 = vmatpush.xpose.msra.mxu0 0.0
  %3994 = vmatpush.xpose.msra.mxu0 0.0
  %3995 = vmatpush.xpose.msra.mxu0 0.0
  %3996 = vmatpush.xpose.msra.mxu0 %v3979
  %3997 = vmatmul.f32.gmra.mxu0 %v3976
  %v3998 = vpop.f32.mrf.mxu0
  %v3999 = vadd.f32 0.0, %v3998
  %4000 = vdwg.mxu0
  %v4002 = vsel %vm3740, %v2737, 0
  %v4005 = vsel %vm3740, %v3233, 0
  %4007 = vmatpush.xpose.msra.mxu0 0.0
  %4008 = vmatpush.xpose.msra.mxu0 0.0
  %4009 = vmatpush.xpose.msra.mxu0 0.0
  %4010 = vmatpush.xpose.msra.mxu0 0.0
  %4011 = vmatpush.xpose.msra.mxu0 0.0
  %4012 = vmatpush.xpose.msra.mxu0 0.0
  %4013 = vmatpush.xpose.msra.mxu0 0.0
  %4014 = vmatpush.xpose.msra.mxu0 0.0
  %4015 = vmatpush.xpose.msra.mxu0 0.0
  %4016 = vmatpush.xpose.msra.mxu0 0.0
  %4017 = vmatpush.xpose.msra.mxu0 0.0
  %4018 = vmatpush.xpose.msra.mxu0 0.0
  %4019 = vmatpush.xpose.msra.mxu0 0.0
  %4020 = vmatpush.xpose.msra.mxu0 0.0
  %4021 = vmatpush.xpose.msra.mxu0 0.0
  %4022 = vmatpush.xpose.msra.mxu0 %v4005
  %4023 = vmatmul.f32.gmra.mxu0 %v4002
  %v4024 = vpop.f32.mrf.mxu0
  %v4025 = vadd.f32 0.0, %v4024
  %4026 = vdwg.mxu0
  %v4028 = vsel %vm3740, %v2739, 0
  %v4031 = vsel %vm3740, %v3235, 0
  %4033 = vmatpush.xpose.msra.mxu0 0.0
  %4034 = vmatpush.xpose.msra.mxu0 0.0
  %4035 = vmatpush.xpose.msra.mxu0 0.0
  %4036 = vmatpush.xpose.msra.mxu0 0.0
  %4037 = vmatpush.xpose.msra.mxu0 0.0
  %4038 = vmatpush.xpose.msra.mxu0 0.0
  %4039 = vmatpush.xpose.msra.mxu0 0.0
  %4040 = vmatpush.xpose.msra.mxu0 0.0
  %4041 = vmatpush.xpose.msra.mxu0 0.0
  %4042 = vmatpush.xpose.msra.mxu0 0.0
  %4043 = vmatpush.xpose.msra.mxu0 0.0
  %4044 = vmatpush.xpose.msra.mxu0 0.0
  %4045 = vmatpush.xpose.msra.mxu0 0.0
  %4046 = vmatpush.xpose.msra.mxu0 0.0
  %4047 = vmatpush.xpose.msra.mxu0 0.0
  %4048 = vmatpush.xpose.msra.mxu0 %v4031
  %4049 = vmatmul.f32.gmra.mxu0 %v4028
  %v4050 = vpop.f32.mrf.mxu0
  %v4051 = vadd.f32 0.0, %v4050
  %4052 = vdwg.mxu0
  %v4054 = vsel %vm3740, %v2741, 0
  %v4057 = vsel %vm3740, %v3237, 0
  %4059 = vmatpush.xpose.msra.mxu0 0.0
  %4060 = vmatpush.xpose.msra.mxu0 0.0
  %4061 = vmatpush.xpose.msra.mxu0 0.0
  %4062 = vmatpush.xpose.msra.mxu0 0.0
  %4063 = vmatpush.xpose.msra.mxu0 0.0
  %4064 = vmatpush.xpose.msra.mxu0 0.0
  %4065 = vmatpush.xpose.msra.mxu0 0.0
  %4066 = vmatpush.xpose.msra.mxu0 0.0
  %4067 = vmatpush.xpose.msra.mxu0 0.0
  %4068 = vmatpush.xpose.msra.mxu0 0.0
  %4069 = vmatpush.xpose.msra.mxu0 0.0
  %4070 = vmatpush.xpose.msra.mxu0 0.0
  %4071 = vmatpush.xpose.msra.mxu0 0.0
  %4072 = vmatpush.xpose.msra.mxu0 0.0
  %4073 = vmatpush.xpose.msra.mxu0 0.0
  %4074 = vmatpush.xpose.msra.mxu0 %v4057
  %4075 = vmatmul.f32.gmra.mxu0 %v4054
  %v4076 = vpop.f32.mrf.mxu0
  %v4077 = vadd.f32 0.0, %v4076
  %4078 = vdwg.mxu0
  %v4080 = vsel %vm3740, %v2743, 0
  %v4083 = vsel %vm3740, %v3239, 0
  %4085 = vmatpush.xpose.msra.mxu0 0.0
  %4086 = vmatpush.xpose.msra.mxu0 0.0
  %4087 = vmatpush.xpose.msra.mxu0 0.0
  %4088 = vmatpush.xpose.msra.mxu0 0.0
  %4089 = vmatpush.xpose.msra.mxu0 0.0
  %4090 = vmatpush.xpose.msra.mxu0 0.0
  %4091 = vmatpush.xpose.msra.mxu0 0.0
  %4092 = vmatpush.xpose.msra.mxu0 0.0
  %4093 = vmatpush.xpose.msra.mxu0 0.0
  %4094 = vmatpush.xpose.msra.mxu0 0.0
  %4095 = vmatpush.xpose.msra.mxu0 0.0
  %4096 = vmatpush.xpose.msra.mxu0 0.0
  %4097 = vmatpush.xpose.msra.mxu0 0.0
  %4098 = vmatpush.xpose.msra.mxu0 0.0
  %4099 = vmatpush.xpose.msra.mxu0 0.0
  %4100 = vmatpush.xpose.msra.mxu0 %v4083
  %4101 = vmatmul.f32.gmra.mxu0 %v4080
  %v4102 = vpop.f32.mrf.mxu0
  %v4103 = vadd.f32 0.0, %v4102
  %4104 = vdwg.mxu0
  %v4106 = vsel %vm3740, %v2745, 0
  %v4109 = vsel %vm3740, %v3241, 0
  %4111 = vmatpush.xpose.msra.mxu0 0.0
  %4112 = vmatpush.xpose.msra.mxu0 0.0
  %4113 = vmatpush.xpose.msra.mxu0 0.0
  %4114 = vmatpush.xpose.msra.mxu0 0.0
  %4115 = vmatpush.xpose.msra.mxu0 0.0
  %4116 = vmatpush.xpose.msra.mxu0 0.0
  %4117 = vmatpush.xpose.msra.mxu0 0.0
  %4118 = vmatpush.xpose.msra.mxu0 0.0
  %4119 = vmatpush.xpose.msra.mxu0 0.0
  %4120 = vmatpush.xpose.msra.mxu0 0.0
  %4121 = vmatpush.xpose.msra.mxu0 0.0
  %4122 = vmatpush.xpose.msra.mxu0 0.0
  %4123 = vmatpush.xpose.msra.mxu0 0.0
  %4124 = vmatpush.xpose.msra.mxu0 0.0
  %4125 = vmatpush.xpose.msra.mxu0 0.0
  %4126 = vmatpush.xpose.msra.mxu0 %v4109
  %4127 = vmatmul.f32.gmra.mxu0 %v4106
  %v4128 = vpop.f32.mrf.mxu0
  %v4129 = vadd.f32 0.0, %v4128
  %4130 = vdwg.mxu0
  %v4132 = vsel %vm3740, %v2747, 0
  %v4135 = vsel %vm3740, %v3243, 0
  %4137 = vmatpush.xpose.msra.mxu0 0.0
  %4138 = vmatpush.xpose.msra.mxu0 0.0
  %4139 = vmatpush.xpose.msra.mxu0 0.0
  %4140 = vmatpush.xpose.msra.mxu0 0.0
  %4141 = vmatpush.xpose.msra.mxu0 0.0
  %4142 = vmatpush.xpose.msra.mxu0 0.0
  %4143 = vmatpush.xpose.msra.mxu0 0.0
  %4144 = vmatpush.xpose.msra.mxu0 0.0
  %4145 = vmatpush.xpose.msra.mxu0 0.0
  %4146 = vmatpush.xpose.msra.mxu0 0.0
  %4147 = vmatpush.xpose.msra.mxu0 0.0
  %4148 = vmatpush.xpose.msra.mxu0 0.0
  %4149 = vmatpush.xpose.msra.mxu0 0.0
  %4150 = vmatpush.xpose.msra.mxu0 0.0
  %4151 = vmatpush.xpose.msra.mxu0 0.0
  %4152 = vmatpush.xpose.msra.mxu0 %v4135
  %4153 = vmatmul.f32.gmra.mxu0 %v4132
  %v4154 = vpop.f32.mrf.mxu0
  %v4155 = vadd.f32 0.0, %v4154
  %4156 = vdwg.mxu0
  %vm4157 = vcmask 64512
  %v4158 = vsel %vm4157, %v3765, -inf
  %4159 = vmax.xlane.f32.xlu0 %v4158
  %v4160 = vpop.xlane.xlu0 %4159
  %v4161 = vsel %vm4157, %v3791, -inf
  %4162 = vmax.xlane.f32.xlu0 %v4161
  %v4163 = vpop.xlane.xlu0 %4162
  %v4164 = vsel %vm4157, %v3817, -inf
  %4165 = vmax.xlane.f32.xlu0 %v4164
  %v4166 = vpop.xlane.xlu0 %4165
  %v4167 = vsel %vm4157, %v3843, -inf
  %4168 = vmax.xlane.f32.xlu0 %v4167
  %v4169 = vpop.xlane.xlu0 %4168
  %v4170 = vsel %vm4157, %v3869, -inf
  %4171 = vmax.xlane.f32.xlu0 %v4170
  %v4172 = vpop.xlane.xlu0 %4171
  %v4173 = vsel %vm4157, %v3895, -inf
  %4174 = vmax.xlane.f32.xlu0 %v4173
  %v4175 = vpop.xlane.xlu0 %4174
  %v4176 = vsel %vm4157, %v3921, -inf
  %4177 = vmax.xlane.f32.xlu0 %v4176
  %v4178 = vpop.xlane.xlu0 %4177
  %v4179 = vsel %vm4157, %v3947, -inf
  %4180 = vmax.xlane.f32.xlu0 %v4179
  %v4181 = vpop.xlane.xlu0 %4180
  %v4182 = vsel %vm4157, %v3973, -inf
  %4183 = vmax.xlane.f32.xlu0 %v4182
  %v4184 = vpop.xlane.xlu0 %4183
  %v4185 = vsel %vm4157, %v3999, -inf
  %4186 = vmax.xlane.f32.xlu0 %v4185
  %v4187 = vpop.xlane.xlu0 %4186
  %v4188 = vsel %vm4157, %v4025, -inf
  %4189 = vmax.xlane.f32.xlu0 %v4188
  %v4190 = vpop.xlane.xlu0 %4189
  %v4191 = vsel %vm4157, %v4051, -inf
  %4192 = vmax.xlane.f32.xlu0 %v4191
  %v4193 = vpop.xlane.xlu0 %4192
  %v4194 = vsel %vm4157, %v4077, -inf
  %4195 = vmax.xlane.f32.xlu0 %v4194
  %v4196 = vpop.xlane.xlu0 %4195
  %v4197 = vsel %vm4157, %v4103, -inf
  %4198 = vmax.xlane.f32.xlu0 %v4197
  %v4199 = vpop.xlane.xlu0 %4198
  %v4200 = vsel %vm4157, %v4129, -inf
  %4201 = vmax.xlane.f32.xlu0 %v4200
  %v4202 = vpop.xlane.xlu0 %4201
  %v4203 = vsel %vm4157, %v4155, -inf
  %4204 = vmax.xlane.f32.xlu0 %v4203
  %v4205 = vpop.xlane.xlu0 %4204
  %v4206 = vsub.f32 %v3765, %v4160
  %v4207 = vsub.f32 %v3791, %v4163
  %v4208 = vsub.f32 %v3817, %v4166
  %v4209 = vsub.f32 %v3843, %v4169
  %v4210 = vsub.f32 %v3869, %v4172
  %v4211 = vsub.f32 %v3895, %v4175
  %v4212 = vsub.f32 %v3921, %v4178
  %v4213 = vsub.f32 %v3947, %v4181
  %v4214 = vsub.f32 %v3973, %v4184
  %v4215 = vsub.f32 %v3999, %v4187
  %v4216 = vsub.f32 %v4025, %v4190
  %v4217 = vsub.f32 %v4051, %v4193
  %v4218 = vsub.f32 %v4077, %v4196
  %v4219 = vsub.f32 %v4103, %v4199
  %v4220 = vsub.f32 %v4129, %v4202
  %v4221 = vsub.f32 %v4155, %v4205
  %v4222 = vmul.f32 %v4206, 1.442695
  %v4223 = vpow.pop %v4222
  %v4224 = vmul.f32 %v4207, 1.442695
  %v4225 = vpow.pop %v4224
  %v4226 = vmul.f32 %v4208, 1.442695
  %v4227 = vpow.pop %v4226
  %v4228 = vmul.f32 %v4209, 1.442695
  %v4229 = vpow.pop %v4228
  %v4230 = vmul.f32 %v4210, 1.442695
  %v4231 = vpow.pop %v4230
  %v4232 = vmul.f32 %v4211, 1.442695
  %v4233 = vpow.pop %v4232
  %v4234 = vmul.f32 %v4212, 1.442695
  %v4235 = vpow.pop %v4234
  %v4236 = vmul.f32 %v4213, 1.442695
  %v4237 = vpow.pop %v4236
  %v4238 = vmul.f32 %v4214, 1.442695
  %v4239 = vpow.pop %v4238
  %v4240 = vmul.f32 %v4215, 1.442695
  %v4241 = vpow.pop %v4240
  %v4242 = vmul.f32 %v4216, 1.442695
  %v4243 = vpow.pop %v4242
  %v4244 = vmul.f32 %v4217, 1.442695
  %v4245 = vpow.pop %v4244
  %v4246 = vmul.f32 %v4218, 1.442695
  %v4247 = vpow.pop %v4246
  %v4248 = vmul.f32 %v4219, 1.442695
  %v4249 = vpow.pop %v4248
  %v4250 = vmul.f32 %v4220, 1.442695
  %v4251 = vpow.pop %v4250
  %v4252 = vmul.f32 %v4221, 1.442695
  %v4253 = vpow.pop %v4252
  %v4254 = vsel %vm4157, %v4223, 0.0
  %4255 = vadd.xlane.f32.xlu0 %v4254
  %v4256 = vpop.xlane.xlu0 %4255
  %v4257 = vsel %vm4157, %v4225, 0.0
  %4258 = vadd.xlane.f32.xlu0 %v4257
  %v4259 = vpop.xlane.xlu0 %4258
  %v4260 = vsel %vm4157, %v4227, 0.0
  %4261 = vadd.xlane.f32.xlu0 %v4260
  %v4262 = vpop.xlane.xlu0 %4261
  %v4263 = vsel %vm4157, %v4229, 0.0
  %4264 = vadd.xlane.f32.xlu0 %v4263
  %v4265 = vpop.xlane.xlu0 %4264
  %v4266 = vsel %vm4157, %v4231, 0.0
  %4267 = vadd.xlane.f32.xlu0 %v4266
  %v4268 = vpop.xlane.xlu0 %4267
  %v4269 = vsel %vm4157, %v4233, 0.0
  %4270 = vadd.xlane.f32.xlu0 %v4269
  %v4271 = vpop.xlane.xlu0 %4270
  %v4272 = vsel %vm4157, %v4235, 0.0
  %4273 = vadd.xlane.f32.xlu0 %v4272
  %v4274 = vpop.xlane.xlu0 %4273
  %v4275 = vsel %vm4157, %v4237, 0.0
  %4276 = vadd.xlane.f32.xlu0 %v4275
  %v4277 = vpop.xlane.xlu0 %4276
  %v4278 = vsel %vm4157, %v4239, 0.0
  %4279 = vadd.xlane.f32.xlu0 %v4278
  %v4280 = vpop.xlane.xlu0 %4279
  %v4281 = vsel %vm4157, %v4241, 0.0
  %4282 = vadd.xlane.f32.xlu0 %v4281
  %v4283 = vpop.xlane.xlu0 %4282
  %v4284 = vsel %vm4157, %v4243, 0.0
  %4285 = vadd.xlane.f32.xlu0 %v4284
  %v4286 = vpop.xlane.xlu0 %4285
  %v4287 = vsel %vm4157, %v4245, 0.0
  %4288 = vadd.xlane.f32.xlu0 %v4287
  %v4289 = vpop.xlane.xlu0 %4288
  %v4290 = vsel %vm4157, %v4247, 0.0
  %4291 = vadd.xlane.f32.xlu0 %v4290
  %v4292 = vpop.xlane.xlu0 %4291
  %v4293 = vsel %vm4157, %v4249, 0.0
  %4294 = vadd.xlane.f32.xlu0 %v4293
  %v4295 = vpop.xlane.xlu0 %4294
  %v4296 = vsel %vm4157, %v4251, 0.0
  %4297 = vadd.xlane.f32.xlu0 %v4296
  %v4298 = vpop.xlane.xlu0 %4297
  %v4299 = vsel %vm4157, %v4253, 0.0
  %4300 = vadd.xlane.f32.xlu0 %v4299
  %v4301 = vpop.xlane.xlu0 %4300
  %v4302 = vrcp.pop %v4256
  %v4303 = vmul.f32 %v4256, %v4302
  %v4304 = vsub.f32 1.0, %v4303
  %v4305 = vmul.f32 %v4302, %v4304
  %v4306 = vadd.f32 %v4302, %v4305
  %vm4307 = vweird.f32 %v4256
  %vm4308 = vweird.f32 %v4302
  %vm4309 = vmor %vm4307, %vm4308
  %v4310 = vsel %vm4309, %v4302, %v4306
  %v4311 = vand.u32 2147483647, %v4256
  %vm4312 = vcmp.eq.f32.partialorder %v4311, 8.507059e+37
  %v4313 = vand.u32 %v4256, 2147483648
  %v4314 = vor.u32 1.1754944e-38, %v4313
  %v4315 = vsel %vm4312, %v4314, %v4310
  %v4316 = vmul.f32 %v4223, %v4315
  %v4317 = vrcp.pop %v4259
  %v4318 = vmul.f32 %v4259, %v4317
  %v4319 = vsub.f32 1.0, %v4318
  %v4320 = vmul.f32 %v4317, %v4319
  %v4321 = vadd.f32 %v4317, %v4320
  %vm4322 = vweird.f32 %v4259
  %vm4323 = vweird.f32 %v4317
  %vm4324 = vmor %vm4322, %vm4323
  %v4325 = vsel %vm4324, %v4317, %v4321
  %v4326 = vand.u32 2147483647, %v4259
  %vm4327 = vcmp.eq.f32.partialorder %v4326, 8.507059e+37
  %v4328 = vand.u32 %v4259, 2147483648
  %v4329 = vor.u32 1.1754944e-38, %v4328
  %v4330 = vsel %vm4327, %v4329, %v4325
  %v4331 = vmul.f32 %v4225, %v4330
  %v4332 = vrcp.pop %v4262
  %v4333 = vmul.f32 %v4262, %v4332
  %v4334 = vsub.f32 1.0, %v4333
  %v4335 = vmul.f32 %v4332, %v4334
  %v4336 = vadd.f32 %v4332, %v4335
  %vm4337 = vweird.f32 %v4262
  %vm4338 = vweird.f32 %v4332
  %vm4339 = vmor %vm4337, %vm4338
  %v4340 = vsel %vm4339, %v4332, %v4336
  %v4341 = vand.u32 2147483647, %v4262
  %vm4342 = vcmp.eq.f32.partialorder %v4341, 8.507059e+37
  %v4343 = vand.u32 %v4262, 2147483648
  %v4344 = vor.u32 1.1754944e-38, %v4343
  %v4345 = vsel %vm4342, %v4344, %v4340
  %v4346 = vmul.f32 %v4227, %v4345
  %v4347 = vrcp.pop %v4265
  %v4348 = vmul.f32 %v4265, %v4347
  %v4349 = vsub.f32 1.0, %v4348
  %v4350 = vmul.f32 %v4347, %v4349
  %v4351 = vadd.f32 %v4347, %v4350
  %vm4352 = vweird.f32 %v4265
  %vm4353 = vweird.f32 %v4347
  %vm4354 = vmor %vm4352, %vm4353
  %v4355 = vsel %vm4354, %v4347, %v4351
  %v4356 = vand.u32 2147483647, %v4265
  %vm4357 = vcmp.eq.f32.partialorder %v4356, 8.507059e+37
  %v4358 = vand.u32 %v4265, 2147483648
  %v4359 = vor.u32 1.1754944e-38, %v4358
  %v4360 = vsel %vm4357, %v4359, %v4355
  %v4361 = vmul.f32 %v4229, %v4360
  %v4362 = vrcp.pop %v4268
  %v4363 = vmul.f32 %v4268, %v4362
  %v4364 = vsub.f32 1.0, %v4363
  %v4365 = vmul.f32 %v4362, %v4364
  %v4366 = vadd.f32 %v4362, %v4365
  %vm4367 = vweird.f32 %v4268
  %vm4368 = vweird.f32 %v4362
  %vm4369 = vmor %vm4367, %vm4368
  %v4370 = vsel %vm4369, %v4362, %v4366
  %v4371 = vand.u32 2147483647, %v4268
  %vm4372 = vcmp.eq.f32.partialorder %v4371, 8.507059e+37
  %v4373 = vand.u32 %v4268, 2147483648
  %v4374 = vor.u32 1.1754944e-38, %v4373
  %v4375 = vsel %vm4372, %v4374, %v4370
  %v4376 = vmul.f32 %v4231, %v4375
  %v4377 = vrcp.pop %v4271
  %v4378 = vmul.f32 %v4271, %v4377
  %v4379 = vsub.f32 1.0, %v4378
  %v4380 = vmul.f32 %v4377, %v4379
  %v4381 = vadd.f32 %v4377, %v4380
  %vm4382 = vweird.f32 %v4271
  %vm4383 = vweird.f32 %v4377
  %vm4384 = vmor %vm4382, %vm4383
  %v4385 = vsel %vm4384, %v4377, %v4381
  %v4386 = vand.u32 2147483647, %v4271
  %vm4387 = vcmp.eq.f32.partialorder %v4386, 8.507059e+37
  %v4388 = vand.u32 %v4271, 2147483648
  %v4389 = vor.u32 1.1754944e-38, %v4388
  %v4390 = vsel %vm4387, %v4389, %v4385
  %v4391 = vmul.f32 %v4233, %v4390
  %v4392 = vrcp.pop %v4274
  %v4393 = vmul.f32 %v4274, %v4392
  %v4394 = vsub.f32 1.0, %v4393
  %v4395 = vmul.f32 %v4392, %v4394
  %v4396 = vadd.f32 %v4392, %v4395
  %vm4397 = vweird.f32 %v4274
  %vm4398 = vweird.f32 %v4392
  %vm4399 = vmor %vm4397, %vm4398
  %v4400 = vsel %vm4399, %v4392, %v4396
  %v4401 = vand.u32 2147483647, %v4274
  %vm4402 = vcmp.eq.f32.partialorder %v4401, 8.507059e+37
  %v4403 = vand.u32 %v4274, 2147483648
  %v4404 = vor.u32 1.1754944e-38, %v4403
  %v4405 = vsel %vm4402, %v4404, %v4400
  %v4406 = vmul.f32 %v4235, %v4405
  %v4407 = vrcp.pop %v4277
  %v4408 = vmul.f32 %v4277, %v4407
  %v4409 = vsub.f32 1.0, %v4408
  %v4410 = vmul.f32 %v4407, %v4409
  %v4411 = vadd.f32 %v4407, %v4410
  %vm4412 = vweird.f32 %v4277
  %vm4413 = vweird.f32 %v4407
  %vm4414 = vmor %vm4412, %vm4413
  %v4415 = vsel %vm4414, %v4407, %v4411
  %v4416 = vand.u32 2147483647, %v4277
  %vm4417 = vcmp.eq.f32.partialorder %v4416, 8.507059e+37
  %v4418 = vand.u32 %v4277, 2147483648
  %v4419 = vor.u32 1.1754944e-38, %v4418
  %v4420 = vsel %vm4417, %v4419, %v4415
  %v4421 = vmul.f32 %v4237, %v4420
  %v4422 = vrcp.pop %v4280
  %v4423 = vmul.f32 %v4280, %v4422
  %v4424 = vsub.f32 1.0, %v4423
  %v4425 = vmul.f32 %v4422, %v4424
  %v4426 = vadd.f32 %v4422, %v4425
  %vm4427 = vweird.f32 %v4280
  %vm4428 = vweird.f32 %v4422
  %vm4429 = vmor %vm4427, %vm4428
  %v4430 = vsel %vm4429, %v4422, %v4426
  %v4431 = vand.u32 2147483647, %v4280
  %vm4432 = vcmp.eq.f32.partialorder %v4431, 8.507059e+37
  %v4433 = vand.u32 %v4280, 2147483648
  %v4434 = vor.u32 1.1754944e-38, %v4433
  %v4435 = vsel %vm4432, %v4434, %v4430
  %v4436 = vmul.f32 %v4239, %v4435
  %v4437 = vrcp.pop %v4283
  %v4438 = vmul.f32 %v4283, %v4437
  %v4439 = vsub.f32 1.0, %v4438
  %v4440 = vmul.f32 %v4437, %v4439
  %v4441 = vadd.f32 %v4437, %v4440
  %vm4442 = vweird.f32 %v4283
  %vm4443 = vweird.f32 %v4437
  %vm4444 = vmor %vm4442, %vm4443
  %v4445 = vsel %vm4444, %v4437, %v4441
  %v4446 = vand.u32 2147483647, %v4283
  %vm4447 = vcmp.eq.f32.partialorder %v4446, 8.507059e+37
  %v4448 = vand.u32 %v4283, 2147483648
  %v4449 = vor.u32 1.1754944e-38, %v4448
  %v4450 = vsel %vm4447, %v4449, %v4445
  %v4451 = vmul.f32 %v4241, %v4450
  %v4452 = vrcp.pop %v4286
  %v4453 = vmul.f32 %v4286, %v4452
  %v4454 = vsub.f32 1.0, %v4453
  %v4455 = vmul.f32 %v4452, %v4454
  %v4456 = vadd.f32 %v4452, %v4455
  %vm4457 = vweird.f32 %v4286
  %vm4458 = vweird.f32 %v4452
  %vm4459 = vmor %vm4457, %vm4458
  %v4460 = vsel %vm4459, %v4452, %v4456
  %v4461 = vand.u32 2147483647, %v4286
  %vm4462 = vcmp.eq.f32.partialorder %v4461, 8.507059e+37
  %v4463 = vand.u32 %v4286, 2147483648
  %v4464 = vor.u32 1.1754944e-38, %v4463
  %v4465 = vsel %vm4462, %v4464, %v4460
  %v4466 = vmul.f32 %v4243, %v4465
  %v4467 = vrcp.pop %v4289
  %v4468 = vmul.f32 %v4289, %v4467
  %v4469 = vsub.f32 1.0, %v4468
  %v4470 = vmul.f32 %v4467, %v4469
  %v4471 = vadd.f32 %v4467, %v4470
  %vm4472 = vweird.f32 %v4289
  %vm4473 = vweird.f32 %v4467
  %vm4474 = vmor %vm4472, %vm4473
  %v4475 = vsel %vm4474, %v4467, %v4471
  %v4476 = vand.u32 2147483647, %v4289
  %vm4477 = vcmp.eq.f32.partialorder %v4476, 8.507059e+37
  %v4478 = vand.u32 %v4289, 2147483648
  %v4479 = vor.u32 1.1754944e-38, %v4478
  %v4480 = vsel %vm4477, %v4479, %v4475
  %v4481 = vmul.f32 %v4245, %v4480
  %v4482 = vrcp.pop %v4292
  %v4483 = vmul.f32 %v4292, %v4482
  %v4484 = vsub.f32 1.0, %v4483
  %v4485 = vmul.f32 %v4482, %v4484
  %v4486 = vadd.f32 %v4482, %v4485
  %vm4487 = vweird.f32 %v4292
  %vm4488 = vweird.f32 %v4482
  %vm4489 = vmor %vm4487, %vm4488
  %v4490 = vsel %vm4489, %v4482, %v4486
  %v4491 = vand.u32 2147483647, %v4292
  %vm4492 = vcmp.eq.f32.partialorder %v4491, 8.507059e+37
  %v4493 = vand.u32 %v4292, 2147483648
  %v4494 = vor.u32 1.1754944e-38, %v4493
  %v4495 = vsel %vm4492, %v4494, %v4490
  %v4496 = vmul.f32 %v4247, %v4495
  %v4497 = vrcp.pop %v4295
  %v4498 = vmul.f32 %v4295, %v4497
  %v4499 = vsub.f32 1.0, %v4498
  %v4500 = vmul.f32 %v4497, %v4499
  %v4501 = vadd.f32 %v4497, %v4500
  %vm4502 = vweird.f32 %v4295
  %vm4503 = vweird.f32 %v4497
  %vm4504 = vmor %vm4502, %vm4503
  %v4505 = vsel %vm4504, %v4497, %v4501
  %v4506 = vand.u32 2147483647, %v4295
  %vm4507 = vcmp.eq.f32.partialorder %v4506, 8.507059e+37
  %v4508 = vand.u32 %v4295, 2147483648
  %v4509 = vor.u32 1.1754944e-38, %v4508
  %v4510 = vsel %vm4507, %v4509, %v4505
  %v4511 = vmul.f32 %v4249, %v4510
  %v4512 = vrcp.pop %v4298
  %v4513 = vmul.f32 %v4298, %v4512
  %v4514 = vsub.f32 1.0, %v4513
  %v4515 = vmul.f32 %v4512, %v4514
  %v4516 = vadd.f32 %v4512, %v4515
  %vm4517 = vweird.f32 %v4298
  %vm4518 = vweird.f32 %v4512
  %vm4519 = vmor %vm4517, %vm4518
  %v4520 = vsel %vm4519, %v4512, %v4516
  %v4521 = vand.u32 2147483647, %v4298
  %vm4522 = vcmp.eq.f32.partialorder %v4521, 8.507059e+37
  %v4523 = vand.u32 %v4298, 2147483648
  %v4524 = vor.u32 1.1754944e-38, %v4523
  %v4525 = vsel %vm4522, %v4524, %v4520
  %v4526 = vmul.f32 %v4251, %v4525
  %v4527 = vrcp.pop %v4301
  %v4528 = vmul.f32 %v4301, %v4527
  %v4529 = vsub.f32 1.0, %v4528
  %v4530 = vmul.f32 %v4527, %v4529
  %v4531 = vadd.f32 %v4527, %v4530
  %vm4532 = vweird.f32 %v4301
  %vm4533 = vweird.f32 %v4527
  %vm4534 = vmor %vm4532, %vm4533
  %v4535 = vsel %vm4534, %v4527, %v4531
  %v4536 = vand.u32 2147483647, %v4301
  %vm4537 = vcmp.eq.f32.partialorder %v4536, 8.507059e+37
  %v4538 = vand.u32 %v4301, 2147483648
  %v4539 = vor.u32 1.1754944e-38, %v4538
  %v4540 = vsel %vm4537, %v4539, %v4535
  %v4541 = vmul.f32 %v4253, %v4540
  %v4543 = vsel %vm4157, %v4316, 0
  %4545 = vmatpush.msra.mxu0 0.0
  %4546 = vmatpush.msra.mxu0 0.0
  %4547 = vmatpush.msra.mxu0 0.0
  %4548 = vmatpush.msra.mxu0 0.0
  %4549 = vmatpush.msra.mxu0 0.0
  %4550 = vmatpush.msra.mxu0 0.0
  %4551 = vmatpush.msra.mxu0 0.0
  %4552 = vmatpush.msra.mxu0 0.0
  %4553 = vmatpush.msra.mxu0 0.0
  %4554 = vmatpush.msra.mxu0 0.0
  %4555 = vmatpush.msra.mxu0 0.0
  %4556 = vmatpush.msra.mxu0 0.0
  %4557 = vmatpush.msra.mxu0 0.0
  %4558 = vmatpush.msra.mxu0 0.0
  %4559 = vmatpush.msra.mxu0 0.0
  %4560 = vmatpush.msra.mxu0 %v3613
  %4561 = vmatmul.f32.gmra.mxu0 %v4543
  %v4562 = vpop.f32.mrf.mxu0
  %v4563 = vadd.f32 0.0, %v4562
  %4564 = vdwg.mxu0
  %v4566 = vsel %vm4157, %v4331, 0
  %4568 = vmatpush.msra.mxu0 0.0
  %4569 = vmatpush.msra.mxu0 0.0
  %4570 = vmatpush.msra.mxu0 0.0
  %4571 = vmatpush.msra.mxu0 0.0
  %4572 = vmatpush.msra.mxu0 0.0
  %4573 = vmatpush.msra.mxu0 0.0
  %4574 = vmatpush.msra.mxu0 0.0
  %4575 = vmatpush.msra.mxu0 0.0
  %4576 = vmatpush.msra.mxu0 0.0
  %4577 = vmatpush.msra.mxu0 0.0
  %4578 = vmatpush.msra.mxu0 0.0
  %4579 = vmatpush.msra.mxu0 0.0
  %4580 = vmatpush.msra.mxu0 0.0
  %4581 = vmatpush.msra.mxu0 0.0
  %4582 = vmatpush.msra.mxu0 0.0
  %4583 = vmatpush.msra.mxu0 %v3615
  %4584 = vmatmul.f32.gmra.mxu0 %v4566
  %v4585 = vpop.f32.mrf.mxu0
  %v4586 = vadd.f32 0.0, %v4585
  %4587 = vdwg.mxu0
  %v4589 = vsel %vm4157, %v4346, 0
  %4591 = vmatpush.msra.mxu0 0.0
  %4592 = vmatpush.msra.mxu0 0.0
  %4593 = vmatpush.msra.mxu0 0.0
  %4594 = vmatpush.msra.mxu0 0.0
  %4595 = vmatpush.msra.mxu0 0.0
  %4596 = vmatpush.msra.mxu0 0.0
  %4597 = vmatpush.msra.mxu0 0.0
  %4598 = vmatpush.msra.mxu0 0.0
  %4599 = vmatpush.msra.mxu0 0.0
  %4600 = vmatpush.msra.mxu0 0.0
  %4601 = vmatpush.msra.mxu0 0.0
  %4602 = vmatpush.msra.mxu0 0.0
  %4603 = vmatpush.msra.mxu0 0.0
  %4604 = vmatpush.msra.mxu0 0.0
  %4605 = vmatpush.msra.mxu0 0.0
  %4606 = vmatpush.msra.mxu0 %v3617
  %4607 = vmatmul.f32.gmra.mxu0 %v4589
  %v4608 = vpop.f32.mrf.mxu0
  %v4609 = vadd.f32 0.0, %v4608
  %4610 = vdwg.mxu0
  %v4612 = vsel %vm4157, %v4361, 0
  %4614 = vmatpush.msra.mxu0 0.0
  %4615 = vmatpush.msra.mxu0 0.0
  %4616 = vmatpush.msra.mxu0 0.0
  %4617 = vmatpush.msra.mxu0 0.0
  %4618 = vmatpush.msra.mxu0 0.0
  %4619 = vmatpush.msra.mxu0 0.0
  %4620 = vmatpush.msra.mxu0 0.0
  %4621 = vmatpush.msra.mxu0 0.0
  %4622 = vmatpush.msra.mxu0 0.0
  %4623 = vmatpush.msra.mxu0 0.0
  %4624 = vmatpush.msra.mxu0 0.0
  %4625 = vmatpush.msra.mxu0 0.0
  %4626 = vmatpush.msra.mxu0 0.0
  %4627 = vmatpush.msra.mxu0 0.0
  %4628 = vmatpush.msra.mxu0 0.0
  %4629 = vmatpush.msra.mxu0 %v3619
  %4630 = vmatmul.f32.gmra.mxu0 %v4612
  %v4631 = vpop.f32.mrf.mxu0
  %v4632 = vadd.f32 0.0, %v4631
  %4633 = vdwg.mxu0
  %v4635 = vsel %vm4157, %v4376, 0
  %4637 = vmatpush.msra.mxu0 0.0
  %4638 = vmatpush.msra.mxu0 0.0
  %4639 = vmatpush.msra.mxu0 0.0
  %4640 = vmatpush.msra.mxu0 0.0
  %4641 = vmatpush.msra.mxu0 0.0
  %4642 = vmatpush.msra.mxu0 0.0
  %4643 = vmatpush.msra.mxu0 0.0
  %4644 = vmatpush.msra.mxu0 0.0
  %4645 = vmatpush.msra.mxu0 0.0
  %4646 = vmatpush.msra.mxu0 0.0
  %4647 = vmatpush.msra.mxu0 0.0
  %4648 = vmatpush.msra.mxu0 0.0
  %4649 = vmatpush.msra.mxu0 0.0
  %4650 = vmatpush.msra.mxu0 0.0
  %4651 = vmatpush.msra.mxu0 0.0
  %4652 = vmatpush.msra.mxu0 %v3621
  %4653 = vmatmul.f32.gmra.mxu0 %v4635
  %v4654 = vpop.f32.mrf.mxu0
  %v4655 = vadd.f32 0.0, %v4654
  %4656 = vdwg.mxu0
  %v4658 = vsel %vm4157, %v4391, 0
  %4660 = vmatpush.msra.mxu0 0.0
  %4661 = vmatpush.msra.mxu0 0.0
  %4662 = vmatpush.msra.mxu0 0.0
  %4663 = vmatpush.msra.mxu0 0.0
  %4664 = vmatpush.msra.mxu0 0.0
  %4665 = vmatpush.msra.mxu0 0.0
  %4666 = vmatpush.msra.mxu0 0.0
  %4667 = vmatpush.msra.mxu0 0.0
  %4668 = vmatpush.msra.mxu0 0.0
  %4669 = vmatpush.msra.mxu0 0.0
  %4670 = vmatpush.msra.mxu0 0.0
  %4671 = vmatpush.msra.mxu0 0.0
  %4672 = vmatpush.msra.mxu0 0.0
  %4673 = vmatpush.msra.mxu0 0.0
  %4674 = vmatpush.msra.mxu0 0.0
  %4675 = vmatpush.msra.mxu0 %v3623
  %4676 = vmatmul.f32.gmra.mxu0 %v4658
  %v4677 = vpop.f32.mrf.mxu0
  %v4678 = vadd.f32 0.0, %v4677
  %4679 = vdwg.mxu0
  %v4681 = vsel %vm4157, %v4406, 0
  %4683 = vmatpush.msra.mxu0 0.0
  %4684 = vmatpush.msra.mxu0 0.0
  %4685 = vmatpush.msra.mxu0 0.0
  %4686 = vmatpush.msra.mxu0 0.0
  %4687 = vmatpush.msra.mxu0 0.0
  %4688 = vmatpush.msra.mxu0 0.0
  %4689 = vmatpush.msra.mxu0 0.0
  %4690 = vmatpush.msra.mxu0 0.0
  %4691 = vmatpush.msra.mxu0 0.0
  %4692 = vmatpush.msra.mxu0 0.0
  %4693 = vmatpush.msra.mxu0 0.0
  %4694 = vmatpush.msra.mxu0 0.0
  %4695 = vmatpush.msra.mxu0 0.0
  %4696 = vmatpush.msra.mxu0 0.0
  %4697 = vmatpush.msra.mxu0 0.0
  %4698 = vmatpush.msra.mxu0 %v3625
  %4699 = vmatmul.f32.gmra.mxu0 %v4681
  %v4700 = vpop.f32.mrf.mxu0
  %v4701 = vadd.f32 0.0, %v4700
  %4702 = vdwg.mxu0
  %v4704 = vsel %vm4157, %v4421, 0
  %4706 = vmatpush.msra.mxu0 0.0
  %4707 = vmatpush.msra.mxu0 0.0
  %4708 = vmatpush.msra.mxu0 0.0
  %4709 = vmatpush.msra.mxu0 0.0
  %4710 = vmatpush.msra.mxu0 0.0
  %4711 = vmatpush.msra.mxu0 0.0
  %4712 = vmatpush.msra.mxu0 0.0
  %4713 = vmatpush.msra.mxu0 0.0
  %4714 = vmatpush.msra.mxu0 0.0
  %4715 = vmatpush.msra.mxu0 0.0
  %4716 = vmatpush.msra.mxu0 0.0
  %4717 = vmatpush.msra.mxu0 0.0
  %4718 = vmatpush.msra.mxu0 0.0
  %4719 = vmatpush.msra.mxu0 0.0
  %4720 = vmatpush.msra.mxu0 0.0
  %4721 = vmatpush.msra.mxu0 %v3627
  %4722 = vmatmul.f32.gmra.mxu0 %v4704
  %v4723 = vpop.f32.mrf.mxu0
  %v4724 = vadd.f32 0.0, %v4723
  %4725 = vdwg.mxu0
  %v4727 = vsel %vm4157, %v4436, 0
  %4729 = vmatpush.msra.mxu0 0.0
  %4730 = vmatpush.msra.mxu0 0.0
  %4731 = vmatpush.msra.mxu0 0.0
  %4732 = vmatpush.msra.mxu0 0.0
  %4733 = vmatpush.msra.mxu0 0.0
  %4734 = vmatpush.msra.mxu0 0.0
  %4735 = vmatpush.msra.mxu0 0.0
  %4736 = vmatpush.msra.mxu0 0.0
  %4737 = vmatpush.msra.mxu0 0.0
  %4738 = vmatpush.msra.mxu0 0.0
  %4739 = vmatpush.msra.mxu0 0.0
  %4740 = vmatpush.msra.mxu0 0.0
  %4741 = vmatpush.msra.mxu0 0.0
  %4742 = vmatpush.msra.mxu0 0.0
  %4743 = vmatpush.msra.mxu0 0.0
  %4744 = vmatpush.msra.mxu0 %v3725
  %4745 = vmatmul.f32.gmra.mxu0 %v4727
  %v4746 = vpop.f32.mrf.mxu0
  %v4747 = vadd.f32 0.0, %v4746
  %4748 = vdwg.mxu0
  %v4750 = vsel %vm4157, %v4451, 0
  %4752 = vmatpush.msra.mxu0 0.0
  %4753 = vmatpush.msra.mxu0 0.0
  %4754 = vmatpush.msra.mxu0 0.0
  %4755 = vmatpush.msra.mxu0 0.0
  %4756 = vmatpush.msra.mxu0 0.0
  %4757 = vmatpush.msra.mxu0 0.0
  %4758 = vmatpush.msra.mxu0 0.0
  %4759 = vmatpush.msra.mxu0 0.0
  %4760 = vmatpush.msra.mxu0 0.0
  %4761 = vmatpush.msra.mxu0 0.0
  %4762 = vmatpush.msra.mxu0 0.0
  %4763 = vmatpush.msra.mxu0 0.0
  %4764 = vmatpush.msra.mxu0 0.0
  %4765 = vmatpush.msra.mxu0 0.0
  %4766 = vmatpush.msra.mxu0 0.0
  %4767 = vmatpush.msra.mxu0 %v3727
  %4768 = vmatmul.f32.gmra.mxu0 %v4750
  %v4769 = vpop.f32.mrf.mxu0
  %v4770 = vadd.f32 0.0, %v4769
  %4771 = vdwg.mxu0
  %v4773 = vsel %vm4157, %v4466, 0
  %4775 = vmatpush.msra.mxu0 0.0
  %4776 = vmatpush.msra.mxu0 0.0
  %4777 = vmatpush.msra.mxu0 0.0
  %4778 = vmatpush.msra.mxu0 0.0
  %4779 = vmatpush.msra.mxu0 0.0
  %4780 = vmatpush.msra.mxu0 0.0
  %4781 = vmatpush.msra.mxu0 0.0
  %4782 = vmatpush.msra.mxu0 0.0
  %4783 = vmatpush.msra.mxu0 0.0
  %4784 = vmatpush.msra.mxu0 0.0
  %4785 = vmatpush.msra.mxu0 0.0
  %4786 = vmatpush.msra.mxu0 0.0
  %4787 = vmatpush.msra.mxu0 0.0
  %4788 = vmatpush.msra.mxu0 0.0
  %4789 = vmatpush.msra.mxu0 0.0
  %4790 = vmatpush.msra.mxu0 %v3729
  %4791 = vmatmul.f32.gmra.mxu0 %v4773
  %v4792 = vpop.f32.mrf.mxu0
  %v4793 = vadd.f32 0.0, %v4792
  %4794 = vdwg.mxu0
  %v4796 = vsel %vm4157, %v4481, 0
  %4798 = vmatpush.msra.mxu0 0.0
  %4799 = vmatpush.msra.mxu0 0.0
  %4800 = vmatpush.msra.mxu0 0.0
  %4801 = vmatpush.msra.mxu0 0.0
  %4802 = vmatpush.msra.mxu0 0.0
  %4803 = vmatpush.msra.mxu0 0.0
  %4804 = vmatpush.msra.mxu0 0.0
  %4805 = vmatpush.msra.mxu0 0.0
  %4806 = vmatpush.msra.mxu0 0.0
  %4807 = vmatpush.msra.mxu0 0.0
  %4808 = vmatpush.msra.mxu0 0.0
  %4809 = vmatpush.msra.mxu0 0.0
  %4810 = vmatpush.msra.mxu0 0.0
  %4811 = vmatpush.msra.mxu0 0.0
  %4812 = vmatpush.msra.mxu0 0.0
  %4813 = vmatpush.msra.mxu0 %v3731
  %4814 = vmatmul.f32.gmra.mxu0 %v4796
  %v4815 = vpop.f32.mrf.mxu0
  %v4816 = vadd.f32 0.0, %v4815
  %4817 = vdwg.mxu0
  %v4819 = vsel %vm4157, %v4496, 0
  %4821 = vmatpush.msra.mxu0 0.0
  %4822 = vmatpush.msra.mxu0 0.0
  %4823 = vmatpush.msra.mxu0 0.0
  %4824 = vmatpush.msra.mxu0 0.0
  %4825 = vmatpush.msra.mxu0 0.0
  %4826 = vmatpush.msra.mxu0 0.0
  %4827 = vmatpush.msra.mxu0 0.0
  %4828 = vmatpush.msra.mxu0 0.0
  %4829 = vmatpush.msra.mxu0 0.0
  %4830 = vmatpush.msra.mxu0 0.0
  %4831 = vmatpush.msra.mxu0 0.0
  %4832 = vmatpush.msra.mxu0 0.0
  %4833 = vmatpush.msra.mxu0 0.0
  %4834 = vmatpush.msra.mxu0 0.0
  %4835 = vmatpush.msra.mxu0 0.0
  %4836 = vmatpush.msra.mxu0 %v3733
  %4837 = vmatmul.f32.gmra.mxu0 %v4819
  %v4838 = vpop.f32.mrf.mxu0
  %v4839 = vadd.f32 0.0, %v4838
  %4840 = vdwg.mxu0
  %v4842 = vsel %vm4157, %v4511, 0
  %4844 = vmatpush.msra.mxu0 0.0
  %4845 = vmatpush.msra.mxu0 0.0
  %4846 = vmatpush.msra.mxu0 0.0
  %4847 = vmatpush.msra.mxu0 0.0
  %4848 = vmatpush.msra.mxu0 0.0
  %4849 = vmatpush.msra.mxu0 0.0
  %4850 = vmatpush.msra.mxu0 0.0
  %4851 = vmatpush.msra.mxu0 0.0
  %4852 = vmatpush.msra.mxu0 0.0
  %4853 = vmatpush.msra.mxu0 0.0
  %4854 = vmatpush.msra.mxu0 0.0
  %4855 = vmatpush.msra.mxu0 0.0
  %4856 = vmatpush.msra.mxu0 0.0
  %4857 = vmatpush.msra.mxu0 0.0
  %4858 = vmatpush.msra.mxu0 0.0
  %4859 = vmatpush.msra.mxu0 %v3735
  %4860 = vmatmul.f32.gmra.mxu0 %v4842
  %v4861 = vpop.f32.mrf.mxu0
  %v4862 = vadd.f32 0.0, %v4861
  %4863 = vdwg.mxu0
  %v4865 = vsel %vm4157, %v4526, 0
  %4867 = vmatpush.msra.mxu0 0.0
  %4868 = vmatpush.msra.mxu0 0.0
  %4869 = vmatpush.msra.mxu0 0.0
  %4870 = vmatpush.msra.mxu0 0.0
  %4871 = vmatpush.msra.mxu0 0.0
  %4872 = vmatpush.msra.mxu0 0.0
  %4873 = vmatpush.msra.mxu0 0.0
  %4874 = vmatpush.msra.mxu0 0.0
  %4875 = vmatpush.msra.mxu0 0.0
  %4876 = vmatpush.msra.mxu0 0.0
  %4877 = vmatpush.msra.mxu0 0.0
  %4878 = vmatpush.msra.mxu0 0.0
  %4879 = vmatpush.msra.mxu0 0.0
  %4880 = vmatpush.msra.mxu0 0.0
  %4881 = vmatpush.msra.mxu0 0.0
  %4882 = vmatpush.msra.mxu0 %v3737
  %4883 = vmatmul.f32.gmra.mxu0 %v4865
  %v4884 = vpop.f32.mrf.mxu0
  %v4885 = vadd.f32 0.0, %v4884
  %4886 = vdwg.mxu0
  %v4888 = vsel %vm4157, %v4541, 0
  %4890 = vmatpush.msra.mxu0 0.0
  %4891 = vmatpush.msra.mxu0 0.0
  %4892 = vmatpush.msra.mxu0 0.0
  %4893 = vmatpush.msra.mxu0 0.0
  %4894 = vmatpush.msra.mxu0 0.0
  %4895 = vmatpush.msra.mxu0 0.0
  %4896 = vmatpush.msra.mxu0 0.0
  %4897 = vmatpush.msra.mxu0 0.0
  %4898 = vmatpush.msra.mxu0 0.0
  %4899 = vmatpush.msra.mxu0 0.0
  %4900 = vmatpush.msra.mxu0 0.0
  %4901 = vmatpush.msra.mxu0 0.0
  %4902 = vmatpush.msra.mxu0 0.0
  %4903 = vmatpush.msra.mxu0 0.0
  %4904 = vmatpush.msra.mxu0 0.0
  %4905 = vmatpush.msra.mxu0 %v3739
  %4906 = vmatmul.f32.gmra.mxu0 %v4888
  %v4907 = vpop.f32.mrf.mxu0
  %v4908 = vadd.f32 0.0, %v4907
  %4909 = vdwg.mxu0
  %v4910 = vrot.slane %v4609, 4
  %v4911 = vsel %vm2300, %v4910, %v4563
  %v4912 = vrot.slane %v4563, 4
  %v4913 = vsel %vm2300, %v4609, %v4912
  %v4915 = vunpack.c.l.s4 1983009808
  %v4916 = vunpack.c.0.s8 %v4915
  %v4917 = vperm.slane %v4911, %v4916
  %v4919 = vunpack.c.l.s4 1983009808
  %v4920 = vunpack.c.0.s8 %v4919
  %v4921 = vperm.slane %v4913, %v4920
  %v4922 = vrot.slane %v4632, 4
  %v4923 = vsel %vm2300, %v4922, %v4586
  %v4924 = vrot.slane %v4586, 4
  %v4925 = vsel %vm2300, %v4632, %v4924
  %v4927 = vunpack.c.l.s4 1983009808
  %v4928 = vunpack.c.0.s8 %v4927
  %v4929 = vperm.slane %v4923, %v4928
  %v4931 = vunpack.c.l.s4 1983009808
  %v4932 = vunpack.c.0.s8 %v4931
  %v4933 = vperm.slane %v4925, %v4932
  %v4934 = vrot.slane %v4701, 4
  %v4935 = vsel %vm2300, %v4934, %v4655
  %v4936 = vrot.slane %v4655, 4
  %v4937 = vsel %vm2300, %v4701, %v4936
  %v4939 = vunpack.c.l.s4 1983009808
  %v4940 = vunpack.c.0.s8 %v4939
  %v4941 = vperm.slane %v4935, %v4940
  %v4943 = vunpack.c.l.s4 1983009808
  %v4944 = vunpack.c.0.s8 %v4943
  %v4945 = vperm.slane %v4937, %v4944
  %v4946 = vrot.slane %v4724, 4
  %v4947 = vsel %vm2300, %v4946, %v4678
  %v4948 = vrot.slane %v4678, 4
  %v4949 = vsel %vm2300, %v4724, %v4948
  %v4951 = vunpack.c.l.s4 1983009808
  %v4952 = vunpack.c.0.s8 %v4951
  %v4953 = vperm.slane %v4947, %v4952
  %v4955 = vunpack.c.l.s4 1983009808
  %v4956 = vunpack.c.0.s8 %v4955
  %v4957 = vperm.slane %v4949, %v4956
  %v4958 = vrot.slane %v4929, 4
  %v4959 = vsel %vm2300, %v4958, %v4917
  %v4960 = vrot.slane %v4917, 4
  %v4961 = vsel %vm2300, %v4929, %v4960
  %v4963 = vunpack.c.l.s4 1934713408
  %v4964 = vunpack.c.0.s8 %v4963
  %v4965 = vperm.slane %v4959, %v4964
  %v4967 = vunpack.c.l.s4 1934713408
  %v4968 = vunpack.c.0.s8 %v4967
  %v4969 = vperm.slane %v4961, %v4968
  %v4970 = vrot.slane %v4933, 4
  %v4971 = vsel %vm2300, %v4970, %v4921
  %v4972 = vrot.slane %v4921, 4
  %v4973 = vsel %vm2300, %v4933, %v4972
  %v4975 = vunpack.c.l.s4 1934713408
  %v4976 = vunpack.c.0.s8 %v4975
  %v4977 = vperm.slane %v4971, %v4976
  %v4979 = vunpack.c.l.s4 1934713408
  %v4980 = vunpack.c.0.s8 %v4979
  %v4981 = vperm.slane %v4973, %v4980
  %v4982 = vrot.slane %v4953, 4
  %v4983 = vsel %vm2300, %v4982, %v4941
  %v4984 = vrot.slane %v4941, 4
  %v4985 = vsel %vm2300, %v4953, %v4984
  %v4987 = vunpack.c.l.s4 1934713408
  %v4988 = vunpack.c.0.s8 %v4987
  %v4989 = vperm.slane %v4983, %v4988
  %v4991 = vunpack.c.l.s4 1934713408
  %v4992 = vunpack.c.0.s8 %v4991
  %v4993 = vperm.slane %v4985, %v4992
  %v4994 = vrot.slane %v4957, 4
  %v4995 = vsel %vm2300, %v4994, %v4945
  %v4996 = vrot.slane %v4945, 4
  %v4997 = vsel %vm2300, %v4957, %v4996
  %v4999 = vunpack.c.l.s4 1934713408
  %v5000 = vunpack.c.0.s8 %v4999
  %v5001 = vperm.slane %v4995, %v5000
  %v5003 = vunpack.c.l.s4 1934713408
  %v5004 = vunpack.c.0.s8 %v5003
  %v5005 = vperm.slane %v4997, %v5004
  %v5006 = vrot.slane %v4989, 4
  %v5007 = vsel %vm2300, %v5006, %v4965
  %v5008 = vrot.slane %v4965, 4
  %v5009 = vsel %vm2300, %v4989, %v5008
  %v5010 = vrot.slane %v4993, 4
  %v5011 = vsel %vm2300, %v5010, %v4969
  %v5012 = vrot.slane %v4969, 4
  %v5013 = vsel %vm2300, %v4993, %v5012
  %v5014 = vrot.slane %v5001, 4
  %v5015 = vsel %vm2300, %v5014, %v4977
  %v5016 = vrot.slane %v4977, 4
  %v5017 = vsel %vm2300, %v5001, %v5016
  %v5018 = vrot.slane %v5005, 4
  %v5019 = vsel %vm2300, %v5018, %v4981
  %v5020 = vrot.slane %v4981, 4
  %v5021 = vsel %vm2300, %v5005, %v5020
  %v5022 = vrot.slane %v4793, 4
  %v5023 = vsel %vm2300, %v5022, %v4747
  %v5024 = vrot.slane %v4747, 4
  %v5025 = vsel %vm2300, %v4793, %v5024
  %v5027 = vunpack.c.l.s4 1983009808
  %v5028 = vunpack.c.0.s8 %v5027
  %v5029 = vperm.slane %v5023, %v5028
  %v5031 = vunpack.c.l.s4 1983009808
  %v5032 = vunpack.c.0.s8 %v5031
  %v5033 = vperm.slane %v5025, %v5032
  %v5034 = vrot.slane %v4816, 4
  %v5035 = vsel %vm2300, %v5034, %v4770
  %v5036 = vrot.slane %v4770, 4
  %v5037 = vsel %vm2300, %v4816, %v5036
  %v5039 = vunpack.c.l.s4 1983009808
  %v5040 = vunpack.c.0.s8 %v5039
  %v5041 = vperm.slane %v5035, %v5040
  %v5043 = vunpack.c.l.s4 1983009808
  %v5044 = vunpack.c.0.s8 %v5043
  %v5045 = vperm.slane %v5037, %v5044
  %v5046 = vrot.slane %v4885, 4
  %v5047 = vsel %vm2300, %v5046, %v4839
  %v5048 = vrot.slane %v4839, 4
  %v5049 = vsel %vm2300, %v4885, %v5048
  %v5051 = vunpack.c.l.s4 1983009808
  %v5052 = vunpack.c.0.s8 %v5051
  %v5053 = vperm.slane %v5047, %v5052
  %v5055 = vunpack.c.l.s4 1983009808
  %v5056 = vunpack.c.0.s8 %v5055
  %v5057 = vperm.slane %v5049, %v5056
  %v5058 = vrot.slane %v4908, 4
  %v5059 = vsel %vm2300, %v5058, %v4862
  %v5060 = vrot.slane %v4862, 4
  %v5061 = vsel %vm2300, %v4908, %v5060
  %v5063 = vunpack.c.l.s4 1983009808
  %v5064 = vunpack.c.0.s8 %v5063
  %v5065 = vperm.slane %v5059, %v5064
  %v5067 = vunpack.c.l.s4 1983009808
  %v5068 = vunpack.c.0.s8 %v5067
  %v5069 = vperm.slane %v5061, %v5068
  %v5070 = vrot.slane %v5041, 4
  %v5071 = vsel %vm2300, %v5070, %v5029
  %v5072 = vrot.slane %v5029, 4
  %v5073 = vsel %vm2300, %v5041, %v5072
  %v5075 = vunpack.c.l.s4 1934713408
  %v5076 = vunpack.c.0.s8 %v5075
  %v5077 = vperm.slane %v5071, %v5076
  %v5079 = vunpack.c.l.s4 1934713408
  %v5080 = vunpack.c.0.s8 %v5079
  %v5081 = vperm.slane %v5073, %v5080
  %v5082 = vrot.slane %v5045, 4
  %v5083 = vsel %vm2300, %v5082, %v5033
  %v5084 = vrot.slane %v5033, 4
  %v5085 = vsel %vm2300, %v5045, %v5084
  %v5087 = vunpack.c.l.s4 1934713408
  %v5088 = vunpack.c.0.s8 %v5087
  %v5089 = vperm.slane %v5083, %v5088
  %v5091 = vunpack.c.l.s4 1934713408
  %v5092 = vunpack.c.0.s8 %v5091
  %v5093 = vperm.slane %v5085, %v5092
  %v5094 = vrot.slane %v5065, 4
  %v5095 = vsel %vm2300, %v5094, %v5053
  %v5096 = vrot.slane %v5053, 4
  %v5097 = vsel %vm2300, %v5065, %v5096
  %v5099 = vunpack.c.l.s4 1934713408
  %v5100 = vunpack.c.0.s8 %v5099
  %v5101 = vperm.slane %v5095, %v5100
  %v5103 = vunpack.c.l.s4 1934713408
  %v5104 = vunpack.c.0.s8 %v5103
  %v5105 = vperm.slane %v5097, %v5104
  %v5106 = vrot.slane %v5069, 4
  %v5107 = vsel %vm2300, %v5106, %v5057
  %v5108 = vrot.slane %v5057, 4
  %v5109 = vsel %vm2300, %v5069, %v5108
  %v5111 = vunpack.c.l.s4 1934713408
  %v5112 = vunpack.c.0.s8 %v5111
  %v5113 = vperm.slane %v5107, %v5112
  %v5115 = vunpack.c.l.s4 1934713408
  %v5116 = vunpack.c.0.s8 %v5115
  %v5117 = vperm.slane %v5109, %v5116
  %v5118 = vrot.slane %v5101, 4
  %v5119 = vsel %vm2300, %v5118, %v5077
  %v5120 = vrot.slane %v5077, 4
  %v5121 = vsel %vm2300, %v5101, %v5120
  %v5122 = vrot.slane %v5105, 4
  %v5123 = vsel %vm2300, %v5122, %v5081
  %v5124 = vrot.slane %v5081, 4
  %v5125 = vsel %vm2300, %v5105, %v5124
  %v5126 = vrot.slane %v5113, 4
  %v5127 = vsel %vm2300, %v5126, %v5089
  %v5128 = vrot.slane %v5089, 4
  %v5129 = vsel %vm2300, %v5113, %v5128
  %v5130 = vrot.slane %v5117, 4
  %v5131 = vsel %vm2300, %v5130, %v5093
  %v5132 = vrot.slane %v5093, 4
  %v5133 = vsel %vm2300, %v5117, %v5132
  %v5134 = vrot.slane %v5011, 4
  %v5135 = vsel %vm2300, %v5134, %v5007
  %v5136 = vrot.slane %v5007, 4
  %v5137 = vsel %vm2300, %v5011, %v5136
  %v5139 = vunpack.c.l.s4 1983009808
  %v5140 = vunpack.c.0.s8 %v5139
  %v5141 = vperm.slane %v5135, %v5140
  %v5143 = vunpack.c.l.s4 1983009808
  %v5144 = vunpack.c.0.s8 %v5143
  %v5145 = vperm.slane %v5137, %v5144
  %v5146 = vrot.slane %v5013, 4
  %v5147 = vsel %vm2300, %v5146, %v5009
  %v5148 = vrot.slane %v5009, 4
  %v5149 = vsel %vm2300, %v5013, %v5148
  %v5151 = vunpack.c.l.s4 1983009808
  %v5152 = vunpack.c.0.s8 %v5151
  %v5153 = vperm.slane %v5147, %v5152
  %v5155 = vunpack.c.l.s4 1983009808
  %v5156 = vunpack.c.0.s8 %v5155
  %v5157 = vperm.slane %v5149, %v5156
  %v5158 = vrot.slane %v5019, 4
  %v5159 = vsel %vm2300, %v5158, %v5015
  %v5160 = vrot.slane %v5015, 4
  %v5161 = vsel %vm2300, %v5019, %v5160
  %v5163 = vunpack.c.l.s4 1983009808
  %v5164 = vunpack.c.0.s8 %v5163
  %v5165 = vperm.slane %v5159, %v5164
  %v5167 = vunpack.c.l.s4 1983009808
  %v5168 = vunpack.c.0.s8 %v5167
  %v5169 = vperm.slane %v5161, %v5168
  %v5170 = vrot.slane %v5021, 4
  %v5171 = vsel %vm2300, %v5170, %v5017
  %v5172 = vrot.slane %v5017, 4
  %v5173 = vsel %vm2300, %v5021, %v5172
  %v5175 = vunpack.c.l.s4 1983009808
  %v5176 = vunpack.c.0.s8 %v5175
  %v5177 = vperm.slane %v5171, %v5176
  %v5179 = vunpack.c.l.s4 1983009808
  %v5180 = vunpack.c.0.s8 %v5179
  %v5181 = vperm.slane %v5173, %v5180
  %v5182 = vrot.slane %v5153, 4
  %v5183 = vsel %vm2300, %v5182, %v5141
  %v5184 = vrot.slane %v5141, 4
  %v5185 = vsel %vm2300, %v5153, %v5184
  %v5187 = vunpack.c.l.s4 1934713408
  %v5188 = vunpack.c.0.s8 %v5187
  %v5189 = vperm.slane %v5183, %v5188
  %v5191 = vunpack.c.l.s4 1934713408
  %v5192 = vunpack.c.0.s8 %v5191
  %v5193 = vperm.slane %v5185, %v5192
  %v5194 = vrot.slane %v5157, 4
  %v5195 = vsel %vm2300, %v5194, %v5145
  %v5196 = vrot.slane %v5145, 4
  %v5197 = vsel %vm2300, %v5157, %v5196
  %v5199 = vunpack.c.l.s4 1934713408
  %v5200 = vunpack.c.0.s8 %v5199
  %v5201 = vperm.slane %v5195, %v5200
  %v5203 = vunpack.c.l.s4 1934713408
  %v5204 = vunpack.c.0.s8 %v5203
  %v5205 = vperm.slane %v5197, %v5204
  %v5206 = vrot.slane %v5177, 4
  %v5207 = vsel %vm2300, %v5206, %v5165
  %v5208 = vrot.slane %v5165, 4
  %v5209 = vsel %vm2300, %v5177, %v5208
  %v5211 = vunpack.c.l.s4 1934713408
  %v5212 = vunpack.c.0.s8 %v5211
  %v5213 = vperm.slane %v5207, %v5212
  %v5215 = vunpack.c.l.s4 1934713408
  %v5216 = vunpack.c.0.s8 %v5215
  %v5217 = vperm.slane %v5209, %v5216
  %v5218 = vrot.slane %v5181, 4
  %v5219 = vsel %vm2300, %v5218, %v5169
  %v5220 = vrot.slane %v5169, 4
  %v5221 = vsel %vm2300, %v5181, %v5220
  %v5223 = vunpack.c.l.s4 1934713408
  %v5224 = vunpack.c.0.s8 %v5223
  %v5225 = vperm.slane %v5219, %v5224
  %v5227 = vunpack.c.l.s4 1934713408
  %v5228 = vunpack.c.0.s8 %v5227
  %v5229 = vperm.slane %v5221, %v5228
  %v5230 = vrot.slane %v5213, 4
  %v5231 = vsel %vm2300, %v5230, %v5189
  %v5232 = vrot.slane %v5189, 4
  %v5233 = vsel %vm2300, %v5213, %v5232
  %v5234 = vrot.slane %v5217, 4
  %v5235 = vsel %vm2300, %v5234, %v5193
  %v5236 = vrot.slane %v5193, 4
  %v5237 = vsel %vm2300, %v5217, %v5236
  %v5238 = vrot.slane %v5225, 4
  %v5239 = vsel %vm2300, %v5238, %v5201
  %v5240 = vrot.slane %v5201, 4
  %v5241 = vsel %vm2300, %v5225, %v5240
  %v5242 = vrot.slane %v5229, 4
  %v5243 = vsel %vm2300, %v5242, %v5205
  %v5244 = vrot.slane %v5205, 4
  %v5245 = vsel %vm2300, %v5229, %v5244
  %v5246 = vrot.slane %v5123, 4
  %v5247 = vsel %vm2300, %v5246, %v5119
  %v5248 = vrot.slane %v5119, 4
  %v5249 = vsel %vm2300, %v5123, %v5248
  %v5251 = vunpack.c.l.s4 1983009808
  %v5252 = vunpack.c.0.s8 %v5251
  %v5253 = vperm.slane %v5247, %v5252
  %v5255 = vunpack.c.l.s4 1983009808
  %v5256 = vunpack.c.0.s8 %v5255
  %v5257 = vperm.slane %v5249, %v5256
  %v5258 = vrot.slane %v5125, 4
  %v5259 = vsel %vm2300, %v5258, %v5121
  %v5260 = vrot.slane %v5121, 4
  %v5261 = vsel %vm2300, %v5125, %v5260
  %v5263 = vunpack.c.l.s4 1983009808
  %v5264 = vunpack.c.0.s8 %v5263
  %v5265 = vperm.slane %v5259, %v5264
  %v5267 = vunpack.c.l.s4 1983009808
  %v5268 = vunpack.c.0.s8 %v5267
  %v5269 = vperm.slane %v5261, %v5268
  %v5270 = vrot.slane %v5131, 4
  %v5271 = vsel %vm2300, %v5270, %v5127
  %v5272 = vrot.slane %v5127, 4
  %v5273 = vsel %vm2300, %v5131, %v5272
  %v5275 = vunpack.c.l.s4 1983009808
  %v5276 = vunpack.c.0.s8 %v5275
  %v5277 = vperm.slane %v5271, %v5276
  %v5279 = vunpack.c.l.s4 1983009808
  %v5280 = vunpack.c.0.s8 %v5279
  %v5281 = vperm.slane %v5273, %v5280
  %v5282 = vrot.slane %v5133, 4
  %v5283 = vsel %vm2300, %v5282, %v5129
  %v5284 = vrot.slane %v5129, 4
  %v5285 = vsel %vm2300, %v5133, %v5284
  %v5287 = vunpack.c.l.s4 1983009808
  %v5288 = vunpack.c.0.s8 %v5287
  %v5289 = vperm.slane %v5283, %v5288
  %v5291 = vunpack.c.l.s4 1983009808
  %v5292 = vunpack.c.0.s8 %v5291
  %v5293 = vperm.slane %v5285, %v5292
  %v5294 = vrot.slane %v5265, 4
  %v5295 = vsel %vm2300, %v5294, %v5253
  %v5296 = vrot.slane %v5253, 4
  %v5297 = vsel %vm2300, %v5265, %v5296
  %v5299 = vunpack.c.l.s4 1934713408
  %v5300 = vunpack.c.0.s8 %v5299
  %v5301 = vperm.slane %v5295, %v5300
  %v5303 = vunpack.c.l.s4 1934713408
  %v5304 = vunpack.c.0.s8 %v5303
  %v5305 = vperm.slane %v5297, %v5304
  %v5306 = vrot.slane %v5269, 4
  %v5307 = vsel %vm2300, %v5306, %v5257
  %v5308 = vrot.slane %v5257, 4
  %v5309 = vsel %vm2300, %v5269, %v5308
  %v5311 = vunpack.c.l.s4 1934713408
  %v5312 = vunpack.c.0.s8 %v5311
  %v5313 = vperm.slane %v5307, %v5312
  %v5315 = vunpack.c.l.s4 1934713408
  %v5316 = vunpack.c.0.s8 %v5315
  %v5317 = vperm.slane %v5309, %v5316
  %v5318 = vrot.slane %v5289, 4
  %v5319 = vsel %vm2300, %v5318, %v5277
  %v5320 = vrot.slane %v5277, 4
  %v5321 = vsel %vm2300, %v5289, %v5320
  %v5323 = vunpack.c.l.s4 1934713408
  %v5324 = vunpack.c.0.s8 %v5323
  %v5325 = vperm.slane %v5319, %v5324
  %v5327 = vunpack.c.l.s4 1934713408
  %v5328 = vunpack.c.0.s8 %v5327
  %v5329 = vperm.slane %v5321, %v5328
  %v5330 = vrot.slane %v5293, 4
  %v5331 = vsel %vm2300, %v5330, %v5281
  %v5332 = vrot.slane %v5281, 4
  %v5333 = vsel %vm2300, %v5293, %v5332
  %v5335 = vunpack.c.l.s4 1934713408
  %v5336 = vunpack.c.0.s8 %v5335
  %v5337 = vperm.slane %v5331, %v5336
  %v5339 = vunpack.c.l.s4 1934713408
  %v5340 = vunpack.c.0.s8 %v5339
  %v5341 = vperm.slane %v5333, %v5340
  %v5342 = vrot.slane %v5325, 4
  %v5343 = vsel %vm2300, %v5342, %v5301
  %v5344 = vrot.slane %v5301, 4
  %v5345 = vsel %vm2300, %v5325, %v5344
  %v5346 = vrot.slane %v5329, 4
  %v5347 = vsel %vm2300, %v5346, %v5305
  %v5348 = vrot.slane %v5305, 4
  %v5349 = vsel %vm2300, %v5329, %v5348
  %v5350 = vrot.slane %v5337, 4
  %v5351 = vsel %vm2300, %v5350, %v5313
  %v5352 = vrot.slane %v5313, 4
  %v5353 = vsel %vm2300, %v5337, %v5352
  %v5354 = vrot.slane %v5341, 4
  %v5355 = vsel %vm2300, %v5354, %v5317
  %v5356 = vrot.slane %v5317, 4
  %v5357 = vsel %vm2300, %v5341, %v5356
  %5360 = vrot.lane.b32.xlu0 %v5233, 4
  %v5361 = vpop.permute.xlu0 %5360
  %5362 = vrot.lane.b32.xlu0 %v5345, 4
  %v5363 = vpop.permute.xlu0 %5362
  %5368 = vrot.lane.b32.xlu0 %v5235, 8
  %v5369 = vpop.permute.xlu0 %5368
  %5370 = vrot.lane.b32.xlu0 %v5347, 8
  %v5371 = vpop.permute.xlu0 %5370
  %5376 = vrot.lane.b32.xlu0 %v5237, 12
  %v5377 = vpop.permute.xlu0 %5376
  %5378 = vrot.lane.b32.xlu0 %v5349, 12
  %v5379 = vpop.permute.xlu0 %5378
  %5384 = vrot.lane.b32.xlu0 %v5239, 16
  %v5385 = vpop.permute.xlu0 %5384
  %5386 = vrot.lane.b32.xlu0 %v5351, 16
  %v5387 = vpop.permute.xlu0 %5386
  %5392 = vrot.lane.b32.xlu0 %v5241, 20
  %v5393 = vpop.permute.xlu0 %5392
  %5394 = vrot.lane.b32.xlu0 %v5353, 20
  %v5395 = vpop.permute.xlu0 %5394
  %5400 = vrot.lane.b32.xlu0 %v5243, 24
  %v5401 = vpop.permute.xlu0 %5400
  %5402 = vrot.lane.b32.xlu0 %v5355, 24
  %v5403 = vpop.permute.xlu0 %5402
  %5408 = vrot.lane.b32.xlu0 %v5245, 28
  %v5409 = vpop.permute.xlu0 %5408
  %5410 = vrot.lane.b32.xlu0 %v5357, 28
  %v5411 = vpop.permute.xlu0 %5410
  %v5414 = vsel %vm3740, %v5231, %v5361
  %v5415 = vsel %vm3740, %v5343, %v5363
  %v5416 = vsel %vm4157, %v5414, %v5369
  %v5417 = vsel %vm4157, %v5415, %v5371
  %vm5418 = vcmask 97280
  %v5419 = vsel %vm5418, %v5416, %v5377
  %v5420 = vsel %vm5418, %v5417, %v5379
  %v5421 = vsel %vm63, %v5419, %v5385
  %v5422 = vsel %vm63, %v5420, %v5387
  %vm5423 = vcmask 162816
  %v5424 = vsel %vm5423, %v5421, %v5393
  %v5425 = vsel %vm5423, %v5422, %v5395
  %vm5426 = vcmask 195584
  %v5427 = vsel %vm5426, %v5424, %v5401
  %v5428 = vsel %vm5426, %v5425, %v5403
  %vm5429 = vcmask 228352
  %v5430 = vsel %vm5429, %v5427, %v5409
  %v5431 = vsel %vm5429, %v5428, %v5411
  %v5432 = vld [vmem:[%s6] sm:$0xff]
  %v5433 = vld [vmem:[%s6 + $0x8] sm:$0xff]
  %v5434 = vld [vmem:[%s6 + $0x10] sm:$0xff]
  %v5435 = vld [vmem:[%s6 + $0x18] sm:$0xff]
  %v5436 = vperm.slane %v57, 1
  %v5438 = vsel %vm127, %v5430, 0
  %v5441 = vsel %vm127, %v5431, 0
  %5443 = vmatpush.msra.mxu0 0.0
  %5444 = vmatpush.msra.mxu0 0.0
  %5445 = vmatpush.msra.mxu0 0.0
  %5446 = vmatpush.msra.mxu0 0.0
  %5447 = vmatpush.msra.mxu0 0.0
  %5448 = vmatpush.msra.mxu0 0.0
  %5449 = vmatpush.msra.mxu0 0.0
  %5450 = vmatpush.msra.mxu0 0.0
  %5451 = vmatpush.msra.mxu0 0.0
  %5452 = vmatpush.msra.mxu0 0.0
  %5453 = vmatpush.msra.mxu0 0.0
  %5454 = vmatpush.msra.mxu0 0.0
  %5455 = vmatpush.msra.mxu0 %v5435
  %5456 = vmatpush.msra.mxu0 %v5434
  %5457 = vmatpush.msra.mxu0 %v5433
  %5458 = vmatpush.msra.mxu0 %v5432
  %5459 = vmatmul.f32.gmra.mxu0 %v5438
  %v5460 = vpop.f32.mrf.mxu0
  %v5461 = vadd.f32 %v5436, %v5460
  %5462 = vmatmul.f32.gmra.mxu0 %v5441
  %v5463 = vpop.f32.mrf.mxu0
  %v5464 = vadd.f32 %v5436, %v5463
  %5465 = vdwg.mxu0
  %5468 = vrot.lane.b32.xlu0 %v5461, 96
  %v5469 = vpop.permute.xlu0 %5468
  %5470 = vrot.lane.b32.xlu0 %v5464, 96
  %v5471 = vpop.permute.xlu0 %5470
  %v5474 = vadd.f32 %v2212, %v5469
  %v5475 = vadd.f32 %v2213, %v5471
  %5478 = vrot.lane.b32.xlu0 %v5474, 32
  %v5479 = vpop.permute.xlu0 %5478
  %5480 = vrot.lane.b32.xlu0 %v5475, 32
  %v5481 = vpop.permute.xlu0 %5480
  %v5484 = vsel %vm127, %v5479, 0.0
  %5485 = vadd.xlane.f32.xlu0 %v5484
  %v5486 = vpop.xlane.xlu0 %5485
  %v5487 = vsel %vm127, %v5481, 0.0
  %5488 = vadd.xlane.f32.xlu0 %v5487
  %v5489 = vpop.xlane.xlu0 %5488
  %v5490 = vmul.f32 %v5486, %v1111
  %v5491 = vmul.f32 %v5489, %v1111
  %v5492 = vsub.f32 %v5474, %v5490
  %v5493 = vsub.f32 %v5475, %v5491
  %v5494 = vmul.f32 %v5492, %v5492
  %v5495 = vmul.f32 %v5493, %v5493
  %5498 = vrot.lane.b32.xlu0 %v5494, 32
  %v5499 = vpop.permute.xlu0 %5498
  %5500 = vrot.lane.b32.xlu0 %v5495, 32
  %v5501 = vpop.permute.xlu0 %5500
  %v5504 = vsel %vm127, %v5499, 0.0
  %5505 = vadd.xlane.f32.xlu0 %v5504
  %v5506 = vpop.xlane.xlu0 %5505
  %v5507 = vsel %vm127, %v5501, 0.0
  %5508 = vadd.xlane.f32.xlu0 %v5507
  %v5509 = vpop.xlane.xlu0 %5508
  %v5510 = vmul.f32 %v5506, %v1111
  %v5511 = vmul.f32 %v5509, %v1111
  %v5512 = vadd.f32 %v5510, 1e-05
  %v5513 = vadd.f32 %v5511, 1e-05
  %v5514 = vrsqrt.pop %v5512
  %v5515 = vmul.f32 %v5514, %v5512
  %v5516 = vmul.f32 %v5515, %v5514
  %v5517 = vmul.f32 0.5, %v5516
  %v5518 = vsub.f32 1.5, %v5517
  %v5519 = vmul.f32 %v5514, %v5518
  %vm5520 = vweird.f32 %v5512
  %vm5521 = vweird.f32 %v5514
  %vm5522 = vmor %vm5520, %vm5521
  %v5523 = vsel %vm5522, %v5514, %v5519
  %v5524 = vrsqrt.pop %v5513
  %v5525 = vmul.f32 %v5524, %v5513
  %v5526 = vmul.f32 %v5525, %v5524
  %v5527 = vmul.f32 0.5, %v5526
  %v5528 = vsub.f32 1.5, %v5527
  %v5529 = vmul.f32 %v5524, %v5528
  %vm5530 = vweird.f32 %v5513
  %vm5531 = vweird.f32 %v5524
  %vm5532 = vmor %vm5530, %vm5531
  %v5533 = vsel %vm5532, %v5524, %v5529
  %v5534 = vmul.f32 %v5492, %v5523
  %v5535 = vmul.f32 %v5493, %v5533
  %v5536 = vperm.slane %v57, 2
  %5538 = vrot.lane.b32.xlu0 %v5536, 96
  %v5539 = vpop.permute.xlu0 %5538
  %v5541 = vmul.f32 %v5534, %v5539
  %v5542 = vmul.f32 %v5535, %v5539
  %v5543 = vperm.slane %v57, 3
  %5545 = vrot.lane.b32.xlu0 %v5543, 96
  %v5546 = vpop.permute.xlu0 %5545
  %v5548 = vadd.f32 %v5541, %v5546
  %v5549 = vadd.f32 %v5542, %v5546
  %v5550 = vrot.slane %v2213, 7
  %5551 = vrot.lane.b32.xlu0 %v5550, 32
  %v5552 = vpop.permute.xlu0 %5551
  %v5557 = vrot.slane %v5549, 7
  %5558 = vrot.lane.b32.xlu0 %v5548, 64
  %v5559 = vpop.permute.xlu0 %5558
  %5560 = vrot.lane.b32.xlu0 %v5557, 64
  %v5561 = vpop.permute.xlu0 %5560
  %v5564 = vsel %vm127, %v2225, %v5559
  %v5565 = vsel %vm127, %v5552, %v5561
  %v5566 = vld [vmem:[%s7] sm:$0xff]
  %v5567 = vld [vmem:[%s7 + $0x8] sm:$0xff]
  %v5568 = vld [vmem:[%s7 + $0x10] sm:$0xff]
  %v5569 = vld [vmem:[%s7 + $0x18] sm:$0xff]
  %v5570 = vld [vmem:[%s7 + $0x20] sm:$0xff]
  %v5571 = vld [vmem:[%s7 + $0x28] sm:$0xff]
  %v5572 = vld [vmem:[%s7 + $0x30] sm:$0xff]
  %v5573 = vld [vmem:[%s7 + $0x38] sm:$0xff]
  %v5574 = vperm.slane %v57, 4
  %v5577 = vrot.slane %v5564, 7
  %v5578 = vrot.slane %v5565, 7
  %v5579 = vsel %vm1070, %v5577, %v5578
  %vm5580 = vcmask 523264
  %v5581 = vsel %vm5580, %v5579, 0
  %5583 = vmatpush.msra.mxu0 0.0
  %5584 = vmatpush.msra.mxu0 0.0
  %5585 = vmatpush.msra.mxu0 0.0
  %5586 = vmatpush.msra.mxu0 0.0
  %5587 = vmatpush.msra.mxu0 0.0
  %5588 = vmatpush.msra.mxu0 0.0
  %5589 = vmatpush.msra.mxu0 0.0
  %5590 = vmatpush.msra.mxu0 0.0
  %5591 = vmatpush.msra.mxu0 %v5573
  %5592 = vmatpush.msra.mxu0 %v5572
  %5593 = vmatpush.msra.mxu0 %v5571
  %5594 = vmatpush.msra.mxu0 %v5570
  %5595 = vmatpush.msra.mxu0 %v5569
  %5596 = vmatpush.msra.mxu0 %v5568
  %5597 = vmatpush.msra.mxu0 %v5567
  %5598 = vmatpush.msra.mxu0 %v5566
  %5599 = vmatmul.f32.gmra.mxu0 %v5581
  %v5600 = vpop.f32.mrf.mxu0
  %v5601 = vadd.f32 %v5574, %v5600
  %5602 = vdwg.mxu0
  %vm5603 = vcmask 254976
  %v5604 = vsel %vm5603, %v5601, 0.0
  %5605 = vadd.xlane.f32.xlu0 %v5604
  %v5606 = vpop.xlane.xlu0 %5605
  %v5607 = vmul.f32 %v5606, %v1111
  %v5608 = vsub.f32 %v5601, %v5607
  %v5609 = vmul.f32 %v5608, %v5608
  %v5610 = vsel %vm5603, %v5609, 0.0
  %5611 = vadd.xlane.f32.xlu0 %v5610
  %v5612 = vpop.xlane.xlu0 %5611
  %v5613 = vmul.f32 %v5612, %v1111
  %v5614 = vadd.f32 %v5613, 1e-05
  %v5615 = vrsqrt.pop %v5614
  %v5616 = vmul.f32 %v5615, %v5614
  %v5617 = vmul.f32 %v5616, %v5615
  %v5618 = vmul.f32 0.5, %v5617
  %v5619 = vsub.f32 1.5, %v5618
  %v5620 = vmul.f32 %v5615, %v5619
  %vm5621 = vweird.f32 %v5614
  %vm5622 = vweird.f32 %v5615
  %vm5623 = vmor %vm5621, %vm5622
  %v5624 = vsel %vm5623, %v5615, %v5620
  %v5625 = vmul.f32 %v5608, %v5624
  %v5626 = vperm.slane %v57, 5
  %v5627 = vmul.f32 %v5625, %v5626
  %v5628 = vperm.slane %v57, 6
  %v5629 = vadd.f32 %v5627, %v5628
  %v5630 = vmax.f32 %v5629, 0.0
  %v5631 = vld [vmem:[%s9] sm:$0xff]
  %v5632 = vld [vmem:[%s9 + $0x8] sm:$0xff]
  %v5633 = vld [vmem:[%s9 + $0x10] sm:$0xff]
  %v5634 = vld [vmem:[%s9 + $0x18] sm:$0xff]
  %v5635 = vld [vmem:[%s9 + $0x20] sm:$0xff]
  %v5636 = vld [vmem:[%s9 + $0x28] sm:$0xff]
  %v5637 = vld [vmem:[%s9 + $0x30] sm:$0xff]
  %v5638 = vld [vmem:[%s9 + $0x38] sm:$0xff]
  %v5639 = vld [vmem:[%s9 + $0x40] sm:$0xff]
  %v5640 = vld [vmem:[%s9 + $0x48] sm:$0xff]
  %v5641 = vld [vmem:[%s9 + $0x50] sm:$0xff]
  %v5642 = vld [vmem:[%s9 + $0x58] sm:$0xff]
  %v5643 = vld [vmem:[%s9 + $0x60] sm:$0xff]
  %v5644 = vld [vmem:[%s9 + $0x68] sm:$0xff]
  %v5645 = vld [vmem:[%s9 + $0x70] sm:$0xff]
  %v5646 = vld [vmem:[%s9 + $0x78] sm:$0xff]
  %v5647 = vld [vmem:[%s10] sm:$0x7]
  %v5648 = vld [vmem:[%s10 + $0x4] sm:$0x7]
  %v5649 = vld [vmem:[%s10 + $0x8] sm:$0x7]
  %v5650 = vld [vmem:[%s10 + $0xc] sm:$0x7]
  %v5651 = vld [vmem:[%s11] sm:$0xff]
  %v5652 = vld [vmem:[%s11 + $0x8] sm:$0xff]
  %v5653 = vld [vmem:[%s11 + $0x10] sm:$0xff]
  %v5654 = vld [vmem:[%s11 + $0x18] sm:$0xff]
  %v5655 = vld [vmem:[%s12] sm:$0x7]
  %v5656 = vld [vmem:[%s12 + $0x4] sm:$0x7]
  %v5657 = vld [vmem:[%s13] sm:$0xff]
  %v5658 = vld [vmem:[%s13 + $0x8] sm:$0xff]
  %v5659 = vld [vmem:[%s16] sm:$0x1]
  %v5660 = vperm.slane %v5647, 0
  %v5662 = vsel %vm127, %v5630, 0
  %5664 = vmatpush.msra.mxu0 0.0
  %5665 = vmatpush.msra.mxu0 0.0
  %5666 = vmatpush.msra.mxu0 0.0
  %5667 = vmatpush.msra.mxu0 0.0
  %5668 = vmatpush.msra.mxu0 0.0
  %5669 = vmatpush.msra.mxu0 0.0
  %5670 = vmatpush.msra.mxu0 0.0
  %5671 = vmatpush.msra.mxu0 0.0
  %5672 = vmatpush.msra.mxu0 0.0
  %5673 = vmatpush.msra.mxu0 0.0
  %5674 = vmatpush.msra.mxu0 0.0
  %5675 = vmatpush.msra.mxu0 0.0
  %5676 = vmatpush.msra.mxu0 %v5634
  %5677 = vmatpush.msra.mxu0 %v5633
  %5678 = vmatpush.msra.mxu0 %v5632
  %5679 = vmatpush.msra.mxu0 %v5631
  %5680 = vmatmul.f32.gmra.mxu0 %v5662
  %v5681 = vpop.f32.mrf.mxu0
  %v5682 = vadd.f32 %v5660, %v5681
  %5683 = vdwg.mxu0
  %vm5684 = vcmask 123904
  %v5685 = vsel %vm5684, %v5682, 0.0
  %5686 = vadd.xlane.f32.xlu0 %v5685
  %v5687 = vpop.xlane.xlu0 %5686
  %v5688 = vrcp.pop 16.0
  %v5689 = vmul.f32 16.0, %v5688
  %v5690 = vsub.f32 1.0, %v5689
  %v5691 = vmul.f32 %v5688, %v5690
  %v5692 = vadd.f32 %v5688, %v5691
  %vm5693 = vweird.f32 %v5688
  %v5694 = vsel %vm5693, %v5688, %v5692
  %v5695 = vmul.f32 %v5687, %v5694
  %v5696 = vsub.f32 %v5682, %v5695
  %v5697 = vmul.f32 %v5696, %v5696
  %v5698 = vsel %vm5684, %v5697, 0.0
  %5699 = vadd.xlane.f32.xlu0 %v5698
  %v5700 = vpop.xlane.xlu0 %5699
  %v5701 = vmul.f32 %v5700, %v5694
  %v5702 = vadd.f32 %v5701, 1e-05
  %v5703 = vrsqrt.pop %v5702
  %v5704 = vmul.f32 %v5703, %v5702
  %v5705 = vmul.f32 %v5704, %v5703
  %v5706 = vmul.f32 0.5, %v5705
  %v5707 = vsub.f32 1.5, %v5706
  %v5708 = vmul.f32 %v5703, %v5707
  %vm5709 = vweird.f32 %v5702
  %vm5710 = vweird.f32 %v5703
  %vm5711 = vmor %vm5709, %vm5710
  %v5712 = vsel %vm5711, %v5703, %v5708
  %v5713 = vmul.f32 %v5696, %v5712
  %v5714 = vperm.slane %v5647, 1
  %v5715 = vmul.f32 %v5713, %v5714
  %v5716 = vperm.slane %v5647, 2
  %v5717 = vadd.f32 %v5715, %v5716
  %v5718 = vmax.f32 %v5717, 0.0
  %v5719 = vperm.slane %v5655, 0
  %v5721 = vsel %vm63, %v5718, 0
  %5723 = vmatpush.msra.mxu0 0.0
  %5724 = vmatpush.msra.mxu0 0.0
  %5725 = vmatpush.msra.mxu0 0.0
  %5726 = vmatpush.msra.mxu0 0.0
  %5727 = vmatpush.msra.mxu0 0.0
  %5728 = vmatpush.msra.mxu0 0.0
  %5729 = vmatpush.msra.mxu0 0.0
  %5730 = vmatpush.msra.mxu0 0.0
  %5731 = vmatpush.msra.mxu0 0.0
  %5732 = vmatpush.msra.mxu0 0.0
  %5733 = vmatpush.msra.mxu0 0.0
  %5734 = vmatpush.msra.mxu0 0.0
  %5735 = vmatpush.msra.mxu0 0.0
  %5736 = vmatpush.msra.mxu0 0.0
  %5737 = vmatpush.msra.mxu0 %v5652
  %5738 = vmatpush.msra.mxu0 %v5651
  %5739 = vmatmul.f32.gmra.mxu0 %v5721
  %v5740 = vpop.f32.mrf.mxu0
  %v5741 = vadd.f32 %v5719, %v5740
  %5742 = vdwg.mxu0
  %vm5743 = vcmask 58368
  %v5744 = vsel %vm5743, %v5741, 0.0
  %5745 = vadd.xlane.f32.xlu0 %v5744
  %v5746 = vpop.xlane.xlu0 %5745
  %v5747 = vrcp.pop 8.0
  %v5748 = vmul.f32 8.0, %v5747
  %v5749 = vsub.f32 1.0, %v5748
  %v5750 = vmul.f32 %v5747, %v5749
  %v5751 = vadd.f32 %v5747, %v5750
  %vm5752 = vweird.f32 %v5747
  %v5753 = vsel %vm5752, %v5747, %v5751
  %v5754 = vmul.f32 %v5746, %v5753
  %v5755 = vsub.f32 %v5741, %v5754
  %v5756 = vmul.f32 %v5755, %v5755
  %v5757 = vsel %vm5743, %v5756, 0.0
  %5758 = vadd.xlane.f32.xlu0 %v5757
  %v5759 = vpop.xlane.xlu0 %5758
  %v5760 = vmul.f32 %v5759, %v5753
  %v5761 = vadd.f32 %v5760, 1e-05
  %v5762 = vrsqrt.pop %v5761
  %v5763 = vmul.f32 %v5762, %v5761
  %v5764 = vmul.f32 %v5763, %v5762
  %v5765 = vmul.f32 0.5, %v5764
  %v5766 = vsub.f32 1.5, %v5765
  %v5767 = vmul.f32 %v5762, %v5766
  %vm5768 = vweird.f32 %v5761
  %vm5769 = vweird.f32 %v5762
  %vm5770 = vmor %vm5768, %vm5769
  %v5771 = vsel %vm5770, %v5762, %v5767
  %v5772 = vmul.f32 %v5755, %v5771
  %v5773 = vperm.slane %v5655, 1
  %v5774 = vmul.f32 %v5772, %v5773
  %v5775 = vperm.slane %v5655, 2
  %v5776 = vadd.f32 %v5774, %v5775
  %v5777 = vmax.f32 %v5776, 0.0
  %v5779 = vperm.slane %v5659, 0
  %v5782 = vsel %vm4157, %v5777, 0
  %5784 = vmatpush.msra.mxu0 0.0
  %5785 = vmatpush.msra.mxu0 0.0
  %5786 = vmatpush.msra.mxu0 0.0
  %5787 = vmatpush.msra.mxu0 0.0
  %5788 = vmatpush.msra.mxu0 0.0
  %5789 = vmatpush.msra.mxu0 0.0
  %5790 = vmatpush.msra.mxu0 0.0
  %5791 = vmatpush.msra.mxu0 0.0
  %5792 = vmatpush.msra.mxu0 0.0
  %5793 = vmatpush.msra.mxu0 0.0
  %5794 = vmatpush.msra.mxu0 0.0
  %5795 = vmatpush.msra.mxu0 0.0
  %5796 = vmatpush.msra.mxu0 0.0
  %5797 = vmatpush.msra.mxu0 0.0
  %5798 = vmatpush.msra.mxu0 0.0
  %5799 = vmatpush.msra.mxu0 %v5657
  %5800 = vmatmul.f32.gmra.mxu0 %v5782
  %v5801 = vpop.f32.mrf.mxu0
  %v5802 = vadd.f32 %v5779, %v5801
  %5803 = vdwg.mxu0
  %v5804 = vperm.slane %v5648, 0
  %5805 = vmatpush.msra.mxu0 0.0
  %5806 = vmatpush.msra.mxu0 0.0
  %5807 = vmatpush.msra.mxu0 0.0
  %5808 = vmatpush.msra.mxu0 0.0
  %5809 = vmatpush.msra.mxu0 0.0
  %5810 = vmatpush.msra.mxu0 0.0
  %5811 = vmatpush.msra.mxu0 0.0
  %5812 = vmatpush.msra.mxu0 0.0
  %5813 = vmatpush.msra.mxu0 0.0
  %5814 = vmatpush.msra.mxu0 0.0
  %5815 = vmatpush.msra.mxu0 0.0
  %5816 = vmatpush.msra.mxu0 0.0
  %5817 = vmatpush.msra.mxu0 %v5638
  %5818 = vmatpush.msra.mxu0 %v5637
  %5819 = vmatpush.msra.mxu0 %v5636
  %5820 = vmatpush.msra.mxu0 %v5635
  %5821 = vmatmul.f32.gmra.mxu0 %v5662
  %v5822 = vpop.f32.mrf.mxu0
  %v5823 = vadd.f32 %v5804, %v5822
  %5824 = vdwg.mxu0
  %v5825 = vsel %vm5684, %v5823, 0.0
  %5826 = vadd.xlane.f32.xlu0 %v5825
  %v5827 = vpop.xlane.xlu0 %5826
  %v5828 = vmul.f32 %v5827, %v5694
  %v5829 = vsub.f32 %v5823, %v5828
  %v5830 = vmul.f32 %v5829, %v5829
  %v5831 = vsel %vm5684, %v5830, 0.0
  %5832 = vadd.xlane.f32.xlu0 %v5831
  %v5833 = vpop.xlane.xlu0 %5832
  %v5834 = vmul.f32 %v5833, %v5694
  %v5835 = vadd.f32 %v5834, 1e-05
  %v5836 = vrsqrt.pop %v5835
  %v5837 = vmul.f32 %v5836, %v5835
  %v5838 = vmul.f32 %v5837, %v5836
  %v5839 = vmul.f32 0.5, %v5838
  %v5840 = vsub.f32 1.5, %v5839
  %v5841 = vmul.f32 %v5836, %v5840
  %vm5842 = vweird.f32 %v5835
  %vm5843 = vweird.f32 %v5836
  %vm5844 = vmor %vm5842, %vm5843
  %v5845 = vsel %vm5844, %v5836, %v5841
  %v5846 = vmul.f32 %v5829, %v5845
  %v5847 = vperm.slane %v5648, 1
  %v5848 = vmul.f32 %v5846, %v5847
  %v5849 = vperm.slane %v5648, 2
  %v5850 = vadd.f32 %v5848, %v5849
  %v5851 = vmax.f32 %v5850, 0.0
  %v5852 = vperm.slane %v5656, 0
  %v5854 = vsel %vm63, %v5851, 0
  %5856 = vmatpush.msra.mxu0 0.0
  %5857 = vmatpush.msra.mxu0 0.0
  %5858 = vmatpush.msra.mxu0 0.0
  %5859 = vmatpush.msra.mxu0 0.0
  %5860 = vmatpush.msra.mxu0 0.0
  %5861 = vmatpush.msra.mxu0 0.0
  %5862 = vmatpush.msra.mxu0 0.0
  %5863 = vmatpush.msra.mxu0 0.0
  %5864 = vmatpush.msra.mxu0 0.0
  %5865 = vmatpush.msra.mxu0 0.0
  %5866 = vmatpush.msra.mxu0 0.0
  %5867 = vmatpush.msra.mxu0 0.0
  %5868 = vmatpush.msra.mxu0 0.0
  %5869 = vmatpush.msra.mxu0 0.0
  %5870 = vmatpush.msra.mxu0 %v5654
  %5871 = vmatpush.msra.mxu0 %v5653
  %5872 = vmatmul.f32.gmra.mxu0 %v5854
  %v5873 = vpop.f32.mrf.mxu0
  %v5874 = vadd.f32 %v5852, %v5873
  %5875 = vdwg.mxu0
  %v5876 = vsel %vm5743, %v5874, 0.0
  %5877 = vadd.xlane.f32.xlu0 %v5876
  %v5878 = vpop.xlane.xlu0 %5877
  %v5879 = vmul.f32 %v5878, %v5753
  %v5880 = vsub.f32 %v5874, %v5879
  %v5881 = vmul.f32 %v5880, %v5880
  %v5882 = vsel %vm5743, %v5881, 0.0
  %5883 = vadd.xlane.f32.xlu0 %v5882
  %v5884 = vpop.xlane.xlu0 %5883
  %v5885 = vmul.f32 %v5884, %v5753
  %v5886 = vadd.f32 %v5885, 1e-05
  %v5887 = vrsqrt.pop %v5886
  %v5888 = vmul.f32 %v5887, %v5886
  %v5889 = vmul.f32 %v5888, %v5887
  %v5890 = vmul.f32 0.5, %v5889
  %v5891 = vsub.f32 1.5, %v5890
  %v5892 = vmul.f32 %v5887, %v5891
  %vm5893 = vweird.f32 %v5886
  %vm5894 = vweird.f32 %v5887
  %vm5895 = vmor %vm5893, %vm5894
  %v5896 = vsel %vm5895, %v5887, %v5892
  %v5897 = vmul.f32 %v5880, %v5896
  %v5898 = vperm.slane %v5656, 1
  %v5899 = vmul.f32 %v5897, %v5898
  %v5900 = vperm.slane %v5656, 2
  %v5901 = vadd.f32 %v5899, %v5900
  %v5902 = vmax.f32 %v5901, 0.0
  %5903 = vrot.lane.b32.xlu0 %v5779, 127
  %v5904 = vpop.permute.xlu0 %5903
  %v5907 = vsel %vm4157, %v5902, 0
  %5909 = vmatpush.msra.mxu0 0.0
  %5910 = vmatpush.msra.mxu0 0.0
  %5911 = vmatpush.msra.mxu0 0.0
  %5912 = vmatpush.msra.mxu0 0.0
  %5913 = vmatpush.msra.mxu0 0.0
  %5914 = vmatpush.msra.mxu0 0.0
  %5915 = vmatpush.msra.mxu0 0.0
  %5916 = vmatpush.msra.mxu0 0.0
  %5917 = vmatpush.msra.mxu0 0.0
  %5918 = vmatpush.msra.mxu0 0.0
  %5919 = vmatpush.msra.mxu0 0.0
  %5920 = vmatpush.msra.mxu0 0.0
  %5921 = vmatpush.msra.mxu0 0.0
  %5922 = vmatpush.msra.mxu0 0.0
  %5923 = vmatpush.msra.mxu0 0.0
  %5924 = vmatpush.msra.mxu0 %v5658
  %5925 = vmatmul.f32.gmra.mxu0 %v5907
  %v5926 = vpop.f32.mrf.mxu0
  %v5927 = vadd.f32 %v5904, %v5926
  %5928 = vdwg.mxu0
  %v5929 = vand.u32 2147483647, %v5927
  %v5930 = vperm.slane %v5649, 0
  %5931 = vmatpush.msra.mxu0 0.0
  %5932 = vmatpush.msra.mxu0 0.0
  %5933 = vmatpush.msra.mxu0 0.0
  %5934 = vmatpush.msra.mxu0 0.0
  %5935 = vmatpush.msra.mxu0 0.0
  %5936 = vmatpush.msra.mxu0 0.0
  %5937 = vmatpush.msra.mxu0 0.0
  %5938 = vmatpush.msra.mxu0 0.0
  %5939 = vmatpush.msra.mxu0 0.0
  %5940 = vmatpush.msra.mxu0 0.0
  %5941 = vmatpush.msra.mxu0 0.0
  %5942 = vmatpush.msra.mxu0 0.0
  %5943 = vmatpush.msra.mxu0 %v5642
  %5944 = vmatpush.msra.mxu0 %v5641
  %5945 = vmatpush.msra.mxu0 %v5640
  %5946 = vmatpush.msra.mxu0 %v5639
  %5947 = vmatmul.f32.gmra.mxu0 %v5662
  %v5948 = vpop.f32.mrf.mxu0
  %v5949 = vadd.f32 %v5930, %v5948
  %5950 = vdwg.mxu0
  %v5951 = vsel %vm5684, %v5949, 0.0
  %5952 = vadd.xlane.f32.xlu0 %v5951
  %v5953 = vpop.xlane.xlu0 %5952
  %v5954 = vmul.f32 %v5953, %v5694
  %v5955 = vsub.f32 %v5949, %v5954
  %v5956 = vmul.f32 %v5955, %v5955
  %v5957 = vsel %vm5684, %v5956, 0.0
  %5958 = vadd.xlane.f32.xlu0 %v5957
  %v5959 = vpop.xlane.xlu0 %5958
  %v5960 = vmul.f32 %v5959, %v5694
  %v5961 = vadd.f32 %v5960, 1e-05
  %v5962 = vrsqrt.pop %v5961
  %v5963 = vmul.f32 %v5962, %v5961
  %v5964 = vmul.f32 %v5963, %v5962
  %v5965 = vmul.f32 0.5, %v5964
  %v5966 = vsub.f32 1.5, %v5965
  %v5967 = vmul.f32 %v5962, %v5966
  %vm5968 = vweird.f32 %v5961
  %vm5969 = vweird.f32 %v5962
  %vm5970 = vmor %vm5968, %vm5969
  %v5971 = vsel %vm5970, %v5962, %v5967
  %v5972 = vmul.f32 %v5955, %v5971
  %v5973 = vperm.slane %v5649, 1
  %v5974 = vmul.f32 %v5972, %v5973
  %v5975 = vperm.slane %v5649, 2
  %v5976 = vadd.f32 %v5974, %v5975
  %v5977 = vmax.f32 %v5976, 0.0
  %v5978 = vld [vmem:[%s14] sm:$0xff]
  %v5979 = vld [vmem:[%s14 + $0x8] sm:$0xff]
  %5980 = vrot.lane.b32.xlu0 %v5779, 126
  %v5981 = vpop.permute.xlu0 %5980
  %v5984 = vsel %vm63, %v5977, 0
  %5986 = vmatpush.msra.mxu0 0.0
  %5987 = vmatpush.msra.mxu0 0.0
  %5988 = vmatpush.msra.mxu0 0.0
  %5989 = vmatpush.msra.mxu0 0.0
  %5990 = vmatpush.msra.mxu0 0.0
  %5991 = vmatpush.msra.mxu0 0.0
  %5992 = vmatpush.msra.mxu0 0.0
  %5993 = vmatpush.msra.mxu0 0.0
  %5994 = vmatpush.msra.mxu0 0.0
  %5995 = vmatpush.msra.mxu0 0.0
  %5996 = vmatpush.msra.mxu0 0.0
  %5997 = vmatpush.msra.mxu0 0.0
  %5998 = vmatpush.msra.mxu0 0.0
  %5999 = vmatpush.msra.mxu0 0.0
  %6000 = vmatpush.msra.mxu0 %v5979
  %6001 = vmatpush.msra.mxu0 %v5978
  %6002 = vmatmul.f32.gmra.mxu0 %v5984
  %v6003 = vpop.f32.mrf.mxu0
  %v6004 = vadd.f32 %v5981, %v6003
  %6005 = vdwg.mxu0
  %v6006 = vperm.slane %v5650, 0
  %6007 = vmatpush.msra.mxu0 0.0
  %6008 = vmatpush.msra.mxu0 0.0
  %6009 = vmatpush.msra.mxu0 0.0
  %6010 = vmatpush.msra.mxu0 0.0
  %6011 = vmatpush.msra.mxu0 0.0
  %6012 = vmatpush.msra.mxu0 0.0
  %6013 = vmatpush.msra.mxu0 0.0
  %6014 = vmatpush.msra.mxu0 0.0
  %6015 = vmatpush.msra.mxu0 0.0
  %6016 = vmatpush.msra.mxu0 0.0
  %6017 = vmatpush.msra.mxu0 0.0
  %6018 = vmatpush.msra.mxu0 0.0
  %6019 = vmatpush.msra.mxu0 %v5646
  %6020 = vmatpush.msra.mxu0 %v5645
  %6021 = vmatpush.msra.mxu0 %v5644
  %6022 = vmatpush.msra.mxu0 %v5643
  %6023 = vmatmul.f32.gmra.mxu0 %v5662
  %v6024 = vpop.f32.mrf.mxu0
  %v6025 = vadd.f32 %v6006, %v6024
  %6026 = vdwg.mxu0
  %v6027 = vsel %vm5684, %v6025, 0.0
  %6028 = vadd.xlane.f32.xlu0 %v6027
  %v6029 = vpop.xlane.xlu0 %6028
  %v6030 = vmul.f32 %v6029, %v5694
  %v6031 = vsub.f32 %v6025, %v6030
  %v6032 = vmul.f32 %v6031, %v6031
  %v6033 = vsel %vm5684, %v6032, 0.0
  %6034 = vadd.xlane.f32.xlu0 %v6033
  %v6035 = vpop.xlane.xlu0 %6034
  %v6036 = vmul.f32 %v6035, %v5694
  %v6037 = vadd.f32 %v6036, 1e-05
  %v6038 = vrsqrt.pop %v6037
  %v6039 = vmul.f32 %v6038, %v6037
  %v6040 = vmul.f32 %v6039, %v6038
  %v6041 = vmul.f32 0.5, %v6040
  %v6042 = vsub.f32 1.5, %v6041
  %v6043 = vmul.f32 %v6038, %v6042
  %vm6044 = vweird.f32 %v6037
  %vm6045 = vweird.f32 %v6038
  %vm6046 = vmor %vm6044, %vm6045
  %v6047 = vsel %vm6046, %v6038, %v6043
  %v6048 = vmul.f32 %v6031, %v6047
  %v6049 = vperm.slane %v5650, 1
  %v6050 = vmul.f32 %v6048, %v6049
  %v6051 = vperm.slane %v5650, 2
  %v6052 = vadd.f32 %v6050, %v6051
  %v6053 = vmax.f32 %v6052, 0.0
  %v6054 = vld [vmem:[%s15] sm:$0xff]
  %v6055 = vld [vmem:[%s15 + $0x8] sm:$0xff]
  %6056 = vrot.lane.b32.xlu0 %v5779, 124
  %v6057 = vpop.permute.xlu0 %6056
  %v6060 = vsel %vm63, %v6053, 0
  %6062 = vmatpush.msra.mxu0 0.0
  %6063 = vmatpush.msra.mxu0 0.0
  %6064 = vmatpush.msra.mxu0 0.0
  %6065 = vmatpush.msra.mxu0 0.0
  %6066 = vmatpush.msra.mxu0 0.0
  %6067 = vmatpush.msra.mxu0 0.0
  %6068 = vmatpush.msra.mxu0 0.0
  %6069 = vmatpush.msra.mxu0 0.0
  %6070 = vmatpush.msra.mxu0 0.0
  %6071 = vmatpush.msra.mxu0 0.0
  %6072 = vmatpush.msra.mxu0 0.0
  %6073 = vmatpush.msra.mxu0 0.0
  %6074 = vmatpush.msra.mxu0 0.0
  %6075 = vmatpush.msra.mxu0 0.0
  %6076 = vmatpush.msra.mxu0 %v6055
  %6077 = vmatpush.msra.mxu0 %v6054
  %6078 = vmatmul.f32.gmra.mxu0 %v6060
  %v6079 = vpop.f32.mrf.mxu0
  %v6080 = vadd.f32 %v6057, %v6079
  %6081 = vdwg.mxu0
  %v6082 = vand.u32 2147483647, %v6080
  %6084 = vrot.lane.b32.xlu0 %v5929, 1
  %v6085 = vpop.permute.xlu0 %6084
  %6088 = vrot.lane.b32.xlu0 %v6004, 2
  %v6089 = vpop.permute.xlu0 %6088
  %6092 = vrot.lane.b32.xlu0 %v6082, 4
  %v6093 = vpop.permute.xlu0 %6092
  %vm6095 = vcmask 7168
  %v6096 = vsel %vm6095, %v5802, %v6085
  %vm6097 = vcmask 15360
  %v6098 = vsel %vm6097, %v6096, %v6089
  %v6099 = vsel %vm3740, %v6098, %v6093
  %vm6100 = vcmask 39936
  %v6101 = vsel %vm6100, %v6099, 0.0
  %6102 = vst.msk [vmem:[%s17] sm:$0x3] %vm5743, %v6101
  // Predicated region
  $region70: #{_forward_impl.1} parent=0 // pred_check
    _
  $region71: #{_forward_impl.1} parent=0 // pred_check_branch
    %6104 = sbr.rel (0) target = $region73
  $region72: #{_forward_impl.1} parent=0 // pred_region
    _
  $region73: #{_forward_impl.1} parent=0 // pred_fallthru
    _
  // Predicated region
  $region74: #{_forward_impl.1} parent=0 // pred_check
    _
  $region75: #{_forward_impl.1} parent=0 // pred_check_branch
    %6106 = sbr.rel (0) target = $region77
  $region76: #{_forward_impl.1} parent=0 // pred_region
    _
  $region77: #{_forward_impl.1} parent=0 // pred_fallthru
    _

</llo_original>
